<compile_context>
chip_gen: v5e
topology: v5e:2x2
jax: 0.10.0
libtpu: 0.0.40
codegen_flags: <defaults>
</compile_context>

<pallas_src>
import functools
import math
from collections import namedtuple

import jax
import jax.numpy as jnp
from jax.experimental import pallas as pl
from jax.experimental.pallas import tpu as pltpu

MATMUL_DTYPE = jnp.bfloat16          # MXU operand / activation storage dtype
VMEM_LIMIT = 64 * 1024 * 1024

Config = namedtuple("Config",
                    ["vocab", "d_model", "nhead", "d_ff", "n_enc", "n_dec", "max_len"])


# ------------------------------ tile helpers ------------------------------- #

def _pick_tile(dim, target, align):
    """Largest tile <= target that divides dim and is a multiple of `align`;
    falls back to the full dimension (always a legal block shape)."""
    if dim <= target:
        return dim
    t = (min(target, dim) // align) * align
    while t >= align:
        if dim % t == 0:
            return t
        t -= align
    return dim


# ------------------------------ Pallas kernels ----------------------------- #

def _linear_kernel(*refs, has_bias, has_res, relu):
    """Tiled matmul with fp32 VMEM accumulator; bias / residual / ReLU fused
    into the finalize epilogue.  Ref order: x, w, [bias], [residual], out, acc."""
    x_ref, w_ref = refs[0], refs[1]
    i = 2
    b_ref = None
    r_ref = None
    if has_bias:
        b_ref = refs[i]; i += 1
    if has_res:
        r_ref = refs[i]; i += 1
    o_ref = refs[i]
    acc_ref = refs[i + 1]

    @pl.when(pl.program_id(2) == 0)
    def _init():
        acc_ref[...] = jnp.zeros_like(acc_ref)

    acc_ref[...] += jnp.dot(x_ref[...], w_ref[...],
                            preferred_element_type=jnp.float32)

    @pl.when(pl.program_id(2) == pl.num_programs(2) - 1)
    def _done():
        r = acc_ref[...]
        if has_bias:
            r = r + b_ref[...]
        if has_res:
            r = r + r_ref[...].astype(jnp.float32)
        if relu:
            r = jnp.maximum(r, 0.0)
        o_ref[...] = r.astype(o_ref.dtype)


def _layernorm_kernel(x_ref, g_ref, b_ref, o_ref, *, eps):
    # LayerNorm with fp32 stats (residual add already fused into the matmul).
    z = x_ref[...].astype(jnp.float32)
    mu = jnp.mean(z, axis=-1, keepdims=True)
    var = jnp.mean((z - mu) ** 2, axis=-1, keepdims=True)
    inv = jax.lax.rsqrt(var + eps)
    o_ref[...] = ((z - mu) * inv * g_ref[...] + b_ref[...]).astype(o_ref.dtype)


def _flash_mha_kernel(q_ref, k_ref, v_ref, kpm_ref, o_ref,
                      m_sc, l_sc, acc_sc, *, nhead, scale, causal):
    """Online-softmax attention. Grid = (B, Lq tiles, Lk tiles); the Lk axis is
    'arbitrary' and m/l/acc scratch persists across it.
    q_ref: (1, tq, D)  k_ref/v_ref: (1, tk, D)  kpm_ref: (1, 1, tk) (1.0 = mask)."""
    ki = pl.program_id(2)

    @pl.when(ki == 0)
    def _init():
        m_sc[...] = jnp.full_like(m_sc, -1e30)
        l_sc[...] = jnp.zeros_like(l_sc)
        acc_sc[...] = jnp.zeros_like(acc_sc)

    tq, D = q_ref.shape[1], q_ref.shape[2]
    tk = k_ref.shape[1]
    dh = D // nhead

    # fold 1/sqrt(dh) into Q once (O(Lq*dh) instead of O(Lq*Lk)); bf16 MXU operands
    q = (q_ref[0].astype(jnp.float32) * scale).astype(jnp.bfloat16)   # (tq, D)
    k = k_ref[0].astype(jnp.bfloat16)                                 # (tk, D)
    v = v_ref[0].astype(jnp.bfloat16)                                 # (tk, D)

    bias = kpm_ref[0].astype(jnp.float32) * (-1e9)                    # (1, tk)
    if causal:
        q0 = pl.program_id(1) * tq
        k0 = ki * tk
        rq = q0 + jax.lax.broadcasted_iota(jnp.int32, (tq, tk), 0)
        rk = k0 + jax.lax.broadcasted_iota(jnp.int32, (tq, tk), 1)
        bias = bias + jnp.where(rk > rq, -1e9, 0.0)

    # TODO(synk): for dh >= 128 grid over (B*H) instead of this static head loop.
    for h in range(nhead):
        sl = slice(h * dh, (h + 1) * dh)
        s = jax.lax.dot_general(q[:, sl], k[:, sl], (((1,), (1,)), ((), ())),
                                preferred_element_type=jnp.float32)    # (tq, tk)
        s = s + bias
        m_prev = m_sc[h]                                               # (tq, 1)
        m_new = jnp.maximum(m_prev, jnp.max(s, axis=-1, keepdims=True))
        alpha = jnp.exp(m_prev - m_new)
        p = jnp.exp(s - m_new)
        l_sc[h] = alpha * l_sc[h] + jnp.sum(p, axis=-1, keepdims=True)
        acc_sc[h] = alpha * acc_sc[h] + jnp.dot(p.astype(jnp.bfloat16), v[:, sl],
                                                preferred_element_type=jnp.float32)
        m_sc[h] = m_new

    @pl.when(ki == pl.num_programs(2) - 1)
    def _done():
        outs = []
        for h in range(nhead):
            outs.append(acc_sc[h] * pl.reciprocal(l_sc[h], approx=True))
        # concatenate heads -> one lane-dense (tq, D) store
        o_ref[0] = jnp.concatenate(outs, axis=-1).astype(o_ref.dtype)


# ------------------------------ Pallas wrappers ---------------------------- #

def pallas_linear(x2d, w, b=None, residual=None, relu=False,
                  tm=512, tk=1024, tn=512, out_dtype=MATMUL_DTYPE):
    M, K = x2d.shape
    Kw, N = w.shape
    assert K == Kw
    tm = _pick_tile(M, tm, 16)
    tk = _pick_tile(K, tk, 128)
    tn = _pick_tile(N, tn, 128)
    grid = (M // tm, N // tn, K // tk)

    xs = x2d if x2d.dtype == MATMUL_DTYPE else x2d.astype(MATMUL_DTYPE)
    ws = w if w.dtype == MATMUL_DTYPE else w.astype(MATMUL_DTYPE)

    in_specs = [pl.BlockSpec((tm, tk), lambda i, j, k: (i, k)),
                pl.BlockSpec((tk, tn), lambda i, j, k: (k, j))]
    args = [xs, ws]
    if b is not None:
        in_specs.append(pl.BlockSpec((1, tn), lambda i, j, k: (0, j)))
        args.append(jnp.reshape(b, (1, N)).astype(jnp.float32))
    if residual is not None:
        assert residual.shape == (M, N)
        in_specs.append(pl.BlockSpec((tm, tn), lambda i, j, k: (i, j)))
        args.append(residual)

    kern = functools.partial(_linear_kernel, has_bias=b is not None,
                             has_res=residual is not None, relu=relu)

    return pl.pallas_call(
        kern,
        out_shape=jax.ShapeDtypeStruct((M, N), out_dtype),
        grid=grid,
        in_specs=in_specs,
        out_specs=pl.BlockSpec((tm, tn), lambda i, j, k: (i, j)),
        scratch_shapes=[pltpu.VMEM((tm, tn), jnp.float32)],
        compiler_params=pltpu.CompilerParams(
            dimension_semantics=("parallel", "parallel", "arbitrary"),
            vmem_limit_bytes=VMEM_LIMIT),
    )(*args)


def pallas_layernorm(x2d, gamma, beta, eps=1e-5, tm=256):
    M, D = x2d.shape
    tm = _pick_tile(M, tm, 16)
    g2 = jnp.reshape(gamma, (1, D)).astype(jnp.float32)
    b2 = jnp.reshape(beta, (1, D)).astype(jnp.float32)
    return pl.pallas_call(
        functools.partial(_layernorm_kernel, eps=eps),
        out_shape=jax.ShapeDtypeStruct((M, D), MATMUL_DTYPE),
        grid=(M // tm,),
        in_specs=[pl.BlockSpec((tm, D), lambda i: (i, 0)),
                  pl.BlockSpec((1, D), lambda i: (0, 0)),
                  pl.BlockSpec((1, D), lambda i: (0, 0))],
        out_specs=pl.BlockSpec((tm, D), lambda i: (i, 0)),
        compiler_params=pltpu.CompilerParams(
            dimension_semantics=("parallel",),
            vmem_limit_bytes=VMEM_LIMIT),
    )(x2d, g2, b2)


def pallas_mha(q_arr, q_off, k_arr, k_off, v_arr, v_off, D, nhead, causal, kpm_f):
    """q_arr: (B, Lq, nq*D), k_arr/v_arr: (B, Lk, nk*D) packed along the last axis;
    *_off selects the D-wide slab via the BlockSpec index_map (no XLA slice copy).
    kpm_f: (B, 1, Lk) float, 1.0 = masked key."""
    B, Lq = q_arr.shape[0], q_arr.shape[1]
    Lk = k_arr.shape[1]

    if D % 128 != 0:
        # fallback for lane-unaligned D: slice the packed tensors in XLA
        def _unpack(a, off):
            if a.shape[-1] == D:
                return a, 0
            return jax.lax.slice_in_dim(a, off * D, (off + 1) * D, axis=2), 0
        q_arr, q_off = _unpack(q_arr, q_off)
        k_arr, k_off = _unpack(k_arr, k_off)
        v_arr, v_off = _unpack(v_arr, v_off)

    tq = _pick_tile(Lq, 256, 16)
    tk = _pick_tile(Lk, 512, 128)
    dh = D // nhead
    scale = 1.0 / math.sqrt(dh)

    return pl.pallas_call(
        functools.partial(_flash_mha_kernel, nhead=nhead, scale=scale, causal=causal),
        out_shape=jax.ShapeDtypeStruct((B, Lq, D), MATMUL_DTYPE),
        grid=(B, Lq // tq, Lk // tk),
        in_specs=[
            pl.BlockSpec((1, tq, D), lambda b, qi, ki, o=q_off: (b, qi, o)),
            pl.BlockSpec((1, tk, D), lambda b, qi, ki, o=k_off: (b, ki, o)),
            pl.BlockSpec((1, tk, D), lambda b, qi, ki, o=v_off: (b, ki, o)),
            pl.BlockSpec((1, 1, tk), lambda b, qi, ki: (b, 0, ki)),
        ],
        out_specs=pl.BlockSpec((1, tq, D), lambda b, qi, ki: (b, qi, 0)),
        scratch_shapes=[pltpu.VMEM((nhead, tq, 1), jnp.float32),
                        pltpu.VMEM((nhead, tq, 1), jnp.float32),
                        pltpu.VMEM((nhead, tq, dh), jnp.float32)],
        compiler_params=pltpu.CompilerParams(
            dimension_semantics=("parallel", "parallel", "arbitrary"),
            vmem_limit_bytes=VMEM_LIMIT),
    )(q_arr, k_arr, v_arr, kpm_f)


# --------------------------- transformer building --------------------------- #

def self_attention_block(x2d, B, L, D, p, nhead, causal, kpm_f):
    qkv = pallas_linear(x2d, p['w_qkv'], p['b_qkv'])           # (B*L, 3D) bf16
    qkv3 = qkv.reshape(B, L, 3 * D)                            # view (batch-major)
    attn = pallas_mha(qkv3, 0, qkv3, 1, qkv3, 2, D, nhead, causal, kpm_f)
    # output projection: bias + residual folded into the matmul epilogue
    return pallas_linear(attn.reshape(B * L, D), p['wo'], p['bo'], residual=x2d)


def cross_attention_block(y2d, B, Lt, mem2d, Ls, D, p, nhead, kpm_f):
    q = pallas_linear(y2d, p['w_q'], p['b_q']).reshape(B, Lt, D)
    kv = pallas_linear(mem2d, p['w_kv'], p['b_kv']).reshape(B, Ls, 2 * D)
    attn = pallas_mha(q, 0, kv, 0, kv, 1, D, nhead, False, kpm_f)
    return pallas_linear(attn.reshape(B * Lt, D), p['wo'], p['bo'], residual=y2d)


def encoder_layer(x2d, B, L, D, p, nhead, src_kpm_f):
    # post-norm (PyTorch default), ReLU FFN, dropout=0 (eval)
    sa = self_attention_block(x2d, B, L, D, p['self_attn'], nhead, False, src_kpm_f)
    x2d = pallas_layernorm(sa, p['ln1_g'], p['ln1_b'])
    h = pallas_linear(x2d, p['ff_w1'], p['ff_b1'], relu=True)
    f = pallas_linear(h, p['ff_w2'], p['ff_b2'], residual=x2d)
    return pallas_layernorm(f, p['ln2_g'], p['ln2_b'])


def decoder_layer(y2d, B, Lt, mem2d, Ls, D, p, nhead, tgt_kpm_f, mem_kpm_f):
    sa = self_attention_block(y2d, B, Lt, D, p['self_attn'], nhead, True, tgt_kpm_f)
    y2d = pallas_layernorm(sa, p['ln1_g'], p['ln1_b'])
    ca = cross_attention_block(y2d, B, Lt, mem2d, Ls, D, p['cross_attn'], nhead, mem_kpm_f)
    y2d = pallas_layernorm(ca, p['ln2_g'], p['ln2_b'])
    h = pallas_linear(y2d, p['ff_w1'], p['ff_b1'], relu=True)
    f = pallas_linear(h, p['ff_w2'], p['ff_b2'], residual=y2d)
    return pallas_layernorm(f, p['ln3_g'], p['ln3_b'])


def sinusoidal_pe(max_len, d_model):
    pos = jnp.arange(max_len, dtype=jnp.float32)[:, None]
    div = jnp.exp(jnp.arange(0, d_model, 2, dtype=jnp.float32)
                  * (-math.log(10000.0) / d_model))
    pe = jnp.zeros((max_len, d_model), jnp.float32)
    pe = pe.at[:, 0::2].set(jnp.sin(pos * div))
    pe = pe.at[:, 1::2].set(jnp.cos(pos * div))
    return pe


# -------------------------------- parameters -------------------------------- #

def _init_self_attn(key, d):
    k1, k2 = jax.random.split(key)
    std = 0.02
    return {'w_qkv': (std * jax.random.normal(k1, (d, 3 * d), jnp.float32)).astype(MATMUL_DTYPE),
            'b_qkv': jnp.zeros((3 * d,), jnp.float32),
            'wo': (std * jax.random.normal(k2, (d, d), jnp.float32)).astype(MATMUL_DTYPE),
            'bo': jnp.zeros((d,), jnp.float32)}


def _init_cross_attn(key, d):
    k1, k2, k3 = jax.random.split(key, 3)
    std = 0.02
    return {'w_q': (std * jax.random.normal(k1, (d, d), jnp.float32)).astype(MATMUL_DTYPE),
            'b_q': jnp.zeros((d,), jnp.float32),
            'w_kv': (std * jax.random.normal(k2, (d, 2 * d), jnp.float32)).astype(MATMUL_DTYPE),
            'b_kv': jnp.zeros((2 * d,), jnp.float32),
            'wo': (std * jax.random.normal(k3, (d, d), jnp.float32)).astype(MATMUL_DTYPE),
            'bo': jnp.zeros((d,), jnp.float32)}


def _init_enc_layer(key, d, d_ff):
    k1, k2, k3 = jax.random.split(key, 3)
    std = 0.02
    return {'self_attn': _init_self_attn(k1, d),
            'ff_w1': (std * jax.random.normal(k2, (d, d_ff), jnp.float32)).astype(MATMUL_DTYPE),
            'ff_b1': jnp.zeros((d_ff,), jnp.float32),
            'ff_w2': (std * jax.random.normal(k3, (d_ff, d), jnp.float32)).astype(MATMUL_DTYPE),
            'ff_b2': jnp.zeros((d,), jnp.float32),
            'ln1_g': jnp.ones((d,), jnp.float32), 'ln1_b': jnp.zeros((d,), jnp.float32),
            'ln2_g': jnp.ones((d,), jnp.float32), 'ln2_b': jnp.zeros((d,), jnp.float32)}


def _init_dec_layer(key, d, d_ff):
    k1, k2, k3, k4 = jax.random.split(key, 4)
    std = 0.02
    return {'self_attn': _init_self_attn(k1, d),
            'cross_attn': _init_cross_attn(k2, d),
            'ff_w1': (std * jax.random.normal(k3, (d, d_ff), jnp.float32)).astype(MATMUL_DTYPE),
            'ff_b1': jnp.zeros((d_ff,), jnp.float32),
            'ff_w2': (std * jax.random.normal(k4, (d_ff, d), jnp.float32)).astype(MATMUL_DTYPE),
            'ff_b2': jnp.zeros((d,), jnp.float32),
            'ln1_g': jnp.ones((d,), jnp.float32), 'ln1_b': jnp.zeros((d,), jnp.float32),
            'ln2_g': jnp.ones((d,), jnp.float32), 'ln2_b': jnp.zeros((d,), jnp.float32),
            'ln3_g': jnp.ones((d,), jnp.float32), 'ln3_b': jnp.zeros((d,), jnp.float32)}


def init_params(key, cfg: Config):
    keys = jax.random.split(key, cfg.n_enc + cfg.n_dec + 2)
    # tied embedding / lm_head weight, uniform(-0.1, 0.1) as in init_weights()
    emb = jax.random.uniform(keys[0], (cfg.vocab, cfg.d_model), jnp.float32, -0.1, 0.1)
    return {
        'embedding': emb,                                    # f32 for the gather
        'lm_head_wT': emb.T.astype(MATMUL_DTYPE),            # tie_weights(): transposed + bf16 once
        'pe': sinusoidal_pe(cfg.max_len, cfg.d_model),
        'dense_w': (0.02 * jax.random.normal(keys[1], (cfg.d_model, cfg.d_model),
                                             jnp.float32)).astype(MATMUL_DTYPE),
        'dense_b': jnp.zeros((cfg.d_model,), jnp.float32),
        'enc_layers': [_init_enc_layer(keys[2 + i], cfg.d_model, cfg.d_ff)
                       for i in range(cfg.n_enc)],
        'dec_layers': [_init_dec_layer(keys[2 + cfg.n_enc + i], cfg.d_model, cfg.d_ff)
                       for i in range(cfg.n_dec)],
    }


# ---------------------------------- forward ---------------------------------- #

def _kpm_input(kpm, B, Lk):
    if kpm is None:
        return jnp.zeros((B, 1, Lk), jnp.float32)
    return kpm.astype(jnp.float32).reshape(B, 1, Lk)


@functools.partial(jax.jit, static_argnums=(0,))
def forward(cfg: Config, params, src, tgt, src_padding_mask, tgt_padding_mask,
            memory_key_padding_mask):
    D, nhead, V = cfg.d_model, cfg.nhead, cfg.vocab
    emb = params['embedding']
    B, Ls = src.shape
    _, Lt = tgt.shape

    # create_mask(): src_mask = zeros (no causal), tgt_mask = causal (built in-kernel)
    src_kpm_f = _kpm_input(src_padding_mask, B, Ls)
    tgt_kpm_f = _kpm_input(tgt_padding_mask, B, Lt)
    mem_kpm_f = _kpm_input(memory_key_padding_mask, B, Ls)

    # ----- encoder: embed -> scale -> positional -> batch-major rows -> N layers -----
    x = (emb[src] * math.sqrt(D) + params['pe'][:Ls][None]).astype(MATMUL_DTYPE)
    x2d = x.reshape(B * Ls, D)                                 # (B*Ls, D), batch-major
    for lyr in params['enc_layers']:
        x2d = encoder_layer(x2d, B, Ls, D, lyr, nhead, src_kpm_f)
    mem2d = x2d

    # ----- decoder -----
    y = (emb[tgt] * math.sqrt(D) + params['pe'][:Lt][None]).astype(MATMUL_DTYPE)
    y2d = y.reshape(B * Lt, D)
    for lyr in params['dec_layers']:
        y2d = decoder_layer(y2d, B, Lt, mem2d, Ls, D, lyr, nhead,
                            tgt_kpm_f, mem_kpm_f)

    # ----- head: h = relu(dense(output)); logits = lm_head(h) (batch-major already) -----
    h2d = pallas_linear(y2d, params['dense_w'], params['dense_b'], relu=True)
    logits2d = pallas_linear(h2d, params['lm_head_wT'], None, out_dtype=jnp.float32)
    return logits2d.reshape(B, Lt, V)                          # (B, Lt, V), no transpose


# ------------------------------------ main ------------------------------------ #

if __name__ == "__main__":
    B = 2
    SRC_LEN = 8
    TGT_LEN = 8
    D_MODEL = 128          # lane-aligned: packed QKV/KV read in-place via BlockSpec offsets
    NHEAD = 4
    D_FF = 256
    VOCAB = 256
    N_ENC = 2
    N_DEC = 2

    cfg = Config(vocab=VOCAB, d_model=D_MODEL, nhead=NHEAD, d_ff=D_FF,
                 n_enc=N_ENC, n_dec=N_DEC, max_len=64)

    root = jax.random.PRNGKey(0)
    k_params, k_src, k_tgt = jax.random.split(root, 3)

    params = init_params(k_params, cfg)

    src = jax.random.randint(k_src, (B, SRC_LEN), 0, VOCAB, dtype=jnp.int32)
    tgt = jax.random.randint(k_tgt, (B, TGT_LEN), 0, VOCAB, dtype=jnp.int32)
    src_padding_mask = jnp.zeros((B, SRC_LEN), dtype=bool)      # no padded tokens
    tgt_padding_mask = jnp.zeros((B, TGT_LEN), dtype=bool)
    memory_key_padding_mask = jnp.zeros((B, SRC_LEN), dtype=bool)

    logits = forward(cfg, params, src, tgt, src_padding_mask, tgt_padding_mask,
                     memory_key_padding_mask)
    logits = jax.block_until_ready(logits)

    assert logits.shape == (B, TGT_LEN, VOCAB), logits.shape
    assert bool(jnp.all(jnp.isfinite(logits)))
    print("KERNEL_OK")
</pallas_src>

<mosaic_0001>
module attributes {stable_mosaic.version = 11 : i64} {
  func.func @_layernorm_kernel(%arg0: i32, %arg1: memref<16x128xbf16, #tpu.memory_space<vmem>>, %arg2: memref<1x128xf32, #tpu.memory_space<vmem>>, %arg3: memref<1x128xf32, #tpu.memory_space<vmem>>, %arg4: memref<16x128xbf16, #tpu.memory_space<vmem>>) attributes {dimension_semantics = [#tpu.dimension_semantics<parallel>], iteration_bounds = array<i64: 1>, scalar_prefetch = 0 : i64, scratch_operands = 0 : i64, tpu.core_type = #tpu.core_type<tc>, window_params = [{transform_indices = @transform_0, window_bounds = array<i64: 16, 128>}, {pipeline_mode = #tpu.pipeline_mode<synchronous>, transform_indices = @transform_1, window_bounds = array<i64: 1, 128>}, {pipeline_mode = #tpu.pipeline_mode<synchronous>, transform_indices = @transform_2, window_bounds = array<i64: 1, 128>}, {transform_indices = @transform_3, window_bounds = array<i64: 16, 128>}]} {
    %c0 = arith.constant 0 : index
    %c0_0 = arith.constant 0 : index
    %0 = vector.load %arg1[%c0, %c0_0] : memref<16x128xbf16, #tpu.memory_space<vmem>>, vector<16x128xbf16>
    %1 = arith.extf %0 : vector<16x128xbf16> to vector<16x128xf32>
    %cst = arith.constant dense<0.000000e+00> : vector<16xf32>
    %2 = vector.multi_reduction <add>, %1, %cst [1] : vector<16x128xf32> to vector<16xf32>
    %3 = vector.shape_cast %2 : vector<16xf32> to vector<16x1xf32>
    %cst_1 = arith.constant 1.280000e+02 : f32
    %4 = vector.broadcast %cst_1 : f32 to vector<16x1xf32>
    %5 = arith.divf %3, %4 : vector<16x1xf32>
    %6 = vector.broadcast %5 : vector<16x1xf32> to vector<16x128xf32>
    %7 = arith.subf %1, %6 : vector<16x128xf32>
    %8 = arith.mulf %7, %7 : vector<16x128xf32>
    %cst_2 = arith.constant dense<0.000000e+00> : vector<16xf32>
    %9 = vector.multi_reduction <add>, %8, %cst_2 [1] : vector<16x128xf32> to vector<16xf32>
    %10 = vector.shape_cast %9 : vector<16xf32> to vector<16x1xf32>
    %cst_3 = arith.constant 1.280000e+02 : f32
    %11 = vector.broadcast %cst_3 : f32 to vector<16x1xf32>
    %12 = arith.divf %10, %11 : vector<16x1xf32>
    %cst_4 = arith.constant 9.99999974E-6 : f32
    %13 = vector.broadcast %cst_4 : f32 to vector<16x1xf32>
    %14 = arith.addf %12, %13 : vector<16x1xf32>
    %15 = math.rsqrt %14 : vector<16x1xf32>
    %16 = vector.broadcast %5 : vector<16x1xf32> to vector<16x128xf32>
    %17 = arith.subf %1, %16 : vector<16x128xf32>
    %18 = vector.broadcast %15 : vector<16x1xf32> to vector<16x128xf32>
    %19 = arith.mulf %17, %18 : vector<16x128xf32>
    %c0_5 = arith.constant 0 : index
    %c0_6 = arith.constant 0 : index
    %20 = vector.load %arg2[%c0_5, %c0_6] : memref<1x128xf32, #tpu.memory_space<vmem>>, vector<1x128xf32>
    %21 = vector.broadcast %20 : vector<1x128xf32> to vector<16x128xf32>
    %22 = arith.mulf %19, %21 : vector<16x128xf32>
    %c0_7 = arith.constant 0 : index
    %c0_8 = arith.constant 0 : index
    %23 = vector.load %arg3[%c0_7, %c0_8] : memref<1x128xf32, #tpu.memory_space<vmem>>, vector<1x128xf32>
    %24 = vector.broadcast %23 : vector<1x128xf32> to vector<16x128xf32>
    %25 = arith.addf %22, %24 : vector<16x128xf32>
    %26 = arith.truncf %25 : vector<16x128xf32> to vector<16x128xbf16>
    %c0_9 = arith.constant 0 : index
    %c0_10 = arith.constant 0 : index
    %27 = vector.load %arg4[%c0_9, %c0_10] : memref<16x128xbf16, #tpu.memory_space<vmem>>, vector<16x128xbf16>
    tpu.vector_store %arg4[%c0_9, %c0_10], %26 {strides = array<i32>} : memref<16x128xbf16, #tpu.memory_space<vmem>>, vector<16x128xbf16>,
    return
  }
  func.func @transform_0(%arg0: i32) -> (i32, i32) {
    %c0_i32 = arith.constant 0 : i32
    %c0_i32_0 = arith.constant 0 : i32
    return %arg0, %c0_i32 : i32, i32
  }
  func.func @transform_1(%arg0: i32) -> (i32, i32) {
    %c0_i32 = arith.constant 0 : i32
    %c0_i32_0 = arith.constant 0 : i32
    %c0_i32_1 = arith.constant 0 : i32
    return %c0_i32, %c0_i32_0 : i32, i32
  }
  func.func @transform_2(%arg0: i32) -> (i32, i32) {
    %c0_i32 = arith.constant 0 : i32
    %c0_i32_0 = arith.constant 0 : i32
    %c0_i32_1 = arith.constant 0 : i32
    return %c0_i32, %c0_i32_0 : i32, i32
  }
  func.func @transform_3(%arg0: i32) -> (i32, i32) {
    %c0_i32 = arith.constant 0 : i32
    %c0_i32_0 = arith.constant 0 : i32
    return %arg0, %c0_i32 : i32, i32
  }
}

module attributes {stable_mosaic.version = 11 : i64} {
  func.func @_linear_kernel(%arg0: i32, %arg1: i32, %arg2: i32, %arg3: memref<16x128xbf16, #tpu.memory_space<vmem>>, %arg4: memref<128x384xbf16, #tpu.memory_space<vmem>>, %arg5: memref<1x384xf32, #tpu.memory_space<vmem>>, %arg6: memref<16x384xbf16, #tpu.memory_space<vmem>>, %arg7: memref<16x384xf32, #tpu.memory_space<vmem>>) attributes {dimension_semantics = [#tpu.dimension_semantics<parallel>, #tpu.dimension_semantics<parallel>, #tpu.dimension_semantics<arbitrary>], iteration_bounds = array<i64: 1, 1, 1>, scalar_prefetch = 0 : i64, scratch_operands = 1 : i64, tpu.core_type = #tpu.core_type<tc>, window_params = [{transform_indices = @transform_0, window_bounds = array<i64: 16, 128>}, {transform_indices = @transform_1, window_bounds = array<i64: 128, 384>}, {transform_indices = @transform_2, window_bounds = array<i64: 1, 384>}, {transform_indices = @transform_3, window_bounds = array<i64: 16, 384>}]} {
    %c0_i32 = arith.constant 0 : i32
    %0 = arith.cmpi eq, %arg2, %c0_i32 : i32
    %1 = arith.extui %0 : i1 to i32
    %c0_i32_0 = arith.constant 0 : i32
    %2 = arith.cmpi ne, %1, %c0_i32_0 : i32
    scf.if %2 {
      %cst_10 = arith.constant 0.000000e+00 : f32
      %12 = vector.broadcast %cst_10 : f32 to vector<16x384xf32>
      %c0_11 = arith.constant 0 : index
      %c0_12 = arith.constant 0 : index
      %13 = vector.load %arg7[%c0_11, %c0_12] : memref<16x384xf32, #tpu.memory_space<vmem>>, vector<16x384xf32>
      tpu.vector_store %arg7[%c0_11, %c0_12], %12 {strides = array<i32>} : memref<16x384xf32, #tpu.memory_space<vmem>>, vector<16x384xf32>,
    } else {
    }
    %c0 = arith.constant 0 : index
    %c0_1 = arith.constant 0 : index
    %3 = vector.load %arg7[%c0, %c0_1] : memref<16x384xf32, #tpu.memory_space<vmem>>, vector<16x384xf32>
    %c0_2 = arith.constant 0 : index
    %c0_3 = arith.constant 0 : index
    %4 = vector.load %arg3[%c0_2, %c0_3] : memref<16x128xbf16, #tpu.memory_space<vmem>>, vector<16x128xbf16>
    %c0_4 = arith.constant 0 : index
    %c0_5 = arith.constant 0 : index
    %5 = vector.load %arg4[%c0_4, %c0_5] : memref<128x384xbf16, #tpu.memory_space<vmem>>, vector<128x384xbf16>
    %cst = arith.constant dense<0.000000e+00> : vector<16x384xf32>
    %6 = tpu.matmul %4, %5, %cst {dimension_numbers = #tpu.dot_dimension_numbers<[1], [0], [0], [1], [0, 0, 1, 1], [], []>} : vector<16x128xbf16>, vector<128x384xbf16>, vector<16x384xf32> -> vector<16x384xf32>
    %7 = arith.addf %3, %6 : vector<16x384xf32>
    %c0_6 = arith.constant 0 : index
    %c0_7 = arith.constant 0 : index
    %8 = vector.load %arg7[%c0_6, %c0_7] : memref<16x384xf32, #tpu.memory_space<vmem>>, vector<16x384xf32>
    tpu.vector_store %arg7[%c0_6, %c0_7], %7 {strides = array<i32>} : memref<16x384xf32, #tpu.memory_space<vmem>>, vector<16x384xf32>,
    %c0_i32_8 = arith.constant 0 : i32
    %9 = arith.cmpi eq, %arg2, %c0_i32_8 : i32
    %10 = arith.extui %9 : i1 to i32
    %c0_i32_9 = arith.constant 0 : i32
    %11 = arith.cmpi ne, %10, %c0_i32_9 : i32
    scf.if %11 {
      %c0_10 = arith.constant 0 : index
      %c0_11 = arith.constant 0 : index
      %12 = vector.load %arg7[%c0_10, %c0_11] : memref<16x384xf32, #tpu.memory_space<vmem>>, vector<16x384xf32>
      %c0_12 = arith.constant 0 : index
      %c0_13 = arith.constant 0 : index
      %13 = vector.load %arg5[%c0_12, %c0_13] : memref<1x384xf32, #tpu.memory_space<vmem>>, vector<1x384xf32>
      %14 = vector.broadcast %13 : vector<1x384xf32> to vector<16x384xf32>
      %15 = arith.addf %12, %14 : vector<16x384xf32>
      %16 = arith.truncf %15 : vector<16x384xf32> to vector<16x384xbf16>
      %c0_14 = arith.constant 0 : index
      %c0_15 = arith.constant 0 : index
      %17 = vector.load %arg6[%c0_14, %c0_15] : memref<16x384xbf16, #tpu.memory_space<vmem>>, vector<16x384xbf16>
      tpu.vector_store %arg6[%c0_14, %c0_15], %16 {strides = array<i32>} : memref<16x384xbf16, #tpu.memory_space<vmem>>, vector<16x384xbf16>,
    } else {
    }
    return
  }
  func.func @transform_0(%arg0: i32, %arg1: i32, %arg2: i32) -> (i32, i32) {
    %c0_i32 = arith.constant 0 : i32
    return %arg0, %arg2 : i32, i32
  }
  func.func @transform_1(%arg0: i32, %arg1: i32, %arg2: i32) -> (i32, i32) {
    %c0_i32 = arith.constant 0 : i32
    return %arg2, %arg1 : i32, i32
  }
  func.func @transform_2(%arg0: i32, %arg1: i32, %arg2: i32) -> (i32, i32) {
    %c0_i32 = arith.constant 0 : i32
    %c0_i32_0 = arith.constant 0 : i32
    return %c0_i32, %arg1 : i32, i32
  }
  func.func @transform_3(%arg0: i32, %arg1: i32, %arg2: i32) -> (i32, i32) {
    %c0_i32 = arith.constant 0 : i32
    return %arg0, %arg1 : i32, i32
  }
}

module attributes {stable_mosaic.version = 11 : i64} {
  func.func @_linear_kernel(%arg0: i32, %arg1: i32, %arg2: i32, %arg3: memref<16x128xbf16, #tpu.memory_space<vmem>>, %arg4: memref<128x128xbf16, #tpu.memory_space<vmem>>, %arg5: memref<1x128xf32, #tpu.memory_space<vmem>>, %arg6: memref<16x128xbf16, #tpu.memory_space<vmem>>, %arg7: memref<16x128xbf16, #tpu.memory_space<vmem>>, %arg8: memref<16x128xf32, #tpu.memory_space<vmem>>) attributes {dimension_semantics = [#tpu.dimension_semantics<parallel>, #tpu.dimension_semantics<parallel>, #tpu.dimension_semantics<arbitrary>], iteration_bounds = array<i64: 1, 1, 1>, scalar_prefetch = 0 : i64, scratch_operands = 1 : i64, tpu.core_type = #tpu.core_type<tc>, window_params = [{transform_indices = @transform_0, window_bounds = array<i64: 16, 128>}, {transform_indices = @transform_1, window_bounds = array<i64: 128, 128>}, {transform_indices = @transform_2, window_bounds = array<i64: 1, 128>}, {transform_indices = @transform_3, window_bounds = array<i64: 16, 128>}, {transform_indices = @transform_4, window_bounds = array<i64: 16, 128>}]} {
    %c0_i32 = arith.constant 0 : i32
    %0 = arith.cmpi eq, %arg2, %c0_i32 : i32
    %1 = arith.extui %0 : i1 to i32
    %c0_i32_0 = arith.constant 0 : i32
    %2 = arith.cmpi ne, %1, %c0_i32_0 : i32
    scf.if %2 {
      %cst_10 = arith.constant 0.000000e+00 : f32
      %12 = vector.broadcast %cst_10 : f32 to vector<16x128xf32>
      %c0_11 = arith.constant 0 : index
      %c0_12 = arith.constant 0 : index
      %13 = vector.load %arg8[%c0_11, %c0_12] : memref<16x128xf32, #tpu.memory_space<vmem>>, vector<16x128xf32>
      tpu.vector_store %arg8[%c0_11, %c0_12], %12 {strides = array<i32>} : memref<16x128xf32, #tpu.memory_space<vmem>>, vector<16x128xf32>,
    } else {
    }
    %c0 = arith.constant 0 : index
    %c0_1 = arith.constant 0 : index
    %3 = vector.load %arg8[%c0, %c0_1] : memref<16x128xf32, #tpu.memory_space<vmem>>, vector<16x128xf32>
    %c0_2 = arith.constant 0 : index
    %c0_3 = arith.constant 0 : index
    %4 = vector.load %arg3[%c0_2, %c0_3] : memref<16x128xbf16, #tpu.memory_space<vmem>>, vector<16x128xbf16>
    %c0_4 = arith.constant 0 : index
    %c0_5 = arith.constant 0 : index
    %5 = vector.load %arg4[%c0_4, %c0_5] : memref<128x128xbf16, #tpu.memory_space<vmem>>, vector<128x128xbf16>
    %cst = arith.constant dense<0.000000e+00> : vector<16x128xf32>
    %6 = tpu.matmul %4, %5, %cst {dimension_numbers = #tpu.dot_dimension_numbers<[1], [0], [0], [1], [0, 0, 1, 1], [], []>} : vector<16x128xbf16>, vector<128x128xbf16>, vector<16x128xf32> -> vector<16x128xf32>
    %7 = arith.addf %3, %6 : vector<16x128xf32>
    %c0_6 = arith.constant 0 : index
    %c0_7 = arith.constant 0 : index
    %8 = vector.load %arg8[%c0_6, %c0_7] : memref<16x128xf32, #tpu.memory_space<vmem>>, vector<16x128xf32>
    tpu.vector_store %arg8[%c0_6, %c0_7], %7 {strides = array<i32>} : memref<16x128xf32, #tpu.memory_space<vmem>>, vector<16x128xf32>,
    %c0_i32_8 = arith.constant 0 : i32
    %9 = arith.cmpi eq, %arg2, %c0_i32_8 : i32
    %10 = arith.extui %9 : i1 to i32
    %c0_i32_9 = arith.constant 0 : i32
    %11 = arith.cmpi ne, %10, %c0_i32_9 : i32
    scf.if %11 {
      %c0_10 = arith.constant 0 : index
      %c0_11 = arith.constant 0 : index
      %12 = vector.load %arg8[%c0_10, %c0_11] : memref<16x128xf32, #tpu.memory_space<vmem>>, vector<16x128xf32>
      %c0_12 = arith.constant 0 : index
      %c0_13 = arith.constant 0 : index
      %13 = vector.load %arg5[%c0_12, %c0_13] : memref<1x128xf32, #tpu.memory_space<vmem>>, vector<1x128xf32>
      %14 = vector.broadcast %13 : vector<1x128xf32> to vector<16x128xf32>
      %15 = arith.addf %12, %14 : vector<16x128xf32>
      %c0_14 = arith.constant 0 : index
      %c0_15 = arith.constant 0 : index
      %16 = vector.load %arg6[%c0_14, %c0_15] : memref<16x128xbf16, #tpu.memory_space<vmem>>, vector<16x128xbf16>
      %17 = arith.extf %16 : vector<16x128xbf16> to vector<16x128xf32>
      %18 = arith.addf %15, %17 : vector<16x128xf32>
      %19 = arith.truncf %18 : vector<16x128xf32> to vector<16x128xbf16>
      %c0_16 = arith.constant 0 : index
      %c0_17 = arith.constant 0 : index
      %20 = vector.load %arg7[%c0_16, %c0_17] : memref<16x128xbf16, #tpu.memory_space<vmem>>, vector<16x128xbf16>
      tpu.vector_store %arg7[%c0_16, %c0_17], %19 {strides = array<i32>} : memref<16x128xbf16, #tpu.memory_space<vmem>>, vector<16x128xbf16>,
    } else {
    }
    return
  }
  func.func @transform_0(%arg0: i32, %arg1: i32, %arg2: i32) -> (i32, i32) {
    %c0_i32 = arith.constant 0 : i32
    return %arg0, %arg2 : i32, i32
  }
  func.func @transform_1(%arg0: i32, %arg1: i32, %arg2: i32) -> (i32, i32) {
    %c0_i32 = arith.constant 0 : i32
    return %arg2, %arg1 : i32, i32
  }
  func.func @transform_2(%arg0: i32, %arg1: i32, %arg2: i32) -> (i32, i32) {
    %c0_i32 = arith.constant 0 : i32
    %c0_i32_0 = arith.constant 0 : i32
    return %c0_i32, %arg1 : i32, i32
  }
  func.func @transform_3(%arg0: i32, %arg1: i32, %arg2: i32) -> (i32, i32) {
    %c0_i32 = arith.constant 0 : i32
    return %arg0, %arg1 : i32, i32
  }
  func.func @transform_4(%arg0: i32, %arg1: i32, %arg2: i32) -> (i32, i32) {
    %c0_i32 = arith.constant 0 : i32
    return %arg0, %arg1 : i32, i32
  }
}

module attributes {stable_mosaic.version = 11 : i64} {
  func.func @_flash_mha_kernel(%arg0: i32, %arg1: i32, %arg2: i32, %arg3: memref<1x8x128xbf16, #tpu.memory_space<vmem>>, %arg4: memref<1x8x128xbf16, #tpu.memory_space<vmem>>, %arg5: memref<1x8x128xbf16, #tpu.memory_space<vmem>>, %arg6: memref<1x1x8xf32, #tpu.memory_space<vmem>>, %arg7: memref<1x8x128xbf16, #tpu.memory_space<vmem>>, %arg8: memref<4x8x1xf32, #tpu.memory_space<vmem>>, %arg9: memref<4x8x1xf32, #tpu.memory_space<vmem>>, %arg10: memref<4x8x32xf32, #tpu.memory_space<vmem>>) attributes {dimension_semantics = [#tpu.dimension_semantics<parallel>, #tpu.dimension_semantics<parallel>, #tpu.dimension_semantics<arbitrary>], iteration_bounds = array<i64: 2, 1, 1>, scalar_prefetch = 0 : i64, scratch_operands = 3 : i64, tpu.core_type = #tpu.core_type<tc>, window_params = [{transform_indices = @transform_0, window_bounds = array<i64: 1, 8, 128>}, {transform_indices = @transform_1, window_bounds = array<i64: 1, 8, 128>}, {transform_indices = @transform_2, window_bounds = array<i64: 1, 8, 128>}, {transform_indices = @transform_3, window_bounds = array<i64: 1, 1, 8>}, {transform_indices = @transform_4, window_bounds = array<i64: 1, 8, 128>}]} {
    %c0_i32 = arith.constant 0 : i32
    %0 = arith.cmpi eq, %arg2, %c0_i32 : i32
    %1 = arith.extui %0 : i1 to i32
    %c0_i32_0 = arith.constant 0 : i32
    %2 = arith.cmpi ne, %1, %c0_i32_0 : i32
    scf.if %2 {
      %cst_103 = arith.constant -1.000000e+30 : f32
      %182 = vector.broadcast %cst_103 : f32 to vector<4x8x1xf32>
      %c0_104 = arith.constant 0 : index
      %c0_105 = arith.constant 0 : index
      %c0_106 = arith.constant 0 : index
      %183 = vector.load %arg8[%c0_104, %c0_105, %c0_106] : memref<4x8x1xf32, #tpu.memory_space<vmem>>, vector<4x8x1xf32>
      tpu.vector_store %arg8[%c0_104, %c0_105, %c0_106], %182 {strides = array<i32>} : memref<4x8x1xf32, #tpu.memory_space<vmem>>, vector<4x8x1xf32>,
      %cst_107 = arith.constant 0.000000e+00 : f32
      %184 = vector.broadcast %cst_107 : f32 to vector<4x8x1xf32>
      %c0_108 = arith.constant 0 : index
      %c0_109 = arith.constant 0 : index
      %c0_110 = arith.constant 0 : index
      %185 = vector.load %arg9[%c0_108, %c0_109, %c0_110] : memref<4x8x1xf32, #tpu.memory_space<vmem>>, vector<4x8x1xf32>
      tpu.vector_store %arg9[%c0_108, %c0_109, %c0_110], %184 {strides = array<i32>} : memref<4x8x1xf32, #tpu.memory_space<vmem>>, vector<4x8x1xf32>,
      %cst_111 = arith.constant 0.000000e+00 : f32
      %186 = vector.broadcast %cst_111 : f32 to vector<4x8x32xf32>
      %c0_112 = arith.constant 0 : index
      %c0_113 = arith.constant 0 : index
      %c0_114 = arith.constant 0 : index
      %187 = vector.load %arg10[%c0_112, %c0_113, %c0_114] : memref<4x8x32xf32, #tpu.memory_space<vmem>>, vector<4x8x32xf32>
      tpu.vector_store %arg10[%c0_112, %c0_113, %c0_114], %186 {strides = array<i32>} : memref<4x8x32xf32, #tpu.memory_space<vmem>>, vector<4x8x32xf32>,
    } else {
    }
    %c0 = arith.constant 0 : index
    %c0_1 = arith.constant 0 : index
    %c0_2 = arith.constant 0 : index
    %3 = vector.load %arg3[%c0, %c0_1, %c0_2] : memref<1x8x128xbf16, #tpu.memory_space<vmem>>, vector<1x8x128xbf16>
    %4 = vector.shape_cast %3 : vector<1x8x128xbf16> to vector<8x128xbf16>
    %5 = arith.extf %4 : vector<8x128xbf16> to vector<8x128xf32>
    %cst = arith.constant 0.176776692 : f32
    %6 = vector.broadcast %cst : f32 to vector<8x128xf32>
    %7 = arith.mulf %5, %6 : vector<8x128xf32>
    %8 = arith.truncf %7 : vector<8x128xf32> to vector<8x128xbf16>
    %c0_3 = arith.constant 0 : index
    %c0_4 = arith.constant 0 : index
    %c0_5 = arith.constant 0 : index
    %9 = vector.load %arg4[%c0_3, %c0_4, %c0_5] : memref<1x8x128xbf16, #tpu.memory_space<vmem>>, vector<1x8x128xbf16>
    %10 = vector.shape_cast %9 : vector<1x8x128xbf16> to vector<8x128xbf16>
    %c0_6 = arith.constant 0 : index
    %c0_7 = arith.constant 0 : index
    %c0_8 = arith.constant 0 : index
    %11 = vector.load %arg5[%c0_6, %c0_7, %c0_8] : memref<1x8x128xbf16, #tpu.memory_space<vmem>>, vector<1x8x128xbf16>
    %12 = vector.shape_cast %11 : vector<1x8x128xbf16> to vector<8x128xbf16>
    %c0_9 = arith.constant 0 : index
    %c0_10 = arith.constant 0 : index
    %c0_11 = arith.constant 0 : index
    %13 = vector.load %arg6[%c0_9, %c0_10, %c0_11] : memref<1x1x8xf32, #tpu.memory_space<vmem>>, vector<1x1x8xf32>
    %14 = vector.shape_cast %13 : vector<1x1x8xf32> to vector<1x8xf32>
    %cst_12 = arith.constant -1.000000e+09 : f32
    %15 = vector.broadcast %cst_12 : f32 to vector<1x8xf32>
    %16 = arith.mulf %14, %15 : vector<1x8xf32>
    %c8_i32 = arith.constant 8 : i32
    %17 = arith.muli %arg1, %c8_i32 : i32
    %c8_i32_13 = arith.constant 8 : i32
    %18 = arith.muli %arg2, %c8_i32_13 : i32
    %19 = tpu.iota {dimensions = array<i32: 0>} : vector<8x8xi32>
    %20 = vector.broadcast %17 : i32 to vector<8x8xi32>
    %21 = arith.addi %20, %19 : vector<8x8xi32>
    %22 = tpu.iota {dimensions = array<i32: 1>} : vector<8x8xi32>
    %23 = vector.broadcast %18 : i32 to vector<8x8xi32>
    %24 = arith.addi %23, %22 : vector<8x8xi32>
    %25 = arith.cmpi sgt, %24, %21 : vector<8x8xi32>
    %cst_14 = arith.constant -1.000000e+09 : f32
    %cst_15 = arith.constant 0.000000e+00 : f32
    %26 = vector.broadcast %cst_14 : f32 to vector<8x8xf32>
    %27 = vector.broadcast %cst_15 : f32 to vector<8x8xf32>
    %28 = arith.select %25, %26, %27 : vector<8x8xi1>, vector<8x8xf32>
    %29 = vector.broadcast %16 : vector<1x8xf32> to vector<8x8xf32>
    %30 = arith.addf %29, %28 : vector<8x8xf32>
    %31 = vector.extract_strided_slice %8 {offsets = [0, 0], sizes = [8, 32], strides = [1, 1]} : vector<8x128xbf16> to vector<8x32xbf16>
    %32 = vector.extract_strided_slice %10 {offsets = [0, 0], sizes = [8, 32], strides = [1, 1]} : vector<8x128xbf16> to vector<8x32xbf16>
    %cst_16 = arith.constant dense<0.000000e+00> : vector<8x8xf32>
    %33 = tpu.matmul %31, %32, %cst_16 {dimension_numbers = #tpu.dot_dimension_numbers<[1], [1], [0], [0], [0, 0, 1, 0], [], []>} : vector<8x32xbf16>, vector<8x32xbf16>, vector<8x8xf32> -> vector<8x8xf32>
    %34 = arith.addf %33, %30 : vector<8x8xf32>
    %c0_17 = arith.constant 0 : index
    %c0_18 = arith.constant 0 : index
    %c0_19 = arith.constant 0 : index
    %35 = vector.load %arg8[%c0_17, %c0_18, %c0_19] : memref<4x8x1xf32, #tpu.memory_space<vmem>>, vector<1x8x1xf32>
    %36 = vector.shape_cast %35 : vector<1x8x1xf32> to vector<8x1xf32>
    %cst_20 = arith.constant dense<0xFF800000> : vector<8xf32>
    %37 = vector.multi_reduction <maximumf>, %34, %cst_20 [1] : vector<8x8xf32> to vector<8xf32>
    %38 = vector.shape_cast %37 : vector<8xf32> to vector<8x1xf32>
    %39 = arith.maximumf %36, %38 : vector<8x1xf32>
    %40 = arith.subf %36, %39 : vector<8x1xf32>
    %41 = math.exp %40 : vector<8x1xf32>
    %42 = vector.broadcast %39 : vector<8x1xf32> to vector<8x8xf32>
    %43 = arith.subf %34, %42 : vector<8x8xf32>
    %44 = math.exp %43 : vector<8x8xf32>
    %c0_21 = arith.constant 0 : index
    %c0_22 = arith.constant 0 : index
    %c0_23 = arith.constant 0 : index
    %45 = vector.load %arg9[%c0_21, %c0_22, %c0_23] : memref<4x8x1xf32, #tpu.memory_space<vmem>>, vector<1x8x1xf32>
    %46 = vector.shape_cast %45 : vector<1x8x1xf32> to vector<8x1xf32>
    %47 = arith.mulf %41, %46 : vector<8x1xf32>
    %cst_24 = arith.constant dense<0.000000e+00> : vector<8xf32>
    %48 = vector.multi_reduction <add>, %44, %cst_24 [1] : vector<8x8xf32> to vector<8xf32>
    %49 = vector.shape_cast %48 : vector<8xf32> to vector<8x1xf32>
    %50 = arith.addf %47, %49 : vector<8x1xf32>
    %c0_25 = arith.constant 0 : index
    %c0_26 = arith.constant 0 : index
    %c0_27 = arith.constant 0 : index
    %51 = vector.load %arg9[%c0_25, %c0_26, %c0_27] : memref<4x8x1xf32, #tpu.memory_space<vmem>>, vector<1x8x1xf32>
    %52 = vector.shape_cast %51 : vector<1x8x1xf32> to vector<8x1xf32>
    %53 = vector.shape_cast %50 : vector<8x1xf32> to vector<1x8x1xf32>
    tpu.vector_store %arg9[%c0_25, %c0_26, %c0_27], %53 {strides = array<i32>} : memref<4x8x1xf32, #tpu.memory_space<vmem>>, vector<1x8x1xf32>,
    %c0_28 = arith.constant 0 : index
    %c0_29 = arith.constant 0 : index
    %c0_30 = arith.constant 0 : index
    %54 = vector.load %arg10[%c0_28, %c0_29, %c0_30] : memref<4x8x32xf32, #tpu.memory_space<vmem>>, vector<1x8x32xf32>
    %55 = vector.shape_cast %54 : vector<1x8x32xf32> to vector<8x32xf32>
    %56 = vector.broadcast %41 : vector<8x1xf32> to vector<8x32xf32>
    %57 = arith.mulf %56, %55 : vector<8x32xf32>
    %58 = arith.truncf %44 : vector<8x8xf32> to vector<8x8xbf16>
    %59 = vector.extract_strided_slice %12 {offsets = [0, 0], sizes = [8, 32], strides = [1, 1]} : vector<8x128xbf16> to vector<8x32xbf16>
    %cst_31 = arith.constant dense<0.000000e+00> : vector<8x32xf32>
    %60 = tpu.matmul %58, %59, %cst_31 {dimension_numbers = #tpu.dot_dimension_numbers<[1], [0], [0], [1], [0, 0, 1, 1], [], []>} : vector<8x8xbf16>, vector<8x32xbf16>, vector<8x32xf32> -> vector<8x32xf32>
    %61 = arith.addf %57, %60 : vector<8x32xf32>
    %c0_32 = arith.constant 0 : index
    %c0_33 = arith.constant 0 : index
    %c0_34 = arith.constant 0 : index
    %62 = vector.load %arg10[%c0_32, %c0_33, %c0_34] : memref<4x8x32xf32, #tpu.memory_space<vmem>>, vector<1x8x32xf32>
    %63 = vector.shape_cast %62 : vector<1x8x32xf32> to vector<8x32xf32>
    %64 = vector.shape_cast %61 : vector<8x32xf32> to vector<1x8x32xf32>
    tpu.vector_store %arg10[%c0_32, %c0_33, %c0_34], %64 {strides = array<i32>} : memref<4x8x32xf32, #tpu.memory_space<vmem>>, vector<1x8x32xf32>,
    %c0_35 = arith.constant 0 : index
    %c0_36 = arith.constant 0 : index
    %c0_37 = arith.constant 0 : index
    %65 = vector.load %arg8[%c0_35, %c0_36, %c0_37] : memref<4x8x1xf32, #tpu.memory_space<vmem>>, vector<1x8x1xf32>
    %66 = vector.shape_cast %65 : vector<1x8x1xf32> to vector<8x1xf32>
    %67 = vector.shape_cast %39 : vector<8x1xf32> to vector<1x8x1xf32>
    tpu.vector_store %arg8[%c0_35, %c0_36, %c0_37], %67 {strides = array<i32>} : memref<4x8x1xf32, #tpu.memory_space<vmem>>, vector<1x8x1xf32>,
    %68 = vector.extract_strided_slice %8 {offsets = [0, 32], sizes = [8, 32], strides = [1, 1]} : vector<8x128xbf16> to vector<8x32xbf16>
    %69 = vector.extract_strided_slice %10 {offsets = [0, 32], sizes = [8, 32], strides = [1, 1]} : vector<8x128xbf16> to vector<8x32xbf16>
    %cst_38 = arith.constant dense<0.000000e+00> : vector<8x8xf32>
    %70 = tpu.matmul %68, %69, %cst_38 {dimension_numbers = #tpu.dot_dimension_numbers<[1], [1], [0], [0], [0, 0, 1, 0], [], []>} : vector<8x32xbf16>, vector<8x32xbf16>, vector<8x8xf32> -> vector<8x8xf32>
    %71 = arith.addf %70, %30 : vector<8x8xf32>
    %c1 = arith.constant 1 : index
    %c0_39 = arith.constant 0 : index
    %c0_40 = arith.constant 0 : index
    %72 = vector.load %arg8[%c1, %c0_39, %c0_40] : memref<4x8x1xf32, #tpu.memory_space<vmem>>, vector<1x8x1xf32>
    %73 = vector.shape_cast %72 : vector<1x8x1xf32> to vector<8x1xf32>
    %cst_41 = arith.constant dense<0xFF800000> : vector<8xf32>
    %74 = vector.multi_reduction <maximumf>, %71, %cst_41 [1] : vector<8x8xf32> to vector<8xf32>
    %75 = vector.shape_cast %74 : vector<8xf32> to vector<8x1xf32>
    %76 = arith.maximumf %73, %75 : vector<8x1xf32>
    %77 = arith.subf %73, %76 : vector<8x1xf32>
    %78 = math.exp %77 : vector<8x1xf32>
    %79 = vector.broadcast %76 : vector<8x1xf32> to vector<8x8xf32>
    %80 = arith.subf %71, %79 : vector<8x8xf32>
    %81 = math.exp %80 : vector<8x8xf32>
    %c1_42 = arith.constant 1 : index
    %c0_43 = arith.constant 0 : index
    %c0_44 = arith.constant 0 : index
    %82 = vector.load %arg9[%c1_42, %c0_43, %c0_44] : memref<4x8x1xf32, #tpu.memory_space<vmem>>, vector<1x8x1xf32>
    %83 = vector.shape_cast %82 : vector<1x8x1xf32> to vector<8x1xf32>
    %84 = arith.mulf %78, %83 : vector<8x1xf32>
    %cst_45 = arith.constant dense<0.000000e+00> : vector<8xf32>
    %85 = vector.multi_reduction <add>, %81, %cst_45 [1] : vector<8x8xf32> to vector<8xf32>
    %86 = vector.shape_cast %85 : vector<8xf32> to vector<8x1xf32>
    %87 = arith.addf %84, %86 : vector<8x1xf32>
    %c1_46 = arith.constant 1 : index
    %c0_47 = arith.constant 0 : index
    %c0_48 = arith.constant 0 : index
    %88 = vector.load %arg9[%c1_46, %c0_47, %c0_48] : memref<4x8x1xf32, #tpu.memory_space<vmem>>, vector<1x8x1xf32>
    %89 = vector.shape_cast %88 : vector<1x8x1xf32> to vector<8x1xf32>
    %90 = vector.shape_cast %87 : vector<8x1xf32> to vector<1x8x1xf32>
    tpu.vector_store %arg9[%c1_46, %c0_47, %c0_48], %90 {strides = array<i32>} : memref<4x8x1xf32, #tpu.memory_space<vmem>>, vector<1x8x1xf32>,
    %c1_49 = arith.constant 1 : index
    %c0_50 = arith.constant 0 : index
    %c0_51 = arith.constant 0 : index
    %91 = vector.load %arg10[%c1_49, %c0_50, %c0_51] : memref<4x8x32xf32, #tpu.memory_space<vmem>>, vector<1x8x32xf32>
    %92 = vector.shape_cast %91 : vector<1x8x32xf32> to vector<8x32xf32>
    %93 = vector.broadcast %78 : vector<8x1xf32> to vector<8x32xf32>
    %94 = arith.mulf %93, %92 : vector<8x32xf32>
    %95 = arith.truncf %81 : vector<8x8xf32> to vector<8x8xbf16>
    %96 = vector.extract_strided_slice %12 {offsets = [0, 32], sizes = [8, 32], strides = [1, 1]} : vector<8x128xbf16> to vector<8x32xbf16>
    %cst_52 = arith.constant dense<0.000000e+00> : vector<8x32xf32>
    %97 = tpu.matmul %95, %96, %cst_52 {dimension_numbers = #tpu.dot_dimension_numbers<[1], [0], [0], [1], [0, 0, 1, 1], [], []>} : vector<8x8xbf16>, vector<8x32xbf16>, vector<8x32xf32> -> vector<8x32xf32>
    %98 = arith.addf %94, %97 : vector<8x32xf32>
    %c1_53 = arith.constant 1 : index
    %c0_54 = arith.constant 0 : index
    %c0_55 = arith.constant 0 : index
    %99 = vector.load %arg10[%c1_53, %c0_54, %c0_55] : memref<4x8x32xf32, #tpu.memory_space<vmem>>, vector<1x8x32xf32>
    %100 = vector.shape_cast %99 : vector<1x8x32xf32> to vector<8x32xf32>
    %101 = vector.shape_cast %98 : vector<8x32xf32> to vector<1x8x32xf32>
    tpu.vector_store %arg10[%c1_53, %c0_54, %c0_55], %101 {strides = array<i32>} : memref<4x8x32xf32, #tpu.memory_space<vmem>>, vector<1x8x32xf32>,
    %c1_56 = arith.constant 1 : index
    %c0_57 = arith.constant 0 : index
    %c0_58 = arith.constant 0 : index
    %102 = vector.load %arg8[%c1_56, %c0_57, %c0_58] : memref<4x8x1xf32, #tpu.memory_space<vmem>>, vector<1x8x1xf32>
    %103 = vector.shape_cast %102 : vector<1x8x1xf32> to vector<8x1xf32>
    %104 = vector.shape_cast %76 : vector<8x1xf32> to vector<1x8x1xf32>
    tpu.vector_store %arg8[%c1_56, %c0_57, %c0_58], %104 {strides = array<i32>} : memref<4x8x1xf32, #tpu.memory_space<vmem>>, vector<1x8x1xf32>,
    %105 = vector.extract_strided_slice %8 {offsets = [0, 64], sizes = [8, 32], strides = [1, 1]} : vector<8x128xbf16> to vector<8x32xbf16>
    %106 = vector.extract_strided_slice %10 {offsets = [0, 64], sizes = [8, 32], strides = [1, 1]} : vector<8x128xbf16> to vector<8x32xbf16>
    %cst_59 = arith.constant dense<0.000000e+00> : vector<8x8xf32>
    %107 = tpu.matmul %105, %106, %cst_59 {dimension_numbers = #tpu.dot_dimension_numbers<[1], [1], [0], [0], [0, 0, 1, 0], [], []>} : vector<8x32xbf16>, vector<8x32xbf16>, vector<8x8xf32> -> vector<8x8xf32>
    %108 = arith.addf %107, %30 : vector<8x8xf32>
    %c2 = arith.constant 2 : index
    %c0_60 = arith.constant 0 : index
    %c0_61 = arith.constant 0 : index
    %109 = vector.load %arg8[%c2, %c0_60, %c0_61] : memref<4x8x1xf32, #tpu.memory_space<vmem>>, vector<1x8x1xf32>
    %110 = vector.shape_cast %109 : vector<1x8x1xf32> to vector<8x1xf32>
    %cst_62 = arith.constant dense<0xFF800000> : vector<8xf32>
    %111 = vector.multi_reduction <maximumf>, %108, %cst_62 [1] : vector<8x8xf32> to vector<8xf32>
    %112 = vector.shape_cast %111 : vector<8xf32> to vector<8x1xf32>
    %113 = arith.maximumf %110, %112 : vector<8x1xf32>
    %114 = arith.subf %110, %113 : vector<8x1xf32>
    %115 = math.exp %114 : vector<8x1xf32>
    %116 = vector.broadcast %113 : vector<8x1xf32> to vector<8x8xf32>
    %117 = arith.subf %108, %116 : vector<8x8xf32>
    %118 = math.exp %117 : vector<8x8xf32>
    %c2_63 = arith.constant 2 : index
    %c0_64 = arith.constant 0 : index
    %c0_65 = arith.constant 0 : index
    %119 = vector.load %arg9[%c2_63, %c0_64, %c0_65] : memref<4x8x1xf32, #tpu.memory_space<vmem>>, vector<1x8x1xf32>
    %120 = vector.shape_cast %119 : vector<1x8x1xf32> to vector<8x1xf32>
    %121 = arith.mulf %115, %120 : vector<8x1xf32>
    %cst_66 = arith.constant dense<0.000000e+00> : vector<8xf32>
    %122 = vector.multi_reduction <add>, %118, %cst_66 [1] : vector<8x8xf32> to vector<8xf32>
    %123 = vector.shape_cast %122 : vector<8xf32> to vector<8x1xf32>
    %124 = arith.addf %121, %123 : vector<8x1xf32>
    %c2_67 = arith.constant 2 : index
    %c0_68 = arith.constant 0 : index
    %c0_69 = arith.constant 0 : index
    %125 = vector.load %arg9[%c2_67, %c0_68, %c0_69] : memref<4x8x1xf32, #tpu.memory_space<vmem>>, vector<1x8x1xf32>
    %126 = vector.shape_cast %125 : vector<1x8x1xf32> to vector<8x1xf32>
    %127 = vector.shape_cast %124 : vector<8x1xf32> to vector<1x8x1xf32>
    tpu.vector_store %arg9[%c2_67, %c0_68, %c0_69], %127 {strides = array<i32>} : memref<4x8x1xf32, #tpu.memory_space<vmem>>, vector<1x8x1xf32>,
    %c2_70 = arith.constant 2 : index
    %c0_71 = arith.constant 0 : index
    %c0_72 = arith.constant 0 : index
    %128 = vector.load %arg10[%c2_70, %c0_71, %c0_72] : memref<4x8x32xf32, #tpu.memory_space<vmem>>, vector<1x8x32xf32>
    %129 = vector.shape_cast %128 : vector<1x8x32xf32> to vector<8x32xf32>
    %130 = vector.broadcast %115 : vector<8x1xf32> to vector<8x32xf32>
    %131 = arith.mulf %130, %129 : vector<8x32xf32>
    %132 = arith.truncf %118 : vector<8x8xf32> to vector<8x8xbf16>
    %133 = vector.extract_strided_slice %12 {offsets = [0, 64], sizes = [8, 32], strides = [1, 1]} : vector<8x128xbf16> to vector<8x32xbf16>
    %cst_73 = arith.constant dense<0.000000e+00> : vector<8x32xf32>
    %134 = tpu.matmul %132, %133, %cst_73 {dimension_numbers = #tpu.dot_dimension_numbers<[1], [0], [0], [1], [0, 0, 1, 1], [], []>} : vector<8x8xbf16>, vector<8x32xbf16>, vector<8x32xf32> -> vector<8x32xf32>
    %135 = arith.addf %131, %134 : vector<8x32xf32>
    %c2_74 = arith.constant 2 : index
    %c0_75 = arith.constant 0 : index
    %c0_76 = arith.constant 0 : index
    %136 = vector.load %arg10[%c2_74, %c0_75, %c0_76] : memref<4x8x32xf32, #tpu.memory_space<vmem>>, vector<1x8x32xf32>
    %137 = vector.shape_cast %136 : vector<1x8x32xf32> to vector<8x32xf32>
    %138 = vector.shape_cast %135 : vector<8x32xf32> to vector<1x8x32xf32>
    tpu.vector_store %arg10[%c2_74, %c0_75, %c0_76], %138 {strides = array<i32>} : memref<4x8x32xf32, #tpu.memory_space<vmem>>, vector<1x8x32xf32>,
    %c2_77 = arith.constant 2 : index
    %c0_78 = arith.constant 0 : index
    %c0_79 = arith.constant 0 : index
    %139 = vector.load %arg8[%c2_77, %c0_78, %c0_79] : memref<4x8x1xf32, #tpu.memory_space<vmem>>, vector<1x8x1xf32>
    %140 = vector.shape_cast %139 : vector<1x8x1xf32> to vector<8x1xf32>
    %141 = vector.shape_cast %113 : vector<8x1xf32> to vector<1x8x1xf32>
    tpu.vector_store %arg8[%c2_77, %c0_78, %c0_79], %141 {strides = array<i32>} : memref<4x8x1xf32, #tpu.memory_space<vmem>>, vector<1x8x1xf32>,
    %142 = vector.extract_strided_slice %8 {offsets = [0, 96], sizes = [8, 32], strides = [1, 1]} : vector<8x128xbf16> to vector<8x32xbf16>
    %143 = vector.extract_strided_slice %10 {offsets = [0, 96], sizes = [8, 32], strides = [1, 1]} : vector<8x128xbf16> to vector<8x32xbf16>
    %cst_80 = arith.constant dense<0.000000e+00> : vector<8x8xf32>
    %144 = tpu.matmul %142, %143, %cst_80 {dimension_numbers = #tpu.dot_dimension_numbers<[1], [1], [0], [0], [0, 0, 1, 0], [], []>} : vector<8x32xbf16>, vector<8x32xbf16>, vector<8x8xf32> -> vector<8x8xf32>
    %145 = arith.addf %144, %30 : vector<8x8xf32>
    %c3 = arith.constant 3 : index
    %c0_81 = arith.constant 0 : index
    %c0_82 = arith.constant 0 : index
    %146 = vector.load %arg8[%c3, %c0_81, %c0_82] : memref<4x8x1xf32, #tpu.memory_space<vmem>>, vector<1x8x1xf32>
    %147 = vector.shape_cast %146 : vector<1x8x1xf32> to vector<8x1xf32>
    %cst_83 = arith.constant dense<0xFF800000> : vector<8xf32>
    %148 = vector.multi_reduction <maximumf>, %145, %cst_83 [1] : vector<8x8xf32> to vector<8xf32>
    %149 = vector.shape_cast %148 : vector<8xf32> to vector<8x1xf32>
    %150 = arith.maximumf %147, %149 : vector<8x1xf32>
    %151 = arith.subf %147, %150 : vector<8x1xf32>
    %152 = math.exp %151 : vector<8x1xf32>
    %153 = vector.broadcast %150 : vector<8x1xf32> to vector<8x8xf32>
    %154 = arith.subf %145, %153 : vector<8x8xf32>
    %155 = math.exp %154 : vector<8x8xf32>
    %c3_84 = arith.constant 3 : index
    %c0_85 = arith.constant 0 : index
    %c0_86 = arith.constant 0 : index
    %156 = vector.load %arg9[%c3_84, %c0_85, %c0_86] : memref<4x8x1xf32, #tpu.memory_space<vmem>>, vector<1x8x1xf32>
    %157 = vector.shape_cast %156 : vector<1x8x1xf32> to vector<8x1xf32>
    %158 = arith.mulf %152, %157 : vector<8x1xf32>
    %cst_87 = arith.constant dense<0.000000e+00> : vector<8xf32>
    %159 = vector.multi_reduction <add>, %155, %cst_87 [1] : vector<8x8xf32> to vector<8xf32>
    %160 = vector.shape_cast %159 : vector<8xf32> to vector<8x1xf32>
    %161 = arith.addf %158, %160 : vector<8x1xf32>
    %c3_88 = arith.constant 3 : index
    %c0_89 = arith.constant 0 : index
    %c0_90 = arith.constant 0 : index
    %162 = vector.load %arg9[%c3_88, %c0_89, %c0_90] : memref<4x8x1xf32, #tpu.memory_space<vmem>>, vector<1x8x1xf32>
    %163 = vector.shape_cast %162 : vector<1x8x1xf32> to vector<8x1xf32>
    %164 = vector.shape_cast %161 : vector<8x1xf32> to vector<1x8x1xf32>
    tpu.vector_store %arg9[%c3_88, %c0_89, %c0_90], %164 {strides = array<i32>} : memref<4x8x1xf32, #tpu.memory_space<vmem>>, vector<1x8x1xf32>,
    %c3_91 = arith.constant 3 : index
    %c0_92 = arith.constant 0 : index
    %c0_93 = arith.constant 0 : index
    %165 = vector.load %arg10[%c3_91, %c0_92, %c0_93] : memref<4x8x32xf32, #tpu.memory_space<vmem>>, vector<1x8x32xf32>
    %166 = vector.shape_cast %165 : vector<1x8x32xf32> to vector<8x32xf32>
    %167 = vector.broadcast %152 : vector<8x1xf32> to vector<8x32xf32>
    %168 = arith.mulf %167, %166 : vector<8x32xf32>
    %169 = arith.truncf %155 : vector<8x8xf32> to vector<8x8xbf16>
    %170 = vector.extract_strided_slice %12 {offsets = [0, 96], sizes = [8, 32], strides = [1, 1]} : vector<8x128xbf16> to vector<8x32xbf16>
    %cst_94 = arith.constant dense<0.000000e+00> : vector<8x32xf32>
    %171 = tpu.matmul %169, %170, %cst_94 {dimension_numbers = #tpu.dot_dimension_numbers<[1], [0], [0], [1], [0, 0, 1, 1], [], []>} : vector<8x8xbf16>, vector<8x32xbf16>, vector<8x32xf32> -> vector<8x32xf32>
    %172 = arith.addf %168, %171 : vector<8x32xf32>
    %c3_95 = arith.constant 3 : index
    %c0_96 = arith.constant 0 : index
    %c0_97 = arith.constant 0 : index
    %173 = vector.load %arg10[%c3_95, %c0_96, %c0_97] : memref<4x8x32xf32, #tpu.memory_space<vmem>>, vector<1x8x32xf32>
    %174 = vector.shape_cast %173 : vector<1x8x32xf32> to vector<8x32xf32>
    %175 = vector.shape_cast %172 : vector<8x32xf32> to vector<1x8x32xf32>
    tpu.vector_store %arg10[%c3_95, %c0_96, %c0_97], %175 {strides = array<i32>} : memref<4x8x32xf32, #tpu.memory_space<vmem>>, vector<1x8x32xf32>,
    %c3_98 = arith.constant 3 : index
    %c0_99 = arith.constant 0 : index
    %c0_100 = arith.constant 0 : index
    %176 = vector.load %arg8[%c3_98, %c0_99, %c0_100] : memref<4x8x1xf32, #tpu.memory_space<vmem>>, vector<1x8x1xf32>
    %177 = vector.shape_cast %176 : vector<1x8x1xf32> to vector<8x1xf32>
    %178 = vector.shape_cast %150 : vector<8x1xf32> to vector<1x8x1xf32>
    tpu.vector_store %arg8[%c3_98, %c0_99, %c0_100], %178 {strides = array<i32>} : memref<4x8x1xf32, #tpu.memory_space<vmem>>, vector<1x8x1xf32>,
    %c0_i32_101 = arith.constant 0 : i32
    %179 = arith.cmpi eq, %arg2, %c0_i32_101 : i32
    %180 = arith.extui %179 : i1 to i32
    %c0_i32_102 = arith.constant 0 : i32
    %181 = arith.cmpi ne, %180, %c0_i32_102 : i32
    scf.if %181 {
      %c0_103 = arith.constant 0 : index
      %c0_104 = arith.constant 0 : index
      %c0_105 = arith.constant 0 : index
      %182 = vector.load %arg10[%c0_103, %c0_104, %c0_105] : memref<4x8x32xf32, #tpu.memory_space<vmem>>, vector<1x8x32xf32>
      %183 = vector.shape_cast %182 : vector<1x8x32xf32> to vector<8x32xf32>
      %c0_106 = arith.constant 0 : index
      %c0_107 = arith.constant 0 : index
      %c0_108 = arith.constant 0 : index
      %184 = vector.load %arg9[%c0_106, %c0_107, %c0_108] : memref<4x8x1xf32, #tpu.memory_space<vmem>>, vector<1x8x1xf32>
      %185 = vector.shape_cast %184 : vector<1x8x1xf32> to vector<8x1xf32>
      %186 = tpu.reciprocal %185 {approx = true} : vector<8x1xf32> -> vector<8x1xf32>
      %187 = vector.broadcast %186 : vector<8x1xf32> to vector<8x32xf32>
      %188 = arith.mulf %183, %187 : vector<8x32xf32>
      %c1_109 = arith.constant 1 : index
      %c0_110 = arith.constant 0 : index
      %c0_111 = arith.constant 0 : index
      %189 = vector.load %arg10[%c1_109, %c0_110, %c0_111] : memref<4x8x32xf32, #tpu.memory_space<vmem>>, vector<1x8x32xf32>
      %190 = vector.shape_cast %189 : vector<1x8x32xf32> to vector<8x32xf32>
      %c1_112 = arith.constant 1 : index
      %c0_113 = arith.constant 0 : index
      %c0_114 = arith.constant 0 : index
      %191 = vector.load %arg9[%c1_112, %c0_113, %c0_114] : memref<4x8x1xf32, #tpu.memory_space<vmem>>, vector<1x8x1xf32>
      %192 = vector.shape_cast %191 : vector<1x8x1xf32> to vector<8x1xf32>
      %193 = tpu.reciprocal %192 {approx = true} : vector<8x1xf32> -> vector<8x1xf32>
      %194 = vector.broadcast %193 : vector<8x1xf32> to vector<8x32xf32>
      %195 = arith.mulf %190, %194 : vector<8x32xf32>
      %c2_115 = arith.constant 2 : index
      %c0_116 = arith.constant 0 : index
      %c0_117 = arith.constant 0 : index
      %196 = vector.load %arg10[%c2_115, %c0_116, %c0_117] : memref<4x8x32xf32, #tpu.memory_space<vmem>>, vector<1x8x32xf32>
      %197 = vector.shape_cast %196 : vector<1x8x32xf32> to vector<8x32xf32>
      %c2_118 = arith.constant 2 : index
      %c0_119 = arith.constant 0 : index
      %c0_120 = arith.constant 0 : index
      %198 = vector.load %arg9[%c2_118, %c0_119, %c0_120] : memref<4x8x1xf32, #tpu.memory_space<vmem>>, vector<1x8x1xf32>
      %199 = vector.shape_cast %198 : vector<1x8x1xf32> to vector<8x1xf32>
      %200 = tpu.reciprocal %199 {approx = true} : vector<8x1xf32> -> vector<8x1xf32>
      %201 = vector.broadcast %200 : vector<8x1xf32> to vector<8x32xf32>
      %202 = arith.mulf %197, %201 : vector<8x32xf32>
      %c3_121 = arith.constant 3 : index
      %c0_122 = arith.constant 0 : index
      %c0_123 = arith.constant 0 : index
      %203 = vector.load %arg10[%c3_121, %c0_122, %c0_123] : memref<4x8x32xf32, #tpu.memory_space<vmem>>, vector<1x8x32xf32>
      %204 = vector.shape_cast %203 : vector<1x8x32xf32> to vector<8x32xf32>
      %c3_124 = arith.constant 3 : index
      %c0_125 = arith.constant 0 : index
      %c0_126 = arith.constant 0 : index
      %205 = vector.load %arg9[%c3_124, %c0_125, %c0_126] : memref<4x8x1xf32, #tpu.memory_space<vmem>>, vector<1x8x1xf32>
      %206 = vector.shape_cast %205 : vector<1x8x1xf32> to vector<8x1xf32>
      %207 = tpu.reciprocal %206 {approx = true} : vector<8x1xf32> -> vector<8x1xf32>
      %208 = vector.broadcast %207 : vector<8x1xf32> to vector<8x32xf32>
      %209 = arith.mulf %204, %208 : vector<8x32xf32>
      %210 = tpu.concatenate %188, %195, %202, %209 in 1 : vector<8x32xf32>, vector<8x32xf32>, vector<8x32xf32>, vector<8x32xf32> -> vector<8x128xf32>
      %211 = arith.truncf %210 : vector<8x128xf32> to vector<8x128xbf16>
      %c0_127 = arith.constant 0 : index
      %c0_128 = arith.constant 0 : index
      %c0_129 = arith.constant 0 : index
      %212 = vector.load %arg7[%c0_127, %c0_128, %c0_129] : memref<1x8x128xbf16, #tpu.memory_space<vmem>>, vector<1x8x128xbf16>
      %213 = vector.shape_cast %212 : vector<1x8x128xbf16> to vector<8x128xbf16>
      %214 = vector.shape_cast %211 : vector<8x128xbf16> to vector<1x8x128xbf16>
      tpu.vector_store %arg7[%c0_127, %c0_128, %c0_129], %214 {strides = array<i32>} : memref<1x8x128xbf16, #tpu.memory_space<vmem>>, vector<1x8x128xbf16>,
    } else {
    }
    return
  }
  func.func @transform_0(%arg0: i32, %arg1: i32, %arg2: i32) -> (i32, i32, i32) {
    %c0_i32 = arith.constant 0 : i32
    %c0_i32_0 = arith.constant 0 : i32
    return %arg0, %arg1, %c0_i32 : i32, i32, i32
  }
  func.func @transform_1(%arg0: i32, %arg1: i32, %arg2: i32) -> (i32, i32, i32) {
    %c1_i32 = arith.constant 1 : i32
    %c0_i32 = arith.constant 0 : i32
    return %arg0, %arg2, %c1_i32 : i32, i32, i32
  }
  func.func @transform_2(%arg0: i32, %arg1: i32, %arg2: i32) -> (i32, i32, i32) {
    %c2_i32 = arith.constant 2 : i32
    %c0_i32 = arith.constant 0 : i32
    return %arg0, %arg2, %c2_i32 : i32, i32, i32
  }
  func.func @transform_3(%arg0: i32, %arg1: i32, %arg2: i32) -> (i32, i32, i32) {
    %c0_i32 = arith.constant 0 : i32
    %c0_i32_0 = arith.constant 0 : i32
    return %arg0, %c0_i32, %arg2 : i32, i32, i32
  }
  func.func @transform_4(%arg0: i32, %arg1: i32, %arg2: i32) -> (i32, i32, i32) {
    %c0_i32 = arith.constant 0 : i32
    %c0_i32_0 = arith.constant 0 : i32
    return %arg0, %arg1, %c0_i32 : i32, i32, i32
  }
}

module attributes {stable_mosaic.version = 11 : i64} {
  func.func @_linear_kernel(%arg0: i32, %arg1: i32, %arg2: i32, %arg3: memref<16x128xbf16, #tpu.memory_space<vmem>>, %arg4: memref<128x128xbf16, #tpu.memory_space<vmem>>, %arg5: memref<1x128xf32, #tpu.memory_space<vmem>>, %arg6: memref<16x128xbf16, #tpu.memory_space<vmem>>, %arg7: memref<16x128xf32, #tpu.memory_space<vmem>>) attributes {dimension_semantics = [#tpu.dimension_semantics<parallel>, #tpu.dimension_semantics<parallel>, #tpu.dimension_semantics<arbitrary>], iteration_bounds = array<i64: 1, 1, 1>, scalar_prefetch = 0 : i64, scratch_operands = 1 : i64, tpu.core_type = #tpu.core_type<tc>, window_params = [{transform_indices = @transform_0, window_bounds = array<i64: 16, 128>}, {transform_indices = @transform_1, window_bounds = array<i64: 128, 128>}, {transform_indices = @transform_2, window_bounds = array<i64: 1, 128>}, {transform_indices = @transform_3, window_bounds = array<i64: 16, 128>}]} {
    %c0_i32 = arith.constant 0 : i32
    %0 = arith.cmpi eq, %arg2, %c0_i32 : i32
    %1 = arith.extui %0 : i1 to i32
    %c0_i32_0 = arith.constant 0 : i32
    %2 = arith.cmpi ne, %1, %c0_i32_0 : i32
    scf.if %2 {
      %cst_10 = arith.constant 0.000000e+00 : f32
      %12 = vector.broadcast %cst_10 : f32 to vector<16x128xf32>
      %c0_11 = arith.constant 0 : index
      %c0_12 = arith.constant 0 : index
      %13 = vector.load %arg7[%c0_11, %c0_12] : memref<16x128xf32, #tpu.memory_space<vmem>>, vector<16x128xf32>
      tpu.vector_store %arg7[%c0_11, %c0_12], %12 {strides = array<i32>} : memref<16x128xf32, #tpu.memory_space<vmem>>, vector<16x128xf32>,
    } else {
    }
    %c0 = arith.constant 0 : index
    %c0_1 = arith.constant 0 : index
    %3 = vector.load %arg7[%c0, %c0_1] : memref<16x128xf32, #tpu.memory_space<vmem>>, vector<16x128xf32>
    %c0_2 = arith.constant 0 : index
    %c0_3 = arith.constant 0 : index
    %4 = vector.load %arg3[%c0_2, %c0_3] : memref<16x128xbf16, #tpu.memory_space<vmem>>, vector<16x128xbf16>
    %c0_4 = arith.constant 0 : index
    %c0_5 = arith.constant 0 : index
    %5 = vector.load %arg4[%c0_4, %c0_5] : memref<128x128xbf16, #tpu.memory_space<vmem>>, vector<128x128xbf16>
    %cst = arith.constant dense<0.000000e+00> : vector<16x128xf32>
    %6 = tpu.matmul %4, %5, %cst {dimension_numbers = #tpu.dot_dimension_numbers<[1], [0], [0], [1], [0, 0, 1, 1], [], []>} : vector<16x128xbf16>, vector<128x128xbf16>, vector<16x128xf32> -> vector<16x128xf32>
    %7 = arith.addf %3, %6 : vector<16x128xf32>
    %c0_6 = arith.constant 0 : index
    %c0_7 = arith.constant 0 : index
    %8 = vector.load %arg7[%c0_6, %c0_7] : memref<16x128xf32, #tpu.memory_space<vmem>>, vector<16x128xf32>
    tpu.vector_store %arg7[%c0_6, %c0_7], %7 {strides = array<i32>} : memref<16x128xf32, #tpu.memory_space<vmem>>, vector<16x128xf32>,
    %c0_i32_8 = arith.constant 0 : i32
    %9 = arith.cmpi eq, %arg2, %c0_i32_8 : i32
    %10 = arith.extui %9 : i1 to i32
    %c0_i32_9 = arith.constant 0 : i32
    %11 = arith.cmpi ne, %10, %c0_i32_9 : i32
    scf.if %11 {
      %c0_10 = arith.constant 0 : index
      %c0_11 = arith.constant 0 : index
      %12 = vector.load %arg7[%c0_10, %c0_11] : memref<16x128xf32, #tpu.memory_space<vmem>>, vector<16x128xf32>
      %c0_12 = arith.constant 0 : index
      %c0_13 = arith.constant 0 : index
      %13 = vector.load %arg5[%c0_12, %c0_13] : memref<1x128xf32, #tpu.memory_space<vmem>>, vector<1x128xf32>
      %14 = vector.broadcast %13 : vector<1x128xf32> to vector<16x128xf32>
      %15 = arith.addf %12, %14 : vector<16x128xf32>
      %16 = arith.truncf %15 : vector<16x128xf32> to vector<16x128xbf16>
      %c0_14 = arith.constant 0 : index
      %c0_15 = arith.constant 0 : index
      %17 = vector.load %arg6[%c0_14, %c0_15] : memref<16x128xbf16, #tpu.memory_space<vmem>>, vector<16x128xbf16>
      tpu.vector_store %arg6[%c0_14, %c0_15], %16 {strides = array<i32>} : memref<16x128xbf16, #tpu.memory_space<vmem>>, vector<16x128xbf16>,
    } else {
    }
    return
  }
  func.func @transform_0(%arg0: i32, %arg1: i32, %arg2: i32) -> (i32, i32) {
    %c0_i32 = arith.constant 0 : i32
    return %arg0, %arg2 : i32, i32
  }
  func.func @transform_1(%arg0: i32, %arg1: i32, %arg2: i32) -> (i32, i32) {
    %c0_i32 = arith.constant 0 : i32
    return %arg2, %arg1 : i32, i32
  }
  func.func @transform_2(%arg0: i32, %arg1: i32, %arg2: i32) -> (i32, i32) {
    %c0_i32 = arith.constant 0 : i32
    %c0_i32_0 = arith.constant 0 : i32
    return %c0_i32, %arg1 : i32, i32
  }
  func.func @transform_3(%arg0: i32, %arg1: i32, %arg2: i32) -> (i32, i32) {
    %c0_i32 = arith.constant 0 : i32
    return %arg0, %arg1 : i32, i32
  }
}

module attributes {stable_mosaic.version = 11 : i64} {
  func.func @_flash_mha_kernel(%arg0: i32, %arg1: i32, %arg2: i32, %arg3: memref<1x8x128xbf16, #tpu.memory_space<vmem>>, %arg4: memref<1x8x128xbf16, #tpu.memory_space<vmem>>, %arg5: memref<1x8x128xbf16, #tpu.memory_space<vmem>>, %arg6: memref<1x1x8xf32, #tpu.memory_space<vmem>>, %arg7: memref<1x8x128xbf16, #tpu.memory_space<vmem>>, %arg8: memref<4x8x1xf32, #tpu.memory_space<vmem>>, %arg9: memref<4x8x1xf32, #tpu.memory_space<vmem>>, %arg10: memref<4x8x32xf32, #tpu.memory_space<vmem>>) attributes {dimension_semantics = [#tpu.dimension_semantics<parallel>, #tpu.dimension_semantics<parallel>, #tpu.dimension_semantics<arbitrary>], iteration_bounds = array<i64: 2, 1, 1>, scalar_prefetch = 0 : i64, scratch_operands = 3 : i64, tpu.core_type = #tpu.core_type<tc>, window_params = [{transform_indices = @transform_0, window_bounds = array<i64: 1, 8, 128>}, {transform_indices = @transform_1, window_bounds = array<i64: 1, 8, 128>}, {transform_indices = @transform_2, window_bounds = array<i64: 1, 8, 128>}, {transform_indices = @transform_3, window_bounds = array<i64: 1, 1, 8>}, {transform_indices = @transform_4, window_bounds = array<i64: 1, 8, 128>}]} {
    %c0_i32 = arith.constant 0 : i32
    %0 = arith.cmpi eq, %arg2, %c0_i32 : i32
    %1 = arith.extui %0 : i1 to i32
    %c0_i32_0 = arith.constant 0 : i32
    %2 = arith.cmpi ne, %1, %c0_i32_0 : i32
    scf.if %2 {
      %cst_100 = arith.constant -1.000000e+30 : f32
      %172 = vector.broadcast %cst_100 : f32 to vector<4x8x1xf32>
      %c0_101 = arith.constant 0 : index
      %c0_102 = arith.constant 0 : index
      %c0_103 = arith.constant 0 : index
      %173 = vector.load %arg8[%c0_101, %c0_102, %c0_103] : memref<4x8x1xf32, #tpu.memory_space<vmem>>, vector<4x8x1xf32>
      tpu.vector_store %arg8[%c0_101, %c0_102, %c0_103], %172 {strides = array<i32>} : memref<4x8x1xf32, #tpu.memory_space<vmem>>, vector<4x8x1xf32>,
      %cst_104 = arith.constant 0.000000e+00 : f32
      %174 = vector.broadcast %cst_104 : f32 to vector<4x8x1xf32>
      %c0_105 = arith.constant 0 : index
      %c0_106 = arith.constant 0 : index
      %c0_107 = arith.constant 0 : index
      %175 = vector.load %arg9[%c0_105, %c0_106, %c0_107] : memref<4x8x1xf32, #tpu.memory_space<vmem>>, vector<4x8x1xf32>
      tpu.vector_store %arg9[%c0_105, %c0_106, %c0_107], %174 {strides = array<i32>} : memref<4x8x1xf32, #tpu.memory_space<vmem>>, vector<4x8x1xf32>,
      %cst_108 = arith.constant 0.000000e+00 : f32
      %176 = vector.broadcast %cst_108 : f32 to vector<4x8x32xf32>
      %c0_109 = arith.constant 0 : index
      %c0_110 = arith.constant 0 : index
      %c0_111 = arith.constant 0 : index
      %177 = vector.load %arg10[%c0_109, %c0_110, %c0_111] : memref<4x8x32xf32, #tpu.memory_space<vmem>>, vector<4x8x32xf32>
      tpu.vector_store %arg10[%c0_109, %c0_110, %c0_111], %176 {strides = array<i32>} : memref<4x8x32xf32, #tpu.memory_space<vmem>>, vector<4x8x32xf32>,
    } else {
    }
    %c0 = arith.constant 0 : index
    %c0_1 = arith.constant 0 : index
    %c0_2 = arith.constant 0 : index
    %3 = vector.load %arg3[%c0, %c0_1, %c0_2] : memref<1x8x128xbf16, #tpu.memory_space<vmem>>, vector<1x8x128xbf16>
    %4 = vector.shape_cast %3 : vector<1x8x128xbf16> to vector<8x128xbf16>
    %5 = arith.extf %4 : vector<8x128xbf16> to vector<8x128xf32>
    %cst = arith.constant 0.176776692 : f32
    %6 = vector.broadcast %cst : f32 to vector<8x128xf32>
    %7 = arith.mulf %5, %6 : vector<8x128xf32>
    %8 = arith.truncf %7 : vector<8x128xf32> to vector<8x128xbf16>
    %c0_3 = arith.constant 0 : index
    %c0_4 = arith.constant 0 : index
    %c0_5 = arith.constant 0 : index
    %9 = vector.load %arg4[%c0_3, %c0_4, %c0_5] : memref<1x8x128xbf16, #tpu.memory_space<vmem>>, vector<1x8x128xbf16>
    %10 = vector.shape_cast %9 : vector<1x8x128xbf16> to vector<8x128xbf16>
    %c0_6 = arith.constant 0 : index
    %c0_7 = arith.constant 0 : index
    %c0_8 = arith.constant 0 : index
    %11 = vector.load %arg5[%c0_6, %c0_7, %c0_8] : memref<1x8x128xbf16, #tpu.memory_space<vmem>>, vector<1x8x128xbf16>
    %12 = vector.shape_cast %11 : vector<1x8x128xbf16> to vector<8x128xbf16>
    %c0_9 = arith.constant 0 : index
    %c0_10 = arith.constant 0 : index
    %c0_11 = arith.constant 0 : index
    %13 = vector.load %arg6[%c0_9, %c0_10, %c0_11] : memref<1x1x8xf32, #tpu.memory_space<vmem>>, vector<1x1x8xf32>
    %14 = vector.shape_cast %13 : vector<1x1x8xf32> to vector<1x8xf32>
    %cst_12 = arith.constant -1.000000e+09 : f32
    %15 = vector.broadcast %cst_12 : f32 to vector<1x8xf32>
    %16 = arith.mulf %14, %15 : vector<1x8xf32>
    %17 = vector.extract_strided_slice %8 {offsets = [0, 0], sizes = [8, 32], strides = [1, 1]} : vector<8x128xbf16> to vector<8x32xbf16>
    %18 = vector.extract_strided_slice %10 {offsets = [0, 0], sizes = [8, 32], strides = [1, 1]} : vector<8x128xbf16> to vector<8x32xbf16>
    %cst_13 = arith.constant dense<0.000000e+00> : vector<8x8xf32>
    %19 = tpu.matmul %17, %18, %cst_13 {dimension_numbers = #tpu.dot_dimension_numbers<[1], [1], [0], [0], [0, 0, 1, 0], [], []>} : vector<8x32xbf16>, vector<8x32xbf16>, vector<8x8xf32> -> vector<8x8xf32>
    %20 = vector.broadcast %16 : vector<1x8xf32> to vector<8x8xf32>
    %21 = arith.addf %19, %20 : vector<8x8xf32>
    %c0_14 = arith.constant 0 : index
    %c0_15 = arith.constant 0 : index
    %c0_16 = arith.constant 0 : index
    %22 = vector.load %arg8[%c0_14, %c0_15, %c0_16] : memref<4x8x1xf32, #tpu.memory_space<vmem>>, vector<1x8x1xf32>
    %23 = vector.shape_cast %22 : vector<1x8x1xf32> to vector<8x1xf32>
    %cst_17 = arith.constant dense<0xFF800000> : vector<8xf32>
    %24 = vector.multi_reduction <maximumf>, %21, %cst_17 [1] : vector<8x8xf32> to vector<8xf32>
    %25 = vector.shape_cast %24 : vector<8xf32> to vector<8x1xf32>
    %26 = arith.maximumf %23, %25 : vector<8x1xf32>
    %27 = arith.subf %23, %26 : vector<8x1xf32>
    %28 = math.exp %27 : vector<8x1xf32>
    %29 = vector.broadcast %26 : vector<8x1xf32> to vector<8x8xf32>
    %30 = arith.subf %21, %29 : vector<8x8xf32>
    %31 = math.exp %30 : vector<8x8xf32>
    %c0_18 = arith.constant 0 : index
    %c0_19 = arith.constant 0 : index
    %c0_20 = arith.constant 0 : index
    %32 = vector.load %arg9[%c0_18, %c0_19, %c0_20] : memref<4x8x1xf32, #tpu.memory_space<vmem>>, vector<1x8x1xf32>
    %33 = vector.shape_cast %32 : vector<1x8x1xf32> to vector<8x1xf32>
    %34 = arith.mulf %28, %33 : vector<8x1xf32>
    %cst_21 = arith.constant dense<0.000000e+00> : vector<8xf32>
    %35 = vector.multi_reduction <add>, %31, %cst_21 [1] : vector<8x8xf32> to vector<8xf32>
    %36 = vector.shape_cast %35 : vector<8xf32> to vector<8x1xf32>
    %37 = arith.addf %34, %36 : vector<8x1xf32>
    %c0_22 = arith.constant 0 : index
    %c0_23 = arith.constant 0 : index
    %c0_24 = arith.constant 0 : index
    %38 = vector.load %arg9[%c0_22, %c0_23, %c0_24] : memref<4x8x1xf32, #tpu.memory_space<vmem>>, vector<1x8x1xf32>
    %39 = vector.shape_cast %38 : vector<1x8x1xf32> to vector<8x1xf32>
    %40 = vector.shape_cast %37 : vector<8x1xf32> to vector<1x8x1xf32>
    tpu.vector_store %arg9[%c0_22, %c0_23, %c0_24], %40 {strides = array<i32>} : memref<4x8x1xf32, #tpu.memory_space<vmem>>, vector<1x8x1xf32>,
    %c0_25 = arith.constant 0 : index
    %c0_26 = arith.constant 0 : index
    %c0_27 = arith.constant 0 : index
    %41 = vector.load %arg10[%c0_25, %c0_26, %c0_27] : memref<4x8x32xf32, #tpu.memory_space<vmem>>, vector<1x8x32xf32>
    %42 = vector.shape_cast %41 : vector<1x8x32xf32> to vector<8x32xf32>
    %43 = vector.broadcast %28 : vector<8x1xf32> to vector<8x32xf32>
    %44 = arith.mulf %43, %42 : vector<8x32xf32>
    %45 = arith.truncf %31 : vector<8x8xf32> to vector<8x8xbf16>
    %46 = vector.extract_strided_slice %12 {offsets = [0, 0], sizes = [8, 32], strides = [1, 1]} : vector<8x128xbf16> to vector<8x32xbf16>
    %cst_28 = arith.constant dense<0.000000e+00> : vector<8x32xf32>
    %47 = tpu.matmul %45, %46, %cst_28 {dimension_numbers = #tpu.dot_dimension_numbers<[1], [0], [0], [1], [0, 0, 1, 1], [], []>} : vector<8x8xbf16>, vector<8x32xbf16>, vector<8x32xf32> -> vector<8x32xf32>
    %48 = arith.addf %44, %47 : vector<8x32xf32>
    %c0_29 = arith.constant 0 : index
    %c0_30 = arith.constant 0 : index
    %c0_31 = arith.constant 0 : index
    %49 = vector.load %arg10[%c0_29, %c0_30, %c0_31] : memref<4x8x32xf32, #tpu.memory_space<vmem>>, vector<1x8x32xf32>
    %50 = vector.shape_cast %49 : vector<1x8x32xf32> to vector<8x32xf32>
    %51 = vector.shape_cast %48 : vector<8x32xf32> to vector<1x8x32xf32>
    tpu.vector_store %arg10[%c0_29, %c0_30, %c0_31], %51 {strides = array<i32>} : memref<4x8x32xf32, #tpu.memory_space<vmem>>, vector<1x8x32xf32>,
    %c0_32 = arith.constant 0 : index
    %c0_33 = arith.constant 0 : index
    %c0_34 = arith.constant 0 : index
    %52 = vector.load %arg8[%c0_32, %c0_33, %c0_34] : memref<4x8x1xf32, #tpu.memory_space<vmem>>, vector<1x8x1xf32>
    %53 = vector.shape_cast %52 : vector<1x8x1xf32> to vector<8x1xf32>
    %54 = vector.shape_cast %26 : vector<8x1xf32> to vector<1x8x1xf32>
    tpu.vector_store %arg8[%c0_32, %c0_33, %c0_34], %54 {strides = array<i32>} : memref<4x8x1xf32, #tpu.memory_space<vmem>>, vector<1x8x1xf32>,
    %55 = vector.extract_strided_slice %8 {offsets = [0, 32], sizes = [8, 32], strides = [1, 1]} : vector<8x128xbf16> to vector<8x32xbf16>
    %56 = vector.extract_strided_slice %10 {offsets = [0, 32], sizes = [8, 32], strides = [1, 1]} : vector<8x128xbf16> to vector<8x32xbf16>
    %cst_35 = arith.constant dense<0.000000e+00> : vector<8x8xf32>
    %57 = tpu.matmul %55, %56, %cst_35 {dimension_numbers = #tpu.dot_dimension_numbers<[1], [1], [0], [0], [0, 0, 1, 0], [], []>} : vector<8x32xbf16>, vector<8x32xbf16>, vector<8x8xf32> -> vector<8x8xf32>
    %58 = vector.broadcast %16 : vector<1x8xf32> to vector<8x8xf32>
    %59 = arith.addf %57, %58 : vector<8x8xf32>
    %c1 = arith.constant 1 : index
    %c0_36 = arith.constant 0 : index
    %c0_37 = arith.constant 0 : index
    %60 = vector.load %arg8[%c1, %c0_36, %c0_37] : memref<4x8x1xf32, #tpu.memory_space<vmem>>, vector<1x8x1xf32>
    %61 = vector.shape_cast %60 : vector<1x8x1xf32> to vector<8x1xf32>
    %cst_38 = arith.constant dense<0xFF800000> : vector<8xf32>
    %62 = vector.multi_reduction <maximumf>, %59, %cst_38 [1] : vector<8x8xf32> to vector<8xf32>
    %63 = vector.shape_cast %62 : vector<8xf32> to vector<8x1xf32>
    %64 = arith.maximumf %61, %63 : vector<8x1xf32>
    %65 = arith.subf %61, %64 : vector<8x1xf32>
    %66 = math.exp %65 : vector<8x1xf32>
    %67 = vector.broadcast %64 : vector<8x1xf32> to vector<8x8xf32>
    %68 = arith.subf %59, %67 : vector<8x8xf32>
    %69 = math.exp %68 : vector<8x8xf32>
    %c1_39 = arith.constant 1 : index
    %c0_40 = arith.constant 0 : index
    %c0_41 = arith.constant 0 : index
    %70 = vector.load %arg9[%c1_39, %c0_40, %c0_41] : memref<4x8x1xf32, #tpu.memory_space<vmem>>, vector<1x8x1xf32>
    %71 = vector.shape_cast %70 : vector<1x8x1xf32> to vector<8x1xf32>
    %72 = arith.mulf %66, %71 : vector<8x1xf32>
    %cst_42 = arith.constant dense<0.000000e+00> : vector<8xf32>
    %73 = vector.multi_reduction <add>, %69, %cst_42 [1] : vector<8x8xf32> to vector<8xf32>
    %74 = vector.shape_cast %73 : vector<8xf32> to vector<8x1xf32>
    %75 = arith.addf %72, %74 : vector<8x1xf32>
    %c1_43 = arith.constant 1 : index
    %c0_44 = arith.constant 0 : index
    %c0_45 = arith.constant 0 : index
    %76 = vector.load %arg9[%c1_43, %c0_44, %c0_45] : memref<4x8x1xf32, #tpu.memory_space<vmem>>, vector<1x8x1xf32>
    %77 = vector.shape_cast %76 : vector<1x8x1xf32> to vector<8x1xf32>
    %78 = vector.shape_cast %75 : vector<8x1xf32> to vector<1x8x1xf32>
    tpu.vector_store %arg9[%c1_43, %c0_44, %c0_45], %78 {strides = array<i32>} : memref<4x8x1xf32, #tpu.memory_space<vmem>>, vector<1x8x1xf32>,
    %c1_46 = arith.constant 1 : index
    %c0_47 = arith.constant 0 : index
    %c0_48 = arith.constant 0 : index
    %79 = vector.load %arg10[%c1_46, %c0_47, %c0_48] : memref<4x8x32xf32, #tpu.memory_space<vmem>>, vector<1x8x32xf32>
    %80 = vector.shape_cast %79 : vector<1x8x32xf32> to vector<8x32xf32>
    %81 = vector.broadcast %66 : vector<8x1xf32> to vector<8x32xf32>
    %82 = arith.mulf %81, %80 : vector<8x32xf32>
    %83 = arith.truncf %69 : vector<8x8xf32> to vector<8x8xbf16>
    %84 = vector.extract_strided_slice %12 {offsets = [0, 32], sizes = [8, 32], strides = [1, 1]} : vector<8x128xbf16> to vector<8x32xbf16>
    %cst_49 = arith.constant dense<0.000000e+00> : vector<8x32xf32>
    %85 = tpu.matmul %83, %84, %cst_49 {dimension_numbers = #tpu.dot_dimension_numbers<[1], [0], [0], [1], [0, 0, 1, 1], [], []>} : vector<8x8xbf16>, vector<8x32xbf16>, vector<8x32xf32> -> vector<8x32xf32>
    %86 = arith.addf %82, %85 : vector<8x32xf32>
    %c1_50 = arith.constant 1 : index
    %c0_51 = arith.constant 0 : index
    %c0_52 = arith.constant 0 : index
    %87 = vector.load %arg10[%c1_50, %c0_51, %c0_52] : memref<4x8x32xf32, #tpu.memory_space<vmem>>, vector<1x8x32xf32>
    %88 = vector.shape_cast %87 : vector<1x8x32xf32> to vector<8x32xf32>
    %89 = vector.shape_cast %86 : vector<8x32xf32> to vector<1x8x32xf32>
    tpu.vector_store %arg10[%c1_50, %c0_51, %c0_52], %89 {strides = array<i32>} : memref<4x8x32xf32, #tpu.memory_space<vmem>>, vector<1x8x32xf32>,
    %c1_53 = arith.constant 1 : index
    %c0_54 = arith.constant 0 : index
    %c0_55 = arith.constant 0 : index
    %90 = vector.load %arg8[%c1_53, %c0_54, %c0_55] : memref<4x8x1xf32, #tpu.memory_space<vmem>>, vector<1x8x1xf32>
    %91 = vector.shape_cast %90 : vector<1x8x1xf32> to vector<8x1xf32>
    %92 = vector.shape_cast %64 : vector<8x1xf32> to vector<1x8x1xf32>
    tpu.vector_store %arg8[%c1_53, %c0_54, %c0_55], %92 {strides = array<i32>} : memref<4x8x1xf32, #tpu.memory_space<vmem>>, vector<1x8x1xf32>,
    %93 = vector.extract_strided_slice %8 {offsets = [0, 64], sizes = [8, 32], strides = [1, 1]} : vector<8x128xbf16> to vector<8x32xbf16>
    %94 = vector.extract_strided_slice %10 {offsets = [0, 64], sizes = [8, 32], strides = [1, 1]} : vector<8x128xbf16> to vector<8x32xbf16>
    %cst_56 = arith.constant dense<0.000000e+00> : vector<8x8xf32>
    %95 = tpu.matmul %93, %94, %cst_56 {dimension_numbers = #tpu.dot_dimension_numbers<[1], [1], [0], [0], [0, 0, 1, 0], [], []>} : vector<8x32xbf16>, vector<8x32xbf16>, vector<8x8xf32> -> vector<8x8xf32>
    %96 = vector.broadcast %16 : vector<1x8xf32> to vector<8x8xf32>
    %97 = arith.addf %95, %96 : vector<8x8xf32>
    %c2 = arith.constant 2 : index
    %c0_57 = arith.constant 0 : index
    %c0_58 = arith.constant 0 : index
    %98 = vector.load %arg8[%c2, %c0_57, %c0_58] : memref<4x8x1xf32, #tpu.memory_space<vmem>>, vector<1x8x1xf32>
    %99 = vector.shape_cast %98 : vector<1x8x1xf32> to vector<8x1xf32>
    %cst_59 = arith.constant dense<0xFF800000> : vector<8xf32>
    %100 = vector.multi_reduction <maximumf>, %97, %cst_59 [1] : vector<8x8xf32> to vector<8xf32>
    %101 = vector.shape_cast %100 : vector<8xf32> to vector<8x1xf32>
    %102 = arith.maximumf %99, %101 : vector<8x1xf32>
    %103 = arith.subf %99, %102 : vector<8x1xf32>
    %104 = math.exp %103 : vector<8x1xf32>
    %105 = vector.broadcast %102 : vector<8x1xf32> to vector<8x8xf32>
    %106 = arith.subf %97, %105 : vector<8x8xf32>
    %107 = math.exp %106 : vector<8x8xf32>
    %c2_60 = arith.constant 2 : index
    %c0_61 = arith.constant 0 : index
    %c0_62 = arith.constant 0 : index
    %108 = vector.load %arg9[%c2_60, %c0_61, %c0_62] : memref<4x8x1xf32, #tpu.memory_space<vmem>>, vector<1x8x1xf32>
    %109 = vector.shape_cast %108 : vector<1x8x1xf32> to vector<8x1xf32>
    %110 = arith.mulf %104, %109 : vector<8x1xf32>
    %cst_63 = arith.constant dense<0.000000e+00> : vector<8xf32>
    %111 = vector.multi_reduction <add>, %107, %cst_63 [1] : vector<8x8xf32> to vector<8xf32>
    %112 = vector.shape_cast %111 : vector<8xf32> to vector<8x1xf32>
    %113 = arith.addf %110, %112 : vector<8x1xf32>
    %c2_64 = arith.constant 2 : index
    %c0_65 = arith.constant 0 : index
    %c0_66 = arith.constant 0 : index
    %114 = vector.load %arg9[%c2_64, %c0_65, %c0_66] : memref<4x8x1xf32, #tpu.memory_space<vmem>>, vector<1x8x1xf32>
    %115 = vector.shape_cast %114 : vector<1x8x1xf32> to vector<8x1xf32>
    %116 = vector.shape_cast %113 : vector<8x1xf32> to vector<1x8x1xf32>
    tpu.vector_store %arg9[%c2_64, %c0_65, %c0_66], %116 {strides = array<i32>} : memref<4x8x1xf32, #tpu.memory_space<vmem>>, vector<1x8x1xf32>,
    %c2_67 = arith.constant 2 : index
    %c0_68 = arith.constant 0 : index
    %c0_69 = arith.constant 0 : index
    %117 = vector.load %arg10[%c2_67, %c0_68, %c0_69] : memref<4x8x32xf32, #tpu.memory_space<vmem>>, vector<1x8x32xf32>
    %118 = vector.shape_cast %117 : vector<1x8x32xf32> to vector<8x32xf32>
    %119 = vector.broadcast %104 : vector<8x1xf32> to vector<8x32xf32>
    %120 = arith.mulf %119, %118 : vector<8x32xf32>
    %121 = arith.truncf %107 : vector<8x8xf32> to vector<8x8xbf16>
    %122 = vector.extract_strided_slice %12 {offsets = [0, 64], sizes = [8, 32], strides = [1, 1]} : vector<8x128xbf16> to vector<8x32xbf16>
    %cst_70 = arith.constant dense<0.000000e+00> : vector<8x32xf32>
    %123 = tpu.matmul %121, %122, %cst_70 {dimension_numbers = #tpu.dot_dimension_numbers<[1], [0], [0], [1], [0, 0, 1, 1], [], []>} : vector<8x8xbf16>, vector<8x32xbf16>, vector<8x32xf32> -> vector<8x32xf32>
    %124 = arith.addf %120, %123 : vector<8x32xf32>
    %c2_71 = arith.constant 2 : index
    %c0_72 = arith.constant 0 : index
    %c0_73 = arith.constant 0 : index
    %125 = vector.load %arg10[%c2_71, %c0_72, %c0_73] : memref<4x8x32xf32, #tpu.memory_space<vmem>>, vector<1x8x32xf32>
    %126 = vector.shape_cast %125 : vector<1x8x32xf32> to vector<8x32xf32>
    %127 = vector.shape_cast %124 : vector<8x32xf32> to vector<1x8x32xf32>
    tpu.vector_store %arg10[%c2_71, %c0_72, %c0_73], %127 {strides = array<i32>} : memref<4x8x32xf32, #tpu.memory_space<vmem>>, vector<1x8x32xf32>,
    %c2_74 = arith.constant 2 : index
    %c0_75 = arith.constant 0 : index
    %c0_76 = arith.constant 0 : index
    %128 = vector.load %arg8[%c2_74, %c0_75, %c0_76] : memref<4x8x1xf32, #tpu.memory_space<vmem>>, vector<1x8x1xf32>
    %129 = vector.shape_cast %128 : vector<1x8x1xf32> to vector<8x1xf32>
    %130 = vector.shape_cast %102 : vector<8x1xf32> to vector<1x8x1xf32>
    tpu.vector_store %arg8[%c2_74, %c0_75, %c0_76], %130 {strides = array<i32>} : memref<4x8x1xf32, #tpu.memory_space<vmem>>, vector<1x8x1xf32>,
    %131 = vector.extract_strided_slice %8 {offsets = [0, 96], sizes = [8, 32], strides = [1, 1]} : vector<8x128xbf16> to vector<8x32xbf16>
    %132 = vector.extract_strided_slice %10 {offsets = [0, 96], sizes = [8, 32], strides = [1, 1]} : vector<8x128xbf16> to vector<8x32xbf16>
    %cst_77 = arith.constant dense<0.000000e+00> : vector<8x8xf32>
    %133 = tpu.matmul %131, %132, %cst_77 {dimension_numbers = #tpu.dot_dimension_numbers<[1], [1], [0], [0], [0, 0, 1, 0], [], []>} : vector<8x32xbf16>, vector<8x32xbf16>, vector<8x8xf32> -> vector<8x8xf32>
    %134 = vector.broadcast %16 : vector<1x8xf32> to vector<8x8xf32>
    %135 = arith.addf %133, %134 : vector<8x8xf32>
    %c3 = arith.constant 3 : index
    %c0_78 = arith.constant 0 : index
    %c0_79 = arith.constant 0 : index
    %136 = vector.load %arg8[%c3, %c0_78, %c0_79] : memref<4x8x1xf32, #tpu.memory_space<vmem>>, vector<1x8x1xf32>
    %137 = vector.shape_cast %136 : vector<1x8x1xf32> to vector<8x1xf32>
    %cst_80 = arith.constant dense<0xFF800000> : vector<8xf32>
    %138 = vector.multi_reduction <maximumf>, %135, %cst_80 [1] : vector<8x8xf32> to vector<8xf32>
    %139 = vector.shape_cast %138 : vector<8xf32> to vector<8x1xf32>
    %140 = arith.maximumf %137, %139 : vector<8x1xf32>
    %141 = arith.subf %137, %140 : vector<8x1xf32>
    %142 = math.exp %141 : vector<8x1xf32>
    %143 = vector.broadcast %140 : vector<8x1xf32> to vector<8x8xf32>
    %144 = arith.subf %135, %143 : vector<8x8xf32>
    %145 = math.exp %144 : vector<8x8xf32>
    %c3_81 = arith.constant 3 : index
    %c0_82 = arith.constant 0 : index
    %c0_83 = arith.constant 0 : index
    %146 = vector.load %arg9[%c3_81, %c0_82, %c0_83] : memref<4x8x1xf32, #tpu.memory_space<vmem>>, vector<1x8x1xf32>
    %147 = vector.shape_cast %146 : vector<1x8x1xf32> to vector<8x1xf32>
    %148 = arith.mulf %142, %147 : vector<8x1xf32>
    %cst_84 = arith.constant dense<0.000000e+00> : vector<8xf32>
    %149 = vector.multi_reduction <add>, %145, %cst_84 [1] : vector<8x8xf32> to vector<8xf32>
    %150 = vector.shape_cast %149 : vector<8xf32> to vector<8x1xf32>
    %151 = arith.addf %148, %150 : vector<8x1xf32>
    %c3_85 = arith.constant 3 : index
    %c0_86 = arith.constant 0 : index
    %c0_87 = arith.constant 0 : index
    %152 = vector.load %arg9[%c3_85, %c0_86, %c0_87] : memref<4x8x1xf32, #tpu.memory_space<vmem>>, vector<1x8x1xf32>
    %153 = vector.shape_cast %152 : vector<1x8x1xf32> to vector<8x1xf32>
    %154 = vector.shape_cast %151 : vector<8x1xf32> to vector<1x8x1xf32>
    tpu.vector_store %arg9[%c3_85, %c0_86, %c0_87], %154 {strides = array<i32>} : memref<4x8x1xf32, #tpu.memory_space<vmem>>, vector<1x8x1xf32>,
    %c3_88 = arith.constant 3 : index
    %c0_89 = arith.constant 0 : index
    %c0_90 = arith.constant 0 : index
    %155 = vector.load %arg10[%c3_88, %c0_89, %c0_90] : memref<4x8x32xf32, #tpu.memory_space<vmem>>, vector<1x8x32xf32>
    %156 = vector.shape_cast %155 : vector<1x8x32xf32> to vector<8x32xf32>
    %157 = vector.broadcast %142 : vector<8x1xf32> to vector<8x32xf32>
    %158 = arith.mulf %157, %156 : vector<8x32xf32>
    %159 = arith.truncf %145 : vector<8x8xf32> to vector<8x8xbf16>
    %160 = vector.extract_strided_slice %12 {offsets = [0, 96], sizes = [8, 32], strides = [1, 1]} : vector<8x128xbf16> to vector<8x32xbf16>
    %cst_91 = arith.constant dense<0.000000e+00> : vector<8x32xf32>
    %161 = tpu.matmul %159, %160, %cst_91 {dimension_numbers = #tpu.dot_dimension_numbers<[1], [0], [0], [1], [0, 0, 1, 1], [], []>} : vector<8x8xbf16>, vector<8x32xbf16>, vector<8x32xf32> -> vector<8x32xf32>
    %162 = arith.addf %158, %161 : vector<8x32xf32>
    %c3_92 = arith.constant 3 : index
    %c0_93 = arith.constant 0 : index
    %c0_94 = arith.constant 0 : index
    %163 = vector.load %arg10[%c3_92, %c0_93, %c0_94] : memref<4x8x32xf32, #tpu.memory_space<vmem>>, vector<1x8x32xf32>
    %164 = vector.shape_cast %163 : vector<1x8x32xf32> to vector<8x32xf32>
    %165 = vector.shape_cast %162 : vector<8x32xf32> to vector<1x8x32xf32>
    tpu.vector_store %arg10[%c3_92, %c0_93, %c0_94], %165 {strides = array<i32>} : memref<4x8x32xf32, #tpu.memory_space<vmem>>, vector<1x8x32xf32>,
    %c3_95 = arith.constant 3 : index
    %c0_96 = arith.constant 0 : index
    %c0_97 = arith.constant 0 : index
    %166 = vector.load %arg8[%c3_95, %c0_96, %c0_97] : memref<4x8x1xf32, #tpu.memory_space<vmem>>, vector<1x8x1xf32>
    %167 = vector.shape_cast %166 : vector<1x8x1xf32> to vector<8x1xf32>
    %168 = vector.shape_cast %140 : vector<8x1xf32> to vector<1x8x1xf32>
    tpu.vector_store %arg8[%c3_95, %c0_96, %c0_97], %168 {strides = array<i32>} : memref<4x8x1xf32, #tpu.memory_space<vmem>>, vector<1x8x1xf32>,
    %c0_i32_98 = arith.constant 0 : i32
    %169 = arith.cmpi eq, %arg2, %c0_i32_98 : i32
    %170 = arith.extui %169 : i1 to i32
    %c0_i32_99 = arith.constant 0 : i32
    %171 = arith.cmpi ne, %170, %c0_i32_99 : i32
    scf.if %171 {
      %c0_100 = arith.constant 0 : index
      %c0_101 = arith.constant 0 : index
      %c0_102 = arith.constant 0 : index
      %172 = vector.load %arg10[%c0_100, %c0_101, %c0_102] : memref<4x8x32xf32, #tpu.memory_space<vmem>>, vector<1x8x32xf32>
      %173 = vector.shape_cast %172 : vector<1x8x32xf32> to vector<8x32xf32>
      %c0_103 = arith.constant 0 : index
      %c0_104 = arith.constant 0 : index
      %c0_105 = arith.constant 0 : index
      %174 = vector.load %arg9[%c0_103, %c0_104, %c0_105] : memref<4x8x1xf32, #tpu.memory_space<vmem>>, vector<1x8x1xf32>
      %175 = vector.shape_cast %174 : vector<1x8x1xf32> to vector<8x1xf32>
      %176 = tpu.reciprocal %175 {approx = true} : vector<8x1xf32> -> vector<8x1xf32>
      %177 = vector.broadcast %176 : vector<8x1xf32> to vector<8x32xf32>
      %178 = arith.mulf %173, %177 : vector<8x32xf32>
      %c1_106 = arith.constant 1 : index
      %c0_107 = arith.constant 0 : index
      %c0_108 = arith.constant 0 : index
      %179 = vector.load %arg10[%c1_106, %c0_107, %c0_108] : memref<4x8x32xf32, #tpu.memory_space<vmem>>, vector<1x8x32xf32>
      %180 = vector.shape_cast %179 : vector<1x8x32xf32> to vector<8x32xf32>
      %c1_109 = arith.constant 1 : index
      %c0_110 = arith.constant 0 : index
      %c0_111 = arith.constant 0 : index
      %181 = vector.load %arg9[%c1_109, %c0_110, %c0_111] : memref<4x8x1xf32, #tpu.memory_space<vmem>>, vector<1x8x1xf32>
      %182 = vector.shape_cast %181 : vector<1x8x1xf32> to vector<8x1xf32>
      %183 = tpu.reciprocal %182 {approx = true} : vector<8x1xf32> -> vector<8x1xf32>
      %184 = vector.broadcast %183 : vector<8x1xf32> to vector<8x32xf32>
      %185 = arith.mulf %180, %184 : vector<8x32xf32>
      %c2_112 = arith.constant 2 : index
      %c0_113 = arith.constant 0 : index
      %c0_114 = arith.constant 0 : index
      %186 = vector.load %arg10[%c2_112, %c0_113, %c0_114] : memref<4x8x32xf32, #tpu.memory_space<vmem>>, vector<1x8x32xf32>
      %187 = vector.shape_cast %186 : vector<1x8x32xf32> to vector<8x32xf32>
      %c2_115 = arith.constant 2 : index
      %c0_116 = arith.constant 0 : index
      %c0_117 = arith.constant 0 : index
      %188 = vector.load %arg9[%c2_115, %c0_116, %c0_117] : memref<4x8x1xf32, #tpu.memory_space<vmem>>, vector<1x8x1xf32>
      %189 = vector.shape_cast %188 : vector<1x8x1xf32> to vector<8x1xf32>
      %190 = tpu.reciprocal %189 {approx = true} : vector<8x1xf32> -> vector<8x1xf32>
      %191 = vector.broadcast %190 : vector<8x1xf32> to vector<8x32xf32>
      %192 = arith.mulf %187, %191 : vector<8x32xf32>
      %c3_118 = arith.constant 3 : index
      %c0_119 = arith.constant 0 : index
      %c0_120 = arith.constant 0 : index
      %193 = vector.load %arg10[%c3_118, %c0_119, %c0_120] : memref<4x8x32xf32, #tpu.memory_space<vmem>>, vector<1x8x32xf32>
      %194 = vector.shape_cast %193 : vector<1x8x32xf32> to vector<8x32xf32>
      %c3_121 = arith.constant 3 : index
      %c0_122 = arith.constant 0 : index
      %c0_123 = arith.constant 0 : index
      %195 = vector.load %arg9[%c3_121, %c0_122, %c0_123] : memref<4x8x1xf32, #tpu.memory_space<vmem>>, vector<1x8x1xf32>
      %196 = vector.shape_cast %195 : vector<1x8x1xf32> to vector<8x1xf32>
      %197 = tpu.reciprocal %196 {approx = true} : vector<8x1xf32> -> vector<8x1xf32>
      %198 = vector.broadcast %197 : vector<8x1xf32> to vector<8x32xf32>
      %199 = arith.mulf %194, %198 : vector<8x32xf32>
      %200 = tpu.concatenate %178, %185, %192, %199 in 1 : vector<8x32xf32>, vector<8x32xf32>, vector<8x32xf32>, vector<8x32xf32> -> vector<8x128xf32>
      %201 = arith.truncf %200 : vector<8x128xf32> to vector<8x128xbf16>
      %c0_124 = arith.constant 0 : index
      %c0_125 = arith.constant 0 : index
      %c0_126 = arith.constant 0 : index
      %202 = vector.load %arg7[%c0_124, %c0_125, %c0_126] : memref<1x8x128xbf16, #tpu.memory_space<vmem>>, vector<1x8x128xbf16>
      %203 = vector.shape_cast %202 : vector<1x8x128xbf16> to vector<8x128xbf16>
      %204 = vector.shape_cast %201 : vector<8x128xbf16> to vector<1x8x128xbf16>
      tpu.vector_store %arg7[%c0_124, %c0_125, %c0_126], %204 {strides = array<i32>} : memref<1x8x128xbf16, #tpu.memory_space<vmem>>, vector<1x8x128xbf16>,
    } else {
    }
    return
  }
  func.func @transform_0(%arg0: i32, %arg1: i32, %arg2: i32) -> (i32, i32, i32) {
    %c0_i32 = arith.constant 0 : i32
    %c0_i32_0 = arith.constant 0 : i32
    return %arg0, %arg1, %c0_i32 : i32, i32, i32
  }
  func.func @transform_1(%arg0: i32, %arg1: i32, %arg2: i32) -> (i32, i32, i32) {
    %c1_i32 = arith.constant 1 : i32
    %c0_i32 = arith.constant 0 : i32
    return %arg0, %arg2, %c1_i32 : i32, i32, i32
  }
  func.func @transform_2(%arg0: i32, %arg1: i32, %arg2: i32) -> (i32, i32, i32) {
    %c2_i32 = arith.constant 2 : i32
    %c0_i32 = arith.constant 0 : i32
    return %arg0, %arg2, %c2_i32 : i32, i32, i32
  }
  func.func @transform_3(%arg0: i32, %arg1: i32, %arg2: i32) -> (i32, i32, i32) {
    %c0_i32 = arith.constant 0 : i32
    %c0_i32_0 = arith.constant 0 : i32
    return %arg0, %c0_i32, %arg2 : i32, i32, i32
  }
  func.func @transform_4(%arg0: i32, %arg1: i32, %arg2: i32) -> (i32, i32, i32) {
    %c0_i32 = arith.constant 0 : i32
    %c0_i32_0 = arith.constant 0 : i32
    return %arg0, %arg1, %c0_i32 : i32, i32, i32
  }
}

module attributes {stable_mosaic.version = 11 : i64} {
  func.func @_linear_kernel(%arg0: i32, %arg1: i32, %arg2: i32, %arg3: memref<16x128xbf16, #tpu.memory_space<vmem>>, %arg4: memref<128x128xbf16, #tpu.memory_space<vmem>>, %arg5: memref<1x128xf32, #tpu.memory_space<vmem>>, %arg6: memref<16x128xbf16, #tpu.memory_space<vmem>>, %arg7: memref<16x128xbf16, #tpu.memory_space<vmem>>, %arg8: memref<16x128xf32, #tpu.memory_space<vmem>>) attributes {dimension_semantics = [#tpu.dimension_semantics<parallel>, #tpu.dimension_semantics<parallel>, #tpu.dimension_semantics<arbitrary>], iteration_bounds = array<i64: 1, 1, 1>, scalar_prefetch = 0 : i64, scratch_operands = 1 : i64, tpu.core_type = #tpu.core_type<tc>, window_params = [{transform_indices = @transform_0, window_bounds = array<i64: 16, 128>}, {transform_indices = @transform_1, window_bounds = array<i64: 128, 128>}, {transform_indices = @transform_2, window_bounds = array<i64: 1, 128>}, {transform_indices = @transform_3, window_bounds = array<i64: 16, 128>}, {transform_indices = @transform_4, window_bounds = array<i64: 16, 128>}]} {
    %c0_i32 = arith.constant 0 : i32
    %0 = arith.cmpi eq, %arg2, %c0_i32 : i32
    %1 = arith.extui %0 : i1 to i32
    %c0_i32_0 = arith.constant 0 : i32
    %2 = arith.cmpi ne, %1, %c0_i32_0 : i32
    scf.if %2 {
      %cst_10 = arith.constant 0.000000e+00 : f32
      %12 = vector.broadcast %cst_10 : f32 to vector<16x128xf32>
      %c0_11 = arith.constant 0 : index
      %c0_12 = arith.constant 0 : index
      %13 = vector.load %arg8[%c0_11, %c0_12] : memref<16x128xf32, #tpu.memory_space<vmem>>, vector<16x128xf32>
      tpu.vector_store %arg8[%c0_11, %c0_12], %12 {strides = array<i32>} : memref<16x128xf32, #tpu.memory_space<vmem>>, vector<16x128xf32>,
    } else {
    }
    %c0 = arith.constant 0 : index
    %c0_1 = arith.constant 0 : index
    %3 = vector.load %arg8[%c0, %c0_1] : memref<16x128xf32, #tpu.memory_space<vmem>>, vector<16x128xf32>
    %c0_2 = arith.constant 0 : index
    %c0_3 = arith.constant 0 : index
    %4 = vector.load %arg3[%c0_2, %c0_3] : memref<16x128xbf16, #tpu.memory_space<vmem>>, vector<16x128xbf16>
    %c0_4 = arith.constant 0 : index
    %c0_5 = arith.constant 0 : index
    %5 = vector.load %arg4[%c0_4, %c0_5] : memref<128x128xbf16, #tpu.memory_space<vmem>>, vector<128x128xbf16>
    %cst = arith.constant dense<0.000000e+00> : vector<16x128xf32>
    %6 = tpu.matmul %4, %5, %cst {dimension_numbers = #tpu.dot_dimension_numbers<[1], [0], [0], [1], [0, 0, 1, 1], [], []>} : vector<16x128xbf16>, vector<128x128xbf16>, vector<16x128xf32> -> vector<16x128xf32>
    %7 = arith.addf %3, %6 : vector<16x128xf32>
    %c0_6 = arith.constant 0 : index
    %c0_7 = arith.constant 0 : index
    %8 = vector.load %arg8[%c0_6, %c0_7] : memref<16x128xf32, #tpu.memory_space<vmem>>, vector<16x128xf32>
    tpu.vector_store %arg8[%c0_6, %c0_7], %7 {strides = array<i32>} : memref<16x128xf32, #tpu.memory_space<vmem>>, vector<16x128xf32>,
    %c0_i32_8 = arith.constant 0 : i32
    %9 = arith.cmpi eq, %arg2, %c0_i32_8 : i32
    %10 = arith.extui %9 : i1 to i32
    %c0_i32_9 = arith.constant 0 : i32
    %11 = arith.cmpi ne, %10, %c0_i32_9 : i32
    scf.if %11 {
      %c0_10 = arith.constant 0 : index
      %c0_11 = arith.constant 0 : index
      %12 = vector.load %arg8[%c0_10, %c0_11] : memref<16x128xf32, #tpu.memory_space<vmem>>, vector<16x128xf32>
      %c0_12 = arith.constant 0 : index
      %c0_13 = arith.constant 0 : index
      %13 = vector.load %arg5[%c0_12, %c0_13] : memref<1x128xf32, #tpu.memory_space<vmem>>, vector<1x128xf32>
      %14 = vector.broadcast %13 : vector<1x128xf32> to vector<16x128xf32>
      %15 = arith.addf %12, %14 : vector<16x128xf32>
      %c0_14 = arith.constant 0 : index
      %c0_15 = arith.constant 0 : index
      %16 = vector.load %arg6[%c0_14, %c0_15] : memref<16x128xbf16, #tpu.memory_space<vmem>>, vector<16x128xbf16>
      %17 = arith.extf %16 : vector<16x128xbf16> to vector<16x128xf32>
      %18 = arith.addf %15, %17 : vector<16x128xf32>
      %19 = arith.truncf %18 : vector<16x128xf32> to vector<16x128xbf16>
      %c0_16 = arith.constant 0 : index
      %c0_17 = arith.constant 0 : index
      %20 = vector.load %arg7[%c0_16, %c0_17] : memref<16x128xbf16, #tpu.memory_space<vmem>>, vector<16x128xbf16>
      tpu.vector_store %arg7[%c0_16, %c0_17], %19 {strides = array<i32>} : memref<16x128xbf16, #tpu.memory_space<vmem>>, vector<16x128xbf16>,
    } else {
    }
    return
  }
  func.func @transform_0(%arg0: i32, %arg1: i32, %arg2: i32) -> (i32, i32) {
    %c0_i32 = arith.constant 0 : i32
    return %arg0, %arg2 : i32, i32
  }
  func.func @transform_1(%arg0: i32, %arg1: i32, %arg2: i32) -> (i32, i32) {
    %c0_i32 = arith.constant 0 : i32
    return %arg2, %arg1 : i32, i32
  }
  func.func @transform_2(%arg0: i32, %arg1: i32, %arg2: i32) -> (i32, i32) {
    %c0_i32 = arith.constant 0 : i32
    %c0_i32_0 = arith.constant 0 : i32
    return %c0_i32, %arg1 : i32, i32
  }
  func.func @transform_3(%arg0: i32, %arg1: i32, %arg2: i32) -> (i32, i32) {
    %c0_i32 = arith.constant 0 : i32
    return %arg0, %arg1 : i32, i32
  }
  func.func @transform_4(%arg0: i32, %arg1: i32, %arg2: i32) -> (i32, i32) {
    %c0_i32 = arith.constant 0 : i32
    return %arg0, %arg1 : i32, i32
  }
}

module attributes {stable_mosaic.version = 11 : i64} {
  func.func @_linear_kernel(%arg0: i32, %arg1: i32, %arg2: i32, %arg3: memref<16x128xbf16, #tpu.memory_space<vmem>>, %arg4: memref<128x256xbf16, #tpu.memory_space<vmem>>, %arg5: memref<1x256xf32, #tpu.memory_space<vmem>>, %arg6: memref<16x256xbf16, #tpu.memory_space<vmem>>, %arg7: memref<16x256xf32, #tpu.memory_space<vmem>>) attributes {dimension_semantics = [#tpu.dimension_semantics<parallel>, #tpu.dimension_semantics<parallel>, #tpu.dimension_semantics<arbitrary>], iteration_bounds = array<i64: 1, 1, 1>, scalar_prefetch = 0 : i64, scratch_operands = 1 : i64, tpu.core_type = #tpu.core_type<tc>, window_params = [{transform_indices = @transform_0, window_bounds = array<i64: 16, 128>}, {transform_indices = @transform_1, window_bounds = array<i64: 128, 256>}, {transform_indices = @transform_2, window_bounds = array<i64: 1, 256>}, {transform_indices = @transform_3, window_bounds = array<i64: 16, 256>}]} {
    %c0_i32 = arith.constant 0 : i32
    %0 = arith.cmpi eq, %arg2, %c0_i32 : i32
    %1 = arith.extui %0 : i1 to i32
    %c0_i32_0 = arith.constant 0 : i32
    %2 = arith.cmpi ne, %1, %c0_i32_0 : i32
    scf.if %2 {
      %cst_10 = arith.constant 0.000000e+00 : f32
      %12 = vector.broadcast %cst_10 : f32 to vector<16x256xf32>
      %c0_11 = arith.constant 0 : index
      %c0_12 = arith.constant 0 : index
      %13 = vector.load %arg7[%c0_11, %c0_12] : memref<16x256xf32, #tpu.memory_space<vmem>>, vector<16x256xf32>
      tpu.vector_store %arg7[%c0_11, %c0_12], %12 {strides = array<i32>} : memref<16x256xf32, #tpu.memory_space<vmem>>, vector<16x256xf32>,
    } else {
    }
    %c0 = arith.constant 0 : index
    %c0_1 = arith.constant 0 : index
    %3 = vector.load %arg7[%c0, %c0_1] : memref<16x256xf32, #tpu.memory_space<vmem>>, vector<16x256xf32>
    %c0_2 = arith.constant 0 : index
    %c0_3 = arith.constant 0 : index
    %4 = vector.load %arg3[%c0_2, %c0_3] : memref<16x128xbf16, #tpu.memory_space<vmem>>, vector<16x128xbf16>
    %c0_4 = arith.constant 0 : index
    %c0_5 = arith.constant 0 : index
    %5 = vector.load %arg4[%c0_4, %c0_5] : memref<128x256xbf16, #tpu.memory_space<vmem>>, vector<128x256xbf16>
    %cst = arith.constant dense<0.000000e+00> : vector<16x256xf32>
    %6 = tpu.matmul %4, %5, %cst {dimension_numbers = #tpu.dot_dimension_numbers<[1], [0], [0], [1], [0, 0, 1, 1], [], []>} : vector<16x128xbf16>, vector<128x256xbf16>, vector<16x256xf32> -> vector<16x256xf32>
    %7 = arith.addf %3, %6 : vector<16x256xf32>
    %c0_6 = arith.constant 0 : index
    %c0_7 = arith.constant 0 : index
    %8 = vector.load %arg7[%c0_6, %c0_7] : memref<16x256xf32, #tpu.memory_space<vmem>>, vector<16x256xf32>
    tpu.vector_store %arg7[%c0_6, %c0_7], %7 {strides = array<i32>} : memref<16x256xf32, #tpu.memory_space<vmem>>, vector<16x256xf32>,
    %c0_i32_8 = arith.constant 0 : i32
    %9 = arith.cmpi eq, %arg2, %c0_i32_8 : i32
    %10 = arith.extui %9 : i1 to i32
    %c0_i32_9 = arith.constant 0 : i32
    %11 = arith.cmpi ne, %10, %c0_i32_9 : i32
    scf.if %11 {
      %c0_10 = arith.constant 0 : index
      %c0_11 = arith.constant 0 : index
      %12 = vector.load %arg7[%c0_10, %c0_11] : memref<16x256xf32, #tpu.memory_space<vmem>>, vector<16x256xf32>
      %c0_12 = arith.constant 0 : index
      %c0_13 = arith.constant 0 : index
      %13 = vector.load %arg5[%c0_12, %c0_13] : memref<1x256xf32, #tpu.memory_space<vmem>>, vector<1x256xf32>
      %14 = vector.broadcast %13 : vector<1x256xf32> to vector<16x256xf32>
      %15 = arith.addf %12, %14 : vector<16x256xf32>
      %cst_14 = arith.constant 0.000000e+00 : f32
      %16 = vector.broadcast %cst_14 : f32 to vector<16x256xf32>
      %17 = arith.maximumf %15, %16 : vector<16x256xf32>
      %18 = arith.truncf %17 : vector<16x256xf32> to vector<16x256xbf16>
      %c0_15 = arith.constant 0 : index
      %c0_16 = arith.constant 0 : index
      %19 = vector.load %arg6[%c0_15, %c0_16] : memref<16x256xbf16, #tpu.memory_space<vmem>>, vector<16x256xbf16>
      tpu.vector_store %arg6[%c0_15, %c0_16], %18 {strides = array<i32>} : memref<16x256xbf16, #tpu.memory_space<vmem>>, vector<16x256xbf16>,
    } else {
    }
    return
  }
  func.func @transform_0(%arg0: i32, %arg1: i32, %arg2: i32) -> (i32, i32) {
    %c0_i32 = arith.constant 0 : i32
    return %arg0, %arg2 : i32, i32
  }
  func.func @transform_1(%arg0: i32, %arg1: i32, %arg2: i32) -> (i32, i32) {
    %c0_i32 = arith.constant 0 : i32
    return %arg2, %arg1 : i32, i32
  }
  func.func @transform_2(%arg0: i32, %arg1: i32, %arg2: i32) -> (i32, i32) {
    %c0_i32 = arith.constant 0 : i32
    %c0_i32_0 = arith.constant 0 : i32
    return %c0_i32, %arg1 : i32, i32
  }
  func.func @transform_3(%arg0: i32, %arg1: i32, %arg2: i32) -> (i32, i32) {
    %c0_i32 = arith.constant 0 : i32
    return %arg0, %arg1 : i32, i32
  }
}

module attributes {stable_mosaic.version = 11 : i64} {
  func.func @_linear_kernel(%arg0: i32, %arg1: i32, %arg2: i32, %arg3: memref<16x256xbf16, #tpu.memory_space<vmem>>, %arg4: memref<256x128xbf16, #tpu.memory_space<vmem>>, %arg5: memref<1x128xf32, #tpu.memory_space<vmem>>, %arg6: memref<16x128xbf16, #tpu.memory_space<vmem>>, %arg7: memref<16x128xbf16, #tpu.memory_space<vmem>>, %arg8: memref<16x128xf32, #tpu.memory_space<vmem>>) attributes {dimension_semantics = [#tpu.dimension_semantics<parallel>, #tpu.dimension_semantics<parallel>, #tpu.dimension_semantics<arbitrary>], iteration_bounds = array<i64: 1, 1, 1>, scalar_prefetch = 0 : i64, scratch_operands = 1 : i64, tpu.core_type = #tpu.core_type<tc>, window_params = [{transform_indices = @transform_0, window_bounds = array<i64: 16, 256>}, {transform_indices = @transform_1, window_bounds = array<i64: 256, 128>}, {transform_indices = @transform_2, window_bounds = array<i64: 1, 128>}, {transform_indices = @transform_3, window_bounds = array<i64: 16, 128>}, {transform_indices = @transform_4, window_bounds = array<i64: 16, 128>}]} {
    %c0_i32 = arith.constant 0 : i32
    %0 = arith.cmpi eq, %arg2, %c0_i32 : i32
    %1 = arith.extui %0 : i1 to i32
    %c0_i32_0 = arith.constant 0 : i32
    %2 = arith.cmpi ne, %1, %c0_i32_0 : i32
    scf.if %2 {
      %cst_10 = arith.constant 0.000000e+00 : f32
      %12 = vector.broadcast %cst_10 : f32 to vector<16x128xf32>
      %c0_11 = arith.constant 0 : index
      %c0_12 = arith.constant 0 : index
      %13 = vector.load %arg8[%c0_11, %c0_12] : memref<16x128xf32, #tpu.memory_space<vmem>>, vector<16x128xf32>
      tpu.vector_store %arg8[%c0_11, %c0_12], %12 {strides = array<i32>} : memref<16x128xf32, #tpu.memory_space<vmem>>, vector<16x128xf32>,
    } else {
    }
    %c0 = arith.constant 0 : index
    %c0_1 = arith.constant 0 : index
    %3 = vector.load %arg8[%c0, %c0_1] : memref<16x128xf32, #tpu.memory_space<vmem>>, vector<16x128xf32>
    %c0_2 = arith.constant 0 : index
    %c0_3 = arith.constant 0 : index
    %4 = vector.load %arg3[%c0_2, %c0_3] : memref<16x256xbf16, #tpu.memory_space<vmem>>, vector<16x256xbf16>
    %c0_4 = arith.constant 0 : index
    %c0_5 = arith.constant 0 : index
    %5 = vector.load %arg4[%c0_4, %c0_5] : memref<256x128xbf16, #tpu.memory_space<vmem>>, vector<256x128xbf16>
    %cst = arith.constant dense<0.000000e+00> : vector<16x128xf32>
    %6 = tpu.matmul %4, %5, %cst {dimension_numbers = #tpu.dot_dimension_numbers<[1], [0], [0], [1], [0, 0, 1, 1], [], []>} : vector<16x256xbf16>, vector<256x128xbf16>, vector<16x128xf32> -> vector<16x128xf32>
    %7 = arith.addf %3, %6 : vector<16x128xf32>
    %c0_6 = arith.constant 0 : index
    %c0_7 = arith.constant 0 : index
    %8 = vector.load %arg8[%c0_6, %c0_7] : memref<16x128xf32, #tpu.memory_space<vmem>>, vector<16x128xf32>
    tpu.vector_store %arg8[%c0_6, %c0_7], %7 {strides = array<i32>} : memref<16x128xf32, #tpu.memory_space<vmem>>, vector<16x128xf32>,
    %c0_i32_8 = arith.constant 0 : i32
    %9 = arith.cmpi eq, %arg2, %c0_i32_8 : i32
    %10 = arith.extui %9 : i1 to i32
    %c0_i32_9 = arith.constant 0 : i32
    %11 = arith.cmpi ne, %10, %c0_i32_9 : i32
    scf.if %11 {
      %c0_10 = arith.constant 0 : index
      %c0_11 = arith.constant 0 : index
      %12 = vector.load %arg8[%c0_10, %c0_11] : memref<16x128xf32, #tpu.memory_space<vmem>>, vector<16x128xf32>
      %c0_12 = arith.constant 0 : index
      %c0_13 = arith.constant 0 : index
      %13 = vector.load %arg5[%c0_12, %c0_13] : memref<1x128xf32, #tpu.memory_space<vmem>>, vector<1x128xf32>
      %14 = vector.broadcast %13 : vector<1x128xf32> to vector<16x128xf32>
      %15 = arith.addf %12, %14 : vector<16x128xf32>
      %c0_14 = arith.constant 0 : index
      %c0_15 = arith.constant 0 : index
      %16 = vector.load %arg6[%c0_14, %c0_15] : memref<16x128xbf16, #tpu.memory_space<vmem>>, vector<16x128xbf16>
      %17 = arith.extf %16 : vector<16x128xbf16> to vector<16x128xf32>
      %18 = arith.addf %15, %17 : vector<16x128xf32>
      %19 = arith.truncf %18 : vector<16x128xf32> to vector<16x128xbf16>
      %c0_16 = arith.constant 0 : index
      %c0_17 = arith.constant 0 : index
      %20 = vector.load %arg7[%c0_16, %c0_17] : memref<16x128xbf16, #tpu.memory_space<vmem>>, vector<16x128xbf16>
      tpu.vector_store %arg7[%c0_16, %c0_17], %19 {strides = array<i32>} : memref<16x128xbf16, #tpu.memory_space<vmem>>, vector<16x128xbf16>,
    } else {
    }
    return
  }
  func.func @transform_0(%arg0: i32, %arg1: i32, %arg2: i32) -> (i32, i32) {
    %c0_i32 = arith.constant 0 : i32
    return %arg0, %arg2 : i32, i32
  }
  func.func @transform_1(%arg0: i32, %arg1: i32, %arg2: i32) -> (i32, i32) {
    %c0_i32 = arith.constant 0 : i32
    return %arg2, %arg1 : i32, i32
  }
  func.func @transform_2(%arg0: i32, %arg1: i32, %arg2: i32) -> (i32, i32) {
    %c0_i32 = arith.constant 0 : i32
    %c0_i32_0 = arith.constant 0 : i32
    return %c0_i32, %arg1 : i32, i32
  }
  func.func @transform_3(%arg0: i32, %arg1: i32, %arg2: i32) -> (i32, i32) {
    %c0_i32 = arith.constant 0 : i32
    return %arg0, %arg1 : i32, i32
  }
  func.func @transform_4(%arg0: i32, %arg1: i32, %arg2: i32) -> (i32, i32) {
    %c0_i32 = arith.constant 0 : i32
    return %arg0, %arg1 : i32, i32
  }
}

module attributes {stable_mosaic.version = 11 : i64} {
  func.func @_linear_kernel(%arg0: i32, %arg1: i32, %arg2: i32, %arg3: memref<16x128xbf16, #tpu.memory_space<vmem>>, %arg4: memref<128x256xbf16, #tpu.memory_space<vmem>>, %arg5: memref<1x256xf32, #tpu.memory_space<vmem>>, %arg6: memref<16x256xbf16, #tpu.memory_space<vmem>>, %arg7: memref<16x256xf32, #tpu.memory_space<vmem>>) attributes {dimension_semantics = [#tpu.dimension_semantics<parallel>, #tpu.dimension_semantics<parallel>, #tpu.dimension_semantics<arbitrary>], iteration_bounds = array<i64: 1, 1, 1>, scalar_prefetch = 0 : i64, scratch_operands = 1 : i64, tpu.core_type = #tpu.core_type<tc>, window_params = [{transform_indices = @transform_0, window_bounds = array<i64: 16, 128>}, {transform_indices = @transform_1, window_bounds = array<i64: 128, 256>}, {transform_indices = @transform_2, window_bounds = array<i64: 1, 256>}, {transform_indices = @transform_3, window_bounds = array<i64: 16, 256>}]} {
    %c0_i32 = arith.constant 0 : i32
    %0 = arith.cmpi eq, %arg2, %c0_i32 : i32
    %1 = arith.extui %0 : i1 to i32
    %c0_i32_0 = arith.constant 0 : i32
    %2 = arith.cmpi ne, %1, %c0_i32_0 : i32
    scf.if %2 {
      %cst_10 = arith.constant 0.000000e+00 : f32
      %12 = vector.broadcast %cst_10 : f32 to vector<16x256xf32>
      %c0_11 = arith.constant 0 : index
      %c0_12 = arith.constant 0 : index
      %13 = vector.load %arg7[%c0_11, %c0_12] : memref<16x256xf32, #tpu.memory_space<vmem>>, vector<16x256xf32>
      tpu.vector_store %arg7[%c0_11, %c0_12], %12 {strides = array<i32>} : memref<16x256xf32, #tpu.memory_space<vmem>>, vector<16x256xf32>,
    } else {
    }
    %c0 = arith.constant 0 : index
    %c0_1 = arith.constant 0 : index
    %3 = vector.load %arg7[%c0, %c0_1] : memref<16x256xf32, #tpu.memory_space<vmem>>, vector<16x256xf32>
    %c0_2 = arith.constant 0 : index
    %c0_3 = arith.constant 0 : index
    %4 = vector.load %arg3[%c0_2, %c0_3] : memref<16x128xbf16, #tpu.memory_space<vmem>>, vector<16x128xbf16>
    %c0_4 = arith.constant 0 : index
    %c0_5 = arith.constant 0 : index
    %5 = vector.load %arg4[%c0_4, %c0_5] : memref<128x256xbf16, #tpu.memory_space<vmem>>, vector<128x256xbf16>
    %cst = arith.constant dense<0.000000e+00> : vector<16x256xf32>
    %6 = tpu.matmul %4, %5, %cst {dimension_numbers = #tpu.dot_dimension_numbers<[1], [0], [0], [1], [0, 0, 1, 1], [], []>} : vector<16x128xbf16>, vector<128x256xbf16>, vector<16x256xf32> -> vector<16x256xf32>
    %7 = arith.addf %3, %6 : vector<16x256xf32>
    %c0_6 = arith.constant 0 : index
    %c0_7 = arith.constant 0 : index
    %8 = vector.load %arg7[%c0_6, %c0_7] : memref<16x256xf32, #tpu.memory_space<vmem>>, vector<16x256xf32>
    tpu.vector_store %arg7[%c0_6, %c0_7], %7 {strides = array<i32>} : memref<16x256xf32, #tpu.memory_space<vmem>>, vector<16x256xf32>,
    %c0_i32_8 = arith.constant 0 : i32
    %9 = arith.cmpi eq, %arg2, %c0_i32_8 : i32
    %10 = arith.extui %9 : i1 to i32
    %c0_i32_9 = arith.constant 0 : i32
    %11 = arith.cmpi ne, %10, %c0_i32_9 : i32
    scf.if %11 {
      %c0_10 = arith.constant 0 : index
      %c0_11 = arith.constant 0 : index
      %12 = vector.load %arg7[%c0_10, %c0_11] : memref<16x256xf32, #tpu.memory_space<vmem>>, vector<16x256xf32>
      %c0_12 = arith.constant 0 : index
      %c0_13 = arith.constant 0 : index
      %13 = vector.load %arg5[%c0_12, %c0_13] : memref<1x256xf32, #tpu.memory_space<vmem>>, vector<1x256xf32>
      %14 = vector.broadcast %13 : vector<1x256xf32> to vector<16x256xf32>
      %15 = arith.addf %12, %14 : vector<16x256xf32>
      %cst_14 = arith.constant 0.000000e+00 : f32
      %16 = vector.broadcast %cst_14 : f32 to vector<16x256xf32>
      %17 = arith.maximumf %15, %16 : vector<16x256xf32>
      %18 = arith.truncf %17 : vector<16x256xf32> to vector<16x256xbf16>
      %c0_15 = arith.constant 0 : index
      %c0_16 = arith.constant 0 : index
      %19 = vector.load %arg6[%c0_15, %c0_16] : memref<16x256xbf16, #tpu.memory_space<vmem>>, vector<16x256xbf16>
      tpu.vector_store %arg6[%c0_15, %c0_16], %18 {strides = array<i32>} : memref<16x256xbf16, #tpu.memory_space<vmem>>, vector<16x256xbf16>,
    } else {
    }
    return
  }
  func.func @transform_0(%arg0: i32, %arg1: i32, %arg2: i32) -> (i32, i32) {
    %c0_i32 = arith.constant 0 : i32
    return %arg0, %arg2 : i32, i32
  }
  func.func @transform_1(%arg0: i32, %arg1: i32, %arg2: i32) -> (i32, i32) {
    %c0_i32 = arith.constant 0 : i32
    return %arg2, %arg1 : i32, i32
  }
  func.func @transform_2(%arg0: i32, %arg1: i32, %arg2: i32) -> (i32, i32) {
    %c0_i32 = arith.constant 0 : i32
    %c0_i32_0 = arith.constant 0 : i32
    return %c0_i32, %arg1 : i32, i32
  }
  func.func @transform_3(%arg0: i32, %arg1: i32, %arg2: i32) -> (i32, i32) {
    %c0_i32 = arith.constant 0 : i32
    return %arg0, %arg1 : i32, i32
  }
}

module attributes {stable_mosaic.version = 11 : i64} {
  func.func @_linear_kernel(%arg0: i32, %arg1: i32, %arg2: i32, %arg3: memref<16x256xbf16, #tpu.memory_space<vmem>>, %arg4: memref<256x128xbf16, #tpu.memory_space<vmem>>, %arg5: memref<1x128xf32, #tpu.memory_space<vmem>>, %arg6: memref<16x128xbf16, #tpu.memory_space<vmem>>, %arg7: memref<16x128xbf16, #tpu.memory_space<vmem>>, %arg8: memref<16x128xf32, #tpu.memory_space<vmem>>) attributes {dimension_semantics = [#tpu.dimension_semantics<parallel>, #tpu.dimension_semantics<parallel>, #tpu.dimension_semantics<arbitrary>], iteration_bounds = array<i64: 1, 1, 1>, scalar_prefetch = 0 : i64, scratch_operands = 1 : i64, tpu.core_type = #tpu.core_type<tc>, window_params = [{transform_indices = @transform_0, window_bounds = array<i64: 16, 256>}, {transform_indices = @transform_1, window_bounds = array<i64: 256, 128>}, {transform_indices = @transform_2, window_bounds = array<i64: 1, 128>}, {transform_indices = @transform_3, window_bounds = array<i64: 16, 128>}, {transform_indices = @transform_4, window_bounds = array<i64: 16, 128>}]} {
    %c0_i32 = arith.constant 0 : i32
    %0 = arith.cmpi eq, %arg2, %c0_i32 : i32
    %1 = arith.extui %0 : i1 to i32
    %c0_i32_0 = arith.constant 0 : i32
    %2 = arith.cmpi ne, %1, %c0_i32_0 : i32
    scf.if %2 {
      %cst_10 = arith.constant 0.000000e+00 : f32
      %12 = vector.broadcast %cst_10 : f32 to vector<16x128xf32>
      %c0_11 = arith.constant 0 : index
      %c0_12 = arith.constant 0 : index
      %13 = vector.load %arg8[%c0_11, %c0_12] : memref<16x128xf32, #tpu.memory_space<vmem>>, vector<16x128xf32>
      tpu.vector_store %arg8[%c0_11, %c0_12], %12 {strides = array<i32>} : memref<16x128xf32, #tpu.memory_space<vmem>>, vector<16x128xf32>,
    } else {
    }
    %c0 = arith.constant 0 : index
    %c0_1 = arith.constant 0 : index
    %3 = vector.load %arg8[%c0, %c0_1] : memref<16x128xf32, #tpu.memory_space<vmem>>, vector<16x128xf32>
    %c0_2 = arith.constant 0 : index
    %c0_3 = arith.constant 0 : index
    %4 = vector.load %arg3[%c0_2, %c0_3] : memref<16x256xbf16, #tpu.memory_space<vmem>>, vector<16x256xbf16>
    %c0_4 = arith.constant 0 : index
    %c0_5 = arith.constant 0 : index
    %5 = vector.load %arg4[%c0_4, %c0_5] : memref<256x128xbf16, #tpu.memory_space<vmem>>, vector<256x128xbf16>
    %cst = arith.constant dense<0.000000e+00> : vector<16x128xf32>
    %6 = tpu.matmul %4, %5, %cst {dimension_numbers = #tpu.dot_dimension_numbers<[1], [0], [0], [1], [0, 0, 1, 1], [], []>} : vector<16x256xbf16>, vector<256x128xbf16>, vector<16x128xf32> -> vector<16x128xf32>
    %7 = arith.addf %3, %6 : vector<16x128xf32>
    %c0_6 = arith.constant 0 : index
    %c0_7 = arith.constant 0 : index
    %8 = vector.load %arg8[%c0_6, %c0_7] : memref<16x128xf32, #tpu.memory_space<vmem>>, vector<16x128xf32>
    tpu.vector_store %arg8[%c0_6, %c0_7], %7 {strides = array<i32>} : memref<16x128xf32, #tpu.memory_space<vmem>>, vector<16x128xf32>,
    %c0_i32_8 = arith.constant 0 : i32
    %9 = arith.cmpi eq, %arg2, %c0_i32_8 : i32
    %10 = arith.extui %9 : i1 to i32
    %c0_i32_9 = arith.constant 0 : i32
    %11 = arith.cmpi ne, %10, %c0_i32_9 : i32
    scf.if %11 {
      %c0_10 = arith.constant 0 : index
      %c0_11 = arith.constant 0 : index
      %12 = vector.load %arg8[%c0_10, %c0_11] : memref<16x128xf32, #tpu.memory_space<vmem>>, vector<16x128xf32>
      %c0_12 = arith.constant 0 : index
      %c0_13 = arith.constant 0 : index
      %13 = vector.load %arg5[%c0_12, %c0_13] : memref<1x128xf32, #tpu.memory_space<vmem>>, vector<1x128xf32>
      %14 = vector.broadcast %13 : vector<1x128xf32> to vector<16x128xf32>
      %15 = arith.addf %12, %14 : vector<16x128xf32>
      %c0_14 = arith.constant 0 : index
      %c0_15 = arith.constant 0 : index
      %16 = vector.load %arg6[%c0_14, %c0_15] : memref<16x128xbf16, #tpu.memory_space<vmem>>, vector<16x128xbf16>
      %17 = arith.extf %16 : vector<16x128xbf16> to vector<16x128xf32>
      %18 = arith.addf %15, %17 : vector<16x128xf32>
      %19 = arith.truncf %18 : vector<16x128xf32> to vector<16x128xbf16>
      %c0_16 = arith.constant 0 : index
      %c0_17 = arith.constant 0 : index
      %20 = vector.load %arg7[%c0_16, %c0_17] : memref<16x128xbf16, #tpu.memory_space<vmem>>, vector<16x128xbf16>
      tpu.vector_store %arg7[%c0_16, %c0_17], %19 {strides = array<i32>} : memref<16x128xbf16, #tpu.memory_space<vmem>>, vector<16x128xbf16>,
    } else {
    }
    return
  }
  func.func @transform_0(%arg0: i32, %arg1: i32, %arg2: i32) -> (i32, i32) {
    %c0_i32 = arith.constant 0 : i32
    return %arg0, %arg2 : i32, i32
  }
  func.func @transform_1(%arg0: i32, %arg1: i32, %arg2: i32) -> (i32, i32) {
    %c0_i32 = arith.constant 0 : i32
    return %arg2, %arg1 : i32, i32
  }
  func.func @transform_2(%arg0: i32, %arg1: i32, %arg2: i32) -> (i32, i32) {
    %c0_i32 = arith.constant 0 : i32
    %c0_i32_0 = arith.constant 0 : i32
    return %c0_i32, %arg1 : i32, i32
  }
  func.func @transform_3(%arg0: i32, %arg1: i32, %arg2: i32) -> (i32, i32) {
    %c0_i32 = arith.constant 0 : i32
    return %arg0, %arg1 : i32, i32
  }
  func.func @transform_4(%arg0: i32, %arg1: i32, %arg2: i32) -> (i32, i32) {
    %c0_i32 = arith.constant 0 : i32
    return %arg0, %arg1 : i32, i32
  }
}

module attributes {stable_mosaic.version = 11 : i64} {
  func.func @_linear_kernel(%arg0: i32, %arg1: i32, %arg2: i32, %arg3: memref<16x128xbf16, #tpu.memory_space<vmem>>, %arg4: memref<128x256xbf16, #tpu.memory_space<vmem>>, %arg5: memref<1x256xf32, #tpu.memory_space<vmem>>, %arg6: memref<16x256xbf16, #tpu.memory_space<vmem>>, %arg7: memref<16x256xf32, #tpu.memory_space<vmem>>) attributes {dimension_semantics = [#tpu.dimension_semantics<parallel>, #tpu.dimension_semantics<parallel>, #tpu.dimension_semantics<arbitrary>], iteration_bounds = array<i64: 1, 1, 1>, scalar_prefetch = 0 : i64, scratch_operands = 1 : i64, tpu.core_type = #tpu.core_type<tc>, window_params = [{transform_indices = @transform_0, window_bounds = array<i64: 16, 128>}, {transform_indices = @transform_1, window_bounds = array<i64: 128, 256>}, {transform_indices = @transform_2, window_bounds = array<i64: 1, 256>}, {transform_indices = @transform_3, window_bounds = array<i64: 16, 256>}]} {
    %c0_i32 = arith.constant 0 : i32
    %0 = arith.cmpi eq, %arg2, %c0_i32 : i32
    %1 = arith.extui %0 : i1 to i32
    %c0_i32_0 = arith.constant 0 : i32
    %2 = arith.cmpi ne, %1, %c0_i32_0 : i32
    scf.if %2 {
      %cst_10 = arith.constant 0.000000e+00 : f32
      %12 = vector.broadcast %cst_10 : f32 to vector<16x256xf32>
      %c0_11 = arith.constant 0 : index
      %c0_12 = arith.constant 0 : index
      %13 = vector.load %arg7[%c0_11, %c0_12] : memref<16x256xf32, #tpu.memory_space<vmem>>, vector<16x256xf32>
      tpu.vector_store %arg7[%c0_11, %c0_12], %12 {strides = array<i32>} : memref<16x256xf32, #tpu.memory_space<vmem>>, vector<16x256xf32>,
    } else {
    }
    %c0 = arith.constant 0 : index
    %c0_1 = arith.constant 0 : index
    %3 = vector.load %arg7[%c0, %c0_1] : memref<16x256xf32, #tpu.memory_space<vmem>>, vector<16x256xf32>
    %c0_2 = arith.constant 0 : index
    %c0_3 = arith.constant 0 : index
    %4 = vector.load %arg3[%c0_2, %c0_3] : memref<16x128xbf16, #tpu.memory_space<vmem>>, vector<16x128xbf16>
    %c0_4 = arith.constant 0 : index
    %c0_5 = arith.constant 0 : index
    %5 = vector.load %arg4[%c0_4, %c0_5] : memref<128x256xbf16, #tpu.memory_space<vmem>>, vector<128x256xbf16>
    %cst = arith.constant dense<0.000000e+00> : vector<16x256xf32>
    %6 = tpu.matmul %4, %5, %cst {dimension_numbers = #tpu.dot_dimension_numbers<[1], [0], [0], [1], [0, 0, 1, 1], [], []>} : vector<16x128xbf16>, vector<128x256xbf16>, vector<16x256xf32> -> vector<16x256xf32>
    %7 = arith.addf %3, %6 : vector<16x256xf32>
    %c0_6 = arith.constant 0 : index
    %c0_7 = arith.constant 0 : index
    %8 = vector.load %arg7[%c0_6, %c0_7] : memref<16x256xf32, #tpu.memory_space<vmem>>, vector<16x256xf32>
    tpu.vector_store %arg7[%c0_6, %c0_7], %7 {strides = array<i32>} : memref<16x256xf32, #tpu.memory_space<vmem>>, vector<16x256xf32>,
    %c0_i32_8 = arith.constant 0 : i32
    %9 = arith.cmpi eq, %arg2, %c0_i32_8 : i32
    %10 = arith.extui %9 : i1 to i32
    %c0_i32_9 = arith.constant 0 : i32
    %11 = arith.cmpi ne, %10, %c0_i32_9 : i32
    scf.if %11 {
      %c0_10 = arith.constant 0 : index
      %c0_11 = arith.constant 0 : index
      %12 = vector.load %arg7[%c0_10, %c0_11] : memref<16x256xf32, #tpu.memory_space<vmem>>, vector<16x256xf32>
      %c0_12 = arith.constant 0 : index
      %c0_13 = arith.constant 0 : index
      %13 = vector.load %arg5[%c0_12, %c0_13] : memref<1x256xf32, #tpu.memory_space<vmem>>, vector<1x256xf32>
      %14 = vector.broadcast %13 : vector<1x256xf32> to vector<16x256xf32>
      %15 = arith.addf %12, %14 : vector<16x256xf32>
      %16 = arith.truncf %15 : vector<16x256xf32> to vector<16x256xbf16>
      %c0_14 = arith.constant 0 : index
      %c0_15 = arith.constant 0 : index
      %17 = vector.load %arg6[%c0_14, %c0_15] : memref<16x256xbf16, #tpu.memory_space<vmem>>, vector<16x256xbf16>
      tpu.vector_store %arg6[%c0_14, %c0_15], %16 {strides = array<i32>} : memref<16x256xbf16, #tpu.memory_space<vmem>>, vector<16x256xbf16>,
    } else {
    }
    return
  }
  func.func @transform_0(%arg0: i32, %arg1: i32, %arg2: i32) -> (i32, i32) {
    %c0_i32 = arith.constant 0 : i32
    return %arg0, %arg2 : i32, i32
  }
  func.func @transform_1(%arg0: i32, %arg1: i32, %arg2: i32) -> (i32, i32) {
    %c0_i32 = arith.constant 0 : i32
    return %arg2, %arg1 : i32, i32
  }
  func.func @transform_2(%arg0: i32, %arg1: i32, %arg2: i32) -> (i32, i32) {
    %c0_i32 = arith.constant 0 : i32
    %c0_i32_0 = arith.constant 0 : i32
    return %c0_i32, %arg1 : i32, i32
  }
  func.func @transform_3(%arg0: i32, %arg1: i32, %arg2: i32) -> (i32, i32) {
    %c0_i32 = arith.constant 0 : i32
    return %arg0, %arg1 : i32, i32
  }
}

module attributes {stable_mosaic.version = 11 : i64} {
  func.func @_flash_mha_kernel(%arg0: i32, %arg1: i32, %arg2: i32, %arg3: memref<1x8x128xbf16, #tpu.memory_space<vmem>>, %arg4: memref<1x8x128xbf16, #tpu.memory_space<vmem>>, %arg5: memref<1x8x128xbf16, #tpu.memory_space<vmem>>, %arg6: memref<1x1x8xf32, #tpu.memory_space<vmem>>, %arg7: memref<1x8x128xbf16, #tpu.memory_space<vmem>>, %arg8: memref<4x8x1xf32, #tpu.memory_space<vmem>>, %arg9: memref<4x8x1xf32, #tpu.memory_space<vmem>>, %arg10: memref<4x8x32xf32, #tpu.memory_space<vmem>>) attributes {dimension_semantics = [#tpu.dimension_semantics<parallel>, #tpu.dimension_semantics<parallel>, #tpu.dimension_semantics<arbitrary>], iteration_bounds = array<i64: 2, 1, 1>, scalar_prefetch = 0 : i64, scratch_operands = 3 : i64, tpu.core_type = #tpu.core_type<tc>, window_params = [{transform_indices = @transform_0, window_bounds = array<i64: 1, 8, 128>}, {transform_indices = @transform_1, window_bounds = array<i64: 1, 8, 128>}, {transform_indices = @transform_2, window_bounds = array<i64: 1, 8, 128>}, {transform_indices = @transform_3, window_bounds = array<i64: 1, 1, 8>}, {transform_indices = @transform_4, window_bounds = array<i64: 1, 8, 128>}]} {
    %c0_i32 = arith.constant 0 : i32
    %0 = arith.cmpi eq, %arg2, %c0_i32 : i32
    %1 = arith.extui %0 : i1 to i32
    %c0_i32_0 = arith.constant 0 : i32
    %2 = arith.cmpi ne, %1, %c0_i32_0 : i32
    scf.if %2 {
      %cst_100 = arith.constant -1.000000e+30 : f32
      %172 = vector.broadcast %cst_100 : f32 to vector<4x8x1xf32>
      %c0_101 = arith.constant 0 : index
      %c0_102 = arith.constant 0 : index
      %c0_103 = arith.constant 0 : index
      %173 = vector.load %arg8[%c0_101, %c0_102, %c0_103] : memref<4x8x1xf32, #tpu.memory_space<vmem>>, vector<4x8x1xf32>
      tpu.vector_store %arg8[%c0_101, %c0_102, %c0_103], %172 {strides = array<i32>} : memref<4x8x1xf32, #tpu.memory_space<vmem>>, vector<4x8x1xf32>,
      %cst_104 = arith.constant 0.000000e+00 : f32
      %174 = vector.broadcast %cst_104 : f32 to vector<4x8x1xf32>
      %c0_105 = arith.constant 0 : index
      %c0_106 = arith.constant 0 : index
      %c0_107 = arith.constant 0 : index
      %175 = vector.load %arg9[%c0_105, %c0_106, %c0_107] : memref<4x8x1xf32, #tpu.memory_space<vmem>>, vector<4x8x1xf32>
      tpu.vector_store %arg9[%c0_105, %c0_106, %c0_107], %174 {strides = array<i32>} : memref<4x8x1xf32, #tpu.memory_space<vmem>>, vector<4x8x1xf32>,
      %cst_108 = arith.constant 0.000000e+00 : f32
      %176 = vector.broadcast %cst_108 : f32 to vector<4x8x32xf32>
      %c0_109 = arith.constant 0 : index
      %c0_110 = arith.constant 0 : index
      %c0_111 = arith.constant 0 : index
      %177 = vector.load %arg10[%c0_109, %c0_110, %c0_111] : memref<4x8x32xf32, #tpu.memory_space<vmem>>, vector<4x8x32xf32>
      tpu.vector_store %arg10[%c0_109, %c0_110, %c0_111], %176 {strides = array<i32>} : memref<4x8x32xf32, #tpu.memory_space<vmem>>, vector<4x8x32xf32>,
    } else {
    }
    %c0 = arith.constant 0 : index
    %c0_1 = arith.constant 0 : index
    %c0_2 = arith.constant 0 : index
    %3 = vector.load %arg3[%c0, %c0_1, %c0_2] : memref<1x8x128xbf16, #tpu.memory_space<vmem>>, vector<1x8x128xbf16>
    %4 = vector.shape_cast %3 : vector<1x8x128xbf16> to vector<8x128xbf16>
    %5 = arith.extf %4 : vector<8x128xbf16> to vector<8x128xf32>
    %cst = arith.constant 0.176776692 : f32
    %6 = vector.broadcast %cst : f32 to vector<8x128xf32>
    %7 = arith.mulf %5, %6 : vector<8x128xf32>
    %8 = arith.truncf %7 : vector<8x128xf32> to vector<8x128xbf16>
    %c0_3 = arith.constant 0 : index
    %c0_4 = arith.constant 0 : index
    %c0_5 = arith.constant 0 : index
    %9 = vector.load %arg4[%c0_3, %c0_4, %c0_5] : memref<1x8x128xbf16, #tpu.memory_space<vmem>>, vector<1x8x128xbf16>
    %10 = vector.shape_cast %9 : vector<1x8x128xbf16> to vector<8x128xbf16>
    %c0_6 = arith.constant 0 : index
    %c0_7 = arith.constant 0 : index
    %c0_8 = arith.constant 0 : index
    %11 = vector.load %arg5[%c0_6, %c0_7, %c0_8] : memref<1x8x128xbf16, #tpu.memory_space<vmem>>, vector<1x8x128xbf16>
    %12 = vector.shape_cast %11 : vector<1x8x128xbf16> to vector<8x128xbf16>
    %c0_9 = arith.constant 0 : index
    %c0_10 = arith.constant 0 : index
    %c0_11 = arith.constant 0 : index
    %13 = vector.load %arg6[%c0_9, %c0_10, %c0_11] : memref<1x1x8xf32, #tpu.memory_space<vmem>>, vector<1x1x8xf32>
    %14 = vector.shape_cast %13 : vector<1x1x8xf32> to vector<1x8xf32>
    %cst_12 = arith.constant -1.000000e+09 : f32
    %15 = vector.broadcast %cst_12 : f32 to vector<1x8xf32>
    %16 = arith.mulf %14, %15 : vector<1x8xf32>
    %17 = vector.extract_strided_slice %8 {offsets = [0, 0], sizes = [8, 32], strides = [1, 1]} : vector<8x128xbf16> to vector<8x32xbf16>
    %18 = vector.extract_strided_slice %10 {offsets = [0, 0], sizes = [8, 32], strides = [1, 1]} : vector<8x128xbf16> to vector<8x32xbf16>
    %cst_13 = arith.constant dense<0.000000e+00> : vector<8x8xf32>
    %19 = tpu.matmul %17, %18, %cst_13 {dimension_numbers = #tpu.dot_dimension_numbers<[1], [1], [0], [0], [0, 0, 1, 0], [], []>} : vector<8x32xbf16>, vector<8x32xbf16>, vector<8x8xf32> -> vector<8x8xf32>
    %20 = vector.broadcast %16 : vector<1x8xf32> to vector<8x8xf32>
    %21 = arith.addf %19, %20 : vector<8x8xf32>
    %c0_14 = arith.constant 0 : index
    %c0_15 = arith.constant 0 : index
    %c0_16 = arith.constant 0 : index
    %22 = vector.load %arg8[%c0_14, %c0_15, %c0_16] : memref<4x8x1xf32, #tpu.memory_space<vmem>>, vector<1x8x1xf32>
    %23 = vector.shape_cast %22 : vector<1x8x1xf32> to vector<8x1xf32>
    %cst_17 = arith.constant dense<0xFF800000> : vector<8xf32>
    %24 = vector.multi_reduction <maximumf>, %21, %cst_17 [1] : vector<8x8xf32> to vector<8xf32>
    %25 = vector.shape_cast %24 : vector<8xf32> to vector<8x1xf32>
    %26 = arith.maximumf %23, %25 : vector<8x1xf32>
    %27 = arith.subf %23, %26 : vector<8x1xf32>
    %28 = math.exp %27 : vector<8x1xf32>
    %29 = vector.broadcast %26 : vector<8x1xf32> to vector<8x8xf32>
    %30 = arith.subf %21, %29 : vector<8x8xf32>
    %31 = math.exp %30 : vector<8x8xf32>
    %c0_18 = arith.constant 0 : index
    %c0_19 = arith.constant 0 : index
    %c0_20 = arith.constant 0 : index
    %32 = vector.load %arg9[%c0_18, %c0_19, %c0_20] : memref<4x8x1xf32, #tpu.memory_space<vmem>>, vector<1x8x1xf32>
    %33 = vector.shape_cast %32 : vector<1x8x1xf32> to vector<8x1xf32>
    %34 = arith.mulf %28, %33 : vector<8x1xf32>
    %cst_21 = arith.constant dense<0.000000e+00> : vector<8xf32>
    %35 = vector.multi_reduction <add>, %31, %cst_21 [1] : vector<8x8xf32> to vector<8xf32>
    %36 = vector.shape_cast %35 : vector<8xf32> to vector<8x1xf32>
    %37 = arith.addf %34, %36 : vector<8x1xf32>
    %c0_22 = arith.constant 0 : index
    %c0_23 = arith.constant 0 : index
    %c0_24 = arith.constant 0 : index
    %38 = vector.load %arg9[%c0_22, %c0_23, %c0_24] : memref<4x8x1xf32, #tpu.memory_space<vmem>>, vector<1x8x1xf32>
    %39 = vector.shape_cast %38 : vector<1x8x1xf32> to vector<8x1xf32>
    %40 = vector.shape_cast %37 : vector<8x1xf32> to vector<1x8x1xf32>
    tpu.vector_store %arg9[%c0_22, %c0_23, %c0_24], %40 {strides = array<i32>} : memref<4x8x1xf32, #tpu.memory_space<vmem>>, vector<1x8x1xf32>,
    %c0_25 = arith.constant 0 : index
    %c0_26 = arith.constant 0 : index
    %c0_27 = arith.constant 0 : index
    %41 = vector.load %arg10[%c0_25, %c0_26, %c0_27] : memref<4x8x32xf32, #tpu.memory_space<vmem>>, vector<1x8x32xf32>
    %42 = vector.shape_cast %41 : vector<1x8x32xf32> to vector<8x32xf32>
    %43 = vector.broadcast %28 : vector<8x1xf32> to vector<8x32xf32>
    %44 = arith.mulf %43, %42 : vector<8x32xf32>
    %45 = arith.truncf %31 : vector<8x8xf32> to vector<8x8xbf16>
    %46 = vector.extract_strided_slice %12 {offsets = [0, 0], sizes = [8, 32], strides = [1, 1]} : vector<8x128xbf16> to vector<8x32xbf16>
    %cst_28 = arith.constant dense<0.000000e+00> : vector<8x32xf32>
    %47 = tpu.matmul %45, %46, %cst_28 {dimension_numbers = #tpu.dot_dimension_numbers<[1], [0], [0], [1], [0, 0, 1, 1], [], []>} : vector<8x8xbf16>, vector<8x32xbf16>, vector<8x32xf32> -> vector<8x32xf32>
    %48 = arith.addf %44, %47 : vector<8x32xf32>
    %c0_29 = arith.constant 0 : index
    %c0_30 = arith.constant 0 : index
    %c0_31 = arith.constant 0 : index
    %49 = vector.load %arg10[%c0_29, %c0_30, %c0_31] : memref<4x8x32xf32, #tpu.memory_space<vmem>>, vector<1x8x32xf32>
    %50 = vector.shape_cast %49 : vector<1x8x32xf32> to vector<8x32xf32>
    %51 = vector.shape_cast %48 : vector<8x32xf32> to vector<1x8x32xf32>
    tpu.vector_store %arg10[%c0_29, %c0_30, %c0_31], %51 {strides = array<i32>} : memref<4x8x32xf32, #tpu.memory_space<vmem>>, vector<1x8x32xf32>,
    %c0_32 = arith.constant 0 : index
    %c0_33 = arith.constant 0 : index
    %c0_34 = arith.constant 0 : index
    %52 = vector.load %arg8[%c0_32, %c0_33, %c0_34] : memref<4x8x1xf32, #tpu.memory_space<vmem>>, vector<1x8x1xf32>
    %53 = vector.shape_cast %52 : vector<1x8x1xf32> to vector<8x1xf32>
    %54 = vector.shape_cast %26 : vector<8x1xf32> to vector<1x8x1xf32>
    tpu.vector_store %arg8[%c0_32, %c0_33, %c0_34], %54 {strides = array<i32>} : memref<4x8x1xf32, #tpu.memory_space<vmem>>, vector<1x8x1xf32>,
    %55 = vector.extract_strided_slice %8 {offsets = [0, 32], sizes = [8, 32], strides = [1, 1]} : vector<8x128xbf16> to vector<8x32xbf16>
    %56 = vector.extract_strided_slice %10 {offsets = [0, 32], sizes = [8, 32], strides = [1, 1]} : vector<8x128xbf16> to vector<8x32xbf16>
    %cst_35 = arith.constant dense<0.000000e+00> : vector<8x8xf32>
    %57 = tpu.matmul %55, %56, %cst_35 {dimension_numbers = #tpu.dot_dimension_numbers<[1], [1], [0], [0], [0, 0, 1, 0], [], []>} : vector<8x32xbf16>, vector<8x32xbf16>, vector<8x8xf32> -> vector<8x8xf32>
    %58 = vector.broadcast %16 : vector<1x8xf32> to vector<8x8xf32>
    %59 = arith.addf %57, %58 : vector<8x8xf32>
    %c1 = arith.constant 1 : index
    %c0_36 = arith.constant 0 : index
    %c0_37 = arith.constant 0 : index
    %60 = vector.load %arg8[%c1, %c0_36, %c0_37] : memref<4x8x1xf32, #tpu.memory_space<vmem>>, vector<1x8x1xf32>
    %61 = vector.shape_cast %60 : vector<1x8x1xf32> to vector<8x1xf32>
    %cst_38 = arith.constant dense<0xFF800000> : vector<8xf32>
    %62 = vector.multi_reduction <maximumf>, %59, %cst_38 [1] : vector<8x8xf32> to vector<8xf32>
    %63 = vector.shape_cast %62 : vector<8xf32> to vector<8x1xf32>
    %64 = arith.maximumf %61, %63 : vector<8x1xf32>
    %65 = arith.subf %61, %64 : vector<8x1xf32>
    %66 = math.exp %65 : vector<8x1xf32>
    %67 = vector.broadcast %64 : vector<8x1xf32> to vector<8x8xf32>
    %68 = arith.subf %59, %67 : vector<8x8xf32>
    %69 = math.exp %68 : vector<8x8xf32>
    %c1_39 = arith.constant 1 : index
    %c0_40 = arith.constant 0 : index
    %c0_41 = arith.constant 0 : index
    %70 = vector.load %arg9[%c1_39, %c0_40, %c0_41] : memref<4x8x1xf32, #tpu.memory_space<vmem>>, vector<1x8x1xf32>
    %71 = vector.shape_cast %70 : vector<1x8x1xf32> to vector<8x1xf32>
    %72 = arith.mulf %66, %71 : vector<8x1xf32>
    %cst_42 = arith.constant dense<0.000000e+00> : vector<8xf32>
    %73 = vector.multi_reduction <add>, %69, %cst_42 [1] : vector<8x8xf32> to vector<8xf32>
    %74 = vector.shape_cast %73 : vector<8xf32> to vector<8x1xf32>
    %75 = arith.addf %72, %74 : vector<8x1xf32>
    %c1_43 = arith.constant 1 : index
    %c0_44 = arith.constant 0 : index
    %c0_45 = arith.constant 0 : index
    %76 = vector.load %arg9[%c1_43, %c0_44, %c0_45] : memref<4x8x1xf32, #tpu.memory_space<vmem>>, vector<1x8x1xf32>
    %77 = vector.shape_cast %76 : vector<1x8x1xf32> to vector<8x1xf32>
    %78 = vector.shape_cast %75 : vector<8x1xf32> to vector<1x8x1xf32>
    tpu.vector_store %arg9[%c1_43, %c0_44, %c0_45], %78 {strides = array<i32>} : memref<4x8x1xf32, #tpu.memory_space<vmem>>, vector<1x8x1xf32>,
    %c1_46 = arith.constant 1 : index
    %c0_47 = arith.constant 0 : index
    %c0_48 = arith.constant 0 : index
    %79 = vector.load %arg10[%c1_46, %c0_47, %c0_48] : memref<4x8x32xf32, #tpu.memory_space<vmem>>, vector<1x8x32xf32>
    %80 = vector.shape_cast %79 : vector<1x8x32xf32> to vector<8x32xf32>
    %81 = vector.broadcast %66 : vector<8x1xf32> to vector<8x32xf32>
    %82 = arith.mulf %81, %80 : vector<8x32xf32>
    %83 = arith.truncf %69 : vector<8x8xf32> to vector<8x8xbf16>
    %84 = vector.extract_strided_slice %12 {offsets = [0, 32], sizes = [8, 32], strides = [1, 1]} : vector<8x128xbf16> to vector<8x32xbf16>
    %cst_49 = arith.constant dense<0.000000e+00> : vector<8x32xf32>
    %85 = tpu.matmul %83, %84, %cst_49 {dimension_numbers = #tpu.dot_dimension_numbers<[1], [0], [0], [1], [0, 0, 1, 1], [], []>} : vector<8x8xbf16>, vector<8x32xbf16>, vector<8x32xf32> -> vector<8x32xf32>
    %86 = arith.addf %82, %85 : vector<8x32xf32>
    %c1_50 = arith.constant 1 : index
    %c0_51 = arith.constant 0 : index
    %c0_52 = arith.constant 0 : index
    %87 = vector.load %arg10[%c1_50, %c0_51, %c0_52] : memref<4x8x32xf32, #tpu.memory_space<vmem>>, vector<1x8x32xf32>
    %88 = vector.shape_cast %87 : vector<1x8x32xf32> to vector<8x32xf32>
    %89 = vector.shape_cast %86 : vector<8x32xf32> to vector<1x8x32xf32>
    tpu.vector_store %arg10[%c1_50, %c0_51, %c0_52], %89 {strides = array<i32>} : memref<4x8x32xf32, #tpu.memory_space<vmem>>, vector<1x8x32xf32>,
    %c1_53 = arith.constant 1 : index
    %c0_54 = arith.constant 0 : index
    %c0_55 = arith.constant 0 : index
    %90 = vector.load %arg8[%c1_53, %c0_54, %c0_55] : memref<4x8x1xf32, #tpu.memory_space<vmem>>, vector<1x8x1xf32>
    %91 = vector.shape_cast %90 : vector<1x8x1xf32> to vector<8x1xf32>
    %92 = vector.shape_cast %64 : vector<8x1xf32> to vector<1x8x1xf32>
    tpu.vector_store %arg8[%c1_53, %c0_54, %c0_55], %92 {strides = array<i32>} : memref<4x8x1xf32, #tpu.memory_space<vmem>>, vector<1x8x1xf32>,
    %93 = vector.extract_strided_slice %8 {offsets = [0, 64], sizes = [8, 32], strides = [1, 1]} : vector<8x128xbf16> to vector<8x32xbf16>
    %94 = vector.extract_strided_slice %10 {offsets = [0, 64], sizes = [8, 32], strides = [1, 1]} : vector<8x128xbf16> to vector<8x32xbf16>
    %cst_56 = arith.constant dense<0.000000e+00> : vector<8x8xf32>
    %95 = tpu.matmul %93, %94, %cst_56 {dimension_numbers = #tpu.dot_dimension_numbers<[1], [1], [0], [0], [0, 0, 1, 0], [], []>} : vector<8x32xbf16>, vector<8x32xbf16>, vector<8x8xf32> -> vector<8x8xf32>
    %96 = vector.broadcast %16 : vector<1x8xf32> to vector<8x8xf32>
    %97 = arith.addf %95, %96 : vector<8x8xf32>
    %c2 = arith.constant 2 : index
    %c0_57 = arith.constant 0 : index
    %c0_58 = arith.constant 0 : index
    %98 = vector.load %arg8[%c2, %c0_57, %c0_58] : memref<4x8x1xf32, #tpu.memory_space<vmem>>, vector<1x8x1xf32>
    %99 = vector.shape_cast %98 : vector<1x8x1xf32> to vector<8x1xf32>
    %cst_59 = arith.constant dense<0xFF800000> : vector<8xf32>
    %100 = vector.multi_reduction <maximumf>, %97, %cst_59 [1] : vector<8x8xf32> to vector<8xf32>
    %101 = vector.shape_cast %100 : vector<8xf32> to vector<8x1xf32>
    %102 = arith.maximumf %99, %101 : vector<8x1xf32>
    %103 = arith.subf %99, %102 : vector<8x1xf32>
    %104 = math.exp %103 : vector<8x1xf32>
    %105 = vector.broadcast %102 : vector<8x1xf32> to vector<8x8xf32>
    %106 = arith.subf %97, %105 : vector<8x8xf32>
    %107 = math.exp %106 : vector<8x8xf32>
    %c2_60 = arith.constant 2 : index
    %c0_61 = arith.constant 0 : index
    %c0_62 = arith.constant 0 : index
    %108 = vector.load %arg9[%c2_60, %c0_61, %c0_62] : memref<4x8x1xf32, #tpu.memory_space<vmem>>, vector<1x8x1xf32>
    %109 = vector.shape_cast %108 : vector<1x8x1xf32> to vector<8x1xf32>
    %110 = arith.mulf %104, %109 : vector<8x1xf32>
    %cst_63 = arith.constant dense<0.000000e+00> : vector<8xf32>
    %111 = vector.multi_reduction <add>, %107, %cst_63 [1] : vector<8x8xf32> to vector<8xf32>
    %112 = vector.shape_cast %111 : vector<8xf32> to vector<8x1xf32>
    %113 = arith.addf %110, %112 : vector<8x1xf32>
    %c2_64 = arith.constant 2 : index
    %c0_65 = arith.constant 0 : index
    %c0_66 = arith.constant 0 : index
    %114 = vector.load %arg9[%c2_64, %c0_65, %c0_66] : memref<4x8x1xf32, #tpu.memory_space<vmem>>, vector<1x8x1xf32>
    %115 = vector.shape_cast %114 : vector<1x8x1xf32> to vector<8x1xf32>
    %116 = vector.shape_cast %113 : vector<8x1xf32> to vector<1x8x1xf32>
    tpu.vector_store %arg9[%c2_64, %c0_65, %c0_66], %116 {strides = array<i32>} : memref<4x8x1xf32, #tpu.memory_space<vmem>>, vector<1x8x1xf32>,
    %c2_67 = arith.constant 2 : index
    %c0_68 = arith.constant 0 : index
    %c0_69 = arith.constant 0 : index
    %117 = vector.load %arg10[%c2_67, %c0_68, %c0_69] : memref<4x8x32xf32, #tpu.memory_space<vmem>>, vector<1x8x32xf32>
    %118 = vector.shape_cast %117 : vector<1x8x32xf32> to vector<8x32xf32>
    %119 = vector.broadcast %104 : vector<8x1xf32> to vector<8x32xf32>
    %120 = arith.mulf %119, %118 : vector<8x32xf32>
    %121 = arith.truncf %107 : vector<8x8xf32> to vector<8x8xbf16>
    %122 = vector.extract_strided_slice %12 {offsets = [0, 64], sizes = [8, 32], strides = [1, 1]} : vector<8x128xbf16> to vector<8x32xbf16>
    %cst_70 = arith.constant dense<0.000000e+00> : vector<8x32xf32>
    %123 = tpu.matmul %121, %122, %cst_70 {dimension_numbers = #tpu.dot_dimension_numbers<[1], [0], [0], [1], [0, 0, 1, 1], [], []>} : vector<8x8xbf16>, vector<8x32xbf16>, vector<8x32xf32> -> vector<8x32xf32>
    %124 = arith.addf %120, %123 : vector<8x32xf32>
    %c2_71 = arith.constant 2 : index
    %c0_72 = arith.constant 0 : index
    %c0_73 = arith.constant 0 : index
    %125 = vector.load %arg10[%c2_71, %c0_72, %c0_73] : memref<4x8x32xf32, #tpu.memory_space<vmem>>, vector<1x8x32xf32>
    %126 = vector.shape_cast %125 : vector<1x8x32xf32> to vector<8x32xf32>
    %127 = vector.shape_cast %124 : vector<8x32xf32> to vector<1x8x32xf32>
    tpu.vector_store %arg10[%c2_71, %c0_72, %c0_73], %127 {strides = array<i32>} : memref<4x8x32xf32, #tpu.memory_space<vmem>>, vector<1x8x32xf32>,
    %c2_74 = arith.constant 2 : index
    %c0_75 = arith.constant 0 : index
    %c0_76 = arith.constant 0 : index
    %128 = vector.load %arg8[%c2_74, %c0_75, %c0_76] : memref<4x8x1xf32, #tpu.memory_space<vmem>>, vector<1x8x1xf32>
    %129 = vector.shape_cast %128 : vector<1x8x1xf32> to vector<8x1xf32>
    %130 = vector.shape_cast %102 : vector<8x1xf32> to vector<1x8x1xf32>
    tpu.vector_store %arg8[%c2_74, %c0_75, %c0_76], %130 {strides = array<i32>} : memref<4x8x1xf32, #tpu.memory_space<vmem>>, vector<1x8x1xf32>,
    %131 = vector.extract_strided_slice %8 {offsets = [0, 96], sizes = [8, 32], strides = [1, 1]} : vector<8x128xbf16> to vector<8x32xbf16>
    %132 = vector.extract_strided_slice %10 {offsets = [0, 96], sizes = [8, 32], strides = [1, 1]} : vector<8x128xbf16> to vector<8x32xbf16>
    %cst_77 = arith.constant dense<0.000000e+00> : vector<8x8xf32>
    %133 = tpu.matmul %131, %132, %cst_77 {dimension_numbers = #tpu.dot_dimension_numbers<[1], [1], [0], [0], [0, 0, 1, 0], [], []>} : vector<8x32xbf16>, vector<8x32xbf16>, vector<8x8xf32> -> vector<8x8xf32>
    %134 = vector.broadcast %16 : vector<1x8xf32> to vector<8x8xf32>
    %135 = arith.addf %133, %134 : vector<8x8xf32>
    %c3 = arith.constant 3 : index
    %c0_78 = arith.constant 0 : index
    %c0_79 = arith.constant 0 : index
    %136 = vector.load %arg8[%c3, %c0_78, %c0_79] : memref<4x8x1xf32, #tpu.memory_space<vmem>>, vector<1x8x1xf32>
    %137 = vector.shape_cast %136 : vector<1x8x1xf32> to vector<8x1xf32>
    %cst_80 = arith.constant dense<0xFF800000> : vector<8xf32>
    %138 = vector.multi_reduction <maximumf>, %135, %cst_80 [1] : vector<8x8xf32> to vector<8xf32>
    %139 = vector.shape_cast %138 : vector<8xf32> to vector<8x1xf32>
    %140 = arith.maximumf %137, %139 : vector<8x1xf32>
    %141 = arith.subf %137, %140 : vector<8x1xf32>
    %142 = math.exp %141 : vector<8x1xf32>
    %143 = vector.broadcast %140 : vector<8x1xf32> to vector<8x8xf32>
    %144 = arith.subf %135, %143 : vector<8x8xf32>
    %145 = math.exp %144 : vector<8x8xf32>
    %c3_81 = arith.constant 3 : index
    %c0_82 = arith.constant 0 : index
    %c0_83 = arith.constant 0 : index
    %146 = vector.load %arg9[%c3_81, %c0_82, %c0_83] : memref<4x8x1xf32, #tpu.memory_space<vmem>>, vector<1x8x1xf32>
    %147 = vector.shape_cast %146 : vector<1x8x1xf32> to vector<8x1xf32>
    %148 = arith.mulf %142, %147 : vector<8x1xf32>
    %cst_84 = arith.constant dense<0.000000e+00> : vector<8xf32>
    %149 = vector.multi_reduction <add>, %145, %cst_84 [1] : vector<8x8xf32> to vector<8xf32>
    %150 = vector.shape_cast %149 : vector<8xf32> to vector<8x1xf32>
    %151 = arith.addf %148, %150 : vector<8x1xf32>
    %c3_85 = arith.constant 3 : index
    %c0_86 = arith.constant 0 : index
    %c0_87 = arith.constant 0 : index
    %152 = vector.load %arg9[%c3_85, %c0_86, %c0_87] : memref<4x8x1xf32, #tpu.memory_space<vmem>>, vector<1x8x1xf32>
    %153 = vector.shape_cast %152 : vector<1x8x1xf32> to vector<8x1xf32>
    %154 = vector.shape_cast %151 : vector<8x1xf32> to vector<1x8x1xf32>
    tpu.vector_store %arg9[%c3_85, %c0_86, %c0_87], %154 {strides = array<i32>} : memref<4x8x1xf32, #tpu.memory_space<vmem>>, vector<1x8x1xf32>,
    %c3_88 = arith.constant 3 : index
    %c0_89 = arith.constant 0 : index
    %c0_90 = arith.constant 0 : index
    %155 = vector.load %arg10[%c3_88, %c0_89, %c0_90] : memref<4x8x32xf32, #tpu.memory_space<vmem>>, vector<1x8x32xf32>
    %156 = vector.shape_cast %155 : vector<1x8x32xf32> to vector<8x32xf32>
    %157 = vector.broadcast %142 : vector<8x1xf32> to vector<8x32xf32>
    %158 = arith.mulf %157, %156 : vector<8x32xf32>
    %159 = arith.truncf %145 : vector<8x8xf32> to vector<8x8xbf16>
    %160 = vector.extract_strided_slice %12 {offsets = [0, 96], sizes = [8, 32], strides = [1, 1]} : vector<8x128xbf16> to vector<8x32xbf16>
    %cst_91 = arith.constant dense<0.000000e+00> : vector<8x32xf32>
    %161 = tpu.matmul %159, %160, %cst_91 {dimension_numbers = #tpu.dot_dimension_numbers<[1], [0], [0], [1], [0, 0, 1, 1], [], []>} : vector<8x8xbf16>, vector<8x32xbf16>, vector<8x32xf32> -> vector<8x32xf32>
    %162 = arith.addf %158, %161 : vector<8x32xf32>
    %c3_92 = arith.constant 3 : index
    %c0_93 = arith.constant 0 : index
    %c0_94 = arith.constant 0 : index
    %163 = vector.load %arg10[%c3_92, %c0_93, %c0_94] : memref<4x8x32xf32, #tpu.memory_space<vmem>>, vector<1x8x32xf32>
    %164 = vector.shape_cast %163 : vector<1x8x32xf32> to vector<8x32xf32>
    %165 = vector.shape_cast %162 : vector<8x32xf32> to vector<1x8x32xf32>
    tpu.vector_store %arg10[%c3_92, %c0_93, %c0_94], %165 {strides = array<i32>} : memref<4x8x32xf32, #tpu.memory_space<vmem>>, vector<1x8x32xf32>,
    %c3_95 = arith.constant 3 : index
    %c0_96 = arith.constant 0 : index
    %c0_97 = arith.constant 0 : index
    %166 = vector.load %arg8[%c3_95, %c0_96, %c0_97] : memref<4x8x1xf32, #tpu.memory_space<vmem>>, vector<1x8x1xf32>
    %167 = vector.shape_cast %166 : vector<1x8x1xf32> to vector<8x1xf32>
    %168 = vector.shape_cast %140 : vector<8x1xf32> to vector<1x8x1xf32>
    tpu.vector_store %arg8[%c3_95, %c0_96, %c0_97], %168 {strides = array<i32>} : memref<4x8x1xf32, #tpu.memory_space<vmem>>, vector<1x8x1xf32>,
    %c0_i32_98 = arith.constant 0 : i32
    %169 = arith.cmpi eq, %arg2, %c0_i32_98 : i32
    %170 = arith.extui %169 : i1 to i32
    %c0_i32_99 = arith.constant 0 : i32
    %171 = arith.cmpi ne, %170, %c0_i32_99 : i32
    scf.if %171 {
      %c0_100 = arith.constant 0 : index
      %c0_101 = arith.constant 0 : index
      %c0_102 = arith.constant 0 : index
      %172 = vector.load %arg10[%c0_100, %c0_101, %c0_102] : memref<4x8x32xf32, #tpu.memory_space<vmem>>, vector<1x8x32xf32>
      %173 = vector.shape_cast %172 : vector<1x8x32xf32> to vector<8x32xf32>
      %c0_103 = arith.constant 0 : index
      %c0_104 = arith.constant 0 : index
      %c0_105 = arith.constant 0 : index
      %174 = vector.load %arg9[%c0_103, %c0_104, %c0_105] : memref<4x8x1xf32, #tpu.memory_space<vmem>>, vector<1x8x1xf32>
      %175 = vector.shape_cast %174 : vector<1x8x1xf32> to vector<8x1xf32>
      %176 = tpu.reciprocal %175 {approx = true} : vector<8x1xf32> -> vector<8x1xf32>
      %177 = vector.broadcast %176 : vector<8x1xf32> to vector<8x32xf32>
      %178 = arith.mulf %173, %177 : vector<8x32xf32>
      %c1_106 = arith.constant 1 : index
      %c0_107 = arith.constant 0 : index
      %c0_108 = arith.constant 0 : index
      %179 = vector.load %arg10[%c1_106, %c0_107, %c0_108] : memref<4x8x32xf32, #tpu.memory_space<vmem>>, vector<1x8x32xf32>
      %180 = vector.shape_cast %179 : vector<1x8x32xf32> to vector<8x32xf32>
      %c1_109 = arith.constant 1 : index
      %c0_110 = arith.constant 0 : index
      %c0_111 = arith.constant 0 : index
      %181 = vector.load %arg9[%c1_109, %c0_110, %c0_111] : memref<4x8x1xf32, #tpu.memory_space<vmem>>, vector<1x8x1xf32>
      %182 = vector.shape_cast %181 : vector<1x8x1xf32> to vector<8x1xf32>
      %183 = tpu.reciprocal %182 {approx = true} : vector<8x1xf32> -> vector<8x1xf32>
      %184 = vector.broadcast %183 : vector<8x1xf32> to vector<8x32xf32>
      %185 = arith.mulf %180, %184 : vector<8x32xf32>
      %c2_112 = arith.constant 2 : index
      %c0_113 = arith.constant 0 : index
      %c0_114 = arith.constant 0 : index
      %186 = vector.load %arg10[%c2_112, %c0_113, %c0_114] : memref<4x8x32xf32, #tpu.memory_space<vmem>>, vector<1x8x32xf32>
      %187 = vector.shape_cast %186 : vector<1x8x32xf32> to vector<8x32xf32>
      %c2_115 = arith.constant 2 : index
      %c0_116 = arith.constant 0 : index
      %c0_117 = arith.constant 0 : index
      %188 = vector.load %arg9[%c2_115, %c0_116, %c0_117] : memref<4x8x1xf32, #tpu.memory_space<vmem>>, vector<1x8x1xf32>
      %189 = vector.shape_cast %188 : vector<1x8x1xf32> to vector<8x1xf32>
      %190 = tpu.reciprocal %189 {approx = true} : vector<8x1xf32> -> vector<8x1xf32>
      %191 = vector.broadcast %190 : vector<8x1xf32> to vector<8x32xf32>
      %192 = arith.mulf %187, %191 : vector<8x32xf32>
      %c3_118 = arith.constant 3 : index
      %c0_119 = arith.constant 0 : index
      %c0_120 = arith.constant 0 : index
      %193 = vector.load %arg10[%c3_118, %c0_119, %c0_120] : memref<4x8x32xf32, #tpu.memory_space<vmem>>, vector<1x8x32xf32>
      %194 = vector.shape_cast %193 : vector<1x8x32xf32> to vector<8x32xf32>
      %c3_121 = arith.constant 3 : index
      %c0_122 = arith.constant 0 : index
      %c0_123 = arith.constant 0 : index
      %195 = vector.load %arg9[%c3_121, %c0_122, %c0_123] : memref<4x8x1xf32, #tpu.memory_space<vmem>>, vector<1x8x1xf32>
      %196 = vector.shape_cast %195 : vector<1x8x1xf32> to vector<8x1xf32>
      %197 = tpu.reciprocal %196 {approx = true} : vector<8x1xf32> -> vector<8x1xf32>
      %198 = vector.broadcast %197 : vector<8x1xf32> to vector<8x32xf32>
      %199 = arith.mulf %194, %198 : vector<8x32xf32>
      %200 = tpu.concatenate %178, %185, %192, %199 in 1 : vector<8x32xf32>, vector<8x32xf32>, vector<8x32xf32>, vector<8x32xf32> -> vector<8x128xf32>
      %201 = arith.truncf %200 : vector<8x128xf32> to vector<8x128xbf16>
      %c0_124 = arith.constant 0 : index
      %c0_125 = arith.constant 0 : index
      %c0_126 = arith.constant 0 : index
      %202 = vector.load %arg7[%c0_124, %c0_125, %c0_126] : memref<1x8x128xbf16, #tpu.memory_space<vmem>>, vector<1x8x128xbf16>
      %203 = vector.shape_cast %202 : vector<1x8x128xbf16> to vector<8x128xbf16>
      %204 = vector.shape_cast %201 : vector<8x128xbf16> to vector<1x8x128xbf16>
      tpu.vector_store %arg7[%c0_124, %c0_125, %c0_126], %204 {strides = array<i32>} : memref<1x8x128xbf16, #tpu.memory_space<vmem>>, vector<1x8x128xbf16>,
    } else {
    }
    return
  }
  func.func @transform_0(%arg0: i32, %arg1: i32, %arg2: i32) -> (i32, i32, i32) {
    %c0_i32 = arith.constant 0 : i32
    %c0_i32_0 = arith.constant 0 : i32
    return %arg0, %arg1, %c0_i32 : i32, i32, i32
  }
  func.func @transform_1(%arg0: i32, %arg1: i32, %arg2: i32) -> (i32, i32, i32) {
    %c0_i32 = arith.constant 0 : i32
    %c0_i32_0 = arith.constant 0 : i32
    return %arg0, %arg2, %c0_i32 : i32, i32, i32
  }
  func.func @transform_2(%arg0: i32, %arg1: i32, %arg2: i32) -> (i32, i32, i32) {
    %c1_i32 = arith.constant 1 : i32
    %c0_i32 = arith.constant 0 : i32
    return %arg0, %arg2, %c1_i32 : i32, i32, i32
  }
  func.func @transform_3(%arg0: i32, %arg1: i32, %arg2: i32) -> (i32, i32, i32) {
    %c0_i32 = arith.constant 0 : i32
    %c0_i32_0 = arith.constant 0 : i32
    return %arg0, %c0_i32, %arg2 : i32, i32, i32
  }
  func.func @transform_4(%arg0: i32, %arg1: i32, %arg2: i32) -> (i32, i32, i32) {
    %c0_i32 = arith.constant 0 : i32
    %c0_i32_0 = arith.constant 0 : i32
    return %arg0, %arg1, %c0_i32 : i32, i32, i32
  }
}

module attributes {stable_mosaic.version = 11 : i64} {
  func.func @_linear_kernel(%arg0: i32, %arg1: i32, %arg2: i32, %arg3: memref<16x128xbf16, #tpu.memory_space<vmem>>, %arg4: memref<128x128xbf16, #tpu.memory_space<vmem>>, %arg5: memref<1x128xf32, #tpu.memory_space<vmem>>, %arg6: memref<16x128xbf16, #tpu.memory_space<vmem>>, %arg7: memref<16x128xf32, #tpu.memory_space<vmem>>) attributes {dimension_semantics = [#tpu.dimension_semantics<parallel>, #tpu.dimension_semantics<parallel>, #tpu.dimension_semantics<arbitrary>], iteration_bounds = array<i64: 1, 1, 1>, scalar_prefetch = 0 : i64, scratch_operands = 1 : i64, tpu.core_type = #tpu.core_type<tc>, window_params = [{transform_indices = @transform_0, window_bounds = array<i64: 16, 128>}, {transform_indices = @transform_1, window_bounds = array<i64: 128, 128>}, {transform_indices = @transform_2, window_bounds = array<i64: 1, 128>}, {transform_indices = @transform_3, window_bounds = array<i64: 16, 128>}]} {
    %c0_i32 = arith.constant 0 : i32
    %0 = arith.cmpi eq, %arg2, %c0_i32 : i32
    %1 = arith.extui %0 : i1 to i32
    %c0_i32_0 = arith.constant 0 : i32
    %2 = arith.cmpi ne, %1, %c0_i32_0 : i32
    scf.if %2 {
      %cst_10 = arith.constant 0.000000e+00 : f32
      %12 = vector.broadcast %cst_10 : f32 to vector<16x128xf32>
      %c0_11 = arith.constant 0 : index
      %c0_12 = arith.constant 0 : index
      %13 = vector.load %arg7[%c0_11, %c0_12] : memref<16x128xf32, #tpu.memory_space<vmem>>, vector<16x128xf32>
      tpu.vector_store %arg7[%c0_11, %c0_12], %12 {strides = array<i32>} : memref<16x128xf32, #tpu.memory_space<vmem>>, vector<16x128xf32>,
    } else {
    }
    %c0 = arith.constant 0 : index
    %c0_1 = arith.constant 0 : index
    %3 = vector.load %arg7[%c0, %c0_1] : memref<16x128xf32, #tpu.memory_space<vmem>>, vector<16x128xf32>
    %c0_2 = arith.constant 0 : index
    %c0_3 = arith.constant 0 : index
    %4 = vector.load %arg3[%c0_2, %c0_3] : memref<16x128xbf16, #tpu.memory_space<vmem>>, vector<16x128xbf16>
    %c0_4 = arith.constant 0 : index
    %c0_5 = arith.constant 0 : index
    %5 = vector.load %arg4[%c0_4, %c0_5] : memref<128x128xbf16, #tpu.memory_space<vmem>>, vector<128x128xbf16>
    %cst = arith.constant dense<0.000000e+00> : vector<16x128xf32>
    %6 = tpu.matmul %4, %5, %cst {dimension_numbers = #tpu.dot_dimension_numbers<[1], [0], [0], [1], [0, 0, 1, 1], [], []>} : vector<16x128xbf16>, vector<128x128xbf16>, vector<16x128xf32> -> vector<16x128xf32>
    %7 = arith.addf %3, %6 : vector<16x128xf32>
    %c0_6 = arith.constant 0 : index
    %c0_7 = arith.constant 0 : index
    %8 = vector.load %arg7[%c0_6, %c0_7] : memref<16x128xf32, #tpu.memory_space<vmem>>, vector<16x128xf32>
    tpu.vector_store %arg7[%c0_6, %c0_7], %7 {strides = array<i32>} : memref<16x128xf32, #tpu.memory_space<vmem>>, vector<16x128xf32>,
    %c0_i32_8 = arith.constant 0 : i32
    %9 = arith.cmpi eq, %arg2, %c0_i32_8 : i32
    %10 = arith.extui %9 : i1 to i32
    %c0_i32_9 = arith.constant 0 : i32
    %11 = arith.cmpi ne, %10, %c0_i32_9 : i32
    scf.if %11 {
      %c0_10 = arith.constant 0 : index
      %c0_11 = arith.constant 0 : index
      %12 = vector.load %arg7[%c0_10, %c0_11] : memref<16x128xf32, #tpu.memory_space<vmem>>, vector<16x128xf32>
      %c0_12 = arith.constant 0 : index
      %c0_13 = arith.constant 0 : index
      %13 = vector.load %arg5[%c0_12, %c0_13] : memref<1x128xf32, #tpu.memory_space<vmem>>, vector<1x128xf32>
      %14 = vector.broadcast %13 : vector<1x128xf32> to vector<16x128xf32>
      %15 = arith.addf %12, %14 : vector<16x128xf32>
      %cst_14 = arith.constant 0.000000e+00 : f32
      %16 = vector.broadcast %cst_14 : f32 to vector<16x128xf32>
      %17 = arith.maximumf %15, %16 : vector<16x128xf32>
      %18 = arith.truncf %17 : vector<16x128xf32> to vector<16x128xbf16>
      %c0_15 = arith.constant 0 : index
      %c0_16 = arith.constant 0 : index
      %19 = vector.load %arg6[%c0_15, %c0_16] : memref<16x128xbf16, #tpu.memory_space<vmem>>, vector<16x128xbf16>
      tpu.vector_store %arg6[%c0_15, %c0_16], %18 {strides = array<i32>} : memref<16x128xbf16, #tpu.memory_space<vmem>>, vector<16x128xbf16>,
    } else {
    }
    return
  }
  func.func @transform_0(%arg0: i32, %arg1: i32, %arg2: i32) -> (i32, i32) {
    %c0_i32 = arith.constant 0 : i32
    return %arg0, %arg2 : i32, i32
  }
  func.func @transform_1(%arg0: i32, %arg1: i32, %arg2: i32) -> (i32, i32) {
    %c0_i32 = arith.constant 0 : i32
    return %arg2, %arg1 : i32, i32
  }
  func.func @transform_2(%arg0: i32, %arg1: i32, %arg2: i32) -> (i32, i32) {
    %c0_i32 = arith.constant 0 : i32
    %c0_i32_0 = arith.constant 0 : i32
    return %c0_i32, %arg1 : i32, i32
  }
  func.func @transform_3(%arg0: i32, %arg1: i32, %arg2: i32) -> (i32, i32) {
    %c0_i32 = arith.constant 0 : i32
    return %arg0, %arg1 : i32, i32
  }
}

module attributes {stable_mosaic.version = 11 : i64} {
  func.func @_linear_kernel(%arg0: i32, %arg1: i32, %arg2: i32, %arg3: memref<16x128xbf16, #tpu.memory_space<vmem>>, %arg4: memref<128x256xbf16, #tpu.memory_space<vmem>>, %arg5: memref<16x256xf32, #tpu.memory_space<vmem>>, %arg6: memref<16x256xf32, #tpu.memory_space<vmem>>) attributes {dimension_semantics = [#tpu.dimension_semantics<parallel>, #tpu.dimension_semantics<parallel>, #tpu.dimension_semantics<arbitrary>], iteration_bounds = array<i64: 1, 1, 1>, scalar_prefetch = 0 : i64, scratch_operands = 1 : i64, tpu.core_type = #tpu.core_type<tc>, window_params = [{transform_indices = @transform_0, window_bounds = array<i64: 16, 128>}, {transform_indices = @transform_1, window_bounds = array<i64: 128, 256>}, {transform_indices = @transform_2, window_bounds = array<i64: 16, 256>}]} {
    %c0_i32 = arith.constant 0 : i32
    %0 = arith.cmpi eq, %arg2, %c0_i32 : i32
    %1 = arith.extui %0 : i1 to i32
    %c0_i32_0 = arith.constant 0 : i32
    %2 = arith.cmpi ne, %1, %c0_i32_0 : i32
    scf.if %2 {
      %cst_10 = arith.constant 0.000000e+00 : f32
      %12 = vector.broadcast %cst_10 : f32 to vector<16x256xf32>
      %c0_11 = arith.constant 0 : index
      %c0_12 = arith.constant 0 : index
      %13 = vector.load %arg6[%c0_11, %c0_12] : memref<16x256xf32, #tpu.memory_space<vmem>>, vector<16x256xf32>
      tpu.vector_store %arg6[%c0_11, %c0_12], %12 {strides = array<i32>} : memref<16x256xf32, #tpu.memory_space<vmem>>, vector<16x256xf32>,
    } else {
    }
    %c0 = arith.constant 0 : index
    %c0_1 = arith.constant 0 : index
    %3 = vector.load %arg6[%c0, %c0_1] : memref<16x256xf32, #tpu.memory_space<vmem>>, vector<16x256xf32>
    %c0_2 = arith.constant 0 : index
    %c0_3 = arith.constant 0 : index
    %4 = vector.load %arg3[%c0_2, %c0_3] : memref<16x128xbf16, #tpu.memory_space<vmem>>, vector<16x128xbf16>
    %c0_4 = arith.constant 0 : index
    %c0_5 = arith.constant 0 : index
    %5 = vector.load %arg4[%c0_4, %c0_5] : memref<128x256xbf16, #tpu.memory_space<vmem>>, vector<128x256xbf16>
    %cst = arith.constant dense<0.000000e+00> : vector<16x256xf32>
    %6 = tpu.matmul %4, %5, %cst {dimension_numbers = #tpu.dot_dimension_numbers<[1], [0], [0], [1], [0, 0, 1, 1], [], []>} : vector<16x128xbf16>, vector<128x256xbf16>, vector<16x256xf32> -> vector<16x256xf32>
    %7 = arith.addf %3, %6 : vector<16x256xf32>
    %c0_6 = arith.constant 0 : index
    %c0_7 = arith.constant 0 : index
    %8 = vector.load %arg6[%c0_6, %c0_7] : memref<16x256xf32, #tpu.memory_space<vmem>>, vector<16x256xf32>
    tpu.vector_store %arg6[%c0_6, %c0_7], %7 {strides = array<i32>} : memref<16x256xf32, #tpu.memory_space<vmem>>, vector<16x256xf32>,
    %c0_i32_8 = arith.constant 0 : i32
    %9 = arith.cmpi eq, %arg2, %c0_i32_8 : i32
    %10 = arith.extui %9 : i1 to i32
    %c0_i32_9 = arith.constant 0 : i32
    %11 = arith.cmpi ne, %10, %c0_i32_9 : i32
    scf.if %11 {
      %c0_10 = arith.constant 0 : index
      %c0_11 = arith.constant 0 : index
      %12 = vector.load %arg6[%c0_10, %c0_11] : memref<16x256xf32, #tpu.memory_space<vmem>>, vector<16x256xf32>
      %c0_12 = arith.constant 0 : index
      %c0_13 = arith.constant 0 : index
      %13 = vector.load %arg5[%c0_12, %c0_13] : memref<16x256xf32, #tpu.memory_space<vmem>>, vector<16x256xf32>
      tpu.vector_store %arg5[%c0_12, %c0_13], %12 {strides = array<i32>} : memref<16x256xf32, #tpu.memory_space<vmem>>, vector<16x256xf32>,
    } else {
    }
    return
  }
  func.func @transform_0(%arg0: i32, %arg1: i32, %arg2: i32) -> (i32, i32) {
    %c0_i32 = arith.constant 0 : i32
    return %arg0, %arg2 : i32, i32
  }
  func.func @transform_1(%arg0: i32, %arg1: i32, %arg2: i32) -> (i32, i32) {
    %c0_i32 = arith.constant 0 : i32
    return %arg2, %arg1 : i32, i32
  }
  func.func @transform_2(%arg0: i32, %arg1: i32, %arg2: i32) -> (i32, i32) {
    %c0_i32 = arith.constant 0 : i32
    return %arg0, %arg1 : i32, i32
  }
}

</mosaic_0001>

<llo_original>
// kernel: forward.56
$region0: #{forward.56}
  #allocation0 [shape = 'u32[]', space=smem, size = 0x4, offset = 0x4, fixed_abs, tag = 'smem constant byte address 0x4 - core index']
  #allocation1 [shape = 'u32[72,128]{1,0:T(1,128)}', space=vmem, size = 0x9000, scoped, tag = 'internal scratch']
  #allocation2 [shape = 'f32[16,128]{1,0:T(8,128)}', space=vmem, size = 0x2000, scoped, tag = 'scratch operand']
  %s0 = inlined_call_operand.vmem [shape: bf16[16,128], index: 0, kind: input, shape index: {}]
  %s1 = inlined_call_operand.vmem [shape: bf16[128,128], index: 1, kind: input, shape index: {}]
  %s2 = inlined_call_operand.vmem [shape: f32[1,128], index: 2, kind: input, shape index: {}]
  %s3 = inlined_call_operand.vmem [shape: bf16[16,128], index: 3, kind: input, shape index: {}]
  %s4 = inlined_call_operand.vmem [shape: bf16[16,128], index: 4, kind: output, shape index: {}]
  %s5 = sld [smem:[#allocation0]]
  $region34: #{forward.56} parent=0
    _
  %s7 = ssub.s32 1, %s5
  %s8 = scalar_select 0, %s7, %s5
  // Predicated region
  $region2: #{forward.56} parent=0 // pred_check
    _
  $region3: #{forward.56} parent=0 // pred_check_branch
    %10 = sbr.rel (0) target = $region5
  $region4: #{forward.56} parent=0 // pred_region
    _
  $region5: #{forward.56} parent=0 // pred_fallthru
    _
  // Predicated region
  $region6: #{forward.56} parent=0 // pred_check
    _
  $region7: #{forward.56} parent=0 // pred_check_branch
    %12 = sbr.rel (0) target = $region9
  $region8: #{forward.56} parent=0 // pred_region
    _
  $region9: #{forward.56} parent=0 // pred_fallthru
    _
  // Predicated region
  $region10: #{forward.56} parent=0 // pred_check
    _
  $region11: #{forward.56} parent=0 // pred_check_branch
    %14 = sbr.rel (0) target = $region13
  $region12: #{forward.56} parent=0 // pred_region
    _
  $region13: #{forward.56} parent=0 // pred_fallthru
    _
  // Predicated region
  $region14: #{forward.56} parent=0 // pred_check
    _
  $region15: #{forward.56} parent=0 // pred_check_branch
    %16 = sbr.rel (0) target = $region17
  $region16: #{forward.56} parent=0 // pred_region
    _
  $region17: #{forward.56} parent=0 // pred_fallthru
    _
  %p17 = scmp.eq.s32.totalorder 0, 0
  // Predicated region
  $region18: #{forward.56} parent=0 // pred_check
    %p18 = pneg %p17
  $region19: #{forward.56} parent=0 // pred_check_branch
    %20 = sbr.rel (%p18) target = $region21
  $region20: #{forward.56} parent=0 // pred_region
    %21 = vst [vmem:[#allocation2] sm:$0xff] 0.0
    %22 = vst [vmem:[#allocation2 + $0x8] sm:$0xff] 0.0
  $region21: #{forward.56} parent=0 // pred_fallthru
    _
  %v23 = vld [vmem:[#allocation2] sm:$0xff]
  %v24 = vld [vmem:[#allocation2 + $0x8] sm:$0xff]
  %v25 = vld [vmem:[%s0] sm:$0xf]
  %v26 = vld [vmem:[%s0 + $0x4] sm:$0xf]
  %v27 = vld [vmem:[%s1] sm:$0xf]
  %v28 = vld [vmem:[%s1 + $0x4] sm:$0xf]
  %v29 = vld [vmem:[%s1 + $0x8] sm:$0xf]
  %v30 = vld [vmem:[%s1 + $0xc] sm:$0xf]
  %v31 = vld [vmem:[%s1 + $0x10] sm:$0xf]
  %v32 = vld [vmem:[%s1 + $0x14] sm:$0xf]
  %v33 = vld [vmem:[%s1 + $0x18] sm:$0xf]
  %v34 = vld [vmem:[%s1 + $0x1c] sm:$0xf]
  %v35 = vld [vmem:[%s1 + $0x20] sm:$0xf]
  %v36 = vld [vmem:[%s1 + $0x24] sm:$0xf]
  %v37 = vld [vmem:[%s1 + $0x28] sm:$0xf]
  %v38 = vld [vmem:[%s1 + $0x2c] sm:$0xf]
  %v39 = vld [vmem:[%s1 + $0x30] sm:$0xf]
  %v40 = vld [vmem:[%s1 + $0x34] sm:$0xf]
  %v41 = vld [vmem:[%s1 + $0x38] sm:$0xf]
  %v42 = vld [vmem:[%s1 + $0x3c] sm:$0xf]
  %v45 = vunpack.c.l.b16 %v25
  %v46 = vunpack.c.l.b16 %v26
  %v47 = vpack.c.b16 %v46, %v45
  %v65 = vunpack.c.l.b16 %v27
  %v66 = vunpack.c.l.b16 %v28
  %v67 = vunpack.c.l.b16 %v29
  %v68 = vunpack.c.l.b16 %v30
  %v69 = vunpack.c.l.b16 %v31
  %v70 = vunpack.c.l.b16 %v32
  %v71 = vunpack.c.l.b16 %v33
  %v72 = vunpack.c.l.b16 %v34
  %v73 = vunpack.c.l.b16 %v35
  %v74 = vunpack.c.l.b16 %v36
  %v75 = vunpack.c.l.b16 %v37
  %v76 = vunpack.c.l.b16 %v38
  %v77 = vunpack.c.l.b16 %v39
  %v78 = vunpack.c.l.b16 %v40
  %v79 = vunpack.c.l.b16 %v41
  %v80 = vunpack.c.l.b16 %v42
  %v81 = vpack.c.b16 %v66, %v65
  %v82 = vpack.c.b16 %v68, %v67
  %v83 = vpack.c.b16 %v70, %v69
  %v84 = vpack.c.b16 %v72, %v71
  %v85 = vpack.c.b16 %v74, %v73
  %v86 = vpack.c.b16 %v76, %v75
  %v87 = vpack.c.b16 %v78, %v77
  %v88 = vpack.c.b16 %v80, %v79
  %97 = vmatpush.bf16.msra.mxu0 %v88
  %98 = vmatpush.bf16.msra.mxu0 %v87
  %99 = vmatpush.bf16.msra.mxu0 %v86
  %100 = vmatpush.bf16.msra.mxu0 %v85
  %101 = vmatpush.bf16.msra.mxu0 %v84
  %102 = vmatpush.bf16.msra.mxu0 %v83
  %103 = vmatpush.bf16.msra.mxu0 %v82
  %104 = vmatpush.bf16.msra.mxu0 %v81
  %105 = vmatmul.bf16.gmra.mxu0 %v47
  %v106 = vpop.f32.mrf.mxu0
  %v107 = vadd.f32 0.0, %v106
  %v108 = vpop.f32.mrf.mxu0
  %v109 = vadd.f32 0.0, %v108
  %110 = vdwg.mxu0
  %v111 = vadd.f32 %v23, %v107
  %v112 = vadd.f32 %v24, %v109
  %113 = vst [vmem:[#allocation2] sm:$0xff] %v111
  %114 = vst [vmem:[#allocation2 + $0x8] sm:$0xff] %v112
  // Predicated region
  $region22: #{forward.56} parent=0 // pred_check
    %p115 = pneg %p17
  $region23: #{forward.56} parent=0 // pred_check_branch
    %117 = sbr.rel (%p115) target = $region25
  $region24: #{forward.56} parent=0 // pred_region
    %v118 = vld [vmem:[#allocation2] sm:$0xff]
    %v119 = vld [vmem:[#allocation2 + $0x8] sm:$0xff]
    %v120 = vld [vmem:[%s2] sm:$0x1]
    %v122 = vperm.slane %v120, 0
    %v124 = vadd.f32 %v118, %v122
    %v125 = vadd.f32 %v119, %v122
    %v126 = vld [vmem:[%s3] sm:$0xf]
    %v127 = vld [vmem:[%s3 + $0x4] sm:$0xf]
    %v128 = vunpack.c.l.bf16 %v126
    %v129 = vunpack.c.l.bf16 %v127
    %v130 = vadd.f32 %v124, %v128
    %v131 = vadd.f32 %v125, %v129
    %v132 = vpack.c.bf16 %v130, %v130
    %v133 = vpack.c.bf16 %v131, %v131
    %134 = vst [vmem:[%s4] sm:$0xf] %v132
    %135 = vst [vmem:[%s4 + $0x4] sm:$0xf] %v133
  $region25: #{forward.56} parent=0 // pred_fallthru
    _
  // Predicated region
  $region26: #{forward.56} parent=0 // pred_check
    _
  $region27: #{forward.56} parent=0 // pred_check_branch
    %137 = sbr.rel (0) target = $region29
  $region28: #{forward.56} parent=0 // pred_region
    _
  $region29: #{forward.56} parent=0 // pred_fallthru
    _
  // Predicated region
  $region30: #{forward.56} parent=0 // pred_check
    _
  $region31: #{forward.56} parent=0 // pred_check_branch
    %139 = sbr.rel (0) target = $region33
  $region32: #{forward.56} parent=0 // pred_region
    _
  $region33: #{forward.56} parent=0 // pred_fallthru
    _

// kernel: forward.57
$region0: #{forward.57}
  #allocation0 [shape = 'u32[]', space=smem, size = 0x4, offset = 0x4, fixed_abs, tag = 'smem constant byte address 0x4 - core index']
  #allocation1 [shape = 'u32[72,128]{1,0:T(1,128)}', space=vmem, size = 0x9000, scoped, tag = 'internal scratch']
  %s0 = inlined_call_operand.vmem [shape: bf16[16,128], index: 0, kind: input, shape index: {}]
  %s1 = inlined_call_operand.vmem [shape: f32[1,128], index: 1, kind: input, shape index: {}]
  %s2 = inlined_call_operand.vmem [shape: f32[1,128], index: 2, kind: input, shape index: {}]
  %s3 = inlined_call_operand.vmem [shape: bf16[16,128], index: 3, kind: output, shape index: {}]
  %s4 = sld [smem:[#allocation0]]
  $region22: #{forward.57} parent=0
    _
  %s6 = ssub.s32 1, %s4
  %s7 = scalar_select 0, %s6, %s4
  // Predicated region
  $region2: #{forward.57} parent=0 // pred_check
    _
  $region3: #{forward.57} parent=0 // pred_check_branch
    %9 = sbr.rel (0) target = $region5
  $region4: #{forward.57} parent=0 // pred_region
    _
  $region5: #{forward.57} parent=0 // pred_fallthru
    _
  // Predicated region
  $region6: #{forward.57} parent=0 // pred_check
    _
  $region7: #{forward.57} parent=0 // pred_check_branch
    %11 = sbr.rel (0) target = $region9
  $region8: #{forward.57} parent=0 // pred_region
    _
  $region9: #{forward.57} parent=0 // pred_fallthru
    _
  // Predicated region
  $region10: #{forward.57} parent=0 // pred_check
    _
  $region11: #{forward.57} parent=0 // pred_check_branch
    %13 = sbr.rel (0) target = $region13
  $region12: #{forward.57} parent=0 // pred_region
    _
  $region13: #{forward.57} parent=0 // pred_fallthru
    _
  %v14 = vld [vmem:[%s0] sm:$0xf]
  %v15 = vld [vmem:[%s0 + $0x4] sm:$0xf]
  %v16 = vunpack.c.l.bf16 %v14
  %v17 = vunpack.c.l.bf16 %v15
  %18 = vadd.xlane.f32.xlu0 %v16
  %v19 = vpop.xlane.xlu0 %18
  %20 = vadd.xlane.f32.xlu0 %v17
  %v21 = vpop.xlane.xlu0 %20
  %v22 = vrcp.pop 128.0
  %v23 = vmul.f32 128.0, %v22
  %v24 = vsub.f32 1.0, %v23
  %v25 = vmul.f32 %v22, %v24
  %v26 = vadd.f32 %v22, %v25
  %vm27 = vweird.f32 %v22
  %v28 = vsel %vm27, %v22, %v26
  %v29 = vmul.f32 %v19, %v28
  %v30 = vmul.f32 %v21, %v28
  %v31 = vsub.f32 %v16, %v29
  %v32 = vsub.f32 %v17, %v30
  %v33 = vmul.f32 %v31, %v31
  %v34 = vmul.f32 %v32, %v32
  %35 = vadd.xlane.f32.xlu0 %v33
  %v36 = vpop.xlane.xlu0 %35
  %37 = vadd.xlane.f32.xlu0 %v34
  %v38 = vpop.xlane.xlu0 %37
  %v39 = vmul.f32 %v36, %v28
  %v40 = vmul.f32 %v38, %v28
  %v41 = vadd.f32 %v39, 1e-05
  %v42 = vadd.f32 %v40, 1e-05
  %v43 = vrsqrt.pop %v41
  %v44 = vmul.f32 %v43, %v41
  %v45 = vmul.f32 %v44, %v43
  %v46 = vmul.f32 0.5, %v45
  %v47 = vsub.f32 1.5, %v46
  %v48 = vmul.f32 %v43, %v47
  %vm49 = vweird.f32 %v41
  %vm50 = vweird.f32 %v43
  %vm51 = vmor %vm49, %vm50
  %v52 = vsel %vm51, %v43, %v48
  %v53 = vrsqrt.pop %v42
  %v54 = vmul.f32 %v53, %v42
  %v55 = vmul.f32 %v54, %v53
  %v56 = vmul.f32 0.5, %v55
  %v57 = vsub.f32 1.5, %v56
  %v58 = vmul.f32 %v53, %v57
  %vm59 = vweird.f32 %v42
  %vm60 = vweird.f32 %v53
  %vm61 = vmor %vm59, %vm60
  %v62 = vsel %vm61, %v53, %v58
  %v63 = vmul.f32 %v31, %v52
  %v64 = vmul.f32 %v32, %v62
  %v65 = vld [vmem:[%s1] sm:$0x1]
  %v67 = vperm.slane %v65, 0
  %v69 = vmul.f32 %v63, %v67
  %v70 = vmul.f32 %v64, %v67
  %v71 = vld [vmem:[%s2] sm:$0x1]
  %v73 = vperm.slane %v71, 0
  %v75 = vadd.f32 %v69, %v73
  %v76 = vadd.f32 %v70, %v73
  %v77 = vpack.c.bf16 %v75, %v75
  %v78 = vpack.c.bf16 %v76, %v76
  %79 = vst [vmem:[%s3] sm:$0xf] %v77
  %80 = vst [vmem:[%s3 + $0x4] sm:$0xf] %v78
  // Predicated region
  $region14: #{forward.57} parent=0 // pred_check
    _
  $region15: #{forward.57} parent=0 // pred_check_branch
    %82 = sbr.rel (0) target = $region17
  $region16: #{forward.57} parent=0 // pred_region
    _
  $region17: #{forward.57} parent=0 // pred_fallthru
    _
  // Predicated region
  $region18: #{forward.57} parent=0 // pred_check
    _
  $region19: #{forward.57} parent=0 // pred_check_branch
    %84 = sbr.rel (0) target = $region21
  $region20: #{forward.57} parent=0 // pred_region
    _
  $region21: #{forward.57} parent=0 // pred_fallthru
    _

// kernel: forward.54
$region0: #{forward.54}
  #allocation0 [shape = 'u32[]', space=smem, size = 0x4, offset = 0x4, fixed_abs, tag = 'smem constant byte address 0x4 - core index']
  #allocation1 [shape = 'u32[72,128]{1,0:T(1,128)}', space=vmem, size = 0x9000, scoped, tag = 'internal scratch']
  #allocation2 [shape = 'f32[16,384]{1,0:T(8,128)}', space=vmem, size = 0x6000, scoped, tag = 'scratch operand']
  %s0 = inlined_call_operand.vmem [shape: bf16[16,128], index: 0, kind: input, shape index: {}]
  %s1 = inlined_call_operand.hbm [shape: bf16[128,384], index: 1, kind: input, shape index: {}]
  %s2 = inlined_call_operand.vmem [shape: f32[1,384], index: 2, kind: input, shape index: {}]
  %s3 = inlined_call_operand.vmem [shape: bf16[16,384], index: 3, kind: output, shape index: {}]
  %s4 = sld [smem:[#allocation0]]
  $region34: #{forward.54} parent=0
    _
  %s6 = ssub.s32 1, %s4
  %s7 = scalar_select 0, %s6, %s4
  $region1: #{forward.54} parent=0
    #allocation3 [shape = 'u8[98304]{0}', space=vmem, size = 0x18000, scoped, tag = 'input window, operand 1, single buffered']
    #allocation4 [shape = 's32[1]{0}', space=sflag, size = 0x4, scoped, tag = 'scoped memory for forward.54']
    %8 = vsyncpa [#allocation4], 0
    // Predicated region
    $region2: #{forward.54} parent=1 // pred_check
      _
    $region3: #{forward.54} parent=1 // pred_check_branch
      %10 = sbr.rel (0) target = $region5
    $region4: #{forward.54} parent=1 // pred_region
      _
    $region5: #{forward.54} parent=1 // pred_fallthru
      _
    // Predicated region
    $region6: #{forward.54} parent=1 // pred_check
      _
    $region7: #{forward.54} parent=1 // pred_check_branch
      %12 = sbr.rel (0) target = $region9
    $region8: #{forward.54} parent=1 // pred_region
      %14 = vsyncadd [#allocation4], 0
      %s15 = sshll.u32 %s1, 4
      %s16 = int_to_ptr.hbm [resolvable:$true] %s15
      %s17 = sshll.u32 [#allocation3], 4
      %s18 = int_to_ptr.vmem [resolvable:$true] %s17
      %23 = dma.hbm_to_vmem [thread:$0]  %s16, 3072, %s18, [#allocation4], 192, 192, 12
    $region9: #{forward.54} parent=1 // pred_fallthru
      _
    // Predicated region
    $region10: #{forward.54} parent=1 // pred_check
      _
    $region11: #{forward.54} parent=1 // pred_check_branch
      %25 = sbr.rel (0) target = $region13
    $region12: #{forward.54} parent=1 // pred_region
      _
    $region13: #{forward.54} parent=1 // pred_fallthru
      _
    // Predicated region
    $region14: #{forward.54} parent=1 // pred_check
      _
    $region15: #{forward.54} parent=1 // pred_check_branch
      %27 = sbr.rel (0) target = $region17
    $region16: #{forward.54} parent=1 // pred_region
      %29 = dma.done [#allocation4], 3072
    $region17: #{forward.54} parent=1 // pred_fallthru
      _
    %p30 = scmp.eq.s32.totalorder 0, 0
    // Predicated region
    $region18: #{forward.54} parent=1 // pred_check
      %p31 = pneg %p30
    $region19: #{forward.54} parent=1 // pred_check_branch
      %33 = sbr.rel (%p31) target = $region21
    $region20: #{forward.54} parent=1 // pred_region
      %34 = vst [vmem:[#allocation2] sm:$0xff] 0.0
      %35 = vst [vmem:[#allocation2 + $0x8] sm:$0xff] 0.0
      %36 = vst [vmem:[#allocation2 + $0x10] sm:$0xff] 0.0
      %37 = vst [vmem:[#allocation2 + $0x18] sm:$0xff] 0.0
      %38 = vst [vmem:[#allocation2 + $0x20] sm:$0xff] 0.0
      %39 = vst [vmem:[#allocation2 + $0x28] sm:$0xff] 0.0
    $region21: #{forward.54} parent=1 // pred_fallthru
      _
    %v40 = vld [vmem:[#allocation2] sm:$0xff]
    %v41 = vld [vmem:[#allocation2 + $0x8] sm:$0xff]
    %v42 = vld [vmem:[#allocation2 + $0x10] sm:$0xff]
    %v43 = vld [vmem:[#allocation2 + $0x18] sm:$0xff]
    %v44 = vld [vmem:[#allocation2 + $0x20] sm:$0xff]
    %v45 = vld [vmem:[#allocation2 + $0x28] sm:$0xff]
    %v46 = vld [vmem:[%s0] sm:$0xf]
    %v47 = vld [vmem:[%s0 + $0x4] sm:$0xf]
    %v48 = vld [vmem:[#allocation3] sm:$0xff]
    %v49 = vld [vmem:[#allocation3 + $0x8] sm:$0xf]
    %v50 = vld [vmem:[#allocation3 + $0xc] sm:$0xff]
    %v51 = vld [vmem:[#allocation3 + $0x14] sm:$0xf]
    %v52 = vld [vmem:[#allocation3 + $0x18] sm:$0xff]
    %v53 = vld [vmem:[#allocation3 + $0x20] sm:$0xf]
    %v54 = vld [vmem:[#allocation3 + $0x24] sm:$0xff]
    %v55 = vld [vmem:[#allocation3 + $0x2c] sm:$0xf]
    %v56 = vld [vmem:[#allocation3 + $0x30] sm:$0xff]
    %v57 = vld [vmem:[#allocation3 + $0x38] sm:$0xf]
    %v58 = vld [vmem:[#allocation3 + $0x3c] sm:$0xff]
    %v59 = vld [vmem:[#allocation3 + $0x44] sm:$0xf]
    %v60 = vld [vmem:[#allocation3 + $0x48] sm:$0xff]
    %v61 = vld [vmem:[#allocation3 + $0x50] sm:$0xf]
    %v62 = vld [vmem:[#allocation3 + $0x54] sm:$0xff]
    %v63 = vld [vmem:[#allocation3 + $0x5c] sm:$0xf]
    %v64 = vld [vmem:[#allocation3 + $0x60] sm:$0xff]
    %v65 = vld [vmem:[#allocation3 + $0x68] sm:$0xf]
    %v66 = vld [vmem:[#allocation3 + $0x6c] sm:$0xff]
    %v67 = vld [vmem:[#allocation3 + $0x74] sm:$0xf]
    %v68 = vld [vmem:[#allocation3 + $0x78] sm:$0xff]
    %v69 = vld [vmem:[#allocation3 + $0x80] sm:$0xf]
    %v70 = vld [vmem:[#allocation3 + $0x84] sm:$0xff]
    %v71 = vld [vmem:[#allocation3 + $0x8c] sm:$0xf]
    %v72 = vld [vmem:[#allocation3 + $0x90] sm:$0xff]
    %v73 = vld [vmem:[#allocation3 + $0x98] sm:$0xf]
    %v74 = vld [vmem:[#allocation3 + $0x9c] sm:$0xff]
    %v75 = vld [vmem:[#allocation3 + $0xa4] sm:$0xf]
    %v76 = vld [vmem:[#allocation3 + $0xa8] sm:$0xff]
    %v77 = vld [vmem:[#allocation3 + $0xb0] sm:$0xf]
    %v78 = vld [vmem:[#allocation3 + $0xb4] sm:$0xff]
    %v79 = vld [vmem:[#allocation3 + $0xbc] sm:$0xf]
    %v82 = vunpack.c.l.b16 %v46
    %v83 = vunpack.c.l.b16 %v47
    %v84 = vpack.c.b16 %v83, %v82
    %v118 = vunpack.c.l.b16 %v48
    %v119 = vunpack.c.h.b16 %v48
    %v120 = vunpack.c.l.b16 %v49
    %v121 = vunpack.c.l.b16 %v50
    %v122 = vunpack.c.h.b16 %v50
    %v123 = vunpack.c.l.b16 %v51
    %v124 = vunpack.c.l.b16 %v52
    %v125 = vunpack.c.h.b16 %v52
    %v126 = vunpack.c.l.b16 %v53
    %v127 = vunpack.c.l.b16 %v54
    %v128 = vunpack.c.h.b16 %v54
    %v129 = vunpack.c.l.b16 %v55
    %v130 = vunpack.c.l.b16 %v56
    %v131 = vunpack.c.h.b16 %v56
    %v132 = vunpack.c.l.b16 %v57
    %v133 = vunpack.c.l.b16 %v58
    %v134 = vunpack.c.h.b16 %v58
    %v135 = vunpack.c.l.b16 %v59
    %v136 = vunpack.c.l.b16 %v60
    %v137 = vunpack.c.h.b16 %v60
    %v138 = vunpack.c.l.b16 %v61
    %v139 = vunpack.c.l.b16 %v62
    %v140 = vunpack.c.h.b16 %v62
    %v141 = vunpack.c.l.b16 %v63
    %v142 = vunpack.c.l.b16 %v64
    %v143 = vunpack.c.h.b16 %v64
    %v144 = vunpack.c.l.b16 %v65
    %v145 = vunpack.c.l.b16 %v66
    %v146 = vunpack.c.h.b16 %v66
    %v147 = vunpack.c.l.b16 %v67
    %v148 = vunpack.c.l.b16 %v68
    %v149 = vunpack.c.h.b16 %v68
    %v150 = vunpack.c.l.b16 %v69
    %v151 = vunpack.c.l.b16 %v70
    %v152 = vunpack.c.h.b16 %v70
    %v153 = vunpack.c.l.b16 %v71
    %v154 = vunpack.c.l.b16 %v72
    %v155 = vunpack.c.h.b16 %v72
    %v156 = vunpack.c.l.b16 %v73
    %v157 = vunpack.c.l.b16 %v74
    %v158 = vunpack.c.h.b16 %v74
    %v159 = vunpack.c.l.b16 %v75
    %v160 = vunpack.c.l.b16 %v76
    %v161 = vunpack.c.h.b16 %v76
    %v162 = vunpack.c.l.b16 %v77
    %v163 = vunpack.c.l.b16 %v78
    %v164 = vunpack.c.h.b16 %v78
    %v165 = vunpack.c.l.b16 %v79
    %v166 = vpack.c.b16 %v121, %v118
    %v167 = vpack.c.b16 %v122, %v119
    %v168 = vpack.c.b16 %v123, %v120
    %v169 = vpack.c.b16 %v127, %v124
    %v170 = vpack.c.b16 %v128, %v125
    %v171 = vpack.c.b16 %v129, %v126
    %v172 = vpack.c.b16 %v133, %v130
    %v173 = vpack.c.b16 %v134, %v131
    %v174 = vpack.c.b16 %v135, %v132
    %v175 = vpack.c.b16 %v139, %v136
    %v176 = vpack.c.b16 %v140, %v137
    %v177 = vpack.c.b16 %v141, %v138
    %v178 = vpack.c.b16 %v145, %v142
    %v179 = vpack.c.b16 %v146, %v143
    %v180 = vpack.c.b16 %v147, %v144
    %v181 = vpack.c.b16 %v151, %v148
    %v182 = vpack.c.b16 %v152, %v149
    %v183 = vpack.c.b16 %v153, %v150
    %v184 = vpack.c.b16 %v157, %v154
    %v185 = vpack.c.b16 %v158, %v155
    %v186 = vpack.c.b16 %v159, %v156
    %v187 = vpack.c.b16 %v163, %v160
    %v188 = vpack.c.b16 %v164, %v161
    %v189 = vpack.c.b16 %v165, %v162
    %214 = vmatpush.bf16.msra.mxu0 %v187
    %215 = vmatpush.bf16.msra.mxu0 %v184
    %216 = vmatpush.bf16.msra.mxu0 %v181
    %217 = vmatpush.bf16.msra.mxu0 %v178
    %218 = vmatpush.bf16.msra.mxu0 %v175
    %219 = vmatpush.bf16.msra.mxu0 %v172
    %220 = vmatpush.bf16.msra.mxu0 %v169
    %221 = vmatpush.bf16.msra.mxu0 %v166
    %222 = vmatmul.bf16.gmra.mxu0 %v84
    %v223 = vpop.f32.mrf.mxu0
    %v224 = vadd.f32 0.0, %v223
    %v225 = vpop.f32.mrf.mxu0
    %v226 = vadd.f32 0.0, %v225
    %227 = vdwg.mxu0
    %228 = vmatpush.bf16.msra.mxu0 %v188
    %229 = vmatpush.bf16.msra.mxu0 %v185
    %230 = vmatpush.bf16.msra.mxu0 %v182
    %231 = vmatpush.bf16.msra.mxu0 %v179
    %232 = vmatpush.bf16.msra.mxu0 %v176
    %233 = vmatpush.bf16.msra.mxu0 %v173
    %234 = vmatpush.bf16.msra.mxu0 %v170
    %235 = vmatpush.bf16.msra.mxu0 %v167
    %236 = vmatmul.bf16.gmra.mxu0 %v84
    %v237 = vpop.f32.mrf.mxu0
    %v238 = vadd.f32 0.0, %v237
    %v239 = vpop.f32.mrf.mxu0
    %v240 = vadd.f32 0.0, %v239
    %241 = vdwg.mxu0
    %242 = vmatpush.bf16.msra.mxu0 %v189
    %243 = vmatpush.bf16.msra.mxu0 %v186
    %244 = vmatpush.bf16.msra.mxu0 %v183
    %245 = vmatpush.bf16.msra.mxu0 %v180
    %246 = vmatpush.bf16.msra.mxu0 %v177
    %247 = vmatpush.bf16.msra.mxu0 %v174
    %248 = vmatpush.bf16.msra.mxu0 %v171
    %249 = vmatpush.bf16.msra.mxu0 %v168
    %250 = vmatmul.bf16.gmra.mxu0 %v84
    %v251 = vpop.f32.mrf.mxu0
    %v252 = vadd.f32 0.0, %v251
    %v253 = vpop.f32.mrf.mxu0
    %v254 = vadd.f32 0.0, %v253
    %255 = vdwg.mxu0
    %v256 = vadd.f32 %v40, %v224
    %v257 = vadd.f32 %v41, %v238
    %v258 = vadd.f32 %v42, %v252
    %v259 = vadd.f32 %v43, %v226
    %v260 = vadd.f32 %v44, %v240
    %v261 = vadd.f32 %v45, %v254
    %262 = vst [vmem:[#allocation2] sm:$0xff] %v256
    %263 = vst [vmem:[#allocation2 + $0x8] sm:$0xff] %v257
    %264 = vst [vmem:[#allocation2 + $0x10] sm:$0xff] %v258
    %265 = vst [vmem:[#allocation2 + $0x18] sm:$0xff] %v259
    %266 = vst [vmem:[#allocation2 + $0x20] sm:$0xff] %v260
    %267 = vst [vmem:[#allocation2 + $0x28] sm:$0xff] %v261
    // Predicated region
    $region22: #{forward.54} parent=1 // pred_check
      %p268 = pneg %p30
    $region23: #{forward.54} parent=1 // pred_check_branch
      %270 = sbr.rel (%p268) target = $region25
    $region24: #{forward.54} parent=1 // pred_region
      %v271 = vld [vmem:[#allocation2] sm:$0xff]
      %v272 = vld [vmem:[#allocation2 + $0x8] sm:$0xff]
      %v273 = vld [vmem:[#allocation2 + $0x10] sm:$0xff]
      %v274 = vld [vmem:[#allocation2 + $0x18] sm:$0xff]
      %v275 = vld [vmem:[#allocation2 + $0x20] sm:$0xff]
      %v276 = vld [vmem:[#allocation2 + $0x28] sm:$0xff]
      %v277 = vld [vmem:[%s2] sm:$0x7]
      %v279 = vperm.slane %v277, 0
      %v280 = vperm.slane %v277, 1
      %v281 = vperm.slane %v277, 2
      %v285 = vadd.f32 %v271, %v279
      %v286 = vadd.f32 %v272, %v280
      %v287 = vadd.f32 %v273, %v281
      %v288 = vadd.f32 %v274, %v279
      %v289 = vadd.f32 %v275, %v280
      %v290 = vadd.f32 %v276, %v281
      %v291 = vpack.c.bf16 %v286, %v285
      %v292 = vpack.c.bf16 %v287, %v287
      %v293 = vpack.c.bf16 %v289, %v288
      %v294 = vpack.c.bf16 %v290, %v290
      %295 = vst [vmem:[%s3] sm:$0xff] %v291
      %296 = vst [vmem:[%s3 + $0x8] sm:$0xf] %v292
      %297 = vst [vmem:[%s3 + $0xc] sm:$0xff] %v293
      %298 = vst [vmem:[%s3 + $0x14] sm:$0xf] %v294
    $region25: #{forward.54} parent=1 // pred_fallthru
      _
    // Predicated region
    $region26: #{forward.54} parent=1 // pred_check
      _
    $region27: #{forward.54} parent=1 // pred_check_branch
      %300 = sbr.rel (0) target = $region29
    $region28: #{forward.54} parent=1 // pred_region
      _
    $region29: #{forward.54} parent=1 // pred_fallthru
      _
    // Predicated region
    $region30: #{forward.54} parent=1 // pred_check
      _
    $region31: #{forward.54} parent=1 // pred_check_branch
      %302 = sbr.rel (0) target = $region33
    $region32: #{forward.54} parent=1 // pred_region
      _
    $region33: #{forward.54} parent=1 // pred_fallthru
      _
    %303 = vsyncpa [#allocation4], 1

// kernel: forward.55
$region0: #{forward.55}
  #allocation0 [shape = 'u32[]', space=smem, size = 0x4, offset = 0x4, fixed_abs, tag = 'smem constant byte address 0x4 - core index']
  #allocation1 [shape = 'u32[72,128]{1,0:T(1,128)}', space=vmem, size = 0x9000, scoped, tag = 'internal scratch']
  #allocation2 [shape = 'f32[4,8,1]{2,1,0:T(8,128)}', space=vmem, size = 0x4000, scoped, tag = 'scratch operand']
  #allocation3 [shape = 'f32[4,8,1]{2,1,0:T(8,128)}', space=vmem, size = 0x4000, scoped, tag = 'scratch operand']
  #allocation4 [shape = 'f32[4,8,32]{2,1,0:T(8,128)}', space=vmem, size = 0x4000, scoped, tag = 'scratch operand']
  %s0 = inlined_call_operand.vmem [shape: bf16[2,8,384], index: 0, kind: input, shape index: {}, may-alias: {0,1,2}]
  %s1 = inlined_call_operand.vmem [shape: bf16[2,8,384], index: 1, kind: input, shape index: {}, may-alias: {0,1,2}]
  %s2 = inlined_call_operand.vmem [shape: bf16[2,8,384], index: 2, kind: input, shape index: {}, may-alias: {0,1,2}]
  %s3 = inlined_call_operand.vmem [shape: f32[2,1,8], index: 3, kind: input, shape index: {}]
  %s4 = inlined_call_operand.vmem [shape: bf16[2,8,128], index: 4, kind: output, shape index: {}]
  %s5 = sld [smem:[#allocation0]]
  $region57: #{forward.55} parent=0
    _
  %s7 = ssub.s32 1, %s5
  %s8 = scalar_select 0, %s7, %s5
  loop: start=0, step=1, limit=4
  $region2: #{forward.55} parent=0 // loop_pre_header
    _
  $region3: #{forward.55} parent=0 // loop_header
    %s10 = sphi 0, %s14
    %p11 = scmp.ge.s32.totalorder %s10, 4
    %s17 = sphi 0, %s36
    %s18 = sphi 0, %s32
    %s19 = sphi 0, %s28
    %s20 = sphi 0, %s17
    %s21 = sphi 0, %s18
    %s22 = sphi 0, %s19
    %s23 = sphi 0, %s20
    %s24 = sphi 0, %s21
    %s25 = sphi 0, %s22
    %s41 = sphi 0, %s43
    %s44 = sphi 0, %s41
    %s45 = sphi 0, %s44
    %s61 = sphi 0, %s45
    %s69 = sphi 0, %s71
    %s72 = sphi 0, %s69
    %s73 = sphi 0, %s72
    %s89 = sphi 0, %s73
    %s97 = sphi 0, %s99
    %s100 = sphi 0, %s97
    %s101 = sphi 0, %s100
    %s117 = sphi 0, %s101
    %s125 = sphi 0, %s127
    %s128 = sphi 0, %s125
    %s129 = sphi 0, %s128
    %s145 = sphi 0, %s129
    %s153 = sphi 0, %s155
    %s156 = sphi 0, %s153
    %s157 = sphi 0, %s156
    %s173 = sphi 0, %s157
  $region4: #{forward.55} parent=0 // loop_header_branch
    %13 = sbr.rel (%p11) target = $region8
  $region5: #{forward.55} parent=0 // loop_body
    %s15 = ssub.s32 %s10, 1
    %s16 = ssub.s32 %s10, 2
    %s26 = sadd.s32 1, %s19
    %p27 = scmp.ge.s32.totalorder %s26, 1
    %s28 = scalar_select %p27, 0, %s26
    %s29 = sadd.s32 1, %s18
    %s30 = scalar_select %p27, %s29, %s18
    %p31 = scmp.ge.s32.totalorder %s30, 1
    %s32 = scalar_select %p31, 0, %s30
    %s33 = sadd.s32 1, %s17
    %s34 = scalar_select %p31, %s33, %s17
    %p35 = scmp.ge.s32.totalorder %s34, 2
    %s36 = scalar_select %p35, 0, %s34
    %s37 = ssub.s32 %s17, %s36
    %s38 = ssub.s32 %s18, %s32
    %s39 = sor.u32 %s37, %s38
    %p40 = scmp.eq.s32.totalorder %s39, 0
    %s42 = sadd.s32 %s41, 1
    %s43 = scalar_select %p40, %s41, %s42
    %p46 = pneg %p40
    %p47 = scmp.eq.s32.totalorder %s10, 1
    %p48 = por %p46, %p47
    %p49 = scmp.ne.s32.totalorder %s41, %s44
    %p50 = scmp.eq.s32.totalorder %s10, 0
    %p51 = por %p49, %p50
    %p52 = scmp.ne.s32.totalorder %s41, %s44
    %p53 = scmp.eq.s32.totalorder %s15, 1
    %p54 = por %p52, %p53
    %p55 = scmp.ne.s32.totalorder %s44, %s45
    %p56 = scmp.eq.s32.totalorder %s15, 0
    %p57 = por %p55, %p56
    %p58 = scmp.ne.s32.totalorder %s44, %s45
    %p59 = scmp.eq.s32.totalorder %s16, 1
    %p60 = por %p58, %p59
    %p62 = scmp.ne.s32.totalorder %s45, %s61
    %p63 = scmp.eq.s32.totalorder %s16, 0
    %p64 = por %p62, %p63
    %s65 = ssub.s32 %s17, %s36
    %s66 = ssub.s32 %s19, %s28
    %s67 = sor.u32 %s65, %s66
    %p68 = scmp.eq.s32.totalorder %s67, 0
    %s70 = sadd.s32 %s69, 1
    %s71 = scalar_select %p68, %s69, %s70
    %p74 = pneg %p68
    %p75 = scmp.eq.s32.totalorder %s10, 1
    %p76 = por %p74, %p75
    %p77 = scmp.ne.s32.totalorder %s69, %s72
    %p78 = scmp.eq.s32.totalorder %s10, 0
    %p79 = por %p77, %p78
    %p80 = scmp.ne.s32.totalorder %s69, %s72
    %p81 = scmp.eq.s32.totalorder %s15, 1
    %p82 = por %p80, %p81
    %p83 = scmp.ne.s32.totalorder %s72, %s73
    %p84 = scmp.eq.s32.totalorder %s15, 0
    %p85 = por %p83, %p84
    %p86 = scmp.ne.s32.totalorder %s72, %s73
    %p87 = scmp.eq.s32.totalorder %s16, 1
    %p88 = por %p86, %p87
    %p90 = scmp.ne.s32.totalorder %s73, %s89
    %p91 = scmp.eq.s32.totalorder %s16, 0
    %p92 = por %p90, %p91
    %s93 = ssub.s32 %s17, %s36
    %s94 = ssub.s32 %s19, %s28
    %s95 = sor.u32 %s93, %s94
    %p96 = scmp.eq.s32.totalorder %s95, 0
    %s98 = sadd.s32 %s97, 1
    %s99 = scalar_select %p96, %s97, %s98
    %p102 = pneg %p96
    %p103 = scmp.eq.s32.totalorder %s10, 1
    %p104 = por %p102, %p103
    %p105 = scmp.ne.s32.totalorder %s97, %s100
    %p106 = scmp.eq.s32.totalorder %s10, 0
    %p107 = por %p105, %p106
    %p108 = scmp.ne.s32.totalorder %s97, %s100
    %p109 = scmp.eq.s32.totalorder %s15, 1
    %p110 = por %p108, %p109
    %p111 = scmp.ne.s32.totalorder %s100, %s101
    %p112 = scmp.eq.s32.totalorder %s15, 0
    %p113 = por %p111, %p112
    %p114 = scmp.ne.s32.totalorder %s100, %s101
    %p115 = scmp.eq.s32.totalorder %s16, 1
    %p116 = por %p114, %p115
    %p118 = scmp.ne.s32.totalorder %s101, %s117
    %p119 = scmp.eq.s32.totalorder %s16, 0
    %p120 = por %p118, %p119
    %s121 = ssub.s32 %s17, %s36
    %s122 = ssub.s32 %s19, %s28
    %s123 = sor.u32 %s121, %s122
    %p124 = scmp.eq.s32.totalorder %s123, 0
    %s126 = sadd.s32 %s125, 1
    %s127 = scalar_select %p124, %s125, %s126
    %p130 = pneg %p124
    %p131 = scmp.eq.s32.totalorder %s10, 1
    %p132 = por %p130, %p131
    %p133 = scmp.ne.s32.totalorder %s125, %s128
    %p134 = scmp.eq.s32.totalorder %s10, 0
    %p135 = por %p133, %p134
    %p136 = scmp.ne.s32.totalorder %s125, %s128
    %p137 = scmp.eq.s32.totalorder %s15, 1
    %p138 = por %p136, %p137
    %p139 = scmp.ne.s32.totalorder %s128, %s129
    %p140 = scmp.eq.s32.totalorder %s15, 0
    %p141 = por %p139, %p140
    %p142 = scmp.ne.s32.totalorder %s128, %s129
    %p143 = scmp.eq.s32.totalorder %s16, 1
    %p144 = por %p142, %p143
    %p146 = scmp.ne.s32.totalorder %s129, %s145
    %p147 = scmp.eq.s32.totalorder %s16, 0
    %p148 = por %p146, %p147
    %s149 = ssub.s32 %s17, %s36
    %s150 = ssub.s32 %s18, %s32
    %s151 = sor.u32 %s149, %s150
    %p152 = scmp.eq.s32.totalorder %s151, 0
    %s154 = sadd.s32 %s153, 1
    %s155 = scalar_select %p152, %s153, %s154
    %p158 = pneg %p152
    %p159 = scmp.eq.s32.totalorder %s10, 1
    %p160 = por %p158, %p159
    %p161 = scmp.ne.s32.totalorder %s153, %s156
    %p162 = scmp.eq.s32.totalorder %s10, 0
    %p163 = por %p161, %p162
    %p164 = scmp.ne.s32.totalorder %s153, %s156
    %p165 = scmp.eq.s32.totalorder %s15, 1
    %p166 = por %p164, %p165
    %p167 = scmp.ne.s32.totalorder %s156, %s157
    %p168 = scmp.eq.s32.totalorder %s15, 0
    %p169 = por %p167, %p168
    %p170 = scmp.ne.s32.totalorder %s156, %s157
    %p171 = scmp.eq.s32.totalorder %s16, 1
    %p172 = por %p170, %p171
    %p174 = scmp.ne.s32.totalorder %s157, %s173
    %p175 = scmp.eq.s32.totalorder %s16, 0
    %p176 = por %p174, %p175
    %p177 = scmp.le.s32.totalorder 1, %s10
    %p178 = scmp.lt.s32.totalorder %s10, 3
    %p179 = pnand %p177, %p178
    %p180 = pneg %p179
    // Predicated region
    $region9: #{forward.55} parent=5 // pred_check
      _
    $region10: #{forward.55} parent=5 // pred_check_branch
      %182 = sbr.rel (%p179) target = $region12
    $region11: #{forward.55} parent=5 // pred_region
      %s183 = ssub.s32 %s10, 1
    $region12: #{forward.55} parent=5 // pred_fallthru
      _
    %p184 = scmp.lt.s32.totalorder %s10, 2
    // Predicated region
    $region13: #{forward.55} parent=5 // pred_check
      %p185 = pneg %p184
    $region14: #{forward.55} parent=5 // pred_check_branch
      %187 = sbr.rel (%p185) target = $region16
    $region15: #{forward.55} parent=5 // pred_region
      // Predicated region
      $region17: #{forward.55} parent=15 // pred_check
        %p188 = pneg %p51
      $region18: #{forward.55} parent=15 // pred_check_branch
        %190 = sbr.rel (%p188) target = $region20
      $region19: #{forward.55} parent=15 // pred_region
        %p191 = scmp.lt.s32.totalorder %s17, 1
        %s192 = scalar_select %p191, %s17, 1
        %p193 = scmp.lt.s32.totalorder %s18, 0
        %s194 = scalar_select %p193, %s18, 0
        %s195 = smul.addr %s194, 3
        %s196 = smul.addr %s192, 3
        %s197 = sadd.s32 %s195, %s196
        %s198 = smul.addr %s197, 4
        %s199 = scalar_lea.vmem %s0, %s198
      $region20: #{forward.55} parent=15 // pred_fallthru
        _
      // Predicated region
      $region21: #{forward.55} parent=15 // pred_check
        %p200 = pneg %p79
      $region22: #{forward.55} parent=15 // pred_check_branch
        %202 = sbr.rel (%p200) target = $region24
      $region23: #{forward.55} parent=15 // pred_region
        %p203 = scmp.lt.s32.totalorder %s17, 1
        %s204 = scalar_select %p203, %s17, 1
        %p205 = scmp.lt.s32.totalorder %s19, 0
        %s206 = scalar_select %p205, %s19, 0
        %s207 = smul.addr %s206, 3
        %s208 = sadd.s32 1, %s207
        %s209 = smul.addr %s204, 3
        %s210 = sadd.s32 %s208, %s209
        %s211 = smul.addr %s210, 4
        %s212 = scalar_lea.vmem %s1, %s211
      $region24: #{forward.55} parent=15 // pred_fallthru
        _
      // Predicated region
      $region25: #{forward.55} parent=15 // pred_check
        %p213 = pneg %p107
      $region26: #{forward.55} parent=15 // pred_check_branch
        %215 = sbr.rel (%p213) target = $region28
      $region27: #{forward.55} parent=15 // pred_region
        %p216 = scmp.lt.s32.totalorder %s17, 1
        %s217 = scalar_select %p216, %s17, 1
        %p218 = scmp.lt.s32.totalorder %s19, 0
        %s219 = scalar_select %p218, %s19, 0
        %s220 = smul.addr %s219, 3
        %s221 = sadd.s32 2, %s220
        %s222 = smul.addr %s217, 3
        %s223 = sadd.s32 %s221, %s222
        %s224 = smul.addr %s223, 4
        %s225 = scalar_lea.vmem %s2, %s224
      $region28: #{forward.55} parent=15 // pred_fallthru
        _
      // Predicated region
      $region29: #{forward.55} parent=15 // pred_check
        %p226 = pneg %p135
      $region30: #{forward.55} parent=15 // pred_check_branch
        %228 = sbr.rel (%p226) target = $region32
      $region31: #{forward.55} parent=15 // pred_region
        %p229 = scmp.lt.s32.totalorder %s17, 1
        %s230 = scalar_select %p229, %s17, 1
        %p231 = scmp.lt.s32.totalorder %s19, 0
        %s232 = scalar_select %p231, %s19, 0
        %s233 = sadd.s32 %s232, %s230
        %s234 = scalar_lea.vmem %s3, %s233
      $region32: #{forward.55} parent=15 // pred_fallthru
        _
    $region16: #{forward.55} parent=5 // pred_fallthru
      _
    %p235 = scmp.le.s32.totalorder 1, %s10
    %p236 = scmp.lt.s32.totalorder %s10, 3
    %p237 = pnand %p235, %p236
    %p238 = pneg %p237
    // Predicated region
    $region33: #{forward.55} parent=5 // pred_check
      _
    $region34: #{forward.55} parent=5 // pred_check_branch
      %240 = sbr.rel (%p237) target = $region36
    $region35: #{forward.55} parent=5 // pred_region
      %s241 = ssub.s32 %s10, 1
      %p242 = scmp.lt.s32.totalorder %s20, 1
      %s243 = scalar_select %p242, %s20, 1
      %p244 = scmp.lt.s32.totalorder %s21, 0
      %s245 = scalar_select %p244, %s21, 0
      %s246 = smul.addr %s245, 3
      %s247 = smul.addr %s243, 3
      %s248 = sadd.s32 %s246, %s247
      %s249 = smul.addr %s248, 4
      %s250 = scalar_lea.vmem %s0, %s249
      %p251 = pneg %p57
      %p252 = pneg %p54
      %p253 = scmp.lt.s32.totalorder %s20, 1
      %s254 = scalar_select %p253, %s20, 1
      %p255 = scmp.lt.s32.totalorder %s22, 0
      %s256 = scalar_select %p255, %s22, 0
      %s257 = smul.addr %s256, 3
      %s258 = sadd.s32 1, %s257
      %s259 = smul.addr %s254, 3
      %s260 = sadd.s32 %s258, %s259
      %s261 = smul.addr %s260, 4
      %s262 = scalar_lea.vmem %s1, %s261
      %p263 = pneg %p85
      %p264 = pneg %p82
      %p265 = scmp.lt.s32.totalorder %s20, 1
      %s266 = scalar_select %p265, %s20, 1
      %p267 = scmp.lt.s32.totalorder %s22, 0
      %s268 = scalar_select %p267, %s22, 0
      %s269 = smul.addr %s268, 3
      %s270 = sadd.s32 2, %s269
      %s271 = smul.addr %s266, 3
      %s272 = sadd.s32 %s270, %s271
      %s273 = smul.addr %s272, 4
      %s274 = scalar_lea.vmem %s2, %s273
      %p275 = pneg %p113
      %p276 = pneg %p110
      %p277 = scmp.lt.s32.totalorder %s20, 1
      %s278 = scalar_select %p277, %s20, 1
      %p279 = scmp.lt.s32.totalorder %s22, 0
      %s280 = scalar_select %p279, %s22, 0
      %s281 = sadd.s32 %s280, %s278
      %s282 = scalar_lea.vmem %s3, %s281
      %p283 = pneg %p141
      %p284 = pneg %p138
      %p285 = pneg %p169
      %p286 = pneg %p166
      %p287 = scmp.lt.s32.totalorder %s20, 1
      %s288 = scalar_select %p287, %s20, 1
      %p289 = scmp.lt.s32.totalorder %s21, 0
      %s290 = scalar_select %p289, %s21, 0
      %s291 = sadd.s32 %s290, %s288
      %s292 = smul.addr %s291, 4
      %s293 = scalar_lea.vmem %s4, %s292
      %p294 = scmp.lt.s32.totalorder %s20, 1
      %s295 = scalar_select %p294, %s20, 1
      %p296 = scmp.lt.s32.totalorder %s21, 0
      %s297 = scalar_select %p296, %s21, 0
      %s298 = smul.addr %s297, 3
      %s299 = smul.addr %s295, 3
      %s300 = sadd.s32 %s298, %s299
      %s301 = smul.addr %s300, 4
      %s302 = scalar_lea.vmem %s0, %s301
      %p303 = scmp.lt.s32.totalorder %s20, 1
      %s304 = scalar_select %p303, %s20, 1
      %p305 = scmp.lt.s32.totalorder %s22, 0
      %s306 = scalar_select %p305, %s22, 0
      %s307 = smul.addr %s306, 3
      %s308 = sadd.s32 1, %s307
      %s309 = smul.addr %s304, 3
      %s310 = sadd.s32 %s308, %s309
      %s311 = smul.addr %s310, 4
      %s312 = scalar_lea.vmem %s1, %s311
      %p313 = scmp.lt.s32.totalorder %s20, 1
      %s314 = scalar_select %p313, %s20, 1
      %p315 = scmp.lt.s32.totalorder %s22, 0
      %s316 = scalar_select %p315, %s22, 0
      %s317 = smul.addr %s316, 3
      %s318 = sadd.s32 2, %s317
      %s319 = smul.addr %s314, 3
      %s320 = sadd.s32 %s318, %s319
      %s321 = smul.addr %s320, 4
      %s322 = scalar_lea.vmem %s2, %s321
      %p323 = scmp.lt.s32.totalorder %s20, 1
      %s324 = scalar_select %p323, %s20, 1
      %p325 = scmp.lt.s32.totalorder %s22, 0
      %s326 = scalar_select %p325, %s22, 0
      %s327 = sadd.s32 %s326, %s324
      %s328 = scalar_lea.vmem %s3, %s327
      %p329 = scmp.lt.s32.totalorder %s20, 1
      %s330 = scalar_select %p329, %s20, 1
      %p331 = scmp.lt.s32.totalorder %s21, 0
      %s332 = scalar_select %p331, %s21, 0
      %s333 = sadd.s32 %s332, %s330
      %s334 = smul.addr %s333, 4
      %s335 = scalar_lea.vmem %s4, %s334
      %p337 = scmp.eq.s32.totalorder %s22, 0
      // Predicated region
      $region37: #{forward.55} parent=35 // pred_check
        %p338 = pneg %p337
      $region38: #{forward.55} parent=35 // pred_check_branch
        %340 = sbr.rel (%p338) target = $region40
      $region39: #{forward.55} parent=35 // pred_region
        %vm341 = vcmask 7168
        %342 = vst.msk [vmem:[#allocation2] sm:$0xff] %vm341, -1e+30
        %343 = vst.msk [vmem:[#allocation2 + $0x8] sm:$0xff] %vm341, -1e+30
        %344 = vst.msk [vmem:[#allocation2 + $0x10] sm:$0xff] %vm341, -1e+30
        %345 = vst.msk [vmem:[#allocation2 + $0x18] sm:$0xff] %vm341, -1e+30
        %346 = vst.msk [vmem:[#allocation3] sm:$0xff] %vm341, 0.0
        %347 = vst.msk [vmem:[#allocation3 + $0x8] sm:$0xff] %vm341, 0.0
        %348 = vst.msk [vmem:[#allocation3 + $0x10] sm:$0xff] %vm341, 0.0
        %349 = vst.msk [vmem:[#allocation3 + $0x18] sm:$0xff] %vm341, 0.0
        %vm350 = vcmask 261120
        %351 = vst.msk [vmem:[#allocation4] sm:$0xff] %vm350, 0.0
        %352 = vst.msk [vmem:[#allocation4 + $0x8] sm:$0xff] %vm350, 0.0
        %353 = vst.msk [vmem:[#allocation4 + $0x10] sm:$0xff] %vm350, 0.0
        %354 = vst.msk [vmem:[#allocation4 + $0x18] sm:$0xff] %vm350, 0.0
      $region40: #{forward.55} parent=35 // pred_fallthru
        _
      %v355 = vld [vmem:[%s302] sm:$0xf]
      %v356 = vunpack.c.l.bf16 %v355
      %v357 = vmul.f32 %v356, 0.17677669
      %v358 = vpack.c.bf16 %v357, %v357
      %v359 = vld [vmem:[%s312] sm:$0xf]
      %v360 = vld [vmem:[%s322] sm:$0xf]
      %v361 = vld [vmem:[%s328] sm:$0x1]
      %v362 = vmul.f32 %v361, -1e+09
      %s363 = smul.u32 %s21, 8
      %s364 = smul.u32 %s22, 8
      %v365 = vlaneseq
      %v366 = vshrl.u32 %v365, 7
      %v367 = vstv %s363
      %v368 = vadd.s32 %v367, %v366
      %v369 = vlaneseq
      %v370 = vand.u32 %v369, 127
      %v371 = vstv %s364
      %v372 = vadd.s32 %v371, %v370
      %vm373 = vcmp.gt.s32.totalorder %v372, %v368
      %v374 = vsel %vm373, -1e+09, 0.0
      %v376 = vperm.slane %v362, 0
      %v378 = vadd.f32 %v376, %v374
      %vm379 = vcmask 261120
      %v381 = vsel %vm379, %v358, 0
      %v384 = vsel %vm379, %v359, 0
      %386 = vmatpush.bf16.xpose.msra.mxu0 0
      %387 = vmatpush.bf16.xpose.msra.mxu0 0
      %388 = vmatpush.bf16.xpose.msra.mxu0 0
      %389 = vmatpush.bf16.xpose.msra.mxu0 0
      %390 = vmatpush.bf16.xpose.msra.mxu0 0
      %391 = vmatpush.bf16.xpose.msra.mxu0 0
      %392 = vmatpush.bf16.xpose.msra.mxu0 0
      %393 = vmatpush.bf16.xpose.msra.mxu0 %v384
      %394 = vmatmul.bf16.gmra.mxu0 %v381
      %v395 = vpop.f32.mrf.mxu0
      %v396 = vadd.f32 %v378, %v395
      %v397 = vpop.f32.mrf.mxu0
      %398 = vdwg.mxu0
      %v399 = vld [vmem:[#allocation2] sm:$0xff]
      %vm400 = vcmask 64512
      %v401 = vsel %vm400, %v396, -inf
      %402 = vmax.xlane.f32.xlu0 %v401
      %v403 = vpop.xlane.xlu0 %402
      %v404 = vmax.f32 %v399, %v403
      %v405 = vsub.f32 %v399, %v404
      %v406 = vmul.f32 %v405, 1.442695
      %v407 = vpow.pop %v406
      %409 = vset.pattern.permute.xlu0 0
      %410 = vperm.xlu0 %409, %v404
      %v411 = vpop.permute.xlu0 %410
      %v413 = vsub.f32 %v396, %v411
      %v414 = vmul.f32 %v413, 1.442695
      %v415 = vpow.pop %v414
      %v416 = vld [vmem:[#allocation3] sm:$0xff]
      %v417 = vmul.f32 %v407, %v416
      %v418 = vsel %vm400, %v415, 0.0
      %419 = vadd.xlane.f32.xlu0 %v418
      %v420 = vpop.xlane.xlu0 %419
      %v421 = vadd.f32 %v417, %v420
      %vm422 = vcmask 7168
      %423 = vst.msk [vmem:[#allocation3] sm:$0xff] %vm422, %v421
      %v424 = vld [vmem:[#allocation4] sm:$0xff]
      %426 = vset.pattern.permute.xlu0 0
      %427 = vperm.xlu0 %426, %v407
      %v428 = vpop.permute.xlu0 %427
      %v430 = vmul.f32 %v428, %v424
      %v431 = vpack.c.bf16 %v415, %v415
      %v433 = vsel %vm400, %v431, 0
      %vm435 = vcmask 1043456
      %v437 = vsel %vm435, %v360, 0
      %439 = vmatpush.bf16.msra.mxu0 0
      %440 = vmatpush.bf16.msra.mxu0 0
      %441 = vmatpush.bf16.msra.mxu0 0
      %442 = vmatpush.bf16.msra.mxu0 0
      %443 = vmatpush.bf16.msra.mxu0 0
      %444 = vmatpush.bf16.msra.mxu0 0
      %445 = vmatpush.bf16.msra.mxu0 0
      %446 = vmatpush.bf16.msra.mxu0 %v437
      %447 = vmatmul.bf16.gmra.mxu0 %v433
      %v448 = vpop.f32.mrf.mxu0
      %v449 = vadd.f32 0.0, %v448
      %v450 = vpop.f32.mrf.mxu0
      %451 = vdwg.mxu0
      %v452 = vadd.f32 %v430, %v449
      %453 = vst.msk [vmem:[#allocation4] sm:$0xff] %vm379, %v452
      %454 = vst.msk [vmem:[#allocation2] sm:$0xff] %vm422, %v404
      %v456 = vunpack.c.l.b16 %v358
      %v457 = vpack.c.b16 %v456, %v456
      %458 = vrot.lane.b32.xlu0 %v457, 96
      %v459 = vpop.permute.xlu0 %458
      %v461 = vunpack.c.l.b16 %v359
      %v462 = vpack.c.b16 %v461, %v461
      %463 = vrot.lane.b32.xlu0 %v462, 96
      %v464 = vpop.permute.xlu0 %463
      %v466 = vsel %vm379, %v459, 0
      %v469 = vsel %vm379, %v464, 0
      %471 = vmatpush.bf16.xpose.msra.mxu0 0
      %472 = vmatpush.bf16.xpose.msra.mxu0 0
      %473 = vmatpush.bf16.xpose.msra.mxu0 0
      %474 = vmatpush.bf16.xpose.msra.mxu0 0
      %475 = vmatpush.bf16.xpose.msra.mxu0 0
      %476 = vmatpush.bf16.xpose.msra.mxu0 0
      %477 = vmatpush.bf16.xpose.msra.mxu0 0
      %478 = vmatpush.bf16.xpose.msra.mxu0 %v469
      %479 = vmatmul.bf16.gmra.mxu0 %v466
      %v480 = vpop.f32.mrf.mxu0
      %v481 = vadd.f32 %v378, %v480
      %v482 = vpop.f32.mrf.mxu0
      %483 = vdwg.mxu0
      %s484 = scalar_lea.vmem [#allocation2], 8
      %v485 = vld [vmem:[%s484] sm:$0xff]
      %v486 = vsel %vm400, %v481, -inf
      %487 = vmax.xlane.f32.xlu0 %v486
      %v488 = vpop.xlane.xlu0 %487
      %v489 = vmax.f32 %v485, %v488
      %v490 = vsub.f32 %v485, %v489
      %v491 = vmul.f32 %v490, 1.442695
      %v492 = vpow.pop %v491
      %494 = vset.pattern.permute.xlu0 0
      %495 = vperm.xlu0 %494, %v489
      %v496 = vpop.permute.xlu0 %495
      %v498 = vsub.f32 %v481, %v496
      %v499 = vmul.f32 %v498, 1.442695
      %v500 = vpow.pop %v499
      %s501 = scalar_lea.vmem [#allocation3], 8
      %v502 = vld [vmem:[%s501] sm:$0xff]
      %v503 = vmul.f32 %v492, %v502
      %v504 = vsel %vm400, %v500, 0.0
      %505 = vadd.xlane.f32.xlu0 %v504
      %v506 = vpop.xlane.xlu0 %505
      %v507 = vadd.f32 %v503, %v506
      %508 = vst.msk [vmem:[%s501] sm:$0xff] %vm422, %v507
      %s509 = scalar_lea.vmem [#allocation4], 8
      %v510 = vld [vmem:[%s509] sm:$0xff]
      %512 = vset.pattern.permute.xlu0 0
      %513 = vperm.xlu0 %512, %v492
      %v514 = vpop.permute.xlu0 %513
      %v516 = vmul.f32 %v514, %v510
      %v517 = vpack.c.bf16 %v500, %v500
      %v519 = vunpack.c.l.b16 %v360
      %v520 = vpack.c.b16 %v519, %v519
      %521 = vrot.lane.b32.xlu0 %v520, 96
      %v522 = vpop.permute.xlu0 %521
      %v524 = vsel %vm400, %v517, 0
      %v527 = vsel %vm435, %v522, 0
      %529 = vmatpush.bf16.msra.mxu0 0
      %530 = vmatpush.bf16.msra.mxu0 0
      %531 = vmatpush.bf16.msra.mxu0 0
      %532 = vmatpush.bf16.msra.mxu0 0
      %533 = vmatpush.bf16.msra.mxu0 0
      %534 = vmatpush.bf16.msra.mxu0 0
      %535 = vmatpush.bf16.msra.mxu0 0
      %536 = vmatpush.bf16.msra.mxu0 %v527
      %537 = vmatmul.bf16.gmra.mxu0 %v524
      %v538 = vpop.f32.mrf.mxu0
      %v539 = vadd.f32 0.0, %v538
      %v540 = vpop.f32.mrf.mxu0
      %541 = vdwg.mxu0
      %v542 = vadd.f32 %v516, %v539
      %543 = vst.msk [vmem:[%s509] sm:$0xff] %vm379, %v542
      %544 = vst.msk [vmem:[%s484] sm:$0xff] %vm422, %v489
      %545 = vrot.lane.b32.xlu0 %v457, 64
      %v546 = vpop.permute.xlu0 %545
      %547 = vrot.lane.b32.xlu0 %v462, 64
      %v548 = vpop.permute.xlu0 %547
      %v550 = vsel %vm379, %v546, 0
      %v553 = vsel %vm379, %v548, 0
      %555 = vmatpush.bf16.xpose.msra.mxu0 0
      %556 = vmatpush.bf16.xpose.msra.mxu0 0
      %557 = vmatpush.bf16.xpose.msra.mxu0 0
      %558 = vmatpush.bf16.xpose.msra.mxu0 0
      %559 = vmatpush.bf16.xpose.msra.mxu0 0
      %560 = vmatpush.bf16.xpose.msra.mxu0 0
      %561 = vmatpush.bf16.xpose.msra.mxu0 0
      %562 = vmatpush.bf16.xpose.msra.mxu0 %v553
      %563 = vmatmul.bf16.gmra.mxu0 %v550
      %v564 = vpop.f32.mrf.mxu0
      %v565 = vadd.f32 %v378, %v564
      %v566 = vpop.f32.mrf.mxu0
      %567 = vdwg.mxu0
      %s568 = scalar_lea.vmem [#allocation2], 16
      %v569 = vld [vmem:[%s568] sm:$0xff]
      %v570 = vsel %vm400, %v565, -inf
      %571 = vmax.xlane.f32.xlu0 %v570
      %v572 = vpop.xlane.xlu0 %571
      %v573 = vmax.f32 %v569, %v572
      %v574 = vsub.f32 %v569, %v573
      %v575 = vmul.f32 %v574, 1.442695
      %v576 = vpow.pop %v575
      %578 = vset.pattern.permute.xlu0 0
      %579 = vperm.xlu0 %578, %v573
      %v580 = vpop.permute.xlu0 %579
      %v582 = vsub.f32 %v565, %v580
      %v583 = vmul.f32 %v582, 1.442695
      %v584 = vpow.pop %v583
      %s585 = scalar_lea.vmem [#allocation3], 16
      %v586 = vld [vmem:[%s585] sm:$0xff]
      %v587 = vmul.f32 %v576, %v586
      %v588 = vsel %vm400, %v584, 0.0
      %589 = vadd.xlane.f32.xlu0 %v588
      %v590 = vpop.xlane.xlu0 %589
      %v591 = vadd.f32 %v587, %v590
      %592 = vst.msk [vmem:[%s585] sm:$0xff] %vm422, %v591
      %s593 = scalar_lea.vmem [#allocation4], 16
      %v594 = vld [vmem:[%s593] sm:$0xff]
      %596 = vset.pattern.permute.xlu0 0
      %597 = vperm.xlu0 %596, %v576
      %v598 = vpop.permute.xlu0 %597
      %v600 = vmul.f32 %v598, %v594
      %v601 = vpack.c.bf16 %v584, %v584
      %602 = vrot.lane.b32.xlu0 %v520, 64
      %v603 = vpop.permute.xlu0 %602
      %v605 = vsel %vm400, %v601, 0
      %v608 = vsel %vm435, %v603, 0
      %610 = vmatpush.bf16.msra.mxu0 0
      %611 = vmatpush.bf16.msra.mxu0 0
      %612 = vmatpush.bf16.msra.mxu0 0
      %613 = vmatpush.bf16.msra.mxu0 0
      %614 = vmatpush.bf16.msra.mxu0 0
      %615 = vmatpush.bf16.msra.mxu0 0
      %616 = vmatpush.bf16.msra.mxu0 0
      %617 = vmatpush.bf16.msra.mxu0 %v608
      %618 = vmatmul.bf16.gmra.mxu0 %v605
      %v619 = vpop.f32.mrf.mxu0
      %v620 = vadd.f32 0.0, %v619
      %v621 = vpop.f32.mrf.mxu0
      %622 = vdwg.mxu0
      %v623 = vadd.f32 %v600, %v620
      %624 = vst.msk [vmem:[%s593] sm:$0xff] %vm379, %v623
      %625 = vst.msk [vmem:[%s568] sm:$0xff] %vm422, %v573
      %626 = vrot.lane.b32.xlu0 %v457, 32
      %v627 = vpop.permute.xlu0 %626
      %628 = vrot.lane.b32.xlu0 %v462, 32
      %v629 = vpop.permute.xlu0 %628
      %v631 = vsel %vm379, %v627, 0
      %v634 = vsel %vm379, %v629, 0
      %636 = vmatpush.bf16.xpose.msra.mxu0 0
      %637 = vmatpush.bf16.xpose.msra.mxu0 0
      %638 = vmatpush.bf16.xpose.msra.mxu0 0
      %639 = vmatpush.bf16.xpose.msra.mxu0 0
      %640 = vmatpush.bf16.xpose.msra.mxu0 0
      %641 = vmatpush.bf16.xpose.msra.mxu0 0
      %642 = vmatpush.bf16.xpose.msra.mxu0 0
      %643 = vmatpush.bf16.xpose.msra.mxu0 %v634
      %644 = vmatmul.bf16.gmra.mxu0 %v631
      %v645 = vpop.f32.mrf.mxu0
      %v646 = vadd.f32 %v378, %v645
      %v647 = vpop.f32.mrf.mxu0
      %648 = vdwg.mxu0
      %s649 = scalar_lea.vmem [#allocation2], 24
      %v650 = vld [vmem:[%s649] sm:$0xff]
      %v651 = vsel %vm400, %v646, -inf
      %652 = vmax.xlane.f32.xlu0 %v651
      %v653 = vpop.xlane.xlu0 %652
      %v654 = vmax.f32 %v650, %v653
      %v655 = vsub.f32 %v650, %v654
      %v656 = vmul.f32 %v655, 1.442695
      %v657 = vpow.pop %v656
      %659 = vset.pattern.permute.xlu0 0
      %660 = vperm.xlu0 %659, %v654
      %v661 = vpop.permute.xlu0 %660
      %v663 = vsub.f32 %v646, %v661
      %v664 = vmul.f32 %v663, 1.442695
      %v665 = vpow.pop %v664
      %s666 = scalar_lea.vmem [#allocation3], 24
      %v667 = vld [vmem:[%s666] sm:$0xff]
      %v668 = vmul.f32 %v657, %v667
      %v669 = vsel %vm400, %v665, 0.0
      %670 = vadd.xlane.f32.xlu0 %v669
      %v671 = vpop.xlane.xlu0 %670
      %v672 = vadd.f32 %v668, %v671
      %673 = vst.msk [vmem:[%s666] sm:$0xff] %vm422, %v672
      %s674 = scalar_lea.vmem [#allocation4], 24
      %v675 = vld [vmem:[%s674] sm:$0xff]
      %677 = vset.pattern.permute.xlu0 0
      %678 = vperm.xlu0 %677, %v657
      %v679 = vpop.permute.xlu0 %678
      %v681 = vmul.f32 %v679, %v675
      %v682 = vpack.c.bf16 %v665, %v665
      %683 = vrot.lane.b32.xlu0 %v520, 32
      %v684 = vpop.permute.xlu0 %683
      %v686 = vsel %vm400, %v682, 0
      %v689 = vsel %vm435, %v684, 0
      %691 = vmatpush.bf16.msra.mxu0 0
      %692 = vmatpush.bf16.msra.mxu0 0
      %693 = vmatpush.bf16.msra.mxu0 0
      %694 = vmatpush.bf16.msra.mxu0 0
      %695 = vmatpush.bf16.msra.mxu0 0
      %696 = vmatpush.bf16.msra.mxu0 0
      %697 = vmatpush.bf16.msra.mxu0 0
      %698 = vmatpush.bf16.msra.mxu0 %v689
      %699 = vmatmul.bf16.gmra.mxu0 %v686
      %v700 = vpop.f32.mrf.mxu0
      %v701 = vadd.f32 0.0, %v700
      %v702 = vpop.f32.mrf.mxu0
      %703 = vdwg.mxu0
      %v704 = vadd.f32 %v681, %v701
      %705 = vst.msk [vmem:[%s674] sm:$0xff] %vm379, %v704
      %706 = vst.msk [vmem:[%s649] sm:$0xff] %vm422, %v654
      // Predicated region
      $region41: #{forward.55} parent=35 // pred_check
        %p707 = pneg %p337
      $region42: #{forward.55} parent=35 // pred_check_branch
        %709 = sbr.rel (%p707) target = $region44
      $region43: #{forward.55} parent=35 // pred_region
        %v710 = vld [vmem:[#allocation4] sm:$0xff]
        %v711 = vld [vmem:[#allocation3] sm:$0xff]
        %v712 = vrcp.pop %v711
        %714 = vset.pattern.permute.xlu0 0
        %715 = vperm.xlu0 %714, %v712
        %v716 = vpop.permute.xlu0 %715
        %v718 = vmul.f32 %v710, %v716
        %v719 = vld [vmem:[%s509] sm:$0xff]
        %v720 = vld [vmem:[%s501] sm:$0xff]
        %v721 = vrcp.pop %v720
        %723 = vset.pattern.permute.xlu0 0
        %724 = vperm.xlu0 %723, %v721
        %v725 = vpop.permute.xlu0 %724
        %v727 = vmul.f32 %v719, %v725
        %v728 = vld [vmem:[%s593] sm:$0xff]
        %v729 = vld [vmem:[%s585] sm:$0xff]
        %v730 = vrcp.pop %v729
        %732 = vset.pattern.permute.xlu0 0
        %733 = vperm.xlu0 %732, %v730
        %v734 = vpop.permute.xlu0 %733
        %v736 = vmul.f32 %v728, %v734
        %v737 = vld [vmem:[%s674] sm:$0xff]
        %v738 = vld [vmem:[%s666] sm:$0xff]
        %v739 = vrcp.pop %v738
        %741 = vset.pattern.permute.xlu0 0
        %742 = vperm.xlu0 %741, %v739
        %v743 = vpop.permute.xlu0 %742
        %v745 = vmul.f32 %v737, %v743
        %747 = vrot.lane.b32.xlu0 %v727, 32
        %v748 = vpop.permute.xlu0 %747
        %751 = vrot.lane.b32.xlu0 %v736, 64
        %v752 = vpop.permute.xlu0 %751
        %755 = vrot.lane.b32.xlu0 %v745, 96
        %v756 = vpop.permute.xlu0 %755
        %v758 = vsel %vm379, %v718, %v748
        %vm759 = vcmask 523264
        %v760 = vsel %vm759, %v758, %v752
        %vm761 = vcmask 785408
        %v762 = vsel %vm761, %v760, %v756
        %v763 = vpack.c.bf16 %v762, %v762
        %764 = vst [vmem:[%s335] sm:$0xf] %v763
      $region44: #{forward.55} parent=35 // pred_fallthru
        _
      %p765 = scmp.lt.s32.totalorder %s20, 1
      %s766 = scalar_select %p765, %s20, 1
      %p767 = scmp.lt.s32.totalorder %s21, 0
      %s768 = scalar_select %p767, %s21, 0
      %s769 = sadd.s32 %s768, %s766
      %s770 = smul.addr %s769, 4
      %s771 = scalar_lea.vmem %s4, %s770
      // Predicated region
      $region45: #{forward.55} parent=35 // pred_check
        %p772 = pneg %p166
      $region46: #{forward.55} parent=35 // pred_check_branch
        %774 = sbr.rel (%p772) target = $region48
      $region47: #{forward.55} parent=35 // pred_region
        _
      $region48: #{forward.55} parent=35 // pred_fallthru
        _
    $region36: #{forward.55} parent=5 // pred_fallthru
      _
    %p775 = scmp.le.s32.totalorder 2, %s10
    // Predicated region
    $region49: #{forward.55} parent=5 // pred_check
      %p776 = pneg %p775
    $region50: #{forward.55} parent=5 // pred_check_branch
      %778 = sbr.rel (%p776) target = $region52
    $region51: #{forward.55} parent=5 // pred_region
      %s779 = ssub.s32 %s10, 2
      // Predicated region
      $region53: #{forward.55} parent=51 // pred_check
        %p780 = pneg %p172
      $region54: #{forward.55} parent=51 // pred_check_branch
        %782 = sbr.rel (%p780) target = $region56
      $region55: #{forward.55} parent=51 // pred_region
        %p783 = scmp.lt.s32.totalorder %s23, 1
        %s784 = scalar_select %p783, %s23, 1
        %p785 = scmp.lt.s32.totalorder %s24, 0
        %s786 = scalar_select %p785, %s24, 0
        %s787 = sadd.s32 %s786, %s784
        %s788 = smul.addr %s787, 4
        %s789 = scalar_lea.vmem %s4, %s788
      $region56: #{forward.55} parent=51 // pred_fallthru
        _
    $region52: #{forward.55} parent=5 // pred_fallthru
      _
  $region6: #{forward.55} parent=0 // loop_footer
    %s14 = sadd.s32 1, %s10
  $region7: #{forward.55} parent=0 // loop_footer_branch
    %9 = sbr.rel target = $region3
  $region8: #{forward.55} parent=0 // loop_exit
    _

// kernel: forward.58
$region0: #{forward.58}
  #allocation0 [shape = 'u32[]', space=smem, size = 0x4, offset = 0x4, fixed_abs, tag = 'smem constant byte address 0x4 - core index']
  #allocation1 [shape = 'u32[72,128]{1,0:T(1,128)}', space=vmem, size = 0x9000, scoped, tag = 'internal scratch']
  #allocation2 [shape = 'f32[16,128]{1,0:T(8,128)}', space=vmem, size = 0x2000, scoped, tag = 'scratch operand']
  %s0 = inlined_call_operand.vmem [shape: bf16[16,128], index: 0, kind: input, shape index: {}]
  %s1 = inlined_call_operand.hbm [shape: bf16[128,128], index: 1, kind: input, shape index: {}]
  %s2 = inlined_call_operand.vmem [shape: f32[1,128], index: 2, kind: input, shape index: {}]
  %s3 = inlined_call_operand.vmem [shape: bf16[16,128], index: 3, kind: output, shape index: {}]
  %s4 = sld [smem:[#allocation0]]
  $region34: #{forward.58} parent=0
    _
  %s6 = ssub.s32 1, %s4
  %s7 = scalar_select 0, %s6, %s4
  $region1: #{forward.58} parent=0
    #allocation3 [shape = 'u8[32768]{0}', space=vmem, size = 0x8000, scoped, tag = 'input window, operand 1, single buffered']
    #allocation4 [shape = 's32[1]{0}', space=sflag, size = 0x4, scoped, tag = 'scoped memory for forward.58']
    %8 = vsyncpa [#allocation4], 0
    // Predicated region
    $region2: #{forward.58} parent=1 // pred_check
      _
    $region3: #{forward.58} parent=1 // pred_check_branch
      %10 = sbr.rel (0) target = $region5
    $region4: #{forward.58} parent=1 // pred_region
      _
    $region5: #{forward.58} parent=1 // pred_fallthru
      _
    // Predicated region
    $region6: #{forward.58} parent=1 // pred_check
      _
    $region7: #{forward.58} parent=1 // pred_check_branch
      %12 = sbr.rel (0) target = $region9
    $region8: #{forward.58} parent=1 // pred_region
      %14 = vsyncadd [#allocation4], 0
      %s15 = sshll.u32 %s1, 4
      %s16 = int_to_ptr.hbm [resolvable:$true] %s15
      %s17 = sshll.u32 [#allocation3], 4
      %s18 = int_to_ptr.vmem [resolvable:$true] %s17
      %23 = dma.hbm_to_vmem [thread:$0]  %s16, 1024, %s18, [#allocation4], 64, 64, 4
    $region9: #{forward.58} parent=1 // pred_fallthru
      _
    // Predicated region
    $region10: #{forward.58} parent=1 // pred_check
      _
    $region11: #{forward.58} parent=1 // pred_check_branch
      %25 = sbr.rel (0) target = $region13
    $region12: #{forward.58} parent=1 // pred_region
      _
    $region13: #{forward.58} parent=1 // pred_fallthru
      _
    // Predicated region
    $region14: #{forward.58} parent=1 // pred_check
      _
    $region15: #{forward.58} parent=1 // pred_check_branch
      %27 = sbr.rel (0) target = $region17
    $region16: #{forward.58} parent=1 // pred_region
      %29 = dma.done [#allocation4], 1024
    $region17: #{forward.58} parent=1 // pred_fallthru
      _
    %p30 = scmp.eq.s32.totalorder 0, 0
    // Predicated region
    $region18: #{forward.58} parent=1 // pred_check
      %p31 = pneg %p30
    $region19: #{forward.58} parent=1 // pred_check_branch
      %33 = sbr.rel (%p31) target = $region21
    $region20: #{forward.58} parent=1 // pred_region
      %34 = vst [vmem:[#allocation2] sm:$0xff] 0.0
      %35 = vst [vmem:[#allocation2 + $0x8] sm:$0xff] 0.0
    $region21: #{forward.58} parent=1 // pred_fallthru
      _
    %v36 = vld [vmem:[#allocation2] sm:$0xff]
    %v37 = vld [vmem:[#allocation2 + $0x8] sm:$0xff]
    %v38 = vld [vmem:[%s0] sm:$0xf]
    %v39 = vld [vmem:[%s0 + $0x4] sm:$0xf]
    %v40 = vld [vmem:[#allocation3] sm:$0xf]
    %v41 = vld [vmem:[#allocation3 + $0x4] sm:$0xf]
    %v42 = vld [vmem:[#allocation3 + $0x8] sm:$0xf]
    %v43 = vld [vmem:[#allocation3 + $0xc] sm:$0xf]
    %v44 = vld [vmem:[#allocation3 + $0x10] sm:$0xf]
    %v45 = vld [vmem:[#allocation3 + $0x14] sm:$0xf]
    %v46 = vld [vmem:[#allocation3 + $0x18] sm:$0xf]
    %v47 = vld [vmem:[#allocation3 + $0x1c] sm:$0xf]
    %v48 = vld [vmem:[#allocation3 + $0x20] sm:$0xf]
    %v49 = vld [vmem:[#allocation3 + $0x24] sm:$0xf]
    %v50 = vld [vmem:[#allocation3 + $0x28] sm:$0xf]
    %v51 = vld [vmem:[#allocation3 + $0x2c] sm:$0xf]
    %v52 = vld [vmem:[#allocation3 + $0x30] sm:$0xf]
    %v53 = vld [vmem:[#allocation3 + $0x34] sm:$0xf]
    %v54 = vld [vmem:[#allocation3 + $0x38] sm:$0xf]
    %v55 = vld [vmem:[#allocation3 + $0x3c] sm:$0xf]
    %v58 = vunpack.c.l.b16 %v38
    %v59 = vunpack.c.l.b16 %v39
    %v60 = vpack.c.b16 %v59, %v58
    %v78 = vunpack.c.l.b16 %v40
    %v79 = vunpack.c.l.b16 %v41
    %v80 = vunpack.c.l.b16 %v42
    %v81 = vunpack.c.l.b16 %v43
    %v82 = vunpack.c.l.b16 %v44
    %v83 = vunpack.c.l.b16 %v45
    %v84 = vunpack.c.l.b16 %v46
    %v85 = vunpack.c.l.b16 %v47
    %v86 = vunpack.c.l.b16 %v48
    %v87 = vunpack.c.l.b16 %v49
    %v88 = vunpack.c.l.b16 %v50
    %v89 = vunpack.c.l.b16 %v51
    %v90 = vunpack.c.l.b16 %v52
    %v91 = vunpack.c.l.b16 %v53
    %v92 = vunpack.c.l.b16 %v54
    %v93 = vunpack.c.l.b16 %v55
    %v94 = vpack.c.b16 %v79, %v78
    %v95 = vpack.c.b16 %v81, %v80
    %v96 = vpack.c.b16 %v83, %v82
    %v97 = vpack.c.b16 %v85, %v84
    %v98 = vpack.c.b16 %v87, %v86
    %v99 = vpack.c.b16 %v89, %v88
    %v100 = vpack.c.b16 %v91, %v90
    %v101 = vpack.c.b16 %v93, %v92
    %110 = vmatpush.bf16.msra.mxu0 %v101
    %111 = vmatpush.bf16.msra.mxu0 %v100
    %112 = vmatpush.bf16.msra.mxu0 %v99
    %113 = vmatpush.bf16.msra.mxu0 %v98
    %114 = vmatpush.bf16.msra.mxu0 %v97
    %115 = vmatpush.bf16.msra.mxu0 %v96
    %116 = vmatpush.bf16.msra.mxu0 %v95
    %117 = vmatpush.bf16.msra.mxu0 %v94
    %118 = vmatmul.bf16.gmra.mxu0 %v60
    %v119 = vpop.f32.mrf.mxu0
    %v120 = vadd.f32 0.0, %v119
    %v121 = vpop.f32.mrf.mxu0
    %v122 = vadd.f32 0.0, %v121
    %123 = vdwg.mxu0
    %v124 = vadd.f32 %v36, %v120
    %v125 = vadd.f32 %v37, %v122
    %126 = vst [vmem:[#allocation2] sm:$0xff] %v124
    %127 = vst [vmem:[#allocation2 + $0x8] sm:$0xff] %v125
    // Predicated region
    $region22: #{forward.58} parent=1 // pred_check
      %p128 = pneg %p30
    $region23: #{forward.58} parent=1 // pred_check_branch
      %130 = sbr.rel (%p128) target = $region25
    $region24: #{forward.58} parent=1 // pred_region
      %v131 = vld [vmem:[#allocation2] sm:$0xff]
      %v132 = vld [vmem:[#allocation2 + $0x8] sm:$0xff]
      %v133 = vld [vmem:[%s2] sm:$0x1]
      %v135 = vperm.slane %v133, 0
      %v137 = vadd.f32 %v131, %v135
      %v138 = vadd.f32 %v132, %v135
      %v139 = vpack.c.bf16 %v137, %v137
      %v140 = vpack.c.bf16 %v138, %v138
      %141 = vst [vmem:[%s3] sm:$0xf] %v139
      %142 = vst [vmem:[%s3 + $0x4] sm:$0xf] %v140
    $region25: #{forward.58} parent=1 // pred_fallthru
      _
    // Predicated region
    $region26: #{forward.58} parent=1 // pred_check
      _
    $region27: #{forward.58} parent=1 // pred_check_branch
      %144 = sbr.rel (0) target = $region29
    $region28: #{forward.58} parent=1 // pred_region
      _
    $region29: #{forward.58} parent=1 // pred_fallthru
      _
    // Predicated region
    $region30: #{forward.58} parent=1 // pred_check
      _
    $region31: #{forward.58} parent=1 // pred_check_branch
      %146 = sbr.rel (0) target = $region33
    $region32: #{forward.58} parent=1 // pred_region
      _
    $region33: #{forward.58} parent=1 // pred_fallthru
      _
    %147 = vsyncpa [#allocation4], 1

// kernel: forward.42
$region0: #{forward.42}
  #allocation0 [shape = 'u32[]', space=smem, size = 0x4, offset = 0x4, fixed_abs, tag = 'smem constant byte address 0x4 - core index']
  #allocation1 [shape = 'u32[72,128]{1,0:T(1,128)}', space=vmem, size = 0x9000, scoped, tag = 'internal scratch']
  #allocation2 [shape = 'f32[16,128]{1,0:T(8,128)}', space=vmem, size = 0x2000, scoped, tag = 'scratch operand']
  %s0 = inlined_call_operand.vmem [shape: bf16[16,128], index: 0, kind: input, shape index: {}]
  %s1 = inlined_call_operand.hbm [shape: bf16[128,128], index: 1, kind: input, shape index: {}]
  %s2 = inlined_call_operand.vmem [shape: f32[1,128], index: 2, kind: input, shape index: {}]
  %s3 = inlined_call_operand.vmem [shape: bf16[16,128], index: 3, kind: input, shape index: {}]
  %s4 = inlined_call_operand.vmem [shape: bf16[16,128], index: 4, kind: output, shape index: {}]
  %s5 = sld [smem:[#allocation0]]
  $region38: #{forward.42} parent=0
    _
  %s7 = ssub.s32 1, %s5
  %s8 = scalar_select 0, %s7, %s5
  $region1: #{forward.42} parent=0
    #allocation3 [shape = 'u8[32768]{0}', space=vmem, size = 0x8000, scoped, tag = 'input window, operand 1, single buffered']
    #allocation4 [shape = 's32[1]{0}', space=sflag, size = 0x4, scoped, tag = 'scoped memory for forward.42']
    %9 = vsyncpa [#allocation4], 0
    // Predicated region
    $region2: #{forward.42} parent=1 // pred_check
      _
    $region3: #{forward.42} parent=1 // pred_check_branch
      %11 = sbr.rel (0) target = $region5
    $region4: #{forward.42} parent=1 // pred_region
      _
    $region5: #{forward.42} parent=1 // pred_fallthru
      _
    // Predicated region
    $region6: #{forward.42} parent=1 // pred_check
      _
    $region7: #{forward.42} parent=1 // pred_check_branch
      %13 = sbr.rel (0) target = $region9
    $region8: #{forward.42} parent=1 // pred_region
      %15 = vsyncadd [#allocation4], 0
      %s16 = sshll.u32 %s1, 4
      %s17 = int_to_ptr.hbm [resolvable:$true] %s16
      %s18 = sshll.u32 [#allocation3], 4
      %s19 = int_to_ptr.vmem [resolvable:$true] %s18
      %24 = dma.hbm_to_vmem [thread:$0]  %s17, 1024, %s19, [#allocation4], 64, 64, 4
    $region9: #{forward.42} parent=1 // pred_fallthru
      _
    // Predicated region
    $region10: #{forward.42} parent=1 // pred_check
      _
    $region11: #{forward.42} parent=1 // pred_check_branch
      %26 = sbr.rel (0) target = $region13
    $region12: #{forward.42} parent=1 // pred_region
      _
    $region13: #{forward.42} parent=1 // pred_fallthru
      _
    // Predicated region
    $region14: #{forward.42} parent=1 // pred_check
      _
    $region15: #{forward.42} parent=1 // pred_check_branch
      %28 = sbr.rel (0) target = $region17
    $region16: #{forward.42} parent=1 // pred_region
      _
    $region17: #{forward.42} parent=1 // pred_fallthru
      _
    // Predicated region
    $region18: #{forward.42} parent=1 // pred_check
      _
    $region19: #{forward.42} parent=1 // pred_check_branch
      %30 = sbr.rel (0) target = $region21
    $region20: #{forward.42} parent=1 // pred_region
      %32 = dma.done [#allocation4], 1024
    $region21: #{forward.42} parent=1 // pred_fallthru
      _
    %p33 = scmp.eq.s32.totalorder 0, 0
    // Predicated region
    $region22: #{forward.42} parent=1 // pred_check
      %p34 = pneg %p33
    $region23: #{forward.42} parent=1 // pred_check_branch
      %36 = sbr.rel (%p34) target = $region25
    $region24: #{forward.42} parent=1 // pred_region
      %37 = vst [vmem:[#allocation2] sm:$0xff] 0.0
      %38 = vst [vmem:[#allocation2 + $0x8] sm:$0xff] 0.0
    $region25: #{forward.42} parent=1 // pred_fallthru
      _
    %v39 = vld [vmem:[#allocation2] sm:$0xff]
    %v40 = vld [vmem:[#allocation2 + $0x8] sm:$0xff]
    %v41 = vld [vmem:[%s0] sm:$0xf]
    %v42 = vld [vmem:[%s0 + $0x4] sm:$0xf]
    %v43 = vld [vmem:[#allocation3] sm:$0xf]
    %v44 = vld [vmem:[#allocation3 + $0x4] sm:$0xf]
    %v45 = vld [vmem:[#allocation3 + $0x8] sm:$0xf]
    %v46 = vld [vmem:[#allocation3 + $0xc] sm:$0xf]
    %v47 = vld [vmem:[#allocation3 + $0x10] sm:$0xf]
    %v48 = vld [vmem:[#allocation3 + $0x14] sm:$0xf]
    %v49 = vld [vmem:[#allocation3 + $0x18] sm:$0xf]
    %v50 = vld [vmem:[#allocation3 + $0x1c] sm:$0xf]
    %v51 = vld [vmem:[#allocation3 + $0x20] sm:$0xf]
    %v52 = vld [vmem:[#allocation3 + $0x24] sm:$0xf]
    %v53 = vld [vmem:[#allocation3 + $0x28] sm:$0xf]
    %v54 = vld [vmem:[#allocation3 + $0x2c] sm:$0xf]
    %v55 = vld [vmem:[#allocation3 + $0x30] sm:$0xf]
    %v56 = vld [vmem:[#allocation3 + $0x34] sm:$0xf]
    %v57 = vld [vmem:[#allocation3 + $0x38] sm:$0xf]
    %v58 = vld [vmem:[#allocation3 + $0x3c] sm:$0xf]
    %v61 = vunpack.c.l.b16 %v41
    %v62 = vunpack.c.l.b16 %v42
    %v63 = vpack.c.b16 %v62, %v61
    %v81 = vunpack.c.l.b16 %v43
    %v82 = vunpack.c.l.b16 %v44
    %v83 = vunpack.c.l.b16 %v45
    %v84 = vunpack.c.l.b16 %v46
    %v85 = vunpack.c.l.b16 %v47
    %v86 = vunpack.c.l.b16 %v48
    %v87 = vunpack.c.l.b16 %v49
    %v88 = vunpack.c.l.b16 %v50
    %v89 = vunpack.c.l.b16 %v51
    %v90 = vunpack.c.l.b16 %v52
    %v91 = vunpack.c.l.b16 %v53
    %v92 = vunpack.c.l.b16 %v54
    %v93 = vunpack.c.l.b16 %v55
    %v94 = vunpack.c.l.b16 %v56
    %v95 = vunpack.c.l.b16 %v57
    %v96 = vunpack.c.l.b16 %v58
    %v97 = vpack.c.b16 %v82, %v81
    %v98 = vpack.c.b16 %v84, %v83
    %v99 = vpack.c.b16 %v86, %v85
    %v100 = vpack.c.b16 %v88, %v87
    %v101 = vpack.c.b16 %v90, %v89
    %v102 = vpack.c.b16 %v92, %v91
    %v103 = vpack.c.b16 %v94, %v93
    %v104 = vpack.c.b16 %v96, %v95
    %113 = vmatpush.bf16.msra.mxu0 %v104
    %114 = vmatpush.bf16.msra.mxu0 %v103
    %115 = vmatpush.bf16.msra.mxu0 %v102
    %116 = vmatpush.bf16.msra.mxu0 %v101
    %117 = vmatpush.bf16.msra.mxu0 %v100
    %118 = vmatpush.bf16.msra.mxu0 %v99
    %119 = vmatpush.bf16.msra.mxu0 %v98
    %120 = vmatpush.bf16.msra.mxu0 %v97
    %121 = vmatmul.bf16.gmra.mxu0 %v63
    %v122 = vpop.f32.mrf.mxu0
    %v123 = vadd.f32 0.0, %v122
    %v124 = vpop.f32.mrf.mxu0
    %v125 = vadd.f32 0.0, %v124
    %126 = vdwg.mxu0
    %v127 = vadd.f32 %v39, %v123
    %v128 = vadd.f32 %v40, %v125
    %129 = vst [vmem:[#allocation2] sm:$0xff] %v127
    %130 = vst [vmem:[#allocation2 + $0x8] sm:$0xff] %v128
    // Predicated region
    $region26: #{forward.42} parent=1 // pred_check
      %p131 = pneg %p33
    $region27: #{forward.42} parent=1 // pred_check_branch
      %133 = sbr.rel (%p131) target = $region29
    $region28: #{forward.42} parent=1 // pred_region
      %v134 = vld [vmem:[#allocation2] sm:$0xff]
      %v135 = vld [vmem:[#allocation2 + $0x8] sm:$0xff]
      %v136 = vld [vmem:[%s2] sm:$0x1]
      %v138 = vperm.slane %v136, 0
      %v140 = vadd.f32 %v134, %v138
      %v141 = vadd.f32 %v135, %v138
      %v142 = vld [vmem:[%s3] sm:$0xf]
      %v143 = vld [vmem:[%s3 + $0x4] sm:$0xf]
      %v144 = vunpack.c.l.bf16 %v142
      %v145 = vunpack.c.l.bf16 %v143
      %v146 = vadd.f32 %v140, %v144
      %v147 = vadd.f32 %v141, %v145
      %v148 = vpack.c.bf16 %v146, %v146
      %v149 = vpack.c.bf16 %v147, %v147
      %150 = vst [vmem:[%s4] sm:$0xf] %v148
      %151 = vst [vmem:[%s4 + $0x4] sm:$0xf] %v149
    $region29: #{forward.42} parent=1 // pred_fallthru
      _
    // Predicated region
    $region30: #{forward.42} parent=1 // pred_check
      _
    $region31: #{forward.42} parent=1 // pred_check_branch
      %153 = sbr.rel (0) target = $region33
    $region32: #{forward.42} parent=1 // pred_region
      _
    $region33: #{forward.42} parent=1 // pred_fallthru
      _
    // Predicated region
    $region34: #{forward.42} parent=1 // pred_check
      _
    $region35: #{forward.42} parent=1 // pred_check_branch
      %155 = sbr.rel (0) target = $region37
    $region36: #{forward.42} parent=1 // pred_region
      _
    $region37: #{forward.42} parent=1 // pred_fallthru
      _
    %156 = vsyncpa [#allocation4], 1

// kernel: forward.44
$region0: #{forward.44}
  #allocation0 [shape = 'u32[]', space=smem, size = 0x4, offset = 0x4, fixed_abs, tag = 'smem constant byte address 0x4 - core index']
  #allocation1 [shape = 'u32[72,128]{1,0:T(1,128)}', space=vmem, size = 0x9000, scoped, tag = 'internal scratch']
  #allocation2 [shape = 'f32[16,256]{1,0:T(8,128)}', space=vmem, size = 0x4000, scoped, tag = 'scratch operand']
  %s0 = inlined_call_operand.vmem [shape: bf16[16,128], index: 0, kind: input, shape index: {}]
  %s1 = inlined_call_operand.vmem [shape: bf16[128,256], index: 1, kind: input, shape index: {}]
  %s2 = inlined_call_operand.vmem [shape: f32[1,256], index: 2, kind: input, shape index: {}]
  %s3 = inlined_call_operand.vmem [shape: bf16[16,256], index: 3, kind: output, shape index: {}]
  %s4 = sld [smem:[#allocation0]]
  $region30: #{forward.44} parent=0
    _
  %s6 = ssub.s32 1, %s4
  %s7 = scalar_select 0, %s6, %s4
  // Predicated region
  $region2: #{forward.44} parent=0 // pred_check
    _
  $region3: #{forward.44} parent=0 // pred_check_branch
    %9 = sbr.rel (0) target = $region5
  $region4: #{forward.44} parent=0 // pred_region
    _
  $region5: #{forward.44} parent=0 // pred_fallthru
    _
  // Predicated region
  $region6: #{forward.44} parent=0 // pred_check
    _
  $region7: #{forward.44} parent=0 // pred_check_branch
    %11 = sbr.rel (0) target = $region9
  $region8: #{forward.44} parent=0 // pred_region
    _
  $region9: #{forward.44} parent=0 // pred_fallthru
    _
  // Predicated region
  $region10: #{forward.44} parent=0 // pred_check
    _
  $region11: #{forward.44} parent=0 // pred_check_branch
    %13 = sbr.rel (0) target = $region13
  $region12: #{forward.44} parent=0 // pred_region
    _
  $region13: #{forward.44} parent=0 // pred_fallthru
    _
  %p14 = scmp.eq.s32.totalorder 0, 0
  // Predicated region
  $region14: #{forward.44} parent=0 // pred_check
    %p15 = pneg %p14
  $region15: #{forward.44} parent=0 // pred_check_branch
    %17 = sbr.rel (%p15) target = $region17
  $region16: #{forward.44} parent=0 // pred_region
    %18 = vst [vmem:[#allocation2] sm:$0xff] 0.0
    %19 = vst [vmem:[#allocation2 + $0x8] sm:$0xff] 0.0
    %20 = vst [vmem:[#allocation2 + $0x10] sm:$0xff] 0.0
    %21 = vst [vmem:[#allocation2 + $0x18] sm:$0xff] 0.0
  $region17: #{forward.44} parent=0 // pred_fallthru
    _
  %v22 = vld [vmem:[#allocation2] sm:$0xff]
  %v23 = vld [vmem:[#allocation2 + $0x8] sm:$0xff]
  %v24 = vld [vmem:[#allocation2 + $0x10] sm:$0xff]
  %v25 = vld [vmem:[#allocation2 + $0x18] sm:$0xff]
  %v26 = vld [vmem:[%s0] sm:$0xf]
  %v27 = vld [vmem:[%s0 + $0x4] sm:$0xf]
  %v28 = vld [vmem:[%s1] sm:$0xff]
  %v29 = vld [vmem:[%s1 + $0x8] sm:$0xff]
  %v30 = vld [vmem:[%s1 + $0x10] sm:$0xff]
  %v31 = vld [vmem:[%s1 + $0x18] sm:$0xff]
  %v32 = vld [vmem:[%s1 + $0x20] sm:$0xff]
  %v33 = vld [vmem:[%s1 + $0x28] sm:$0xff]
  %v34 = vld [vmem:[%s1 + $0x30] sm:$0xff]
  %v35 = vld [vmem:[%s1 + $0x38] sm:$0xff]
  %v36 = vld [vmem:[%s1 + $0x40] sm:$0xff]
  %v37 = vld [vmem:[%s1 + $0x48] sm:$0xff]
  %v38 = vld [vmem:[%s1 + $0x50] sm:$0xff]
  %v39 = vld [vmem:[%s1 + $0x58] sm:$0xff]
  %v40 = vld [vmem:[%s1 + $0x60] sm:$0xff]
  %v41 = vld [vmem:[%s1 + $0x68] sm:$0xff]
  %v42 = vld [vmem:[%s1 + $0x70] sm:$0xff]
  %v43 = vld [vmem:[%s1 + $0x78] sm:$0xff]
  %v46 = vunpack.c.l.b16 %v26
  %v47 = vunpack.c.l.b16 %v27
  %v48 = vpack.c.b16 %v47, %v46
  %v66 = vunpack.c.l.b16 %v28
  %v67 = vunpack.c.h.b16 %v28
  %v68 = vunpack.c.l.b16 %v29
  %v69 = vunpack.c.h.b16 %v29
  %v70 = vunpack.c.l.b16 %v30
  %v71 = vunpack.c.h.b16 %v30
  %v72 = vunpack.c.l.b16 %v31
  %v73 = vunpack.c.h.b16 %v31
  %v74 = vunpack.c.l.b16 %v32
  %v75 = vunpack.c.h.b16 %v32
  %v76 = vunpack.c.l.b16 %v33
  %v77 = vunpack.c.h.b16 %v33
  %v78 = vunpack.c.l.b16 %v34
  %v79 = vunpack.c.h.b16 %v34
  %v80 = vunpack.c.l.b16 %v35
  %v81 = vunpack.c.h.b16 %v35
  %v82 = vunpack.c.l.b16 %v36
  %v83 = vunpack.c.h.b16 %v36
  %v84 = vunpack.c.l.b16 %v37
  %v85 = vunpack.c.h.b16 %v37
  %v86 = vunpack.c.l.b16 %v38
  %v87 = vunpack.c.h.b16 %v38
  %v88 = vunpack.c.l.b16 %v39
  %v89 = vunpack.c.h.b16 %v39
  %v90 = vunpack.c.l.b16 %v40
  %v91 = vunpack.c.h.b16 %v40
  %v92 = vunpack.c.l.b16 %v41
  %v93 = vunpack.c.h.b16 %v41
  %v94 = vunpack.c.l.b16 %v42
  %v95 = vunpack.c.h.b16 %v42
  %v96 = vunpack.c.l.b16 %v43
  %v97 = vunpack.c.h.b16 %v43
  %v98 = vpack.c.b16 %v68, %v66
  %v99 = vpack.c.b16 %v69, %v67
  %v100 = vpack.c.b16 %v72, %v70
  %v101 = vpack.c.b16 %v73, %v71
  %v102 = vpack.c.b16 %v76, %v74
  %v103 = vpack.c.b16 %v77, %v75
  %v104 = vpack.c.b16 %v80, %v78
  %v105 = vpack.c.b16 %v81, %v79
  %v106 = vpack.c.b16 %v84, %v82
  %v107 = vpack.c.b16 %v85, %v83
  %v108 = vpack.c.b16 %v88, %v86
  %v109 = vpack.c.b16 %v89, %v87
  %v110 = vpack.c.b16 %v92, %v90
  %v111 = vpack.c.b16 %v93, %v91
  %v112 = vpack.c.b16 %v96, %v94
  %v113 = vpack.c.b16 %v97, %v95
  %130 = vmatpush.bf16.msra.mxu0 %v112
  %131 = vmatpush.bf16.msra.mxu0 %v110
  %132 = vmatpush.bf16.msra.mxu0 %v108
  %133 = vmatpush.bf16.msra.mxu0 %v106
  %134 = vmatpush.bf16.msra.mxu0 %v104
  %135 = vmatpush.bf16.msra.mxu0 %v102
  %136 = vmatpush.bf16.msra.mxu0 %v100
  %137 = vmatpush.bf16.msra.mxu0 %v98
  %138 = vmatmul.bf16.gmra.mxu0 %v48
  %v139 = vpop.f32.mrf.mxu0
  %v140 = vadd.f32 0.0, %v139
  %v141 = vpop.f32.mrf.mxu0
  %v142 = vadd.f32 0.0, %v141
  %143 = vdwg.mxu0
  %144 = vmatpush.bf16.msra.mxu0 %v113
  %145 = vmatpush.bf16.msra.mxu0 %v111
  %146 = vmatpush.bf16.msra.mxu0 %v109
  %147 = vmatpush.bf16.msra.mxu0 %v107
  %148 = vmatpush.bf16.msra.mxu0 %v105
  %149 = vmatpush.bf16.msra.mxu0 %v103
  %150 = vmatpush.bf16.msra.mxu0 %v101
  %151 = vmatpush.bf16.msra.mxu0 %v99
  %152 = vmatmul.bf16.gmra.mxu0 %v48
  %v153 = vpop.f32.mrf.mxu0
  %v154 = vadd.f32 0.0, %v153
  %v155 = vpop.f32.mrf.mxu0
  %v156 = vadd.f32 0.0, %v155
  %157 = vdwg.mxu0
  %v158 = vadd.f32 %v22, %v140
  %v159 = vadd.f32 %v23, %v154
  %v160 = vadd.f32 %v24, %v142
  %v161 = vadd.f32 %v25, %v156
  %162 = vst [vmem:[#allocation2] sm:$0xff] %v158
  %163 = vst [vmem:[#allocation2 + $0x8] sm:$0xff] %v159
  %164 = vst [vmem:[#allocation2 + $0x10] sm:$0xff] %v160
  %165 = vst [vmem:[#allocation2 + $0x18] sm:$0xff] %v161
  // Predicated region
  $region18: #{forward.44} parent=0 // pred_check
    %p166 = pneg %p14
  $region19: #{forward.44} parent=0 // pred_check_branch
    %168 = sbr.rel (%p166) target = $region21
  $region20: #{forward.44} parent=0 // pred_region
    %v169 = vld [vmem:[#allocation2] sm:$0xff]
    %v170 = vld [vmem:[#allocation2 + $0x8] sm:$0xff]
    %v171 = vld [vmem:[#allocation2 + $0x10] sm:$0xff]
    %v172 = vld [vmem:[#allocation2 + $0x18] sm:$0xff]
    %v173 = vld [vmem:[%s2] sm:$0x3]
    %v175 = vperm.slane %v173, 0
    %v176 = vperm.slane %v173, 1
    %v179 = vadd.f32 %v169, %v175
    %v180 = vadd.f32 %v170, %v176
    %v181 = vadd.f32 %v171, %v175
    %v182 = vadd.f32 %v172, %v176
    %v183 = vmax.f32 %v179, 0.0
    %v184 = vmax.f32 %v180, 0.0
    %v185 = vmax.f32 %v181, 0.0
    %v186 = vmax.f32 %v182, 0.0
    %v187 = vpack.c.bf16 %v184, %v183
    %v188 = vpack.c.bf16 %v186, %v185
    %189 = vst [vmem:[%s3] sm:$0xff] %v187
    %190 = vst [vmem:[%s3 + $0x8] sm:$0xff] %v188
  $region21: #{forward.44} parent=0 // pred_fallthru
    _
  // Predicated region
  $region22: #{forward.44} parent=0 // pred_check
    _
  $region23: #{forward.44} parent=0 // pred_check_branch
    %192 = sbr.rel (0) target = $region25
  $region24: #{forward.44} parent=0 // pred_region
    _
  $region25: #{forward.44} parent=0 // pred_fallthru
    _
  // Predicated region
  $region26: #{forward.44} parent=0 // pred_check
    _
  $region27: #{forward.44} parent=0 // pred_check_branch
    %194 = sbr.rel (0) target = $region29
  $region28: #{forward.44} parent=0 // pred_region
    _
  $region29: #{forward.44} parent=0 // pred_fallthru
    _

// kernel: forward.41
$region0: #{forward.41}
  #allocation0 [shape = 'u32[]', space=smem, size = 0x4, offset = 0x4, fixed_abs, tag = 'smem constant byte address 0x4 - core index']
  #allocation1 [shape = 'u32[72,128]{1,0:T(1,128)}', space=vmem, size = 0x9000, scoped, tag = 'internal scratch']
  #allocation2 [shape = 'f32[4,8,1]{2,1,0:T(8,128)}', space=vmem, size = 0x4000, scoped, tag = 'scratch operand']
  #allocation3 [shape = 'f32[4,8,1]{2,1,0:T(8,128)}', space=vmem, size = 0x4000, scoped, tag = 'scratch operand']
  #allocation4 [shape = 'f32[4,8,32]{2,1,0:T(8,128)}', space=vmem, size = 0x4000, scoped, tag = 'scratch operand']
  %s0 = inlined_call_operand.vmem [shape: bf16[2,8,384], index: 0, kind: input, shape index: {}, may-alias: {0,1,2}]
  %s1 = inlined_call_operand.vmem [shape: bf16[2,8,384], index: 1, kind: input, shape index: {}, may-alias: {0,1,2}]
  %s2 = inlined_call_operand.vmem [shape: bf16[2,8,384], index: 2, kind: input, shape index: {}, may-alias: {0,1,2}]
  %s3 = inlined_call_operand.vmem [shape: f32[2,1,8], index: 3, kind: input, shape index: {}]
  %s4 = inlined_call_operand.vmem [shape: bf16[2,8,128], index: 4, kind: output, shape index: {}]
  %s5 = sld [smem:[#allocation0]]
  $region57: #{forward.41} parent=0
    _
  %s7 = ssub.s32 1, %s5
  %s8 = scalar_select 0, %s7, %s5
  loop: start=0, step=1, limit=4
  $region2: #{forward.41} parent=0 // loop_pre_header
    _
  $region3: #{forward.41} parent=0 // loop_header
    %s10 = sphi 0, %s14
    %p11 = scmp.ge.s32.totalorder %s10, 4
    %s17 = sphi 0, %s36
    %s18 = sphi 0, %s32
    %s19 = sphi 0, %s28
    %s20 = sphi 0, %s17
    %s21 = sphi 0, %s18
    %s22 = sphi 0, %s19
    %s23 = sphi 0, %s20
    %s24 = sphi 0, %s21
    %s25 = sphi 0, %s22
    %s41 = sphi 0, %s43
    %s44 = sphi 0, %s41
    %s45 = sphi 0, %s44
    %s61 = sphi 0, %s45
    %s69 = sphi 0, %s71
    %s72 = sphi 0, %s69
    %s73 = sphi 0, %s72
    %s89 = sphi 0, %s73
    %s97 = sphi 0, %s99
    %s100 = sphi 0, %s97
    %s101 = sphi 0, %s100
    %s117 = sphi 0, %s101
    %s125 = sphi 0, %s127
    %s128 = sphi 0, %s125
    %s129 = sphi 0, %s128
    %s145 = sphi 0, %s129
    %s153 = sphi 0, %s155
    %s156 = sphi 0, %s153
    %s157 = sphi 0, %s156
    %s173 = sphi 0, %s157
  $region4: #{forward.41} parent=0 // loop_header_branch
    %13 = sbr.rel (%p11) target = $region8
  $region5: #{forward.41} parent=0 // loop_body
    %s15 = ssub.s32 %s10, 1
    %s16 = ssub.s32 %s10, 2
    %s26 = sadd.s32 1, %s19
    %p27 = scmp.ge.s32.totalorder %s26, 1
    %s28 = scalar_select %p27, 0, %s26
    %s29 = sadd.s32 1, %s18
    %s30 = scalar_select %p27, %s29, %s18
    %p31 = scmp.ge.s32.totalorder %s30, 1
    %s32 = scalar_select %p31, 0, %s30
    %s33 = sadd.s32 1, %s17
    %s34 = scalar_select %p31, %s33, %s17
    %p35 = scmp.ge.s32.totalorder %s34, 2
    %s36 = scalar_select %p35, 0, %s34
    %s37 = ssub.s32 %s17, %s36
    %s38 = ssub.s32 %s18, %s32
    %s39 = sor.u32 %s37, %s38
    %p40 = scmp.eq.s32.totalorder %s39, 0
    %s42 = sadd.s32 %s41, 1
    %s43 = scalar_select %p40, %s41, %s42
    %p46 = pneg %p40
    %p47 = scmp.eq.s32.totalorder %s10, 1
    %p48 = por %p46, %p47
    %p49 = scmp.ne.s32.totalorder %s41, %s44
    %p50 = scmp.eq.s32.totalorder %s10, 0
    %p51 = por %p49, %p50
    %p52 = scmp.ne.s32.totalorder %s41, %s44
    %p53 = scmp.eq.s32.totalorder %s15, 1
    %p54 = por %p52, %p53
    %p55 = scmp.ne.s32.totalorder %s44, %s45
    %p56 = scmp.eq.s32.totalorder %s15, 0
    %p57 = por %p55, %p56
    %p58 = scmp.ne.s32.totalorder %s44, %s45
    %p59 = scmp.eq.s32.totalorder %s16, 1
    %p60 = por %p58, %p59
    %p62 = scmp.ne.s32.totalorder %s45, %s61
    %p63 = scmp.eq.s32.totalorder %s16, 0
    %p64 = por %p62, %p63
    %s65 = ssub.s32 %s17, %s36
    %s66 = ssub.s32 %s19, %s28
    %s67 = sor.u32 %s65, %s66
    %p68 = scmp.eq.s32.totalorder %s67, 0
    %s70 = sadd.s32 %s69, 1
    %s71 = scalar_select %p68, %s69, %s70
    %p74 = pneg %p68
    %p75 = scmp.eq.s32.totalorder %s10, 1
    %p76 = por %p74, %p75
    %p77 = scmp.ne.s32.totalorder %s69, %s72
    %p78 = scmp.eq.s32.totalorder %s10, 0
    %p79 = por %p77, %p78
    %p80 = scmp.ne.s32.totalorder %s69, %s72
    %p81 = scmp.eq.s32.totalorder %s15, 1
    %p82 = por %p80, %p81
    %p83 = scmp.ne.s32.totalorder %s72, %s73
    %p84 = scmp.eq.s32.totalorder %s15, 0
    %p85 = por %p83, %p84
    %p86 = scmp.ne.s32.totalorder %s72, %s73
    %p87 = scmp.eq.s32.totalorder %s16, 1
    %p88 = por %p86, %p87
    %p90 = scmp.ne.s32.totalorder %s73, %s89
    %p91 = scmp.eq.s32.totalorder %s16, 0
    %p92 = por %p90, %p91
    %s93 = ssub.s32 %s17, %s36
    %s94 = ssub.s32 %s19, %s28
    %s95 = sor.u32 %s93, %s94
    %p96 = scmp.eq.s32.totalorder %s95, 0
    %s98 = sadd.s32 %s97, 1
    %s99 = scalar_select %p96, %s97, %s98
    %p102 = pneg %p96
    %p103 = scmp.eq.s32.totalorder %s10, 1
    %p104 = por %p102, %p103
    %p105 = scmp.ne.s32.totalorder %s97, %s100
    %p106 = scmp.eq.s32.totalorder %s10, 0
    %p107 = por %p105, %p106
    %p108 = scmp.ne.s32.totalorder %s97, %s100
    %p109 = scmp.eq.s32.totalorder %s15, 1
    %p110 = por %p108, %p109
    %p111 = scmp.ne.s32.totalorder %s100, %s101
    %p112 = scmp.eq.s32.totalorder %s15, 0
    %p113 = por %p111, %p112
    %p114 = scmp.ne.s32.totalorder %s100, %s101
    %p115 = scmp.eq.s32.totalorder %s16, 1
    %p116 = por %p114, %p115
    %p118 = scmp.ne.s32.totalorder %s101, %s117
    %p119 = scmp.eq.s32.totalorder %s16, 0
    %p120 = por %p118, %p119
    %s121 = ssub.s32 %s17, %s36
    %s122 = ssub.s32 %s19, %s28
    %s123 = sor.u32 %s121, %s122
    %p124 = scmp.eq.s32.totalorder %s123, 0
    %s126 = sadd.s32 %s125, 1
    %s127 = scalar_select %p124, %s125, %s126
    %p130 = pneg %p124
    %p131 = scmp.eq.s32.totalorder %s10, 1
    %p132 = por %p130, %p131
    %p133 = scmp.ne.s32.totalorder %s125, %s128
    %p134 = scmp.eq.s32.totalorder %s10, 0
    %p135 = por %p133, %p134
    %p136 = scmp.ne.s32.totalorder %s125, %s128
    %p137 = scmp.eq.s32.totalorder %s15, 1
    %p138 = por %p136, %p137
    %p139 = scmp.ne.s32.totalorder %s128, %s129
    %p140 = scmp.eq.s32.totalorder %s15, 0
    %p141 = por %p139, %p140
    %p142 = scmp.ne.s32.totalorder %s128, %s129
    %p143 = scmp.eq.s32.totalorder %s16, 1
    %p144 = por %p142, %p143
    %p146 = scmp.ne.s32.totalorder %s129, %s145
    %p147 = scmp.eq.s32.totalorder %s16, 0
    %p148 = por %p146, %p147
    %s149 = ssub.s32 %s17, %s36
    %s150 = ssub.s32 %s18, %s32
    %s151 = sor.u32 %s149, %s150
    %p152 = scmp.eq.s32.totalorder %s151, 0
    %s154 = sadd.s32 %s153, 1
    %s155 = scalar_select %p152, %s153, %s154
    %p158 = pneg %p152
    %p159 = scmp.eq.s32.totalorder %s10, 1
    %p160 = por %p158, %p159
    %p161 = scmp.ne.s32.totalorder %s153, %s156
    %p162 = scmp.eq.s32.totalorder %s10, 0
    %p163 = por %p161, %p162
    %p164 = scmp.ne.s32.totalorder %s153, %s156
    %p165 = scmp.eq.s32.totalorder %s15, 1
    %p166 = por %p164, %p165
    %p167 = scmp.ne.s32.totalorder %s156, %s157
    %p168 = scmp.eq.s32.totalorder %s15, 0
    %p169 = por %p167, %p168
    %p170 = scmp.ne.s32.totalorder %s156, %s157
    %p171 = scmp.eq.s32.totalorder %s16, 1
    %p172 = por %p170, %p171
    %p174 = scmp.ne.s32.totalorder %s157, %s173
    %p175 = scmp.eq.s32.totalorder %s16, 0
    %p176 = por %p174, %p175
    %p177 = scmp.le.s32.totalorder 1, %s10
    %p178 = scmp.lt.s32.totalorder %s10, 3
    %p179 = pnand %p177, %p178
    %p180 = pneg %p179
    // Predicated region
    $region9: #{forward.41} parent=5 // pred_check
      _
    $region10: #{forward.41} parent=5 // pred_check_branch
      %182 = sbr.rel (%p179) target = $region12
    $region11: #{forward.41} parent=5 // pred_region
      %s183 = ssub.s32 %s10, 1
    $region12: #{forward.41} parent=5 // pred_fallthru
      _
    %p184 = scmp.lt.s32.totalorder %s10, 2
    // Predicated region
    $region13: #{forward.41} parent=5 // pred_check
      %p185 = pneg %p184
    $region14: #{forward.41} parent=5 // pred_check_branch
      %187 = sbr.rel (%p185) target = $region16
    $region15: #{forward.41} parent=5 // pred_region
      // Predicated region
      $region17: #{forward.41} parent=15 // pred_check
        %p188 = pneg %p51
      $region18: #{forward.41} parent=15 // pred_check_branch
        %190 = sbr.rel (%p188) target = $region20
      $region19: #{forward.41} parent=15 // pred_region
        %p191 = scmp.lt.s32.totalorder %s17, 1
        %s192 = scalar_select %p191, %s17, 1
        %p193 = scmp.lt.s32.totalorder %s18, 0
        %s194 = scalar_select %p193, %s18, 0
        %s195 = smul.addr %s194, 3
        %s196 = smul.addr %s192, 3
        %s197 = sadd.s32 %s195, %s196
        %s198 = smul.addr %s197, 4
        %s199 = scalar_lea.vmem %s0, %s198
      $region20: #{forward.41} parent=15 // pred_fallthru
        _
      // Predicated region
      $region21: #{forward.41} parent=15 // pred_check
        %p200 = pneg %p79
      $region22: #{forward.41} parent=15 // pred_check_branch
        %202 = sbr.rel (%p200) target = $region24
      $region23: #{forward.41} parent=15 // pred_region
        %p203 = scmp.lt.s32.totalorder %s17, 1
        %s204 = scalar_select %p203, %s17, 1
        %p205 = scmp.lt.s32.totalorder %s19, 0
        %s206 = scalar_select %p205, %s19, 0
        %s207 = smul.addr %s206, 3
        %s208 = sadd.s32 1, %s207
        %s209 = smul.addr %s204, 3
        %s210 = sadd.s32 %s208, %s209
        %s211 = smul.addr %s210, 4
        %s212 = scalar_lea.vmem %s1, %s211
      $region24: #{forward.41} parent=15 // pred_fallthru
        _
      // Predicated region
      $region25: #{forward.41} parent=15 // pred_check
        %p213 = pneg %p107
      $region26: #{forward.41} parent=15 // pred_check_branch
        %215 = sbr.rel (%p213) target = $region28
      $region27: #{forward.41} parent=15 // pred_region
        %p216 = scmp.lt.s32.totalorder %s17, 1
        %s217 = scalar_select %p216, %s17, 1
        %p218 = scmp.lt.s32.totalorder %s19, 0
        %s219 = scalar_select %p218, %s19, 0
        %s220 = smul.addr %s219, 3
        %s221 = sadd.s32 2, %s220
        %s222 = smul.addr %s217, 3
        %s223 = sadd.s32 %s221, %s222
        %s224 = smul.addr %s223, 4
        %s225 = scalar_lea.vmem %s2, %s224
      $region28: #{forward.41} parent=15 // pred_fallthru
        _
      // Predicated region
      $region29: #{forward.41} parent=15 // pred_check
        %p226 = pneg %p135
      $region30: #{forward.41} parent=15 // pred_check_branch
        %228 = sbr.rel (%p226) target = $region32
      $region31: #{forward.41} parent=15 // pred_region
        %p229 = scmp.lt.s32.totalorder %s17, 1
        %s230 = scalar_select %p229, %s17, 1
        %p231 = scmp.lt.s32.totalorder %s19, 0
        %s232 = scalar_select %p231, %s19, 0
        %s233 = sadd.s32 %s232, %s230
        %s234 = scalar_lea.vmem %s3, %s233
      $region32: #{forward.41} parent=15 // pred_fallthru
        _
    $region16: #{forward.41} parent=5 // pred_fallthru
      _
    %p235 = scmp.le.s32.totalorder 1, %s10
    %p236 = scmp.lt.s32.totalorder %s10, 3
    %p237 = pnand %p235, %p236
    %p238 = pneg %p237
    // Predicated region
    $region33: #{forward.41} parent=5 // pred_check
      _
    $region34: #{forward.41} parent=5 // pred_check_branch
      %240 = sbr.rel (%p237) target = $region36
    $region35: #{forward.41} parent=5 // pred_region
      %s241 = ssub.s32 %s10, 1
      %p242 = scmp.lt.s32.totalorder %s20, 1
      %s243 = scalar_select %p242, %s20, 1
      %p244 = scmp.lt.s32.totalorder %s21, 0
      %s245 = scalar_select %p244, %s21, 0
      %s246 = smul.addr %s245, 3
      %s247 = smul.addr %s243, 3
      %s248 = sadd.s32 %s246, %s247
      %s249 = smul.addr %s248, 4
      %s250 = scalar_lea.vmem %s0, %s249
      %p251 = pneg %p57
      %p252 = pneg %p54
      %p253 = scmp.lt.s32.totalorder %s20, 1
      %s254 = scalar_select %p253, %s20, 1
      %p255 = scmp.lt.s32.totalorder %s22, 0
      %s256 = scalar_select %p255, %s22, 0
      %s257 = smul.addr %s256, 3
      %s258 = sadd.s32 1, %s257
      %s259 = smul.addr %s254, 3
      %s260 = sadd.s32 %s258, %s259
      %s261 = smul.addr %s260, 4
      %s262 = scalar_lea.vmem %s1, %s261
      %p263 = pneg %p85
      %p264 = pneg %p82
      %p265 = scmp.lt.s32.totalorder %s20, 1
      %s266 = scalar_select %p265, %s20, 1
      %p267 = scmp.lt.s32.totalorder %s22, 0
      %s268 = scalar_select %p267, %s22, 0
      %s269 = smul.addr %s268, 3
      %s270 = sadd.s32 2, %s269
      %s271 = smul.addr %s266, 3
      %s272 = sadd.s32 %s270, %s271
      %s273 = smul.addr %s272, 4
      %s274 = scalar_lea.vmem %s2, %s273
      %p275 = pneg %p113
      %p276 = pneg %p110
      %p277 = scmp.lt.s32.totalorder %s20, 1
      %s278 = scalar_select %p277, %s20, 1
      %p279 = scmp.lt.s32.totalorder %s22, 0
      %s280 = scalar_select %p279, %s22, 0
      %s281 = sadd.s32 %s280, %s278
      %s282 = scalar_lea.vmem %s3, %s281
      %p283 = pneg %p141
      %p284 = pneg %p138
      %p285 = pneg %p169
      %p286 = pneg %p166
      %p287 = scmp.lt.s32.totalorder %s20, 1
      %s288 = scalar_select %p287, %s20, 1
      %p289 = scmp.lt.s32.totalorder %s21, 0
      %s290 = scalar_select %p289, %s21, 0
      %s291 = sadd.s32 %s290, %s288
      %s292 = smul.addr %s291, 4
      %s293 = scalar_lea.vmem %s4, %s292
      %p294 = scmp.lt.s32.totalorder %s20, 1
      %s295 = scalar_select %p294, %s20, 1
      %p296 = scmp.lt.s32.totalorder %s21, 0
      %s297 = scalar_select %p296, %s21, 0
      %s298 = smul.addr %s297, 3
      %s299 = smul.addr %s295, 3
      %s300 = sadd.s32 %s298, %s299
      %s301 = smul.addr %s300, 4
      %s302 = scalar_lea.vmem %s0, %s301
      %p303 = scmp.lt.s32.totalorder %s20, 1
      %s304 = scalar_select %p303, %s20, 1
      %p305 = scmp.lt.s32.totalorder %s22, 0
      %s306 = scalar_select %p305, %s22, 0
      %s307 = smul.addr %s306, 3
      %s308 = sadd.s32 1, %s307
      %s309 = smul.addr %s304, 3
      %s310 = sadd.s32 %s308, %s309
      %s311 = smul.addr %s310, 4
      %s312 = scalar_lea.vmem %s1, %s311
      %p313 = scmp.lt.s32.totalorder %s20, 1
      %s314 = scalar_select %p313, %s20, 1
      %p315 = scmp.lt.s32.totalorder %s22, 0
      %s316 = scalar_select %p315, %s22, 0
      %s317 = smul.addr %s316, 3
      %s318 = sadd.s32 2, %s317
      %s319 = smul.addr %s314, 3
      %s320 = sadd.s32 %s318, %s319
      %s321 = smul.addr %s320, 4
      %s322 = scalar_lea.vmem %s2, %s321
      %p323 = scmp.lt.s32.totalorder %s20, 1
      %s324 = scalar_select %p323, %s20, 1
      %p325 = scmp.lt.s32.totalorder %s22, 0
      %s326 = scalar_select %p325, %s22, 0
      %s327 = sadd.s32 %s326, %s324
      %s328 = scalar_lea.vmem %s3, %s327
      %p329 = scmp.lt.s32.totalorder %s20, 1
      %s330 = scalar_select %p329, %s20, 1
      %p331 = scmp.lt.s32.totalorder %s21, 0
      %s332 = scalar_select %p331, %s21, 0
      %s333 = sadd.s32 %s332, %s330
      %s334 = smul.addr %s333, 4
      %s335 = scalar_lea.vmem %s4, %s334
      %p337 = scmp.eq.s32.totalorder %s22, 0
      // Predicated region
      $region37: #{forward.41} parent=35 // pred_check
        %p338 = pneg %p337
      $region38: #{forward.41} parent=35 // pred_check_branch
        %340 = sbr.rel (%p338) target = $region40
      $region39: #{forward.41} parent=35 // pred_region
        %vm341 = vcmask 7168
        %342 = vst.msk [vmem:[#allocation2] sm:$0xff] %vm341, -1e+30
        %343 = vst.msk [vmem:[#allocation2 + $0x8] sm:$0xff] %vm341, -1e+30
        %344 = vst.msk [vmem:[#allocation2 + $0x10] sm:$0xff] %vm341, -1e+30
        %345 = vst.msk [vmem:[#allocation2 + $0x18] sm:$0xff] %vm341, -1e+30
        %346 = vst.msk [vmem:[#allocation3] sm:$0xff] %vm341, 0.0
        %347 = vst.msk [vmem:[#allocation3 + $0x8] sm:$0xff] %vm341, 0.0
        %348 = vst.msk [vmem:[#allocation3 + $0x10] sm:$0xff] %vm341, 0.0
        %349 = vst.msk [vmem:[#allocation3 + $0x18] sm:$0xff] %vm341, 0.0
        %vm350 = vcmask 261120
        %351 = vst.msk [vmem:[#allocation4] sm:$0xff] %vm350, 0.0
        %352 = vst.msk [vmem:[#allocation4 + $0x8] sm:$0xff] %vm350, 0.0
        %353 = vst.msk [vmem:[#allocation4 + $0x10] sm:$0xff] %vm350, 0.0
        %354 = vst.msk [vmem:[#allocation4 + $0x18] sm:$0xff] %vm350, 0.0
      $region40: #{forward.41} parent=35 // pred_fallthru
        _
      %v355 = vld [vmem:[%s302] sm:$0xf]
      %v356 = vunpack.c.l.bf16 %v355
      %v357 = vmul.f32 %v356, 0.17677669
      %v358 = vpack.c.bf16 %v357, %v357
      %v359 = vld [vmem:[%s312] sm:$0xf]
      %v360 = vld [vmem:[%s322] sm:$0xf]
      %v361 = vld [vmem:[%s328] sm:$0x1]
      %v362 = vmul.f32 %v361, -1e+09
      %v364 = vperm.slane %v362, 0
      %vm366 = vcmask 261120
      %v368 = vsel %vm366, %v358, 0
      %v371 = vsel %vm366, %v359, 0
      %373 = vmatpush.bf16.xpose.msra.mxu0 0
      %374 = vmatpush.bf16.xpose.msra.mxu0 0
      %375 = vmatpush.bf16.xpose.msra.mxu0 0
      %376 = vmatpush.bf16.xpose.msra.mxu0 0
      %377 = vmatpush.bf16.xpose.msra.mxu0 0
      %378 = vmatpush.bf16.xpose.msra.mxu0 0
      %379 = vmatpush.bf16.xpose.msra.mxu0 0
      %380 = vmatpush.bf16.xpose.msra.mxu0 %v371
      %381 = vmatmul.bf16.gmra.mxu0 %v368
      %v382 = vpop.f32.mrf.mxu0
      %v383 = vadd.f32 %v364, %v382
      %v384 = vpop.f32.mrf.mxu0
      %385 = vdwg.mxu0
      %v386 = vld [vmem:[#allocation2] sm:$0xff]
      %vm387 = vcmask 64512
      %v388 = vsel %vm387, %v383, -inf
      %389 = vmax.xlane.f32.xlu0 %v388
      %v390 = vpop.xlane.xlu0 %389
      %v391 = vmax.f32 %v386, %v390
      %v392 = vsub.f32 %v386, %v391
      %v393 = vmul.f32 %v392, 1.442695
      %v394 = vpow.pop %v393
      %396 = vset.pattern.permute.xlu0 0
      %397 = vperm.xlu0 %396, %v391
      %v398 = vpop.permute.xlu0 %397
      %v400 = vsub.f32 %v383, %v398
      %v401 = vmul.f32 %v400, 1.442695
      %v402 = vpow.pop %v401
      %v403 = vld [vmem:[#allocation3] sm:$0xff]
      %v404 = vmul.f32 %v394, %v403
      %v405 = vsel %vm387, %v402, 0.0
      %406 = vadd.xlane.f32.xlu0 %v405
      %v407 = vpop.xlane.xlu0 %406
      %v408 = vadd.f32 %v404, %v407
      %vm409 = vcmask 7168
      %410 = vst.msk [vmem:[#allocation3] sm:$0xff] %vm409, %v408
      %v411 = vld [vmem:[#allocation4] sm:$0xff]
      %413 = vset.pattern.permute.xlu0 0
      %414 = vperm.xlu0 %413, %v394
      %v415 = vpop.permute.xlu0 %414
      %v417 = vmul.f32 %v415, %v411
      %v418 = vpack.c.bf16 %v402, %v402
      %v420 = vsel %vm387, %v418, 0
      %vm422 = vcmask 1043456
      %v424 = vsel %vm422, %v360, 0
      %426 = vmatpush.bf16.msra.mxu0 0
      %427 = vmatpush.bf16.msra.mxu0 0
      %428 = vmatpush.bf16.msra.mxu0 0
      %429 = vmatpush.bf16.msra.mxu0 0
      %430 = vmatpush.bf16.msra.mxu0 0
      %431 = vmatpush.bf16.msra.mxu0 0
      %432 = vmatpush.bf16.msra.mxu0 0
      %433 = vmatpush.bf16.msra.mxu0 %v424
      %434 = vmatmul.bf16.gmra.mxu0 %v420
      %v435 = vpop.f32.mrf.mxu0
      %v436 = vadd.f32 0.0, %v435
      %v437 = vpop.f32.mrf.mxu0
      %438 = vdwg.mxu0
      %v439 = vadd.f32 %v417, %v436
      %440 = vst.msk [vmem:[#allocation4] sm:$0xff] %vm366, %v439
      %441 = vst.msk [vmem:[#allocation2] sm:$0xff] %vm409, %v391
      %v443 = vunpack.c.l.b16 %v358
      %v444 = vpack.c.b16 %v443, %v443
      %445 = vrot.lane.b32.xlu0 %v444, 96
      %v446 = vpop.permute.xlu0 %445
      %v448 = vunpack.c.l.b16 %v359
      %v449 = vpack.c.b16 %v448, %v448
      %450 = vrot.lane.b32.xlu0 %v449, 96
      %v451 = vpop.permute.xlu0 %450
      %v453 = vsel %vm366, %v446, 0
      %v456 = vsel %vm366, %v451, 0
      %458 = vmatpush.bf16.xpose.msra.mxu0 0
      %459 = vmatpush.bf16.xpose.msra.mxu0 0
      %460 = vmatpush.bf16.xpose.msra.mxu0 0
      %461 = vmatpush.bf16.xpose.msra.mxu0 0
      %462 = vmatpush.bf16.xpose.msra.mxu0 0
      %463 = vmatpush.bf16.xpose.msra.mxu0 0
      %464 = vmatpush.bf16.xpose.msra.mxu0 0
      %465 = vmatpush.bf16.xpose.msra.mxu0 %v456
      %466 = vmatmul.bf16.gmra.mxu0 %v453
      %v467 = vpop.f32.mrf.mxu0
      %v468 = vadd.f32 %v364, %v467
      %v469 = vpop.f32.mrf.mxu0
      %470 = vdwg.mxu0
      %s471 = scalar_lea.vmem [#allocation2], 8
      %v472 = vld [vmem:[%s471] sm:$0xff]
      %v473 = vsel %vm387, %v468, -inf
      %474 = vmax.xlane.f32.xlu0 %v473
      %v475 = vpop.xlane.xlu0 %474
      %v476 = vmax.f32 %v472, %v475
      %v477 = vsub.f32 %v472, %v476
      %v478 = vmul.f32 %v477, 1.442695
      %v479 = vpow.pop %v478
      %481 = vset.pattern.permute.xlu0 0
      %482 = vperm.xlu0 %481, %v476
      %v483 = vpop.permute.xlu0 %482
      %v485 = vsub.f32 %v468, %v483
      %v486 = vmul.f32 %v485, 1.442695
      %v487 = vpow.pop %v486
      %s488 = scalar_lea.vmem [#allocation3], 8
      %v489 = vld [vmem:[%s488] sm:$0xff]
      %v490 = vmul.f32 %v479, %v489
      %v491 = vsel %vm387, %v487, 0.0
      %492 = vadd.xlane.f32.xlu0 %v491
      %v493 = vpop.xlane.xlu0 %492
      %v494 = vadd.f32 %v490, %v493
      %495 = vst.msk [vmem:[%s488] sm:$0xff] %vm409, %v494
      %s496 = scalar_lea.vmem [#allocation4], 8
      %v497 = vld [vmem:[%s496] sm:$0xff]
      %499 = vset.pattern.permute.xlu0 0
      %500 = vperm.xlu0 %499, %v479
      %v501 = vpop.permute.xlu0 %500
      %v503 = vmul.f32 %v501, %v497
      %v504 = vpack.c.bf16 %v487, %v487
      %v506 = vunpack.c.l.b16 %v360
      %v507 = vpack.c.b16 %v506, %v506
      %508 = vrot.lane.b32.xlu0 %v507, 96
      %v509 = vpop.permute.xlu0 %508
      %v511 = vsel %vm387, %v504, 0
      %v514 = vsel %vm422, %v509, 0
      %516 = vmatpush.bf16.msra.mxu0 0
      %517 = vmatpush.bf16.msra.mxu0 0
      %518 = vmatpush.bf16.msra.mxu0 0
      %519 = vmatpush.bf16.msra.mxu0 0
      %520 = vmatpush.bf16.msra.mxu0 0
      %521 = vmatpush.bf16.msra.mxu0 0
      %522 = vmatpush.bf16.msra.mxu0 0
      %523 = vmatpush.bf16.msra.mxu0 %v514
      %524 = vmatmul.bf16.gmra.mxu0 %v511
      %v525 = vpop.f32.mrf.mxu0
      %v526 = vadd.f32 0.0, %v525
      %v527 = vpop.f32.mrf.mxu0
      %528 = vdwg.mxu0
      %v529 = vadd.f32 %v503, %v526
      %530 = vst.msk [vmem:[%s496] sm:$0xff] %vm366, %v529
      %531 = vst.msk [vmem:[%s471] sm:$0xff] %vm409, %v476
      %532 = vrot.lane.b32.xlu0 %v444, 64
      %v533 = vpop.permute.xlu0 %532
      %534 = vrot.lane.b32.xlu0 %v449, 64
      %v535 = vpop.permute.xlu0 %534
      %v537 = vsel %vm366, %v533, 0
      %v540 = vsel %vm366, %v535, 0
      %542 = vmatpush.bf16.xpose.msra.mxu0 0
      %543 = vmatpush.bf16.xpose.msra.mxu0 0
      %544 = vmatpush.bf16.xpose.msra.mxu0 0
      %545 = vmatpush.bf16.xpose.msra.mxu0 0
      %546 = vmatpush.bf16.xpose.msra.mxu0 0
      %547 = vmatpush.bf16.xpose.msra.mxu0 0
      %548 = vmatpush.bf16.xpose.msra.mxu0 0
      %549 = vmatpush.bf16.xpose.msra.mxu0 %v540
      %550 = vmatmul.bf16.gmra.mxu0 %v537
      %v551 = vpop.f32.mrf.mxu0
      %v552 = vadd.f32 %v364, %v551
      %v553 = vpop.f32.mrf.mxu0
      %554 = vdwg.mxu0
      %s555 = scalar_lea.vmem [#allocation2], 16
      %v556 = vld [vmem:[%s555] sm:$0xff]
      %v557 = vsel %vm387, %v552, -inf
      %558 = vmax.xlane.f32.xlu0 %v557
      %v559 = vpop.xlane.xlu0 %558
      %v560 = vmax.f32 %v556, %v559
      %v561 = vsub.f32 %v556, %v560
      %v562 = vmul.f32 %v561, 1.442695
      %v563 = vpow.pop %v562
      %565 = vset.pattern.permute.xlu0 0
      %566 = vperm.xlu0 %565, %v560
      %v567 = vpop.permute.xlu0 %566
      %v569 = vsub.f32 %v552, %v567
      %v570 = vmul.f32 %v569, 1.442695
      %v571 = vpow.pop %v570
      %s572 = scalar_lea.vmem [#allocation3], 16
      %v573 = vld [vmem:[%s572] sm:$0xff]
      %v574 = vmul.f32 %v563, %v573
      %v575 = vsel %vm387, %v571, 0.0
      %576 = vadd.xlane.f32.xlu0 %v575
      %v577 = vpop.xlane.xlu0 %576
      %v578 = vadd.f32 %v574, %v577
      %579 = vst.msk [vmem:[%s572] sm:$0xff] %vm409, %v578
      %s580 = scalar_lea.vmem [#allocation4], 16
      %v581 = vld [vmem:[%s580] sm:$0xff]
      %583 = vset.pattern.permute.xlu0 0
      %584 = vperm.xlu0 %583, %v563
      %v585 = vpop.permute.xlu0 %584
      %v587 = vmul.f32 %v585, %v581
      %v588 = vpack.c.bf16 %v571, %v571
      %589 = vrot.lane.b32.xlu0 %v507, 64
      %v590 = vpop.permute.xlu0 %589
      %v592 = vsel %vm387, %v588, 0
      %v595 = vsel %vm422, %v590, 0
      %597 = vmatpush.bf16.msra.mxu0 0
      %598 = vmatpush.bf16.msra.mxu0 0
      %599 = vmatpush.bf16.msra.mxu0 0
      %600 = vmatpush.bf16.msra.mxu0 0
      %601 = vmatpush.bf16.msra.mxu0 0
      %602 = vmatpush.bf16.msra.mxu0 0
      %603 = vmatpush.bf16.msra.mxu0 0
      %604 = vmatpush.bf16.msra.mxu0 %v595
      %605 = vmatmul.bf16.gmra.mxu0 %v592
      %v606 = vpop.f32.mrf.mxu0
      %v607 = vadd.f32 0.0, %v606
      %v608 = vpop.f32.mrf.mxu0
      %609 = vdwg.mxu0
      %v610 = vadd.f32 %v587, %v607
      %611 = vst.msk [vmem:[%s580] sm:$0xff] %vm366, %v610
      %612 = vst.msk [vmem:[%s555] sm:$0xff] %vm409, %v560
      %613 = vrot.lane.b32.xlu0 %v444, 32
      %v614 = vpop.permute.xlu0 %613
      %615 = vrot.lane.b32.xlu0 %v449, 32
      %v616 = vpop.permute.xlu0 %615
      %v618 = vsel %vm366, %v614, 0
      %v621 = vsel %vm366, %v616, 0
      %623 = vmatpush.bf16.xpose.msra.mxu0 0
      %624 = vmatpush.bf16.xpose.msra.mxu0 0
      %625 = vmatpush.bf16.xpose.msra.mxu0 0
      %626 = vmatpush.bf16.xpose.msra.mxu0 0
      %627 = vmatpush.bf16.xpose.msra.mxu0 0
      %628 = vmatpush.bf16.xpose.msra.mxu0 0
      %629 = vmatpush.bf16.xpose.msra.mxu0 0
      %630 = vmatpush.bf16.xpose.msra.mxu0 %v621
      %631 = vmatmul.bf16.gmra.mxu0 %v618
      %v632 = vpop.f32.mrf.mxu0
      %v633 = vadd.f32 %v364, %v632
      %v634 = vpop.f32.mrf.mxu0
      %635 = vdwg.mxu0
      %s636 = scalar_lea.vmem [#allocation2], 24
      %v637 = vld [vmem:[%s636] sm:$0xff]
      %v638 = vsel %vm387, %v633, -inf
      %639 = vmax.xlane.f32.xlu0 %v638
      %v640 = vpop.xlane.xlu0 %639
      %v641 = vmax.f32 %v637, %v640
      %v642 = vsub.f32 %v637, %v641
      %v643 = vmul.f32 %v642, 1.442695
      %v644 = vpow.pop %v643
      %646 = vset.pattern.permute.xlu0 0
      %647 = vperm.xlu0 %646, %v641
      %v648 = vpop.permute.xlu0 %647
      %v650 = vsub.f32 %v633, %v648
      %v651 = vmul.f32 %v650, 1.442695
      %v652 = vpow.pop %v651
      %s653 = scalar_lea.vmem [#allocation3], 24
      %v654 = vld [vmem:[%s653] sm:$0xff]
      %v655 = vmul.f32 %v644, %v654
      %v656 = vsel %vm387, %v652, 0.0
      %657 = vadd.xlane.f32.xlu0 %v656
      %v658 = vpop.xlane.xlu0 %657
      %v659 = vadd.f32 %v655, %v658
      %660 = vst.msk [vmem:[%s653] sm:$0xff] %vm409, %v659
      %s661 = scalar_lea.vmem [#allocation4], 24
      %v662 = vld [vmem:[%s661] sm:$0xff]
      %664 = vset.pattern.permute.xlu0 0
      %665 = vperm.xlu0 %664, %v644
      %v666 = vpop.permute.xlu0 %665
      %v668 = vmul.f32 %v666, %v662
      %v669 = vpack.c.bf16 %v652, %v652
      %670 = vrot.lane.b32.xlu0 %v507, 32
      %v671 = vpop.permute.xlu0 %670
      %v673 = vsel %vm387, %v669, 0
      %v676 = vsel %vm422, %v671, 0
      %678 = vmatpush.bf16.msra.mxu0 0
      %679 = vmatpush.bf16.msra.mxu0 0
      %680 = vmatpush.bf16.msra.mxu0 0
      %681 = vmatpush.bf16.msra.mxu0 0
      %682 = vmatpush.bf16.msra.mxu0 0
      %683 = vmatpush.bf16.msra.mxu0 0
      %684 = vmatpush.bf16.msra.mxu0 0
      %685 = vmatpush.bf16.msra.mxu0 %v676
      %686 = vmatmul.bf16.gmra.mxu0 %v673
      %v687 = vpop.f32.mrf.mxu0
      %v688 = vadd.f32 0.0, %v687
      %v689 = vpop.f32.mrf.mxu0
      %690 = vdwg.mxu0
      %v691 = vadd.f32 %v668, %v688
      %692 = vst.msk [vmem:[%s661] sm:$0xff] %vm366, %v691
      %693 = vst.msk [vmem:[%s636] sm:$0xff] %vm409, %v641
      // Predicated region
      $region41: #{forward.41} parent=35 // pred_check
        %p694 = pneg %p337
      $region42: #{forward.41} parent=35 // pred_check_branch
        %696 = sbr.rel (%p694) target = $region44
      $region43: #{forward.41} parent=35 // pred_region
        %v697 = vld [vmem:[#allocation4] sm:$0xff]
        %v698 = vld [vmem:[#allocation3] sm:$0xff]
        %v699 = vrcp.pop %v698
        %701 = vset.pattern.permute.xlu0 0
        %702 = vperm.xlu0 %701, %v699
        %v703 = vpop.permute.xlu0 %702
        %v705 = vmul.f32 %v697, %v703
        %v706 = vld [vmem:[%s496] sm:$0xff]
        %v707 = vld [vmem:[%s488] sm:$0xff]
        %v708 = vrcp.pop %v707
        %710 = vset.pattern.permute.xlu0 0
        %711 = vperm.xlu0 %710, %v708
        %v712 = vpop.permute.xlu0 %711
        %v714 = vmul.f32 %v706, %v712
        %v715 = vld [vmem:[%s580] sm:$0xff]
        %v716 = vld [vmem:[%s572] sm:$0xff]
        %v717 = vrcp.pop %v716
        %719 = vset.pattern.permute.xlu0 0
        %720 = vperm.xlu0 %719, %v717
        %v721 = vpop.permute.xlu0 %720
        %v723 = vmul.f32 %v715, %v721
        %v724 = vld [vmem:[%s661] sm:$0xff]
        %v725 = vld [vmem:[%s653] sm:$0xff]
        %v726 = vrcp.pop %v725
        %728 = vset.pattern.permute.xlu0 0
        %729 = vperm.xlu0 %728, %v726
        %v730 = vpop.permute.xlu0 %729
        %v732 = vmul.f32 %v724, %v730
        %734 = vrot.lane.b32.xlu0 %v714, 32
        %v735 = vpop.permute.xlu0 %734
        %738 = vrot.lane.b32.xlu0 %v723, 64
        %v739 = vpop.permute.xlu0 %738
        %742 = vrot.lane.b32.xlu0 %v732, 96
        %v743 = vpop.permute.xlu0 %742
        %v745 = vsel %vm366, %v705, %v735
        %vm746 = vcmask 523264
        %v747 = vsel %vm746, %v745, %v739
        %vm748 = vcmask 785408
        %v749 = vsel %vm748, %v747, %v743
        %v750 = vpack.c.bf16 %v749, %v749
        %751 = vst [vmem:[%s335] sm:$0xf] %v750
      $region44: #{forward.41} parent=35 // pred_fallthru
        _
      %p752 = scmp.lt.s32.totalorder %s20, 1
      %s753 = scalar_select %p752, %s20, 1
      %p754 = scmp.lt.s32.totalorder %s21, 0
      %s755 = scalar_select %p754, %s21, 0
      %s756 = sadd.s32 %s755, %s753
      %s757 = smul.addr %s756, 4
      %s758 = scalar_lea.vmem %s4, %s757
      // Predicated region
      $region45: #{forward.41} parent=35 // pred_check
        %p759 = pneg %p166
      $region46: #{forward.41} parent=35 // pred_check_branch
        %761 = sbr.rel (%p759) target = $region48
      $region47: #{forward.41} parent=35 // pred_region
        _
      $region48: #{forward.41} parent=35 // pred_fallthru
        _
    $region36: #{forward.41} parent=5 // pred_fallthru
      _
    %p762 = scmp.le.s32.totalorder 2, %s10
    // Predicated region
    $region49: #{forward.41} parent=5 // pred_check
      %p763 = pneg %p762
    $region50: #{forward.41} parent=5 // pred_check_branch
      %765 = sbr.rel (%p763) target = $region52
    $region51: #{forward.41} parent=5 // pred_region
      %s766 = ssub.s32 %s10, 2
      // Predicated region
      $region53: #{forward.41} parent=51 // pred_check
        %p767 = pneg %p172
      $region54: #{forward.41} parent=51 // pred_check_branch
        %769 = sbr.rel (%p767) target = $region56
      $region55: #{forward.41} parent=51 // pred_region
        %p770 = scmp.lt.s32.totalorder %s23, 1
        %s771 = scalar_select %p770, %s23, 1
        %p772 = scmp.lt.s32.totalorder %s24, 0
        %s773 = scalar_select %p772, %s24, 0
        %s774 = sadd.s32 %s773, %s771
        %s775 = smul.addr %s774, 4
        %s776 = scalar_lea.vmem %s4, %s775
      $region56: #{forward.41} parent=51 // pred_fallthru
        _
    $region52: #{forward.41} parent=5 // pred_fallthru
      _
  $region6: #{forward.41} parent=0 // loop_footer
    %s14 = sadd.s32 1, %s10
  $region7: #{forward.41} parent=0 // loop_footer_branch
    %9 = sbr.rel target = $region3
  $region8: #{forward.41} parent=0 // loop_exit
    _

// kernel: forward.45
$region0: #{forward.45}
  #allocation0 [shape = 'u32[]', space=smem, size = 0x4, offset = 0x4, fixed_abs, tag = 'smem constant byte address 0x4 - core index']
  #allocation1 [shape = 'u32[72,128]{1,0:T(1,128)}', space=vmem, size = 0x9000, scoped, tag = 'internal scratch']
  #allocation2 [shape = 'f32[16,128]{1,0:T(8,128)}', space=vmem, size = 0x2000, scoped, tag = 'scratch operand']
  %s0 = inlined_call_operand.vmem [shape: bf16[16,256], index: 0, kind: input, shape index: {}]
  %s1 = inlined_call_operand.vmem [shape: bf16[256,128], index: 1, kind: input, shape index: {}]
  %s2 = inlined_call_operand.vmem [shape: f32[1,128], index: 2, kind: input, shape index: {}]
  %s3 = inlined_call_operand.vmem [shape: bf16[16,128], index: 3, kind: input, shape index: {}]
  %s4 = inlined_call_operand.vmem [shape: bf16[16,128], index: 4, kind: output, shape index: {}]
  %s5 = sld [smem:[#allocation0]]
  $region34: #{forward.45} parent=0
    _
  %s7 = ssub.s32 1, %s5
  %s8 = scalar_select 0, %s7, %s5
  // Predicated region
  $region2: #{forward.45} parent=0 // pred_check
    _
  $region3: #{forward.45} parent=0 // pred_check_branch
    %10 = sbr.rel (0) target = $region5
  $region4: #{forward.45} parent=0 // pred_region
    _
  $region5: #{forward.45} parent=0 // pred_fallthru
    _
  // Predicated region
  $region6: #{forward.45} parent=0 // pred_check
    _
  $region7: #{forward.45} parent=0 // pred_check_branch
    %12 = sbr.rel (0) target = $region9
  $region8: #{forward.45} parent=0 // pred_region
    _
  $region9: #{forward.45} parent=0 // pred_fallthru
    _
  // Predicated region
  $region10: #{forward.45} parent=0 // pred_check
    _
  $region11: #{forward.45} parent=0 // pred_check_branch
    %14 = sbr.rel (0) target = $region13
  $region12: #{forward.45} parent=0 // pred_region
    _
  $region13: #{forward.45} parent=0 // pred_fallthru
    _
  // Predicated region
  $region14: #{forward.45} parent=0 // pred_check
    _
  $region15: #{forward.45} parent=0 // pred_check_branch
    %16 = sbr.rel (0) target = $region17
  $region16: #{forward.45} parent=0 // pred_region
    _
  $region17: #{forward.45} parent=0 // pred_fallthru
    _
  %p17 = scmp.eq.s32.totalorder 0, 0
  // Predicated region
  $region18: #{forward.45} parent=0 // pred_check
    %p18 = pneg %p17
  $region19: #{forward.45} parent=0 // pred_check_branch
    %20 = sbr.rel (%p18) target = $region21
  $region20: #{forward.45} parent=0 // pred_region
    %21 = vst [vmem:[#allocation2] sm:$0xff] 0.0
    %22 = vst [vmem:[#allocation2 + $0x8] sm:$0xff] 0.0
  $region21: #{forward.45} parent=0 // pred_fallthru
    _
  %v23 = vld [vmem:[#allocation2] sm:$0xff]
  %v24 = vld [vmem:[#allocation2 + $0x8] sm:$0xff]
  %v25 = vld [vmem:[%s0] sm:$0xff]
  %v26 = vld [vmem:[%s0 + $0x8] sm:$0xff]
  %v27 = vld [vmem:[%s1] sm:$0xf]
  %v28 = vld [vmem:[%s1 + $0x4] sm:$0xf]
  %v29 = vld [vmem:[%s1 + $0x8] sm:$0xf]
  %v30 = vld [vmem:[%s1 + $0xc] sm:$0xf]
  %v31 = vld [vmem:[%s1 + $0x10] sm:$0xf]
  %v32 = vld [vmem:[%s1 + $0x14] sm:$0xf]
  %v33 = vld [vmem:[%s1 + $0x18] sm:$0xf]
  %v34 = vld [vmem:[%s1 + $0x1c] sm:$0xf]
  %v35 = vld [vmem:[%s1 + $0x20] sm:$0xf]
  %v36 = vld [vmem:[%s1 + $0x24] sm:$0xf]
  %v37 = vld [vmem:[%s1 + $0x28] sm:$0xf]
  %v38 = vld [vmem:[%s1 + $0x2c] sm:$0xf]
  %v39 = vld [vmem:[%s1 + $0x30] sm:$0xf]
  %v40 = vld [vmem:[%s1 + $0x34] sm:$0xf]
  %v41 = vld [vmem:[%s1 + $0x38] sm:$0xf]
  %v42 = vld [vmem:[%s1 + $0x3c] sm:$0xf]
  %v43 = vld [vmem:[%s1 + $0x40] sm:$0xf]
  %v44 = vld [vmem:[%s1 + $0x44] sm:$0xf]
  %v45 = vld [vmem:[%s1 + $0x48] sm:$0xf]
  %v46 = vld [vmem:[%s1 + $0x4c] sm:$0xf]
  %v47 = vld [vmem:[%s1 + $0x50] sm:$0xf]
  %v48 = vld [vmem:[%s1 + $0x54] sm:$0xf]
  %v49 = vld [vmem:[%s1 + $0x58] sm:$0xf]
  %v50 = vld [vmem:[%s1 + $0x5c] sm:$0xf]
  %v51 = vld [vmem:[%s1 + $0x60] sm:$0xf]
  %v52 = vld [vmem:[%s1 + $0x64] sm:$0xf]
  %v53 = vld [vmem:[%s1 + $0x68] sm:$0xf]
  %v54 = vld [vmem:[%s1 + $0x6c] sm:$0xf]
  %v55 = vld [vmem:[%s1 + $0x70] sm:$0xf]
  %v56 = vld [vmem:[%s1 + $0x74] sm:$0xf]
  %v57 = vld [vmem:[%s1 + $0x78] sm:$0xf]
  %v58 = vld [vmem:[%s1 + $0x7c] sm:$0xf]
  %v61 = vunpack.c.l.b16 %v25
  %v62 = vunpack.c.h.b16 %v25
  %v63 = vunpack.c.l.b16 %v26
  %v64 = vunpack.c.h.b16 %v26
  %v65 = vpack.c.b16 %v63, %v61
  %v66 = vpack.c.b16 %v64, %v62
  %v101 = vunpack.c.l.b16 %v27
  %v102 = vunpack.c.l.b16 %v28
  %v103 = vunpack.c.l.b16 %v29
  %v104 = vunpack.c.l.b16 %v30
  %v105 = vunpack.c.l.b16 %v31
  %v106 = vunpack.c.l.b16 %v32
  %v107 = vunpack.c.l.b16 %v33
  %v108 = vunpack.c.l.b16 %v34
  %v109 = vunpack.c.l.b16 %v35
  %v110 = vunpack.c.l.b16 %v36
  %v111 = vunpack.c.l.b16 %v37
  %v112 = vunpack.c.l.b16 %v38
  %v113 = vunpack.c.l.b16 %v39
  %v114 = vunpack.c.l.b16 %v40
  %v115 = vunpack.c.l.b16 %v41
  %v116 = vunpack.c.l.b16 %v42
  %v117 = vunpack.c.l.b16 %v43
  %v118 = vunpack.c.l.b16 %v44
  %v119 = vunpack.c.l.b16 %v45
  %v120 = vunpack.c.l.b16 %v46
  %v121 = vunpack.c.l.b16 %v47
  %v122 = vunpack.c.l.b16 %v48
  %v123 = vunpack.c.l.b16 %v49
  %v124 = vunpack.c.l.b16 %v50
  %v125 = vunpack.c.l.b16 %v51
  %v126 = vunpack.c.l.b16 %v52
  %v127 = vunpack.c.l.b16 %v53
  %v128 = vunpack.c.l.b16 %v54
  %v129 = vunpack.c.l.b16 %v55
  %v130 = vunpack.c.l.b16 %v56
  %v131 = vunpack.c.l.b16 %v57
  %v132 = vunpack.c.l.b16 %v58
  %v133 = vpack.c.b16 %v102, %v101
  %v134 = vpack.c.b16 %v104, %v103
  %v135 = vpack.c.b16 %v106, %v105
  %v136 = vpack.c.b16 %v108, %v107
  %v137 = vpack.c.b16 %v110, %v109
  %v138 = vpack.c.b16 %v112, %v111
  %v139 = vpack.c.b16 %v114, %v113
  %v140 = vpack.c.b16 %v116, %v115
  %v141 = vpack.c.b16 %v118, %v117
  %v142 = vpack.c.b16 %v120, %v119
  %v143 = vpack.c.b16 %v122, %v121
  %v144 = vpack.c.b16 %v124, %v123
  %v145 = vpack.c.b16 %v126, %v125
  %v146 = vpack.c.b16 %v128, %v127
  %v147 = vpack.c.b16 %v130, %v129
  %v148 = vpack.c.b16 %v132, %v131
  %165 = vmatpush.bf16.msra.mxu0 %v140
  %166 = vmatpush.bf16.msra.mxu0 %v139
  %167 = vmatpush.bf16.msra.mxu0 %v138
  %168 = vmatpush.bf16.msra.mxu0 %v137
  %169 = vmatpush.bf16.msra.mxu0 %v136
  %170 = vmatpush.bf16.msra.mxu0 %v135
  %171 = vmatpush.bf16.msra.mxu0 %v134
  %172 = vmatpush.bf16.msra.mxu0 %v133
  %173 = vmatmul.bf16.gmra.mxu0 %v65
  %v174 = vpop.f32.mrf.mxu0
  %v175 = vadd.f32 0.0, %v174
  %v176 = vpop.f32.mrf.mxu0
  %v177 = vadd.f32 0.0, %v176
  %178 = vdwg.mxu0
  %179 = vmatpush.bf16.msra.mxu0 %v148
  %180 = vmatpush.bf16.msra.mxu0 %v147
  %181 = vmatpush.bf16.msra.mxu0 %v146
  %182 = vmatpush.bf16.msra.mxu0 %v145
  %183 = vmatpush.bf16.msra.mxu0 %v144
  %184 = vmatpush.bf16.msra.mxu0 %v143
  %185 = vmatpush.bf16.msra.mxu0 %v142
  %186 = vmatpush.bf16.msra.mxu0 %v141
  %187 = vmatmul.bf16.gmra.mxu0 %v66
  %v188 = vpop.f32.mrf.mxu0
  %v189 = vadd.f32 %v175, %v188
  %v190 = vpop.f32.mrf.mxu0
  %v191 = vadd.f32 %v177, %v190
  %192 = vdwg.mxu0
  %v193 = vadd.f32 %v23, %v189
  %v194 = vadd.f32 %v24, %v191
  %195 = vst [vmem:[#allocation2] sm:$0xff] %v193
  %196 = vst [vmem:[#allocation2 + $0x8] sm:$0xff] %v194
  // Predicated region
  $region22: #{forward.45} parent=0 // pred_check
    %p197 = pneg %p17
  $region23: #{forward.45} parent=0 // pred_check_branch
    %199 = sbr.rel (%p197) target = $region25
  $region24: #{forward.45} parent=0 // pred_region
    %v200 = vld [vmem:[#allocation2] sm:$0xff]
    %v201 = vld [vmem:[#allocation2 + $0x8] sm:$0xff]
    %v202 = vld [vmem:[%s2] sm:$0x1]
    %v204 = vperm.slane %v202, 0
    %v206 = vadd.f32 %v200, %v204
    %v207 = vadd.f32 %v201, %v204
    %v208 = vld [vmem:[%s3] sm:$0xf]
    %v209 = vld [vmem:[%s3 + $0x4] sm:$0xf]
    %v210 = vunpack.c.l.bf16 %v208
    %v211 = vunpack.c.l.bf16 %v209
    %v212 = vadd.f32 %v206, %v210
    %v213 = vadd.f32 %v207, %v211
    %v214 = vpack.c.bf16 %v212, %v212
    %v215 = vpack.c.bf16 %v213, %v213
    %216 = vst [vmem:[%s4] sm:$0xf] %v214
    %217 = vst [vmem:[%s4 + $0x4] sm:$0xf] %v215
  $region25: #{forward.45} parent=0 // pred_fallthru
    _
  // Predicated region
  $region26: #{forward.45} parent=0 // pred_check
    _
  $region27: #{forward.45} parent=0 // pred_check_branch
    %219 = sbr.rel (0) target = $region29
  $region28: #{forward.45} parent=0 // pred_region
    _
  $region29: #{forward.45} parent=0 // pred_fallthru
    _
  // Predicated region
  $region30: #{forward.45} parent=0 // pred_check
    _
  $region31: #{forward.45} parent=0 // pred_check_branch
    %221 = sbr.rel (0) target = $region33
  $region32: #{forward.45} parent=0 // pred_region
    _
  $region33: #{forward.45} parent=0 // pred_fallthru
    _

// kernel: forward.51
$region0: #{forward.51}
  #allocation0 [shape = 'u32[]', space=smem, size = 0x4, offset = 0x4, fixed_abs, tag = 'smem constant byte address 0x4 - core index']
  #allocation1 [shape = 'u32[72,128]{1,0:T(1,128)}', space=vmem, size = 0x9000, scoped, tag = 'internal scratch']
  #allocation2 [shape = 'f32[16,256]{1,0:T(8,128)}', space=vmem, size = 0x4000, scoped, tag = 'scratch operand']
  %s0 = inlined_call_operand.vmem [shape: bf16[16,128], index: 0, kind: input, shape index: {}]
  %s1 = inlined_call_operand.hbm [shape: bf16[128,256], index: 1, kind: input, shape index: {}]
  %s2 = inlined_call_operand.vmem [shape: f32[1,256], index: 2, kind: input, shape index: {}]
  %s3 = inlined_call_operand.vmem [shape: bf16[16,256], index: 3, kind: output, shape index: {}]
  %s4 = sld [smem:[#allocation0]]
  $region34: #{forward.51} parent=0
    _
  %s6 = ssub.s32 1, %s4
  %s7 = scalar_select 0, %s6, %s4
  $region1: #{forward.51} parent=0
    #allocation3 [shape = 'u8[65536]{0}', space=vmem, size = 0x10000, scoped, tag = 'input window, operand 1, single buffered']
    #allocation4 [shape = 's32[1]{0}', space=sflag, size = 0x4, scoped, tag = 'scoped memory for forward.51']
    %8 = vsyncpa [#allocation4], 0
    // Predicated region
    $region2: #{forward.51} parent=1 // pred_check
      _
    $region3: #{forward.51} parent=1 // pred_check_branch
      %10 = sbr.rel (0) target = $region5
    $region4: #{forward.51} parent=1 // pred_region
      _
    $region5: #{forward.51} parent=1 // pred_fallthru
      _
    // Predicated region
    $region6: #{forward.51} parent=1 // pred_check
      _
    $region7: #{forward.51} parent=1 // pred_check_branch
      %12 = sbr.rel (0) target = $region9
    $region8: #{forward.51} parent=1 // pred_region
      %14 = vsyncadd [#allocation4], 0
      %s15 = sshll.u32 %s1, 4
      %s16 = int_to_ptr.hbm [resolvable:$true] %s15
      %s17 = sshll.u32 [#allocation3], 4
      %s18 = int_to_ptr.vmem [resolvable:$true] %s17
      %23 = dma.hbm_to_vmem [thread:$0]  %s16, 2048, %s18, [#allocation4], 128, 128, 8
    $region9: #{forward.51} parent=1 // pred_fallthru
      _
    // Predicated region
    $region10: #{forward.51} parent=1 // pred_check
      _
    $region11: #{forward.51} parent=1 // pred_check_branch
      %25 = sbr.rel (0) target = $region13
    $region12: #{forward.51} parent=1 // pred_region
      _
    $region13: #{forward.51} parent=1 // pred_fallthru
      _
    // Predicated region
    $region14: #{forward.51} parent=1 // pred_check
      _
    $region15: #{forward.51} parent=1 // pred_check_branch
      %27 = sbr.rel (0) target = $region17
    $region16: #{forward.51} parent=1 // pred_region
      %29 = dma.done [#allocation4], 2048
    $region17: #{forward.51} parent=1 // pred_fallthru
      _
    %p30 = scmp.eq.s32.totalorder 0, 0
    // Predicated region
    $region18: #{forward.51} parent=1 // pred_check
      %p31 = pneg %p30
    $region19: #{forward.51} parent=1 // pred_check_branch
      %33 = sbr.rel (%p31) target = $region21
    $region20: #{forward.51} parent=1 // pred_region
      %34 = vst [vmem:[#allocation2] sm:$0xff] 0.0
      %35 = vst [vmem:[#allocation2 + $0x8] sm:$0xff] 0.0
      %36 = vst [vmem:[#allocation2 + $0x10] sm:$0xff] 0.0
      %37 = vst [vmem:[#allocation2 + $0x18] sm:$0xff] 0.0
    $region21: #{forward.51} parent=1 // pred_fallthru
      _
    %v38 = vld [vmem:[#allocation2] sm:$0xff]
    %v39 = vld [vmem:[#allocation2 + $0x8] sm:$0xff]
    %v40 = vld [vmem:[#allocation2 + $0x10] sm:$0xff]
    %v41 = vld [vmem:[#allocation2 + $0x18] sm:$0xff]
    %v42 = vld [vmem:[%s0] sm:$0xf]
    %v43 = vld [vmem:[%s0 + $0x4] sm:$0xf]
    %v44 = vld [vmem:[#allocation3] sm:$0xff]
    %v45 = vld [vmem:[#allocation3 + $0x8] sm:$0xff]
    %v46 = vld [vmem:[#allocation3 + $0x10] sm:$0xff]
    %v47 = vld [vmem:[#allocation3 + $0x18] sm:$0xff]
    %v48 = vld [vmem:[#allocation3 + $0x20] sm:$0xff]
    %v49 = vld [vmem:[#allocation3 + $0x28] sm:$0xff]
    %v50 = vld [vmem:[#allocation3 + $0x30] sm:$0xff]
    %v51 = vld [vmem:[#allocation3 + $0x38] sm:$0xff]
    %v52 = vld [vmem:[#allocation3 + $0x40] sm:$0xff]
    %v53 = vld [vmem:[#allocation3 + $0x48] sm:$0xff]
    %v54 = vld [vmem:[#allocation3 + $0x50] sm:$0xff]
    %v55 = vld [vmem:[#allocation3 + $0x58] sm:$0xff]
    %v56 = vld [vmem:[#allocation3 + $0x60] sm:$0xff]
    %v57 = vld [vmem:[#allocation3 + $0x68] sm:$0xff]
    %v58 = vld [vmem:[#allocation3 + $0x70] sm:$0xff]
    %v59 = vld [vmem:[#allocation3 + $0x78] sm:$0xff]
    %v62 = vunpack.c.l.b16 %v42
    %v63 = vunpack.c.l.b16 %v43
    %v64 = vpack.c.b16 %v63, %v62
    %v82 = vunpack.c.l.b16 %v44
    %v83 = vunpack.c.h.b16 %v44
    %v84 = vunpack.c.l.b16 %v45
    %v85 = vunpack.c.h.b16 %v45
    %v86 = vunpack.c.l.b16 %v46
    %v87 = vunpack.c.h.b16 %v46
    %v88 = vunpack.c.l.b16 %v47
    %v89 = vunpack.c.h.b16 %v47
    %v90 = vunpack.c.l.b16 %v48
    %v91 = vunpack.c.h.b16 %v48
    %v92 = vunpack.c.l.b16 %v49
    %v93 = vunpack.c.h.b16 %v49
    %v94 = vunpack.c.l.b16 %v50
    %v95 = vunpack.c.h.b16 %v50
    %v96 = vunpack.c.l.b16 %v51
    %v97 = vunpack.c.h.b16 %v51
    %v98 = vunpack.c.l.b16 %v52
    %v99 = vunpack.c.h.b16 %v52
    %v100 = vunpack.c.l.b16 %v53
    %v101 = vunpack.c.h.b16 %v53
    %v102 = vunpack.c.l.b16 %v54
    %v103 = vunpack.c.h.b16 %v54
    %v104 = vunpack.c.l.b16 %v55
    %v105 = vunpack.c.h.b16 %v55
    %v106 = vunpack.c.l.b16 %v56
    %v107 = vunpack.c.h.b16 %v56
    %v108 = vunpack.c.l.b16 %v57
    %v109 = vunpack.c.h.b16 %v57
    %v110 = vunpack.c.l.b16 %v58
    %v111 = vunpack.c.h.b16 %v58
    %v112 = vunpack.c.l.b16 %v59
    %v113 = vunpack.c.h.b16 %v59
    %v114 = vpack.c.b16 %v84, %v82
    %v115 = vpack.c.b16 %v85, %v83
    %v116 = vpack.c.b16 %v88, %v86
    %v117 = vpack.c.b16 %v89, %v87
    %v118 = vpack.c.b16 %v92, %v90
    %v119 = vpack.c.b16 %v93, %v91
    %v120 = vpack.c.b16 %v96, %v94
    %v121 = vpack.c.b16 %v97, %v95
    %v122 = vpack.c.b16 %v100, %v98
    %v123 = vpack.c.b16 %v101, %v99
    %v124 = vpack.c.b16 %v104, %v102
    %v125 = vpack.c.b16 %v105, %v103
    %v126 = vpack.c.b16 %v108, %v106
    %v127 = vpack.c.b16 %v109, %v107
    %v128 = vpack.c.b16 %v112, %v110
    %v129 = vpack.c.b16 %v113, %v111
    %146 = vmatpush.bf16.msra.mxu0 %v128
    %147 = vmatpush.bf16.msra.mxu0 %v126
    %148 = vmatpush.bf16.msra.mxu0 %v124
    %149 = vmatpush.bf16.msra.mxu0 %v122
    %150 = vmatpush.bf16.msra.mxu0 %v120
    %151 = vmatpush.bf16.msra.mxu0 %v118
    %152 = vmatpush.bf16.msra.mxu0 %v116
    %153 = vmatpush.bf16.msra.mxu0 %v114
    %154 = vmatmul.bf16.gmra.mxu0 %v64
    %v155 = vpop.f32.mrf.mxu0
    %v156 = vadd.f32 0.0, %v155
    %v157 = vpop.f32.mrf.mxu0
    %v158 = vadd.f32 0.0, %v157
    %159 = vdwg.mxu0
    %160 = vmatpush.bf16.msra.mxu0 %v129
    %161 = vmatpush.bf16.msra.mxu0 %v127
    %162 = vmatpush.bf16.msra.mxu0 %v125
    %163 = vmatpush.bf16.msra.mxu0 %v123
    %164 = vmatpush.bf16.msra.mxu0 %v121
    %165 = vmatpush.bf16.msra.mxu0 %v119
    %166 = vmatpush.bf16.msra.mxu0 %v117
    %167 = vmatpush.bf16.msra.mxu0 %v115
    %168 = vmatmul.bf16.gmra.mxu0 %v64
    %v169 = vpop.f32.mrf.mxu0
    %v170 = vadd.f32 0.0, %v169
    %v171 = vpop.f32.mrf.mxu0
    %v172 = vadd.f32 0.0, %v171
    %173 = vdwg.mxu0
    %v174 = vadd.f32 %v38, %v156
    %v175 = vadd.f32 %v39, %v170
    %v176 = vadd.f32 %v40, %v158
    %v177 = vadd.f32 %v41, %v172
    %178 = vst [vmem:[#allocation2] sm:$0xff] %v174
    %179 = vst [vmem:[#allocation2 + $0x8] sm:$0xff] %v175
    %180 = vst [vmem:[#allocation2 + $0x10] sm:$0xff] %v176
    %181 = vst [vmem:[#allocation2 + $0x18] sm:$0xff] %v177
    // Predicated region
    $region22: #{forward.51} parent=1 // pred_check
      %p182 = pneg %p30
    $region23: #{forward.51} parent=1 // pred_check_branch
      %184 = sbr.rel (%p182) target = $region25
    $region24: #{forward.51} parent=1 // pred_region
      %v185 = vld [vmem:[#allocation2] sm:$0xff]
      %v186 = vld [vmem:[#allocation2 + $0x8] sm:$0xff]
      %v187 = vld [vmem:[#allocation2 + $0x10] sm:$0xff]
      %v188 = vld [vmem:[#allocation2 + $0x18] sm:$0xff]
      %v189 = vld [vmem:[%s2] sm:$0x3]
      %v191 = vperm.slane %v189, 0
      %v192 = vperm.slane %v189, 1
      %v195 = vadd.f32 %v185, %v191
      %v196 = vadd.f32 %v186, %v192
      %v197 = vadd.f32 %v187, %v191
      %v198 = vadd.f32 %v188, %v192
      %v199 = vmax.f32 %v195, 0.0
      %v200 = vmax.f32 %v196, 0.0
      %v201 = vmax.f32 %v197, 0.0
      %v202 = vmax.f32 %v198, 0.0
      %v203 = vpack.c.bf16 %v200, %v199
      %v204 = vpack.c.bf16 %v202, %v201
      %205 = vst [vmem:[%s3] sm:$0xff] %v203
      %206 = vst [vmem:[%s3 + $0x8] sm:$0xff] %v204
    $region25: #{forward.51} parent=1 // pred_fallthru
      _
    // Predicated region
    $region26: #{forward.51} parent=1 // pred_check
      _
    $region27: #{forward.51} parent=1 // pred_check_branch
      %208 = sbr.rel (0) target = $region29
    $region28: #{forward.51} parent=1 // pred_region
      _
    $region29: #{forward.51} parent=1 // pred_fallthru
      _
    // Predicated region
    $region30: #{forward.51} parent=1 // pred_check
      _
    $region31: #{forward.51} parent=1 // pred_check_branch
      %210 = sbr.rel (0) target = $region33
    $region32: #{forward.51} parent=1 // pred_region
      _
    $region33: #{forward.51} parent=1 // pred_fallthru
      _
    %211 = vsyncpa [#allocation4], 1

// kernel: forward.59
$region0: #{forward.59}
  #allocation0 [shape = 'u32[]', space=smem, size = 0x4, offset = 0x4, fixed_abs, tag = 'smem constant byte address 0x4 - core index']
  #allocation1 [shape = 'u32[72,128]{1,0:T(1,128)}', space=vmem, size = 0x9000, scoped, tag = 'internal scratch']
  #allocation2 [shape = 'f32[16,256]{1,0:T(8,128)}', space=vmem, size = 0x4000, scoped, tag = 'scratch operand']
  %s0 = inlined_call_operand.vmem [shape: bf16[16,128], index: 0, kind: input, shape index: {}]
  %s1 = inlined_call_operand.hbm [shape: bf16[128,256], index: 1, kind: input, shape index: {}]
  %s2 = inlined_call_operand.vmem [shape: f32[1,256], index: 2, kind: input, shape index: {}]
  %s3 = inlined_call_operand.vmem [shape: bf16[16,256], index: 3, kind: output, shape index: {}]
  %s4 = sld [smem:[#allocation0]]
  $region34: #{forward.59} parent=0
    _
  %s6 = ssub.s32 1, %s4
  %s7 = scalar_select 0, %s6, %s4
  $region1: #{forward.59} parent=0
    #allocation3 [shape = 'u8[65536]{0}', space=vmem, size = 0x10000, scoped, tag = 'input window, operand 1, single buffered']
    #allocation4 [shape = 's32[1]{0}', space=sflag, size = 0x4, scoped, tag = 'scoped memory for forward.59']
    %8 = vsyncpa [#allocation4], 0
    // Predicated region
    $region2: #{forward.59} parent=1 // pred_check
      _
    $region3: #{forward.59} parent=1 // pred_check_branch
      %10 = sbr.rel (0) target = $region5
    $region4: #{forward.59} parent=1 // pred_region
      _
    $region5: #{forward.59} parent=1 // pred_fallthru
      _
    // Predicated region
    $region6: #{forward.59} parent=1 // pred_check
      _
    $region7: #{forward.59} parent=1 // pred_check_branch
      %12 = sbr.rel (0) target = $region9
    $region8: #{forward.59} parent=1 // pred_region
      %14 = vsyncadd [#allocation4], 0
      %s15 = sshll.u32 %s1, 4
      %s16 = int_to_ptr.hbm [resolvable:$true] %s15
      %s17 = sshll.u32 [#allocation3], 4
      %s18 = int_to_ptr.vmem [resolvable:$true] %s17
      %23 = dma.hbm_to_vmem [thread:$0]  %s16, 2048, %s18, [#allocation4], 128, 128, 8
    $region9: #{forward.59} parent=1 // pred_fallthru
      _
    // Predicated region
    $region10: #{forward.59} parent=1 // pred_check
      _
    $region11: #{forward.59} parent=1 // pred_check_branch
      %25 = sbr.rel (0) target = $region13
    $region12: #{forward.59} parent=1 // pred_region
      _
    $region13: #{forward.59} parent=1 // pred_fallthru
      _
    // Predicated region
    $region14: #{forward.59} parent=1 // pred_check
      _
    $region15: #{forward.59} parent=1 // pred_check_branch
      %27 = sbr.rel (0) target = $region17
    $region16: #{forward.59} parent=1 // pred_region
      %29 = dma.done [#allocation4], 2048
    $region17: #{forward.59} parent=1 // pred_fallthru
      _
    %p30 = scmp.eq.s32.totalorder 0, 0
    // Predicated region
    $region18: #{forward.59} parent=1 // pred_check
      %p31 = pneg %p30
    $region19: #{forward.59} parent=1 // pred_check_branch
      %33 = sbr.rel (%p31) target = $region21
    $region20: #{forward.59} parent=1 // pred_region
      %34 = vst [vmem:[#allocation2] sm:$0xff] 0.0
      %35 = vst [vmem:[#allocation2 + $0x8] sm:$0xff] 0.0
      %36 = vst [vmem:[#allocation2 + $0x10] sm:$0xff] 0.0
      %37 = vst [vmem:[#allocation2 + $0x18] sm:$0xff] 0.0
    $region21: #{forward.59} parent=1 // pred_fallthru
      _
    %v38 = vld [vmem:[#allocation2] sm:$0xff]
    %v39 = vld [vmem:[#allocation2 + $0x8] sm:$0xff]
    %v40 = vld [vmem:[#allocation2 + $0x10] sm:$0xff]
    %v41 = vld [vmem:[#allocation2 + $0x18] sm:$0xff]
    %v42 = vld [vmem:[%s0] sm:$0xf]
    %v43 = vld [vmem:[%s0 + $0x4] sm:$0xf]
    %v44 = vld [vmem:[#allocation3] sm:$0xff]
    %v45 = vld [vmem:[#allocation3 + $0x8] sm:$0xff]
    %v46 = vld [vmem:[#allocation3 + $0x10] sm:$0xff]
    %v47 = vld [vmem:[#allocation3 + $0x18] sm:$0xff]
    %v48 = vld [vmem:[#allocation3 + $0x20] sm:$0xff]
    %v49 = vld [vmem:[#allocation3 + $0x28] sm:$0xff]
    %v50 = vld [vmem:[#allocation3 + $0x30] sm:$0xff]
    %v51 = vld [vmem:[#allocation3 + $0x38] sm:$0xff]
    %v52 = vld [vmem:[#allocation3 + $0x40] sm:$0xff]
    %v53 = vld [vmem:[#allocation3 + $0x48] sm:$0xff]
    %v54 = vld [vmem:[#allocation3 + $0x50] sm:$0xff]
    %v55 = vld [vmem:[#allocation3 + $0x58] sm:$0xff]
    %v56 = vld [vmem:[#allocation3 + $0x60] sm:$0xff]
    %v57 = vld [vmem:[#allocation3 + $0x68] sm:$0xff]
    %v58 = vld [vmem:[#allocation3 + $0x70] sm:$0xff]
    %v59 = vld [vmem:[#allocation3 + $0x78] sm:$0xff]
    %v62 = vunpack.c.l.b16 %v42
    %v63 = vunpack.c.l.b16 %v43
    %v64 = vpack.c.b16 %v63, %v62
    %v82 = vunpack.c.l.b16 %v44
    %v83 = vunpack.c.h.b16 %v44
    %v84 = vunpack.c.l.b16 %v45
    %v85 = vunpack.c.h.b16 %v45
    %v86 = vunpack.c.l.b16 %v46
    %v87 = vunpack.c.h.b16 %v46
    %v88 = vunpack.c.l.b16 %v47
    %v89 = vunpack.c.h.b16 %v47
    %v90 = vunpack.c.l.b16 %v48
    %v91 = vunpack.c.h.b16 %v48
    %v92 = vunpack.c.l.b16 %v49
    %v93 = vunpack.c.h.b16 %v49
    %v94 = vunpack.c.l.b16 %v50
    %v95 = vunpack.c.h.b16 %v50
    %v96 = vunpack.c.l.b16 %v51
    %v97 = vunpack.c.h.b16 %v51
    %v98 = vunpack.c.l.b16 %v52
    %v99 = vunpack.c.h.b16 %v52
    %v100 = vunpack.c.l.b16 %v53
    %v101 = vunpack.c.h.b16 %v53
    %v102 = vunpack.c.l.b16 %v54
    %v103 = vunpack.c.h.b16 %v54
    %v104 = vunpack.c.l.b16 %v55
    %v105 = vunpack.c.h.b16 %v55
    %v106 = vunpack.c.l.b16 %v56
    %v107 = vunpack.c.h.b16 %v56
    %v108 = vunpack.c.l.b16 %v57
    %v109 = vunpack.c.h.b16 %v57
    %v110 = vunpack.c.l.b16 %v58
    %v111 = vunpack.c.h.b16 %v58
    %v112 = vunpack.c.l.b16 %v59
    %v113 = vunpack.c.h.b16 %v59
    %v114 = vpack.c.b16 %v84, %v82
    %v115 = vpack.c.b16 %v85, %v83
    %v116 = vpack.c.b16 %v88, %v86
    %v117 = vpack.c.b16 %v89, %v87
    %v118 = vpack.c.b16 %v92, %v90
    %v119 = vpack.c.b16 %v93, %v91
    %v120 = vpack.c.b16 %v96, %v94
    %v121 = vpack.c.b16 %v97, %v95
    %v122 = vpack.c.b16 %v100, %v98
    %v123 = vpack.c.b16 %v101, %v99
    %v124 = vpack.c.b16 %v104, %v102
    %v125 = vpack.c.b16 %v105, %v103
    %v126 = vpack.c.b16 %v108, %v106
    %v127 = vpack.c.b16 %v109, %v107
    %v128 = vpack.c.b16 %v112, %v110
    %v129 = vpack.c.b16 %v113, %v111
    %146 = vmatpush.bf16.msra.mxu0 %v128
    %147 = vmatpush.bf16.msra.mxu0 %v126
    %148 = vmatpush.bf16.msra.mxu0 %v124
    %149 = vmatpush.bf16.msra.mxu0 %v122
    %150 = vmatpush.bf16.msra.mxu0 %v120
    %151 = vmatpush.bf16.msra.mxu0 %v118
    %152 = vmatpush.bf16.msra.mxu0 %v116
    %153 = vmatpush.bf16.msra.mxu0 %v114
    %154 = vmatmul.bf16.gmra.mxu0 %v64
    %v155 = vpop.f32.mrf.mxu0
    %v156 = vadd.f32 0.0, %v155
    %v157 = vpop.f32.mrf.mxu0
    %v158 = vadd.f32 0.0, %v157
    %159 = vdwg.mxu0
    %160 = vmatpush.bf16.msra.mxu0 %v129
    %161 = vmatpush.bf16.msra.mxu0 %v127
    %162 = vmatpush.bf16.msra.mxu0 %v125
    %163 = vmatpush.bf16.msra.mxu0 %v123
    %164 = vmatpush.bf16.msra.mxu0 %v121
    %165 = vmatpush.bf16.msra.mxu0 %v119
    %166 = vmatpush.bf16.msra.mxu0 %v117
    %167 = vmatpush.bf16.msra.mxu0 %v115
    %168 = vmatmul.bf16.gmra.mxu0 %v64
    %v169 = vpop.f32.mrf.mxu0
    %v170 = vadd.f32 0.0, %v169
    %v171 = vpop.f32.mrf.mxu0
    %v172 = vadd.f32 0.0, %v171
    %173 = vdwg.mxu0
    %v174 = vadd.f32 %v38, %v156
    %v175 = vadd.f32 %v39, %v170
    %v176 = vadd.f32 %v40, %v158
    %v177 = vadd.f32 %v41, %v172
    %178 = vst [vmem:[#allocation2] sm:$0xff] %v174
    %179 = vst [vmem:[#allocation2 + $0x8] sm:$0xff] %v175
    %180 = vst [vmem:[#allocation2 + $0x10] sm:$0xff] %v176
    %181 = vst [vmem:[#allocation2 + $0x18] sm:$0xff] %v177
    // Predicated region
    $region22: #{forward.59} parent=1 // pred_check
      %p182 = pneg %p30
    $region23: #{forward.59} parent=1 // pred_check_branch
      %184 = sbr.rel (%p182) target = $region25
    $region24: #{forward.59} parent=1 // pred_region
      %v185 = vld [vmem:[#allocation2] sm:$0xff]
      %v186 = vld [vmem:[#allocation2 + $0x8] sm:$0xff]
      %v187 = vld [vmem:[#allocation2 + $0x10] sm:$0xff]
      %v188 = vld [vmem:[#allocation2 + $0x18] sm:$0xff]
      %v189 = vld [vmem:[%s2] sm:$0x3]
      %v191 = vperm.slane %v189, 0
      %v192 = vperm.slane %v189, 1
      %v195 = vadd.f32 %v185, %v191
      %v196 = vadd.f32 %v186, %v192
      %v197 = vadd.f32 %v187, %v191
      %v198 = vadd.f32 %v188, %v192
      %v199 = vpack.c.bf16 %v196, %v195
      %v200 = vpack.c.bf16 %v198, %v197
      %201 = vst [vmem:[%s3] sm:$0xff] %v199
      %202 = vst [vmem:[%s3 + $0x8] sm:$0xff] %v200
    $region25: #{forward.59} parent=1 // pred_fallthru
      _
    // Predicated region
    $region26: #{forward.59} parent=1 // pred_check
      _
    $region27: #{forward.59} parent=1 // pred_check_branch
      %204 = sbr.rel (0) target = $region29
    $region28: #{forward.59} parent=1 // pred_region
      _
    $region29: #{forward.59} parent=1 // pred_fallthru
      _
    // Predicated region
    $region30: #{forward.59} parent=1 // pred_check
      _
    $region31: #{forward.59} parent=1 // pred_check_branch
      %206 = sbr.rel (0) target = $region33
    $region32: #{forward.59} parent=1 // pred_region
      _
    $region33: #{forward.59} parent=1 // pred_fallthru
      _
    %207 = vsyncpa [#allocation4], 1

// kernel: forward.52
$region0: #{forward.52}
  #allocation0 [shape = 'u32[]', space=smem, size = 0x4, offset = 0x4, fixed_abs, tag = 'smem constant byte address 0x4 - core index']
  #allocation1 [shape = 'u32[72,128]{1,0:T(1,128)}', space=vmem, size = 0x9000, scoped, tag = 'internal scratch']
  #allocation2 [shape = 'f32[16,128]{1,0:T(8,128)}', space=vmem, size = 0x2000, scoped, tag = 'scratch operand']
  %s0 = inlined_call_operand.vmem [shape: bf16[16,256], index: 0, kind: input, shape index: {}]
  %s1 = inlined_call_operand.hbm [shape: bf16[256,128], index: 1, kind: input, shape index: {}]
  %s2 = inlined_call_operand.vmem [shape: f32[1,128], index: 2, kind: input, shape index: {}]
  %s3 = inlined_call_operand.vmem [shape: bf16[16,128], index: 3, kind: input, shape index: {}]
  %s4 = inlined_call_operand.vmem [shape: bf16[16,128], index: 4, kind: output, shape index: {}]
  %s5 = sld [smem:[#allocation0]]
  $region38: #{forward.52} parent=0
    _
  %s7 = ssub.s32 1, %s5
  %s8 = scalar_select 0, %s7, %s5
  $region1: #{forward.52} parent=0
    #allocation3 [shape = 'u8[65536]{0}', space=vmem, size = 0x10000, scoped, tag = 'input window, operand 1, single buffered']
    #allocation4 [shape = 's32[1]{0}', space=sflag, size = 0x4, scoped, tag = 'scoped memory for forward.52']
    %9 = vsyncpa [#allocation4], 0
    // Predicated region
    $region2: #{forward.52} parent=1 // pred_check
      _
    $region3: #{forward.52} parent=1 // pred_check_branch
      %11 = sbr.rel (0) target = $region5
    $region4: #{forward.52} parent=1 // pred_region
      _
    $region5: #{forward.52} parent=1 // pred_fallthru
      _
    // Predicated region
    $region6: #{forward.52} parent=1 // pred_check
      _
    $region7: #{forward.52} parent=1 // pred_check_branch
      %13 = sbr.rel (0) target = $region9
    $region8: #{forward.52} parent=1 // pred_region
      %15 = vsyncadd [#allocation4], 0
      %s16 = sshll.u32 %s1, 4
      %s17 = int_to_ptr.hbm [resolvable:$true] %s16
      %s18 = sshll.u32 [#allocation3], 4
      %s19 = int_to_ptr.vmem [resolvable:$true] %s18
      %24 = dma.hbm_to_vmem [thread:$0]  %s17, 2048, %s19, [#allocation4], 64, 64, 4
    $region9: #{forward.52} parent=1 // pred_fallthru
      _
    // Predicated region
    $region10: #{forward.52} parent=1 // pred_check
      _
    $region11: #{forward.52} parent=1 // pred_check_branch
      %26 = sbr.rel (0) target = $region13
    $region12: #{forward.52} parent=1 // pred_region
      _
    $region13: #{forward.52} parent=1 // pred_fallthru
      _
    // Predicated region
    $region14: #{forward.52} parent=1 // pred_check
      _
    $region15: #{forward.52} parent=1 // pred_check_branch
      %28 = sbr.rel (0) target = $region17
    $region16: #{forward.52} parent=1 // pred_region
      _
    $region17: #{forward.52} parent=1 // pred_fallthru
      _
    // Predicated region
    $region18: #{forward.52} parent=1 // pred_check
      _
    $region19: #{forward.52} parent=1 // pred_check_branch
      %30 = sbr.rel (0) target = $region21
    $region20: #{forward.52} parent=1 // pred_region
      %32 = dma.done [#allocation4], 2048
    $region21: #{forward.52} parent=1 // pred_fallthru
      _
    %p33 = scmp.eq.s32.totalorder 0, 0
    // Predicated region
    $region22: #{forward.52} parent=1 // pred_check
      %p34 = pneg %p33
    $region23: #{forward.52} parent=1 // pred_check_branch
      %36 = sbr.rel (%p34) target = $region25
    $region24: #{forward.52} parent=1 // pred_region
      %37 = vst [vmem:[#allocation2] sm:$0xff] 0.0
      %38 = vst [vmem:[#allocation2 + $0x8] sm:$0xff] 0.0
    $region25: #{forward.52} parent=1 // pred_fallthru
      _
    %v39 = vld [vmem:[#allocation2] sm:$0xff]
    %v40 = vld [vmem:[#allocation2 + $0x8] sm:$0xff]
    %v41 = vld [vmem:[%s0] sm:$0xff]
    %v42 = vld [vmem:[%s0 + $0x8] sm:$0xff]
    %v43 = vld [vmem:[#allocation3] sm:$0xf]
    %v44 = vld [vmem:[#allocation3 + $0x4] sm:$0xf]
    %v45 = vld [vmem:[#allocation3 + $0x8] sm:$0xf]
    %v46 = vld [vmem:[#allocation3 + $0xc] sm:$0xf]
    %v47 = vld [vmem:[#allocation3 + $0x10] sm:$0xf]
    %v48 = vld [vmem:[#allocation3 + $0x14] sm:$0xf]
    %v49 = vld [vmem:[#allocation3 + $0x18] sm:$0xf]
    %v50 = vld [vmem:[#allocation3 + $0x1c] sm:$0xf]
    %v51 = vld [vmem:[#allocation3 + $0x20] sm:$0xf]
    %v52 = vld [vmem:[#allocation3 + $0x24] sm:$0xf]
    %v53 = vld [vmem:[#allocation3 + $0x28] sm:$0xf]
    %v54 = vld [vmem:[#allocation3 + $0x2c] sm:$0xf]
    %v55 = vld [vmem:[#allocation3 + $0x30] sm:$0xf]
    %v56 = vld [vmem:[#allocation3 + $0x34] sm:$0xf]
    %v57 = vld [vmem:[#allocation3 + $0x38] sm:$0xf]
    %v58 = vld [vmem:[#allocation3 + $0x3c] sm:$0xf]
    %v59 = vld [vmem:[#allocation3 + $0x40] sm:$0xf]
    %v60 = vld [vmem:[#allocation3 + $0x44] sm:$0xf]
    %v61 = vld [vmem:[#allocation3 + $0x48] sm:$0xf]
    %v62 = vld [vmem:[#allocation3 + $0x4c] sm:$0xf]
    %v63 = vld [vmem:[#allocation3 + $0x50] sm:$0xf]
    %v64 = vld [vmem:[#allocation3 + $0x54] sm:$0xf]
    %v65 = vld [vmem:[#allocation3 + $0x58] sm:$0xf]
    %v66 = vld [vmem:[#allocation3 + $0x5c] sm:$0xf]
    %v67 = vld [vmem:[#allocation3 + $0x60] sm:$0xf]
    %v68 = vld [vmem:[#allocation3 + $0x64] sm:$0xf]
    %v69 = vld [vmem:[#allocation3 + $0x68] sm:$0xf]
    %v70 = vld [vmem:[#allocation3 + $0x6c] sm:$0xf]
    %v71 = vld [vmem:[#allocation3 + $0x70] sm:$0xf]
    %v72 = vld [vmem:[#allocation3 + $0x74] sm:$0xf]
    %v73 = vld [vmem:[#allocation3 + $0x78] sm:$0xf]
    %v74 = vld [vmem:[#allocation3 + $0x7c] sm:$0xf]
    %v77 = vunpack.c.l.b16 %v41
    %v78 = vunpack.c.h.b16 %v41
    %v79 = vunpack.c.l.b16 %v42
    %v80 = vunpack.c.h.b16 %v42
    %v81 = vpack.c.b16 %v79, %v77
    %v82 = vpack.c.b16 %v80, %v78
    %v117 = vunpack.c.l.b16 %v43
    %v118 = vunpack.c.l.b16 %v44
    %v119 = vunpack.c.l.b16 %v45
    %v120 = vunpack.c.l.b16 %v46
    %v121 = vunpack.c.l.b16 %v47
    %v122 = vunpack.c.l.b16 %v48
    %v123 = vunpack.c.l.b16 %v49
    %v124 = vunpack.c.l.b16 %v50
    %v125 = vunpack.c.l.b16 %v51
    %v126 = vunpack.c.l.b16 %v52
    %v127 = vunpack.c.l.b16 %v53
    %v128 = vunpack.c.l.b16 %v54
    %v129 = vunpack.c.l.b16 %v55
    %v130 = vunpack.c.l.b16 %v56
    %v131 = vunpack.c.l.b16 %v57
    %v132 = vunpack.c.l.b16 %v58
    %v133 = vunpack.c.l.b16 %v59
    %v134 = vunpack.c.l.b16 %v60
    %v135 = vunpack.c.l.b16 %v61
    %v136 = vunpack.c.l.b16 %v62
    %v137 = vunpack.c.l.b16 %v63
    %v138 = vunpack.c.l.b16 %v64
    %v139 = vunpack.c.l.b16 %v65
    %v140 = vunpack.c.l.b16 %v66
    %v141 = vunpack.c.l.b16 %v67
    %v142 = vunpack.c.l.b16 %v68
    %v143 = vunpack.c.l.b16 %v69
    %v144 = vunpack.c.l.b16 %v70
    %v145 = vunpack.c.l.b16 %v71
    %v146 = vunpack.c.l.b16 %v72
    %v147 = vunpack.c.l.b16 %v73
    %v148 = vunpack.c.l.b16 %v74
    %v149 = vpack.c.b16 %v118, %v117
    %v150 = vpack.c.b16 %v120, %v119
    %v151 = vpack.c.b16 %v122, %v121
    %v152 = vpack.c.b16 %v124, %v123
    %v153 = vpack.c.b16 %v126, %v125
    %v154 = vpack.c.b16 %v128, %v127
    %v155 = vpack.c.b16 %v130, %v129
    %v156 = vpack.c.b16 %v132, %v131
    %v157 = vpack.c.b16 %v134, %v133
    %v158 = vpack.c.b16 %v136, %v135
    %v159 = vpack.c.b16 %v138, %v137
    %v160 = vpack.c.b16 %v140, %v139
    %v161 = vpack.c.b16 %v142, %v141
    %v162 = vpack.c.b16 %v144, %v143
    %v163 = vpack.c.b16 %v146, %v145
    %v164 = vpack.c.b16 %v148, %v147
    %181 = vmatpush.bf16.msra.mxu0 %v156
    %182 = vmatpush.bf16.msra.mxu0 %v155
    %183 = vmatpush.bf16.msra.mxu0 %v154
    %184 = vmatpush.bf16.msra.mxu0 %v153
    %185 = vmatpush.bf16.msra.mxu0 %v152
    %186 = vmatpush.bf16.msra.mxu0 %v151
    %187 = vmatpush.bf16.msra.mxu0 %v150
    %188 = vmatpush.bf16.msra.mxu0 %v149
    %189 = vmatmul.bf16.gmra.mxu0 %v81
    %v190 = vpop.f32.mrf.mxu0
    %v191 = vadd.f32 0.0, %v190
    %v192 = vpop.f32.mrf.mxu0
    %v193 = vadd.f32 0.0, %v192
    %194 = vdwg.mxu0
    %195 = vmatpush.bf16.msra.mxu0 %v164
    %196 = vmatpush.bf16.msra.mxu0 %v163
    %197 = vmatpush.bf16.msra.mxu0 %v162
    %198 = vmatpush.bf16.msra.mxu0 %v161
    %199 = vmatpush.bf16.msra.mxu0 %v160
    %200 = vmatpush.bf16.msra.mxu0 %v159
    %201 = vmatpush.bf16.msra.mxu0 %v158
    %202 = vmatpush.bf16.msra.mxu0 %v157
    %203 = vmatmul.bf16.gmra.mxu0 %v82
    %v204 = vpop.f32.mrf.mxu0
    %v205 = vadd.f32 %v191, %v204
    %v206 = vpop.f32.mrf.mxu0
    %v207 = vadd.f32 %v193, %v206
    %208 = vdwg.mxu0
    %v209 = vadd.f32 %v39, %v205
    %v210 = vadd.f32 %v40, %v207
    %211 = vst [vmem:[#allocation2] sm:$0xff] %v209
    %212 = vst [vmem:[#allocation2 + $0x8] sm:$0xff] %v210
    // Predicated region
    $region26: #{forward.52} parent=1 // pred_check
      %p213 = pneg %p33
    $region27: #{forward.52} parent=1 // pred_check_branch
      %215 = sbr.rel (%p213) target = $region29
    $region28: #{forward.52} parent=1 // pred_region
      %v216 = vld [vmem:[#allocation2] sm:$0xff]
      %v217 = vld [vmem:[#allocation2 + $0x8] sm:$0xff]
      %v218 = vld [vmem:[%s2] sm:$0x1]
      %v220 = vperm.slane %v218, 0
      %v222 = vadd.f32 %v216, %v220
      %v223 = vadd.f32 %v217, %v220
      %v224 = vld [vmem:[%s3] sm:$0xf]
      %v225 = vld [vmem:[%s3 + $0x4] sm:$0xf]
      %v226 = vunpack.c.l.bf16 %v224
      %v227 = vunpack.c.l.bf16 %v225
      %v228 = vadd.f32 %v222, %v226
      %v229 = vadd.f32 %v223, %v227
      %v230 = vpack.c.bf16 %v228, %v228
      %v231 = vpack.c.bf16 %v229, %v229
      %232 = vst [vmem:[%s4] sm:$0xf] %v230
      %233 = vst [vmem:[%s4 + $0x4] sm:$0xf] %v231
    $region29: #{forward.52} parent=1 // pred_fallthru
      _
    // Predicated region
    $region30: #{forward.52} parent=1 // pred_check
      _
    $region31: #{forward.52} parent=1 // pred_check_branch
      %235 = sbr.rel (0) target = $region33
    $region32: #{forward.52} parent=1 // pred_region
      _
    $region33: #{forward.52} parent=1 // pred_fallthru
      _
    // Predicated region
    $region34: #{forward.52} parent=1 // pred_check
      _
    $region35: #{forward.52} parent=1 // pred_check_branch
      %237 = sbr.rel (0) target = $region37
    $region36: #{forward.52} parent=1 // pred_region
      _
    $region37: #{forward.52} parent=1 // pred_fallthru
      _
    %238 = vsyncpa [#allocation4], 1

// kernel: forward.78
$region0: #{forward.78}
  #allocation0 [shape = 'u32[]', space=smem, size = 0x4, offset = 0x4, fixed_abs, tag = 'smem constant byte address 0x4 - core index']
  #allocation1 [shape = 'u32[72,128]{1,0:T(1,128)}', space=vmem, size = 0x9000, scoped, tag = 'internal scratch']
  #allocation2 [shape = 'f32[16,128]{1,0:T(8,128)}', space=vmem, size = 0x2000, scoped, tag = 'scratch operand']
  %s0 = inlined_call_operand.vmem [shape: bf16[16,128], index: 0, kind: input, shape index: {}]
  %s1 = inlined_call_operand.hbm [shape: bf16[128,128], index: 1, kind: input, shape index: {}]
  %s2 = inlined_call_operand.vmem [shape: f32[1,128], index: 2, kind: input, shape index: {}]
  %s3 = inlined_call_operand.vmem [shape: bf16[16,128], index: 3, kind: output, shape index: {}]
  %s4 = sld [smem:[#allocation0]]
  $region34: #{forward.78} parent=0
    _
  %s6 = ssub.s32 1, %s4
  %s7 = scalar_select 0, %s6, %s4
  $region1: #{forward.78} parent=0
    #allocation3 [shape = 'u8[32768]{0}', space=vmem, size = 0x8000, scoped, tag = 'input window, operand 1, single buffered']
    #allocation4 [shape = 's32[1]{0}', space=sflag, size = 0x4, scoped, tag = 'scoped memory for forward.78']
    %8 = vsyncpa [#allocation4], 0
    // Predicated region
    $region2: #{forward.78} parent=1 // pred_check
      _
    $region3: #{forward.78} parent=1 // pred_check_branch
      %10 = sbr.rel (0) target = $region5
    $region4: #{forward.78} parent=1 // pred_region
      _
    $region5: #{forward.78} parent=1 // pred_fallthru
      _
    // Predicated region
    $region6: #{forward.78} parent=1 // pred_check
      _
    $region7: #{forward.78} parent=1 // pred_check_branch
      %12 = sbr.rel (0) target = $region9
    $region8: #{forward.78} parent=1 // pred_region
      %14 = vsyncadd [#allocation4], 0
      %s15 = sshll.u32 %s1, 4
      %s16 = int_to_ptr.hbm [resolvable:$true] %s15
      %s17 = sshll.u32 [#allocation3], 4
      %s18 = int_to_ptr.vmem [resolvable:$true] %s17
      %23 = dma.hbm_to_vmem [thread:$0]  %s16, 1024, %s18, [#allocation4], 64, 64, 4
    $region9: #{forward.78} parent=1 // pred_fallthru
      _
    // Predicated region
    $region10: #{forward.78} parent=1 // pred_check
      _
    $region11: #{forward.78} parent=1 // pred_check_branch
      %25 = sbr.rel (0) target = $region13
    $region12: #{forward.78} parent=1 // pred_region
      _
    $region13: #{forward.78} parent=1 // pred_fallthru
      _
    // Predicated region
    $region14: #{forward.78} parent=1 // pred_check
      _
    $region15: #{forward.78} parent=1 // pred_check_branch
      %27 = sbr.rel (0) target = $region17
    $region16: #{forward.78} parent=1 // pred_region
      %29 = dma.done [#allocation4], 1024
    $region17: #{forward.78} parent=1 // pred_fallthru
      _
    %p30 = scmp.eq.s32.totalorder 0, 0
    // Predicated region
    $region18: #{forward.78} parent=1 // pred_check
      %p31 = pneg %p30
    $region19: #{forward.78} parent=1 // pred_check_branch
      %33 = sbr.rel (%p31) target = $region21
    $region20: #{forward.78} parent=1 // pred_region
      %34 = vst [vmem:[#allocation2] sm:$0xff] 0.0
      %35 = vst [vmem:[#allocation2 + $0x8] sm:$0xff] 0.0
    $region21: #{forward.78} parent=1 // pred_fallthru
      _
    %v36 = vld [vmem:[#allocation2] sm:$0xff]
    %v37 = vld [vmem:[#allocation2 + $0x8] sm:$0xff]
    %v38 = vld [vmem:[%s0] sm:$0xf]
    %v39 = vld [vmem:[%s0 + $0x4] sm:$0xf]
    %v40 = vld [vmem:[#allocation3] sm:$0xf]
    %v41 = vld [vmem:[#allocation3 + $0x4] sm:$0xf]
    %v42 = vld [vmem:[#allocation3 + $0x8] sm:$0xf]
    %v43 = vld [vmem:[#allocation3 + $0xc] sm:$0xf]
    %v44 = vld [vmem:[#allocation3 + $0x10] sm:$0xf]
    %v45 = vld [vmem:[#allocation3 + $0x14] sm:$0xf]
    %v46 = vld [vmem:[#allocation3 + $0x18] sm:$0xf]
    %v47 = vld [vmem:[#allocation3 + $0x1c] sm:$0xf]
    %v48 = vld [vmem:[#allocation3 + $0x20] sm:$0xf]
    %v49 = vld [vmem:[#allocation3 + $0x24] sm:$0xf]
    %v50 = vld [vmem:[#allocation3 + $0x28] sm:$0xf]
    %v51 = vld [vmem:[#allocation3 + $0x2c] sm:$0xf]
    %v52 = vld [vmem:[#allocation3 + $0x30] sm:$0xf]
    %v53 = vld [vmem:[#allocation3 + $0x34] sm:$0xf]
    %v54 = vld [vmem:[#allocation3 + $0x38] sm:$0xf]
    %v55 = vld [vmem:[#allocation3 + $0x3c] sm:$0xf]
    %v58 = vunpack.c.l.b16 %v38
    %v59 = vunpack.c.l.b16 %v39
    %v60 = vpack.c.b16 %v59, %v58
    %v78 = vunpack.c.l.b16 %v40
    %v79 = vunpack.c.l.b16 %v41
    %v80 = vunpack.c.l.b16 %v42
    %v81 = vunpack.c.l.b16 %v43
    %v82 = vunpack.c.l.b16 %v44
    %v83 = vunpack.c.l.b16 %v45
    %v84 = vunpack.c.l.b16 %v46
    %v85 = vunpack.c.l.b16 %v47
    %v86 = vunpack.c.l.b16 %v48
    %v87 = vunpack.c.l.b16 %v49
    %v88 = vunpack.c.l.b16 %v50
    %v89 = vunpack.c.l.b16 %v51
    %v90 = vunpack.c.l.b16 %v52
    %v91 = vunpack.c.l.b16 %v53
    %v92 = vunpack.c.l.b16 %v54
    %v93 = vunpack.c.l.b16 %v55
    %v94 = vpack.c.b16 %v79, %v78
    %v95 = vpack.c.b16 %v81, %v80
    %v96 = vpack.c.b16 %v83, %v82
    %v97 = vpack.c.b16 %v85, %v84
    %v98 = vpack.c.b16 %v87, %v86
    %v99 = vpack.c.b16 %v89, %v88
    %v100 = vpack.c.b16 %v91, %v90
    %v101 = vpack.c.b16 %v93, %v92
    %110 = vmatpush.bf16.msra.mxu0 %v101
    %111 = vmatpush.bf16.msra.mxu0 %v100
    %112 = vmatpush.bf16.msra.mxu0 %v99
    %113 = vmatpush.bf16.msra.mxu0 %v98
    %114 = vmatpush.bf16.msra.mxu0 %v97
    %115 = vmatpush.bf16.msra.mxu0 %v96
    %116 = vmatpush.bf16.msra.mxu0 %v95
    %117 = vmatpush.bf16.msra.mxu0 %v94
    %118 = vmatmul.bf16.gmra.mxu0 %v60
    %v119 = vpop.f32.mrf.mxu0
    %v120 = vadd.f32 0.0, %v119
    %v121 = vpop.f32.mrf.mxu0
    %v122 = vadd.f32 0.0, %v121
    %123 = vdwg.mxu0
    %v124 = vadd.f32 %v36, %v120
    %v125 = vadd.f32 %v37, %v122
    %126 = vst [vmem:[#allocation2] sm:$0xff] %v124
    %127 = vst [vmem:[#allocation2 + $0x8] sm:$0xff] %v125
    // Predicated region
    $region22: #{forward.78} parent=1 // pred_check
      %p128 = pneg %p30
    $region23: #{forward.78} parent=1 // pred_check_branch
      %130 = sbr.rel (%p128) target = $region25
    $region24: #{forward.78} parent=1 // pred_region
      %v131 = vld [vmem:[#allocation2] sm:$0xff]
      %v132 = vld [vmem:[#allocation2 + $0x8] sm:$0xff]
      %v133 = vld [vmem:[%s2] sm:$0x1]
      %v135 = vperm.slane %v133, 0
      %v137 = vadd.f32 %v131, %v135
      %v138 = vadd.f32 %v132, %v135
      %v139 = vmax.f32 %v137, 0.0
      %v140 = vmax.f32 %v138, 0.0
      %v141 = vpack.c.bf16 %v139, %v139
      %v142 = vpack.c.bf16 %v140, %v140
      %143 = vst [vmem:[%s3] sm:$0xf] %v141
      %144 = vst [vmem:[%s3 + $0x4] sm:$0xf] %v142
    $region25: #{forward.78} parent=1 // pred_fallthru
      _
    // Predicated region
    $region26: #{forward.78} parent=1 // pred_check
      _
    $region27: #{forward.78} parent=1 // pred_check_branch
      %146 = sbr.rel (0) target = $region29
    $region28: #{forward.78} parent=1 // pred_region
      _
    $region29: #{forward.78} parent=1 // pred_fallthru
      _
    // Predicated region
    $region30: #{forward.78} parent=1 // pred_check
      _
    $region31: #{forward.78} parent=1 // pred_check_branch
      %148 = sbr.rel (0) target = $region33
    $region32: #{forward.78} parent=1 // pred_region
      _
    $region33: #{forward.78} parent=1 // pred_fallthru
      _
    %149 = vsyncpa [#allocation4], 1

// kernel: forward.60
$region0: #{forward.60}
  #allocation0 [shape = 'u32[]', space=smem, size = 0x4, offset = 0x4, fixed_abs, tag = 'smem constant byte address 0x4 - core index']
  #allocation1 [shape = 'u32[72,128]{1,0:T(1,128)}', space=vmem, size = 0x9000, scoped, tag = 'internal scratch']
  #allocation2 [shape = 'f32[4,8,1]{2,1,0:T(8,128)}', space=vmem, size = 0x4000, scoped, tag = 'scratch operand']
  #allocation3 [shape = 'f32[4,8,1]{2,1,0:T(8,128)}', space=vmem, size = 0x4000, scoped, tag = 'scratch operand']
  #allocation4 [shape = 'f32[4,8,32]{2,1,0:T(8,128)}', space=vmem, size = 0x4000, scoped, tag = 'scratch operand']
  %s0 = inlined_call_operand.vmem [shape: bf16[2,8,128], index: 0, kind: input, shape index: {}]
  %s1 = inlined_call_operand.vmem [shape: bf16[2,8,256], index: 1, kind: input, shape index: {}, may-alias: {1,2}]
  %s2 = inlined_call_operand.vmem [shape: bf16[2,8,256], index: 2, kind: input, shape index: {}, may-alias: {1,2}]
  %s3 = inlined_call_operand.vmem [shape: f32[2,1,8], index: 3, kind: input, shape index: {}]
  %s4 = inlined_call_operand.vmem [shape: bf16[2,8,128], index: 4, kind: output, shape index: {}]
  %s5 = sld [smem:[#allocation0]]
  $region57: #{forward.60} parent=0
    _
  %s7 = ssub.s32 1, %s5
  %s8 = scalar_select 0, %s7, %s5
  loop: start=0, step=1, limit=4
  $region2: #{forward.60} parent=0 // loop_pre_header
    _
  $region3: #{forward.60} parent=0 // loop_header
    %s10 = sphi 0, %s14
    %p11 = scmp.ge.s32.totalorder %s10, 4
    %s17 = sphi 0, %s36
    %s18 = sphi 0, %s32
    %s19 = sphi 0, %s28
    %s20 = sphi 0, %s17
    %s21 = sphi 0, %s18
    %s22 = sphi 0, %s19
    %s23 = sphi 0, %s20
    %s24 = sphi 0, %s21
    %s25 = sphi 0, %s22
    %s41 = sphi 0, %s43
    %s44 = sphi 0, %s41
    %s45 = sphi 0, %s44
    %s61 = sphi 0, %s45
    %s69 = sphi 0, %s71
    %s72 = sphi 0, %s69
    %s73 = sphi 0, %s72
    %s89 = sphi 0, %s73
    %s97 = sphi 0, %s99
    %s100 = sphi 0, %s97
    %s101 = sphi 0, %s100
    %s117 = sphi 0, %s101
    %s125 = sphi 0, %s127
    %s128 = sphi 0, %s125
    %s129 = sphi 0, %s128
    %s145 = sphi 0, %s129
    %s153 = sphi 0, %s155
    %s156 = sphi 0, %s153
    %s157 = sphi 0, %s156
    %s173 = sphi 0, %s157
  $region4: #{forward.60} parent=0 // loop_header_branch
    %13 = sbr.rel (%p11) target = $region8
  $region5: #{forward.60} parent=0 // loop_body
    %s15 = ssub.s32 %s10, 1
    %s16 = ssub.s32 %s10, 2
    %s26 = sadd.s32 1, %s19
    %p27 = scmp.ge.s32.totalorder %s26, 1
    %s28 = scalar_select %p27, 0, %s26
    %s29 = sadd.s32 1, %s18
    %s30 = scalar_select %p27, %s29, %s18
    %p31 = scmp.ge.s32.totalorder %s30, 1
    %s32 = scalar_select %p31, 0, %s30
    %s33 = sadd.s32 1, %s17
    %s34 = scalar_select %p31, %s33, %s17
    %p35 = scmp.ge.s32.totalorder %s34, 2
    %s36 = scalar_select %p35, 0, %s34
    %s37 = ssub.s32 %s17, %s36
    %s38 = ssub.s32 %s18, %s32
    %s39 = sor.u32 %s37, %s38
    %p40 = scmp.eq.s32.totalorder %s39, 0
    %s42 = sadd.s32 %s41, 1
    %s43 = scalar_select %p40, %s41, %s42
    %p46 = pneg %p40
    %p47 = scmp.eq.s32.totalorder %s10, 1
    %p48 = por %p46, %p47
    %p49 = scmp.ne.s32.totalorder %s41, %s44
    %p50 = scmp.eq.s32.totalorder %s10, 0
    %p51 = por %p49, %p50
    %p52 = scmp.ne.s32.totalorder %s41, %s44
    %p53 = scmp.eq.s32.totalorder %s15, 1
    %p54 = por %p52, %p53
    %p55 = scmp.ne.s32.totalorder %s44, %s45
    %p56 = scmp.eq.s32.totalorder %s15, 0
    %p57 = por %p55, %p56
    %p58 = scmp.ne.s32.totalorder %s44, %s45
    %p59 = scmp.eq.s32.totalorder %s16, 1
    %p60 = por %p58, %p59
    %p62 = scmp.ne.s32.totalorder %s45, %s61
    %p63 = scmp.eq.s32.totalorder %s16, 0
    %p64 = por %p62, %p63
    %s65 = ssub.s32 %s17, %s36
    %s66 = ssub.s32 %s19, %s28
    %s67 = sor.u32 %s65, %s66
    %p68 = scmp.eq.s32.totalorder %s67, 0
    %s70 = sadd.s32 %s69, 1
    %s71 = scalar_select %p68, %s69, %s70
    %p74 = pneg %p68
    %p75 = scmp.eq.s32.totalorder %s10, 1
    %p76 = por %p74, %p75
    %p77 = scmp.ne.s32.totalorder %s69, %s72
    %p78 = scmp.eq.s32.totalorder %s10, 0
    %p79 = por %p77, %p78
    %p80 = scmp.ne.s32.totalorder %s69, %s72
    %p81 = scmp.eq.s32.totalorder %s15, 1
    %p82 = por %p80, %p81
    %p83 = scmp.ne.s32.totalorder %s72, %s73
    %p84 = scmp.eq.s32.totalorder %s15, 0
    %p85 = por %p83, %p84
    %p86 = scmp.ne.s32.totalorder %s72, %s73
    %p87 = scmp.eq.s32.totalorder %s16, 1
    %p88 = por %p86, %p87
    %p90 = scmp.ne.s32.totalorder %s73, %s89
    %p91 = scmp.eq.s32.totalorder %s16, 0
    %p92 = por %p90, %p91
    %s93 = ssub.s32 %s17, %s36
    %s94 = ssub.s32 %s19, %s28
    %s95 = sor.u32 %s93, %s94
    %p96 = scmp.eq.s32.totalorder %s95, 0
    %s98 = sadd.s32 %s97, 1
    %s99 = scalar_select %p96, %s97, %s98
    %p102 = pneg %p96
    %p103 = scmp.eq.s32.totalorder %s10, 1
    %p104 = por %p102, %p103
    %p105 = scmp.ne.s32.totalorder %s97, %s100
    %p106 = scmp.eq.s32.totalorder %s10, 0
    %p107 = por %p105, %p106
    %p108 = scmp.ne.s32.totalorder %s97, %s100
    %p109 = scmp.eq.s32.totalorder %s15, 1
    %p110 = por %p108, %p109
    %p111 = scmp.ne.s32.totalorder %s100, %s101
    %p112 = scmp.eq.s32.totalorder %s15, 0
    %p113 = por %p111, %p112
    %p114 = scmp.ne.s32.totalorder %s100, %s101
    %p115 = scmp.eq.s32.totalorder %s16, 1
    %p116 = por %p114, %p115
    %p118 = scmp.ne.s32.totalorder %s101, %s117
    %p119 = scmp.eq.s32.totalorder %s16, 0
    %p120 = por %p118, %p119
    %s121 = ssub.s32 %s17, %s36
    %s122 = ssub.s32 %s19, %s28
    %s123 = sor.u32 %s121, %s122
    %p124 = scmp.eq.s32.totalorder %s123, 0
    %s126 = sadd.s32 %s125, 1
    %s127 = scalar_select %p124, %s125, %s126
    %p130 = pneg %p124
    %p131 = scmp.eq.s32.totalorder %s10, 1
    %p132 = por %p130, %p131
    %p133 = scmp.ne.s32.totalorder %s125, %s128
    %p134 = scmp.eq.s32.totalorder %s10, 0
    %p135 = por %p133, %p134
    %p136 = scmp.ne.s32.totalorder %s125, %s128
    %p137 = scmp.eq.s32.totalorder %s15, 1
    %p138 = por %p136, %p137
    %p139 = scmp.ne.s32.totalorder %s128, %s129
    %p140 = scmp.eq.s32.totalorder %s15, 0
    %p141 = por %p139, %p140
    %p142 = scmp.ne.s32.totalorder %s128, %s129
    %p143 = scmp.eq.s32.totalorder %s16, 1
    %p144 = por %p142, %p143
    %p146 = scmp.ne.s32.totalorder %s129, %s145
    %p147 = scmp.eq.s32.totalorder %s16, 0
    %p148 = por %p146, %p147
    %s149 = ssub.s32 %s17, %s36
    %s150 = ssub.s32 %s18, %s32
    %s151 = sor.u32 %s149, %s150
    %p152 = scmp.eq.s32.totalorder %s151, 0
    %s154 = sadd.s32 %s153, 1
    %s155 = scalar_select %p152, %s153, %s154
    %p158 = pneg %p152
    %p159 = scmp.eq.s32.totalorder %s10, 1
    %p160 = por %p158, %p159
    %p161 = scmp.ne.s32.totalorder %s153, %s156
    %p162 = scmp.eq.s32.totalorder %s10, 0
    %p163 = por %p161, %p162
    %p164 = scmp.ne.s32.totalorder %s153, %s156
    %p165 = scmp.eq.s32.totalorder %s15, 1
    %p166 = por %p164, %p165
    %p167 = scmp.ne.s32.totalorder %s156, %s157
    %p168 = scmp.eq.s32.totalorder %s15, 0
    %p169 = por %p167, %p168
    %p170 = scmp.ne.s32.totalorder %s156, %s157
    %p171 = scmp.eq.s32.totalorder %s16, 1
    %p172 = por %p170, %p171
    %p174 = scmp.ne.s32.totalorder %s157, %s173
    %p175 = scmp.eq.s32.totalorder %s16, 0
    %p176 = por %p174, %p175
    %p177 = scmp.le.s32.totalorder 1, %s10
    %p178 = scmp.lt.s32.totalorder %s10, 3
    %p179 = pnand %p177, %p178
    %p180 = pneg %p179
    // Predicated region
    $region9: #{forward.60} parent=5 // pred_check
      _
    $region10: #{forward.60} parent=5 // pred_check_branch
      %182 = sbr.rel (%p179) target = $region12
    $region11: #{forward.60} parent=5 // pred_region
      %s183 = ssub.s32 %s10, 1
    $region12: #{forward.60} parent=5 // pred_fallthru
      _
    %p184 = scmp.lt.s32.totalorder %s10, 2
    // Predicated region
    $region13: #{forward.60} parent=5 // pred_check
      %p185 = pneg %p184
    $region14: #{forward.60} parent=5 // pred_check_branch
      %187 = sbr.rel (%p185) target = $region16
    $region15: #{forward.60} parent=5 // pred_region
      // Predicated region
      $region17: #{forward.60} parent=15 // pred_check
        %p188 = pneg %p51
      $region18: #{forward.60} parent=15 // pred_check_branch
        %190 = sbr.rel (%p188) target = $region20
      $region19: #{forward.60} parent=15 // pred_region
        %p191 = scmp.lt.s32.totalorder %s17, 1
        %s192 = scalar_select %p191, %s17, 1
        %p193 = scmp.lt.s32.totalorder %s18, 0
        %s194 = scalar_select %p193, %s18, 0
        %s195 = sadd.s32 %s194, %s192
        %s196 = smul.addr %s195, 4
        %s197 = scalar_lea.vmem %s0, %s196
      $region20: #{forward.60} parent=15 // pred_fallthru
        _
      // Predicated region
      $region21: #{forward.60} parent=15 // pred_check
        %p198 = pneg %p79
      $region22: #{forward.60} parent=15 // pred_check_branch
        %200 = sbr.rel (%p198) target = $region24
      $region23: #{forward.60} parent=15 // pred_region
        %p201 = scmp.lt.s32.totalorder %s17, 1
        %s202 = scalar_select %p201, %s17, 1
        %p203 = scmp.lt.s32.totalorder %s19, 0
        %s204 = scalar_select %p203, %s19, 0
        %s205 = smul.addr %s204, 2
        %s206 = smul.addr %s202, 2
        %s207 = sadd.s32 %s205, %s206
        %s208 = smul.addr %s207, 4
        %s209 = scalar_lea.vmem %s1, %s208
      $region24: #{forward.60} parent=15 // pred_fallthru
        _
      // Predicated region
      $region25: #{forward.60} parent=15 // pred_check
        %p210 = pneg %p107
      $region26: #{forward.60} parent=15 // pred_check_branch
        %212 = sbr.rel (%p210) target = $region28
      $region27: #{forward.60} parent=15 // pred_region
        %p213 = scmp.lt.s32.totalorder %s17, 1
        %s214 = scalar_select %p213, %s17, 1
        %p215 = scmp.lt.s32.totalorder %s19, 0
        %s216 = scalar_select %p215, %s19, 0
        %s217 = smul.addr %s216, 2
        %s218 = sadd.s32 1, %s217
        %s219 = smul.addr %s214, 2
        %s220 = sadd.s32 %s218, %s219
        %s221 = smul.addr %s220, 4
        %s222 = scalar_lea.vmem %s2, %s221
      $region28: #{forward.60} parent=15 // pred_fallthru
        _
      // Predicated region
      $region29: #{forward.60} parent=15 // pred_check
        %p223 = pneg %p135
      $region30: #{forward.60} parent=15 // pred_check_branch
        %225 = sbr.rel (%p223) target = $region32
      $region31: #{forward.60} parent=15 // pred_region
        %p226 = scmp.lt.s32.totalorder %s17, 1
        %s227 = scalar_select %p226, %s17, 1
        %p228 = scmp.lt.s32.totalorder %s19, 0
        %s229 = scalar_select %p228, %s19, 0
        %s230 = sadd.s32 %s229, %s227
        %s231 = scalar_lea.vmem %s3, %s230
      $region32: #{forward.60} parent=15 // pred_fallthru
        _
    $region16: #{forward.60} parent=5 // pred_fallthru
      _
    %p232 = scmp.le.s32.totalorder 1, %s10
    %p233 = scmp.lt.s32.totalorder %s10, 3
    %p234 = pnand %p232, %p233
    %p235 = pneg %p234
    // Predicated region
    $region33: #{forward.60} parent=5 // pred_check
      _
    $region34: #{forward.60} parent=5 // pred_check_branch
      %237 = sbr.rel (%p234) target = $region36
    $region35: #{forward.60} parent=5 // pred_region
      %s238 = ssub.s32 %s10, 1
      %p239 = scmp.lt.s32.totalorder %s20, 1
      %s240 = scalar_select %p239, %s20, 1
      %p241 = scmp.lt.s32.totalorder %s21, 0
      %s242 = scalar_select %p241, %s21, 0
      %s243 = sadd.s32 %s242, %s240
      %s244 = smul.addr %s243, 4
      %s245 = scalar_lea.vmem %s0, %s244
      %p246 = pneg %p57
      %p247 = pneg %p54
      %p248 = scmp.lt.s32.totalorder %s20, 1
      %s249 = scalar_select %p248, %s20, 1
      %p250 = scmp.lt.s32.totalorder %s22, 0
      %s251 = scalar_select %p250, %s22, 0
      %s252 = smul.addr %s251, 2
      %s253 = smul.addr %s249, 2
      %s254 = sadd.s32 %s252, %s253
      %s255 = smul.addr %s254, 4
      %s256 = scalar_lea.vmem %s1, %s255
      %p257 = pneg %p85
      %p258 = pneg %p82
      %p259 = scmp.lt.s32.totalorder %s20, 1
      %s260 = scalar_select %p259, %s20, 1
      %p261 = scmp.lt.s32.totalorder %s22, 0
      %s262 = scalar_select %p261, %s22, 0
      %s263 = smul.addr %s262, 2
      %s264 = sadd.s32 1, %s263
      %s265 = smul.addr %s260, 2
      %s266 = sadd.s32 %s264, %s265
      %s267 = smul.addr %s266, 4
      %s268 = scalar_lea.vmem %s2, %s267
      %p269 = pneg %p113
      %p270 = pneg %p110
      %p271 = scmp.lt.s32.totalorder %s20, 1
      %s272 = scalar_select %p271, %s20, 1
      %p273 = scmp.lt.s32.totalorder %s22, 0
      %s274 = scalar_select %p273, %s22, 0
      %s275 = sadd.s32 %s274, %s272
      %s276 = scalar_lea.vmem %s3, %s275
      %p277 = pneg %p141
      %p278 = pneg %p138
      %p279 = pneg %p169
      %p280 = pneg %p166
      %p281 = scmp.lt.s32.totalorder %s20, 1
      %s282 = scalar_select %p281, %s20, 1
      %p283 = scmp.lt.s32.totalorder %s21, 0
      %s284 = scalar_select %p283, %s21, 0
      %s285 = sadd.s32 %s284, %s282
      %s286 = smul.addr %s285, 4
      %s287 = scalar_lea.vmem %s4, %s286
      %p288 = scmp.lt.s32.totalorder %s20, 1
      %s289 = scalar_select %p288, %s20, 1
      %p290 = scmp.lt.s32.totalorder %s21, 0
      %s291 = scalar_select %p290, %s21, 0
      %s292 = sadd.s32 %s291, %s289
      %s293 = smul.addr %s292, 4
      %s294 = scalar_lea.vmem %s0, %s293
      %p295 = scmp.lt.s32.totalorder %s20, 1
      %s296 = scalar_select %p295, %s20, 1
      %p297 = scmp.lt.s32.totalorder %s22, 0
      %s298 = scalar_select %p297, %s22, 0
      %s299 = smul.addr %s298, 2
      %s300 = smul.addr %s296, 2
      %s301 = sadd.s32 %s299, %s300
      %s302 = smul.addr %s301, 4
      %s303 = scalar_lea.vmem %s1, %s302
      %p304 = scmp.lt.s32.totalorder %s20, 1
      %s305 = scalar_select %p304, %s20, 1
      %p306 = scmp.lt.s32.totalorder %s22, 0
      %s307 = scalar_select %p306, %s22, 0
      %s308 = smul.addr %s307, 2
      %s309 = sadd.s32 1, %s308
      %s310 = smul.addr %s305, 2
      %s311 = sadd.s32 %s309, %s310
      %s312 = smul.addr %s311, 4
      %s313 = scalar_lea.vmem %s2, %s312
      %p314 = scmp.lt.s32.totalorder %s20, 1
      %s315 = scalar_select %p314, %s20, 1
      %p316 = scmp.lt.s32.totalorder %s22, 0
      %s317 = scalar_select %p316, %s22, 0
      %s318 = sadd.s32 %s317, %s315
      %s319 = scalar_lea.vmem %s3, %s318
      %p320 = scmp.lt.s32.totalorder %s20, 1
      %s321 = scalar_select %p320, %s20, 1
      %p322 = scmp.lt.s32.totalorder %s21, 0
      %s323 = scalar_select %p322, %s21, 0
      %s324 = sadd.s32 %s323, %s321
      %s325 = smul.addr %s324, 4
      %s326 = scalar_lea.vmem %s4, %s325
      %p328 = scmp.eq.s32.totalorder %s22, 0
      // Predicated region
      $region37: #{forward.60} parent=35 // pred_check
        %p329 = pneg %p328
      $region38: #{forward.60} parent=35 // pred_check_branch
        %331 = sbr.rel (%p329) target = $region40
      $region39: #{forward.60} parent=35 // pred_region
        %vm332 = vcmask 7168
        %333 = vst.msk [vmem:[#allocation2] sm:$0xff] %vm332, -1e+30
        %334 = vst.msk [vmem:[#allocation2 + $0x8] sm:$0xff] %vm332, -1e+30
        %335 = vst.msk [vmem:[#allocation2 + $0x10] sm:$0xff] %vm332, -1e+30
        %336 = vst.msk [vmem:[#allocation2 + $0x18] sm:$0xff] %vm332, -1e+30
        %337 = vst.msk [vmem:[#allocation3] sm:$0xff] %vm332, 0.0
        %338 = vst.msk [vmem:[#allocation3 + $0x8] sm:$0xff] %vm332, 0.0
        %339 = vst.msk [vmem:[#allocation3 + $0x10] sm:$0xff] %vm332, 0.0
        %340 = vst.msk [vmem:[#allocation3 + $0x18] sm:$0xff] %vm332, 0.0
        %vm341 = vcmask 261120
        %342 = vst.msk [vmem:[#allocation4] sm:$0xff] %vm341, 0.0
        %343 = vst.msk [vmem:[#allocation4 + $0x8] sm:$0xff] %vm341, 0.0
        %344 = vst.msk [vmem:[#allocation4 + $0x10] sm:$0xff] %vm341, 0.0
        %345 = vst.msk [vmem:[#allocation4 + $0x18] sm:$0xff] %vm341, 0.0
      $region40: #{forward.60} parent=35 // pred_fallthru
        _
      %v346 = vld [vmem:[%s294] sm:$0xf]
      %v347 = vunpack.c.l.bf16 %v346
      %v348 = vmul.f32 %v347, 0.17677669
      %v349 = vpack.c.bf16 %v348, %v348
      %v350 = vld [vmem:[%s303] sm:$0xf]
      %v351 = vld [vmem:[%s313] sm:$0xf]
      %v352 = vld [vmem:[%s319] sm:$0x1]
      %v353 = vmul.f32 %v352, -1e+09
      %v355 = vperm.slane %v353, 0
      %vm357 = vcmask 261120
      %v359 = vsel %vm357, %v349, 0
      %v362 = vsel %vm357, %v350, 0
      %364 = vmatpush.bf16.xpose.msra.mxu0 0
      %365 = vmatpush.bf16.xpose.msra.mxu0 0
      %366 = vmatpush.bf16.xpose.msra.mxu0 0
      %367 = vmatpush.bf16.xpose.msra.mxu0 0
      %368 = vmatpush.bf16.xpose.msra.mxu0 0
      %369 = vmatpush.bf16.xpose.msra.mxu0 0
      %370 = vmatpush.bf16.xpose.msra.mxu0 0
      %371 = vmatpush.bf16.xpose.msra.mxu0 %v362
      %372 = vmatmul.bf16.gmra.mxu0 %v359
      %v373 = vpop.f32.mrf.mxu0
      %v374 = vadd.f32 %v355, %v373
      %v375 = vpop.f32.mrf.mxu0
      %376 = vdwg.mxu0
      %v377 = vld [vmem:[#allocation2] sm:$0xff]
      %vm378 = vcmask 64512
      %v379 = vsel %vm378, %v374, -inf
      %380 = vmax.xlane.f32.xlu0 %v379
      %v381 = vpop.xlane.xlu0 %380
      %v382 = vmax.f32 %v377, %v381
      %v383 = vsub.f32 %v377, %v382
      %v384 = vmul.f32 %v383, 1.442695
      %v385 = vpow.pop %v384
      %387 = vset.pattern.permute.xlu0 0
      %388 = vperm.xlu0 %387, %v382
      %v389 = vpop.permute.xlu0 %388
      %v391 = vsub.f32 %v374, %v389
      %v392 = vmul.f32 %v391, 1.442695
      %v393 = vpow.pop %v392
      %v394 = vld [vmem:[#allocation3] sm:$0xff]
      %v395 = vmul.f32 %v385, %v394
      %v396 = vsel %vm378, %v393, 0.0
      %397 = vadd.xlane.f32.xlu0 %v396
      %v398 = vpop.xlane.xlu0 %397
      %v399 = vadd.f32 %v395, %v398
      %vm400 = vcmask 7168
      %401 = vst.msk [vmem:[#allocation3] sm:$0xff] %vm400, %v399
      %v402 = vld [vmem:[#allocation4] sm:$0xff]
      %404 = vset.pattern.permute.xlu0 0
      %405 = vperm.xlu0 %404, %v385
      %v406 = vpop.permute.xlu0 %405
      %v408 = vmul.f32 %v406, %v402
      %v409 = vpack.c.bf16 %v393, %v393
      %v411 = vsel %vm378, %v409, 0
      %vm413 = vcmask 1043456
      %v415 = vsel %vm413, %v351, 0
      %417 = vmatpush.bf16.msra.mxu0 0
      %418 = vmatpush.bf16.msra.mxu0 0
      %419 = vmatpush.bf16.msra.mxu0 0
      %420 = vmatpush.bf16.msra.mxu0 0
      %421 = vmatpush.bf16.msra.mxu0 0
      %422 = vmatpush.bf16.msra.mxu0 0
      %423 = vmatpush.bf16.msra.mxu0 0
      %424 = vmatpush.bf16.msra.mxu0 %v415
      %425 = vmatmul.bf16.gmra.mxu0 %v411
      %v426 = vpop.f32.mrf.mxu0
      %v427 = vadd.f32 0.0, %v426
      %v428 = vpop.f32.mrf.mxu0
      %429 = vdwg.mxu0
      %v430 = vadd.f32 %v408, %v427
      %431 = vst.msk [vmem:[#allocation4] sm:$0xff] %vm357, %v430
      %432 = vst.msk [vmem:[#allocation2] sm:$0xff] %vm400, %v382
      %v434 = vunpack.c.l.b16 %v349
      %v435 = vpack.c.b16 %v434, %v434
      %436 = vrot.lane.b32.xlu0 %v435, 96
      %v437 = vpop.permute.xlu0 %436
      %v439 = vunpack.c.l.b16 %v350
      %v440 = vpack.c.b16 %v439, %v439
      %441 = vrot.lane.b32.xlu0 %v440, 96
      %v442 = vpop.permute.xlu0 %441
      %v444 = vsel %vm357, %v437, 0
      %v447 = vsel %vm357, %v442, 0
      %449 = vmatpush.bf16.xpose.msra.mxu0 0
      %450 = vmatpush.bf16.xpose.msra.mxu0 0
      %451 = vmatpush.bf16.xpose.msra.mxu0 0
      %452 = vmatpush.bf16.xpose.msra.mxu0 0
      %453 = vmatpush.bf16.xpose.msra.mxu0 0
      %454 = vmatpush.bf16.xpose.msra.mxu0 0
      %455 = vmatpush.bf16.xpose.msra.mxu0 0
      %456 = vmatpush.bf16.xpose.msra.mxu0 %v447
      %457 = vmatmul.bf16.gmra.mxu0 %v444
      %v458 = vpop.f32.mrf.mxu0
      %v459 = vadd.f32 %v355, %v458
      %v460 = vpop.f32.mrf.mxu0
      %461 = vdwg.mxu0
      %s462 = scalar_lea.vmem [#allocation2], 8
      %v463 = vld [vmem:[%s462] sm:$0xff]
      %v464 = vsel %vm378, %v459, -inf
      %465 = vmax.xlane.f32.xlu0 %v464
      %v466 = vpop.xlane.xlu0 %465
      %v467 = vmax.f32 %v463, %v466
      %v468 = vsub.f32 %v463, %v467
      %v469 = vmul.f32 %v468, 1.442695
      %v470 = vpow.pop %v469
      %472 = vset.pattern.permute.xlu0 0
      %473 = vperm.xlu0 %472, %v467
      %v474 = vpop.permute.xlu0 %473
      %v476 = vsub.f32 %v459, %v474
      %v477 = vmul.f32 %v476, 1.442695
      %v478 = vpow.pop %v477
      %s479 = scalar_lea.vmem [#allocation3], 8
      %v480 = vld [vmem:[%s479] sm:$0xff]
      %v481 = vmul.f32 %v470, %v480
      %v482 = vsel %vm378, %v478, 0.0
      %483 = vadd.xlane.f32.xlu0 %v482
      %v484 = vpop.xlane.xlu0 %483
      %v485 = vadd.f32 %v481, %v484
      %486 = vst.msk [vmem:[%s479] sm:$0xff] %vm400, %v485
      %s487 = scalar_lea.vmem [#allocation4], 8
      %v488 = vld [vmem:[%s487] sm:$0xff]
      %490 = vset.pattern.permute.xlu0 0
      %491 = vperm.xlu0 %490, %v470
      %v492 = vpop.permute.xlu0 %491
      %v494 = vmul.f32 %v492, %v488
      %v495 = vpack.c.bf16 %v478, %v478
      %v497 = vunpack.c.l.b16 %v351
      %v498 = vpack.c.b16 %v497, %v497
      %499 = vrot.lane.b32.xlu0 %v498, 96
      %v500 = vpop.permute.xlu0 %499
      %v502 = vsel %vm378, %v495, 0
      %v505 = vsel %vm413, %v500, 0
      %507 = vmatpush.bf16.msra.mxu0 0
      %508 = vmatpush.bf16.msra.mxu0 0
      %509 = vmatpush.bf16.msra.mxu0 0
      %510 = vmatpush.bf16.msra.mxu0 0
      %511 = vmatpush.bf16.msra.mxu0 0
      %512 = vmatpush.bf16.msra.mxu0 0
      %513 = vmatpush.bf16.msra.mxu0 0
      %514 = vmatpush.bf16.msra.mxu0 %v505
      %515 = vmatmul.bf16.gmra.mxu0 %v502
      %v516 = vpop.f32.mrf.mxu0
      %v517 = vadd.f32 0.0, %v516
      %v518 = vpop.f32.mrf.mxu0
      %519 = vdwg.mxu0
      %v520 = vadd.f32 %v494, %v517
      %521 = vst.msk [vmem:[%s487] sm:$0xff] %vm357, %v520
      %522 = vst.msk [vmem:[%s462] sm:$0xff] %vm400, %v467
      %523 = vrot.lane.b32.xlu0 %v435, 64
      %v524 = vpop.permute.xlu0 %523
      %525 = vrot.lane.b32.xlu0 %v440, 64
      %v526 = vpop.permute.xlu0 %525
      %v528 = vsel %vm357, %v524, 0
      %v531 = vsel %vm357, %v526, 0
      %533 = vmatpush.bf16.xpose.msra.mxu0 0
      %534 = vmatpush.bf16.xpose.msra.mxu0 0
      %535 = vmatpush.bf16.xpose.msra.mxu0 0
      %536 = vmatpush.bf16.xpose.msra.mxu0 0
      %537 = vmatpush.bf16.xpose.msra.mxu0 0
      %538 = vmatpush.bf16.xpose.msra.mxu0 0
      %539 = vmatpush.bf16.xpose.msra.mxu0 0
      %540 = vmatpush.bf16.xpose.msra.mxu0 %v531
      %541 = vmatmul.bf16.gmra.mxu0 %v528
      %v542 = vpop.f32.mrf.mxu0
      %v543 = vadd.f32 %v355, %v542
      %v544 = vpop.f32.mrf.mxu0
      %545 = vdwg.mxu0
      %s546 = scalar_lea.vmem [#allocation2], 16
      %v547 = vld [vmem:[%s546] sm:$0xff]
      %v548 = vsel %vm378, %v543, -inf
      %549 = vmax.xlane.f32.xlu0 %v548
      %v550 = vpop.xlane.xlu0 %549
      %v551 = vmax.f32 %v547, %v550
      %v552 = vsub.f32 %v547, %v551
      %v553 = vmul.f32 %v552, 1.442695
      %v554 = vpow.pop %v553
      %556 = vset.pattern.permute.xlu0 0
      %557 = vperm.xlu0 %556, %v551
      %v558 = vpop.permute.xlu0 %557
      %v560 = vsub.f32 %v543, %v558
      %v561 = vmul.f32 %v560, 1.442695
      %v562 = vpow.pop %v561
      %s563 = scalar_lea.vmem [#allocation3], 16
      %v564 = vld [vmem:[%s563] sm:$0xff]
      %v565 = vmul.f32 %v554, %v564
      %v566 = vsel %vm378, %v562, 0.0
      %567 = vadd.xlane.f32.xlu0 %v566
      %v568 = vpop.xlane.xlu0 %567
      %v569 = vadd.f32 %v565, %v568
      %570 = vst.msk [vmem:[%s563] sm:$0xff] %vm400, %v569
      %s571 = scalar_lea.vmem [#allocation4], 16
      %v572 = vld [vmem:[%s571] sm:$0xff]
      %574 = vset.pattern.permute.xlu0 0
      %575 = vperm.xlu0 %574, %v554
      %v576 = vpop.permute.xlu0 %575
      %v578 = vmul.f32 %v576, %v572
      %v579 = vpack.c.bf16 %v562, %v562
      %580 = vrot.lane.b32.xlu0 %v498, 64
      %v581 = vpop.permute.xlu0 %580
      %v583 = vsel %vm378, %v579, 0
      %v586 = vsel %vm413, %v581, 0
      %588 = vmatpush.bf16.msra.mxu0 0
      %589 = vmatpush.bf16.msra.mxu0 0
      %590 = vmatpush.bf16.msra.mxu0 0
      %591 = vmatpush.bf16.msra.mxu0 0
      %592 = vmatpush.bf16.msra.mxu0 0
      %593 = vmatpush.bf16.msra.mxu0 0
      %594 = vmatpush.bf16.msra.mxu0 0
      %595 = vmatpush.bf16.msra.mxu0 %v586
      %596 = vmatmul.bf16.gmra.mxu0 %v583
      %v597 = vpop.f32.mrf.mxu0
      %v598 = vadd.f32 0.0, %v597
      %v599 = vpop.f32.mrf.mxu0
      %600 = vdwg.mxu0
      %v601 = vadd.f32 %v578, %v598
      %602 = vst.msk [vmem:[%s571] sm:$0xff] %vm357, %v601
      %603 = vst.msk [vmem:[%s546] sm:$0xff] %vm400, %v551
      %604 = vrot.lane.b32.xlu0 %v435, 32
      %v605 = vpop.permute.xlu0 %604
      %606 = vrot.lane.b32.xlu0 %v440, 32
      %v607 = vpop.permute.xlu0 %606
      %v609 = vsel %vm357, %v605, 0
      %v612 = vsel %vm357, %v607, 0
      %614 = vmatpush.bf16.xpose.msra.mxu0 0
      %615 = vmatpush.bf16.xpose.msra.mxu0 0
      %616 = vmatpush.bf16.xpose.msra.mxu0 0
      %617 = vmatpush.bf16.xpose.msra.mxu0 0
      %618 = vmatpush.bf16.xpose.msra.mxu0 0
      %619 = vmatpush.bf16.xpose.msra.mxu0 0
      %620 = vmatpush.bf16.xpose.msra.mxu0 0
      %621 = vmatpush.bf16.xpose.msra.mxu0 %v612
      %622 = vmatmul.bf16.gmra.mxu0 %v609
      %v623 = vpop.f32.mrf.mxu0
      %v624 = vadd.f32 %v355, %v623
      %v625 = vpop.f32.mrf.mxu0
      %626 = vdwg.mxu0
      %s627 = scalar_lea.vmem [#allocation2], 24
      %v628 = vld [vmem:[%s627] sm:$0xff]
      %v629 = vsel %vm378, %v624, -inf
      %630 = vmax.xlane.f32.xlu0 %v629
      %v631 = vpop.xlane.xlu0 %630
      %v632 = vmax.f32 %v628, %v631
      %v633 = vsub.f32 %v628, %v632
      %v634 = vmul.f32 %v633, 1.442695
      %v635 = vpow.pop %v634
      %637 = vset.pattern.permute.xlu0 0
      %638 = vperm.xlu0 %637, %v632
      %v639 = vpop.permute.xlu0 %638
      %v641 = vsub.f32 %v624, %v639
      %v642 = vmul.f32 %v641, 1.442695
      %v643 = vpow.pop %v642
      %s644 = scalar_lea.vmem [#allocation3], 24
      %v645 = vld [vmem:[%s644] sm:$0xff]
      %v646 = vmul.f32 %v635, %v645
      %v647 = vsel %vm378, %v643, 0.0
      %648 = vadd.xlane.f32.xlu0 %v647
      %v649 = vpop.xlane.xlu0 %648
      %v650 = vadd.f32 %v646, %v649
      %651 = vst.msk [vmem:[%s644] sm:$0xff] %vm400, %v650
      %s652 = scalar_lea.vmem [#allocation4], 24
      %v653 = vld [vmem:[%s652] sm:$0xff]
      %655 = vset.pattern.permute.xlu0 0
      %656 = vperm.xlu0 %655, %v635
      %v657 = vpop.permute.xlu0 %656
      %v659 = vmul.f32 %v657, %v653
      %v660 = vpack.c.bf16 %v643, %v643
      %661 = vrot.lane.b32.xlu0 %v498, 32
      %v662 = vpop.permute.xlu0 %661
      %v664 = vsel %vm378, %v660, 0
      %v667 = vsel %vm413, %v662, 0
      %669 = vmatpush.bf16.msra.mxu0 0
      %670 = vmatpush.bf16.msra.mxu0 0
      %671 = vmatpush.bf16.msra.mxu0 0
      %672 = vmatpush.bf16.msra.mxu0 0
      %673 = vmatpush.bf16.msra.mxu0 0
      %674 = vmatpush.bf16.msra.mxu0 0
      %675 = vmatpush.bf16.msra.mxu0 0
      %676 = vmatpush.bf16.msra.mxu0 %v667
      %677 = vmatmul.bf16.gmra.mxu0 %v664
      %v678 = vpop.f32.mrf.mxu0
      %v679 = vadd.f32 0.0, %v678
      %v680 = vpop.f32.mrf.mxu0
      %681 = vdwg.mxu0
      %v682 = vadd.f32 %v659, %v679
      %683 = vst.msk [vmem:[%s652] sm:$0xff] %vm357, %v682
      %684 = vst.msk [vmem:[%s627] sm:$0xff] %vm400, %v632
      // Predicated region
      $region41: #{forward.60} parent=35 // pred_check
        %p685 = pneg %p328
      $region42: #{forward.60} parent=35 // pred_check_branch
        %687 = sbr.rel (%p685) target = $region44
      $region43: #{forward.60} parent=35 // pred_region
        %v688 = vld [vmem:[#allocation4] sm:$0xff]
        %v689 = vld [vmem:[#allocation3] sm:$0xff]
        %v690 = vrcp.pop %v689
        %692 = vset.pattern.permute.xlu0 0
        %693 = vperm.xlu0 %692, %v690
        %v694 = vpop.permute.xlu0 %693
        %v696 = vmul.f32 %v688, %v694
        %v697 = vld [vmem:[%s487] sm:$0xff]
        %v698 = vld [vmem:[%s479] sm:$0xff]
        %v699 = vrcp.pop %v698
        %701 = vset.pattern.permute.xlu0 0
        %702 = vperm.xlu0 %701, %v699
        %v703 = vpop.permute.xlu0 %702
        %v705 = vmul.f32 %v697, %v703
        %v706 = vld [vmem:[%s571] sm:$0xff]
        %v707 = vld [vmem:[%s563] sm:$0xff]
        %v708 = vrcp.pop %v707
        %710 = vset.pattern.permute.xlu0 0
        %711 = vperm.xlu0 %710, %v708
        %v712 = vpop.permute.xlu0 %711
        %v714 = vmul.f32 %v706, %v712
        %v715 = vld [vmem:[%s652] sm:$0xff]
        %v716 = vld [vmem:[%s644] sm:$0xff]
        %v717 = vrcp.pop %v716
        %719 = vset.pattern.permute.xlu0 0
        %720 = vperm.xlu0 %719, %v717
        %v721 = vpop.permute.xlu0 %720
        %v723 = vmul.f32 %v715, %v721
        %725 = vrot.lane.b32.xlu0 %v705, 32
        %v726 = vpop.permute.xlu0 %725
        %729 = vrot.lane.b32.xlu0 %v714, 64
        %v730 = vpop.permute.xlu0 %729
        %733 = vrot.lane.b32.xlu0 %v723, 96
        %v734 = vpop.permute.xlu0 %733
        %v736 = vsel %vm357, %v696, %v726
        %vm737 = vcmask 523264
        %v738 = vsel %vm737, %v736, %v730
        %vm739 = vcmask 785408
        %v740 = vsel %vm739, %v738, %v734
        %v741 = vpack.c.bf16 %v740, %v740
        %742 = vst [vmem:[%s326] sm:$0xf] %v741
      $region44: #{forward.60} parent=35 // pred_fallthru
        _
      %p743 = scmp.lt.s32.totalorder %s20, 1
      %s744 = scalar_select %p743, %s20, 1
      %p745 = scmp.lt.s32.totalorder %s21, 0
      %s746 = scalar_select %p745, %s21, 0
      %s747 = sadd.s32 %s746, %s744
      %s748 = smul.addr %s747, 4
      %s749 = scalar_lea.vmem %s4, %s748
      // Predicated region
      $region45: #{forward.60} parent=35 // pred_check
        %p750 = pneg %p166
      $region46: #{forward.60} parent=35 // pred_check_branch
        %752 = sbr.rel (%p750) target = $region48
      $region47: #{forward.60} parent=35 // pred_region
        _
      $region48: #{forward.60} parent=35 // pred_fallthru
        _
    $region36: #{forward.60} parent=5 // pred_fallthru
      _
    %p753 = scmp.le.s32.totalorder 2, %s10
    // Predicated region
    $region49: #{forward.60} parent=5 // pred_check
      %p754 = pneg %p753
    $region50: #{forward.60} parent=5 // pred_check_branch
      %756 = sbr.rel (%p754) target = $region52
    $region51: #{forward.60} parent=5 // pred_region
      %s757 = ssub.s32 %s10, 2
      // Predicated region
      $region53: #{forward.60} parent=51 // pred_check
        %p758 = pneg %p172
      $region54: #{forward.60} parent=51 // pred_check_branch
        %760 = sbr.rel (%p758) target = $region56
      $region55: #{forward.60} parent=51 // pred_region
        %p761 = scmp.lt.s32.totalorder %s23, 1
        %s762 = scalar_select %p761, %s23, 1
        %p763 = scmp.lt.s32.totalorder %s24, 0
        %s764 = scalar_select %p763, %s24, 0
        %s765 = sadd.s32 %s764, %s762
        %s766 = smul.addr %s765, 4
        %s767 = scalar_lea.vmem %s4, %s766
      $region56: #{forward.60} parent=51 // pred_fallthru
        _
    $region52: #{forward.60} parent=5 // pred_fallthru
      _
  $region6: #{forward.60} parent=0 // loop_footer
    %s14 = sadd.s32 1, %s10
  $region7: #{forward.60} parent=0 // loop_footer_branch
    %9 = sbr.rel target = $region3
  $region8: #{forward.60} parent=0 // loop_exit
    _

// kernel: forward.79
$region0: #{forward.79}
  #allocation0 [shape = 'u32[]', space=smem, size = 0x4, offset = 0x4, fixed_abs, tag = 'smem constant byte address 0x4 - core index']
  #allocation1 [shape = 'u32[72,128]{1,0:T(1,128)}', space=vmem, size = 0x9000, scoped, tag = 'internal scratch']
  #allocation2 [shape = 'f32[16,256]{1,0:T(8,128)}', space=vmem, size = 0x4000, scoped, tag = 'scratch operand']
  %s0 = inlined_call_operand.vmem [shape: bf16[16,128], index: 0, kind: input, shape index: {}]
  %s1 = inlined_call_operand.hbm [shape: bf16[128,256], index: 1, kind: input, shape index: {}]
  %s2 = inlined_call_operand.hbm [shape: f32[16,256], index: 2, kind: output, shape index: {}]
  %s3 = sld [smem:[#allocation0]]
  $region30: #{forward.79} parent=0
    _
  %s5 = ssub.s32 1, %s3
  %s6 = scalar_select 0, %s5, %s3
  $region1: #{forward.79} parent=0
    #allocation3 [shape = 'u8[65536]{0}', space=vmem, size = 0x10000, scoped, tag = 'input window, operand 1, single buffered']
    #allocation4 [shape = 's32[1]{0}', space=sflag, size = 0x4, scoped, tag = 'scoped memory for forward.79']
    #allocation5 [shape = 's32[1]{0}', space=sflag, size = 0x4, scoped, tag = 'scoped memory for forward.79']
    #allocation6 [shape = 'u8[16384]{0}', space=vmem, size = 0x4000, scoped, tag = 'output window, operand 0, single buffered']
    %7 = vsyncpa [#allocation4], 0
    %8 = vsyncpa [#allocation5], 0
    // Predicated region
    $region2: #{forward.79} parent=1 // pred_check
      _
    $region3: #{forward.79} parent=1 // pred_check_branch
      %10 = sbr.rel (0) target = $region5
    $region4: #{forward.79} parent=1 // pred_region
      _
    $region5: #{forward.79} parent=1 // pred_fallthru
      _
    // Predicated region
    $region6: #{forward.79} parent=1 // pred_check
      _
    $region7: #{forward.79} parent=1 // pred_check_branch
      %12 = sbr.rel (0) target = $region9
    $region8: #{forward.79} parent=1 // pred_region
      %14 = vsyncadd [#allocation4], 0
      %s15 = sshll.u32 %s1, 4
      %s16 = int_to_ptr.hbm [resolvable:$true] %s15
      %s17 = sshll.u32 [#allocation3], 4
      %s18 = int_to_ptr.vmem [resolvable:$true] %s17
      %23 = dma.hbm_to_vmem [thread:$0]  %s16, 2048, %s18, [#allocation4], 128, 128, 8
    $region9: #{forward.79} parent=1 // pred_fallthru
      _
    // Predicated region
    $region10: #{forward.79} parent=1 // pred_check
      _
    $region11: #{forward.79} parent=1 // pred_check_branch
      %25 = sbr.rel (0) target = $region13
    $region12: #{forward.79} parent=1 // pred_region
      %27 = dma.done [#allocation4], 2048
    $region13: #{forward.79} parent=1 // pred_fallthru
      _
    %p28 = scmp.eq.s32.totalorder 0, 0
    // Predicated region
    $region14: #{forward.79} parent=1 // pred_check
      %p29 = pneg %p28
    $region15: #{forward.79} parent=1 // pred_check_branch
      %31 = sbr.rel (%p29) target = $region17
    $region16: #{forward.79} parent=1 // pred_region
      %32 = vst [vmem:[#allocation2] sm:$0xff] 0.0
      %33 = vst [vmem:[#allocation2 + $0x8] sm:$0xff] 0.0
      %34 = vst [vmem:[#allocation2 + $0x10] sm:$0xff] 0.0
      %35 = vst [vmem:[#allocation2 + $0x18] sm:$0xff] 0.0
    $region17: #{forward.79} parent=1 // pred_fallthru
      _
    %v36 = vld [vmem:[#allocation2] sm:$0xff]
    %v37 = vld [vmem:[#allocation2 + $0x8] sm:$0xff]
    %v38 = vld [vmem:[#allocation2 + $0x10] sm:$0xff]
    %v39 = vld [vmem:[#allocation2 + $0x18] sm:$0xff]
    %v40 = vld [vmem:[%s0] sm:$0xf]
    %v41 = vld [vmem:[%s0 + $0x4] sm:$0xf]
    %v42 = vld [vmem:[#allocation3] sm:$0xff]
    %v43 = vld [vmem:[#allocation3 + $0x8] sm:$0xff]
    %v44 = vld [vmem:[#allocation3 + $0x10] sm:$0xff]
    %v45 = vld [vmem:[#allocation3 + $0x18] sm:$0xff]
    %v46 = vld [vmem:[#allocation3 + $0x20] sm:$0xff]
    %v47 = vld [vmem:[#allocation3 + $0x28] sm:$0xff]
    %v48 = vld [vmem:[#allocation3 + $0x30] sm:$0xff]
    %v49 = vld [vmem:[#allocation3 + $0x38] sm:$0xff]
    %v50 = vld [vmem:[#allocation3 + $0x40] sm:$0xff]
    %v51 = vld [vmem:[#allocation3 + $0x48] sm:$0xff]
    %v52 = vld [vmem:[#allocation3 + $0x50] sm:$0xff]
    %v53 = vld [vmem:[#allocation3 + $0x58] sm:$0xff]
    %v54 = vld [vmem:[#allocation3 + $0x60] sm:$0xff]
    %v55 = vld [vmem:[#allocation3 + $0x68] sm:$0xff]
    %v56 = vld [vmem:[#allocation3 + $0x70] sm:$0xff]
    %v57 = vld [vmem:[#allocation3 + $0x78] sm:$0xff]
    %v60 = vunpack.c.l.b16 %v40
    %v61 = vunpack.c.l.b16 %v41
    %v62 = vpack.c.b16 %v61, %v60
    %v80 = vunpack.c.l.b16 %v42
    %v81 = vunpack.c.h.b16 %v42
    %v82 = vunpack.c.l.b16 %v43
    %v83 = vunpack.c.h.b16 %v43
    %v84 = vunpack.c.l.b16 %v44
    %v85 = vunpack.c.h.b16 %v44
    %v86 = vunpack.c.l.b16 %v45
    %v87 = vunpack.c.h.b16 %v45
    %v88 = vunpack.c.l.b16 %v46
    %v89 = vunpack.c.h.b16 %v46
    %v90 = vunpack.c.l.b16 %v47
    %v91 = vunpack.c.h.b16 %v47
    %v92 = vunpack.c.l.b16 %v48
    %v93 = vunpack.c.h.b16 %v48
    %v94 = vunpack.c.l.b16 %v49
    %v95 = vunpack.c.h.b16 %v49
    %v96 = vunpack.c.l.b16 %v50
    %v97 = vunpack.c.h.b16 %v50
    %v98 = vunpack.c.l.b16 %v51
    %v99 = vunpack.c.h.b16 %v51
    %v100 = vunpack.c.l.b16 %v52
    %v101 = vunpack.c.h.b16 %v52
    %v102 = vunpack.c.l.b16 %v53
    %v103 = vunpack.c.h.b16 %v53
    %v104 = vunpack.c.l.b16 %v54
    %v105 = vunpack.c.h.b16 %v54
    %v106 = vunpack.c.l.b16 %v55
    %v107 = vunpack.c.h.b16 %v55
    %v108 = vunpack.c.l.b16 %v56
    %v109 = vunpack.c.h.b16 %v56
    %v110 = vunpack.c.l.b16 %v57
    %v111 = vunpack.c.h.b16 %v57
    %v112 = vpack.c.b16 %v82, %v80
    %v113 = vpack.c.b16 %v83, %v81
    %v114 = vpack.c.b16 %v86, %v84
    %v115 = vpack.c.b16 %v87, %v85
    %v116 = vpack.c.b16 %v90, %v88
    %v117 = vpack.c.b16 %v91, %v89
    %v118 = vpack.c.b16 %v94, %v92
    %v119 = vpack.c.b16 %v95, %v93
    %v120 = vpack.c.b16 %v98, %v96
    %v121 = vpack.c.b16 %v99, %v97
    %v122 = vpack.c.b16 %v102, %v100
    %v123 = vpack.c.b16 %v103, %v101
    %v124 = vpack.c.b16 %v106, %v104
    %v125 = vpack.c.b16 %v107, %v105
    %v126 = vpack.c.b16 %v110, %v108
    %v127 = vpack.c.b16 %v111, %v109
    %144 = vmatpush.bf16.msra.mxu0 %v126
    %145 = vmatpush.bf16.msra.mxu0 %v124
    %146 = vmatpush.bf16.msra.mxu0 %v122
    %147 = vmatpush.bf16.msra.mxu0 %v120
    %148 = vmatpush.bf16.msra.mxu0 %v118
    %149 = vmatpush.bf16.msra.mxu0 %v116
    %150 = vmatpush.bf16.msra.mxu0 %v114
    %151 = vmatpush.bf16.msra.mxu0 %v112
    %152 = vmatmul.bf16.gmra.mxu0 %v62
    %v153 = vpop.f32.mrf.mxu0
    %v154 = vadd.f32 0.0, %v153
    %v155 = vpop.f32.mrf.mxu0
    %v156 = vadd.f32 0.0, %v155
    %157 = vdwg.mxu0
    %158 = vmatpush.bf16.msra.mxu0 %v127
    %159 = vmatpush.bf16.msra.mxu0 %v125
    %160 = vmatpush.bf16.msra.mxu0 %v123
    %161 = vmatpush.bf16.msra.mxu0 %v121
    %162 = vmatpush.bf16.msra.mxu0 %v119
    %163 = vmatpush.bf16.msra.mxu0 %v117
    %164 = vmatpush.bf16.msra.mxu0 %v115
    %165 = vmatpush.bf16.msra.mxu0 %v113
    %166 = vmatmul.bf16.gmra.mxu0 %v62
    %v167 = vpop.f32.mrf.mxu0
    %v168 = vadd.f32 0.0, %v167
    %v169 = vpop.f32.mrf.mxu0
    %v170 = vadd.f32 0.0, %v169
    %171 = vdwg.mxu0
    %v172 = vadd.f32 %v36, %v154
    %v173 = vadd.f32 %v37, %v168
    %v174 = vadd.f32 %v38, %v156
    %v175 = vadd.f32 %v39, %v170
    %176 = vst [vmem:[#allocation2] sm:$0xff] %v172
    %177 = vst [vmem:[#allocation2 + $0x8] sm:$0xff] %v173
    %178 = vst [vmem:[#allocation2 + $0x10] sm:$0xff] %v174
    %179 = vst [vmem:[#allocation2 + $0x18] sm:$0xff] %v175
    // Predicated region
    $region18: #{forward.79} parent=1 // pred_check
      %p180 = pneg %p28
    $region19: #{forward.79} parent=1 // pred_check_branch
      %182 = sbr.rel (%p180) target = $region21
    $region20: #{forward.79} parent=1 // pred_region
      %v183 = vld [vmem:[#allocation2] sm:$0xff]
      %v184 = vld [vmem:[#allocation2 + $0x8] sm:$0xff]
      %v185 = vld [vmem:[#allocation2 + $0x10] sm:$0xff]
      %v186 = vld [vmem:[#allocation2 + $0x18] sm:$0xff]
      %187 = vst [vmem:[#allocation6] sm:$0xff] %v183
      %188 = vst [vmem:[#allocation6 + $0x8] sm:$0xff] %v184
      %189 = vst [vmem:[#allocation6 + $0x10] sm:$0xff] %v185
      %190 = vst [vmem:[#allocation6 + $0x18] sm:$0xff] %v186
    $region21: #{forward.79} parent=1 // pred_fallthru
      _
    // Predicated region
    $region22: #{forward.79} parent=1 // pred_check
      _
    $region23: #{forward.79} parent=1 // pred_check_branch
      %192 = sbr.rel (0) target = $region25
    $region24: #{forward.79} parent=1 // pred_region
      %194 = vsyncadd [#allocation5], 0
      %s195 = sshll.u32 [#allocation6], 4
      %s196 = int_to_ptr.vmem [resolvable:$true] %s195
      %s197 = sshll.u32 %s2, 4
      %s198 = int_to_ptr.hbm [resolvable:$true] %s197
      %203 = dma.vmem_to_hbm [thread:$0]  %s196, 512, %s198, [#allocation5], 256, 256, 16
    $region25: #{forward.79} parent=1 // pred_fallthru
      _
    // Predicated region
    $region26: #{forward.79} parent=1 // pred_check
      _
    $region27: #{forward.79} parent=1 // pred_check_branch
      %205 = sbr.rel (0) target = $region29
    $region28: #{forward.79} parent=1 // pred_region
      %207 = dma.done [#allocation5], 512
    $region29: #{forward.79} parent=1 // pred_fallthru
      _
    %208 = vsyncpa [#allocation4], 1
    %209 = vsyncpa [#allocation5], 1

</llo_original>
